<compile_context>
chip_gen: v6e
topology: v6e:2x2x1
jax: 0.10.0
libtpu: 0.0.40
codegen_flags: <defaults>
</compile_context>

<pallas_src>
import functools

import jax
import jax.numpy as jnp
from jax.experimental import pallas as pl
from jax.experimental.pallas import tpu as pltpu

LANES = 128          # output lanes are padded to a multiple of this (lane-dense matmul/store)
KH = KW = 5
STRIDE = 2
PAD = 2
NEG_SLOPE = 0.2
_PATCH_BYTES_TARGET = 512 * 1024     # per-strip im2row staging budget (bf16 bytes)


def _out_size(n):
    # Conv2d(k=5, s=2, p=2) output size
    return (n + 2 * PAD - KH) // STRIDE + 1


def _folded_size(n):
    # padded-to-even spatial size / 2; equals _out_size(n) + 2 for k=5, s=2, p=2
    npad = n + 2 * PAD
    return (npad + (npad % 2)) // 2


def _round_up(x, m):
    return (x + m - 1) // m * m


def _strip_rows(ho, wo, cin):
    """Output-row strip height: keeps the per-strip im2row patch near _PATCH_BYTES_TARGET and
    even (so every non-final strip starts at an even output row for the parity repack)."""
    k = 25 * cin
    target_m = min(1024, max(64, _PATCH_BYTES_TARGET // (2 * k)))
    th = max(2, (target_m // max(1, wo)) // 2 * 2)
    return min(th, ho)


def _vmem_capacity_bytes():
    try:
        info = pltpu.get_tpu_info()
        for attr in ("vmem_capacity_bytes", "vmem_bytes", "vmem_size_bytes"):
            v = getattr(info, attr, None)
            if v:
                return int(v)
    except Exception:
        pass
    return 64 * 2 ** 20     # conservative (v7x per-TC) fallback


def _padded_vmem_bytes(shape, dtype):
    """VMEM footprint with (sublane, lane) tiling padding applied."""
    itemsize = jnp.dtype(dtype).itemsize
    dims = list(shape) if len(shape) else [1]
    dims[-1] = _round_up(dims[-1], 128)
    if len(dims) >= 2:
        dims[-2] = _round_up(dims[-2], {4: 8, 2: 16, 1: 32}.get(itemsize, 8))
    n = 1
    for d in dims:
        n *= d
    return n * itemsize


# ---------------------------------------------------------------------------
# Wrapper-side packing (pure layout plumbing, no compute hoisted out of the kernel)
# ---------------------------------------------------------------------------
def pack_weight(w_hwio, nout):
    """HWIO (5,5,cin,cout) -> (25*cin, nout) bf16.
    Row order = in-kernel im2row K order: kh-major, kw (0..4) minor, cin innermost.
    (The zero kw=5 tap of the column-parity fold is dropped entirely.)"""
    kh_, kw_, cin, cout = w_hwio.shape
    rows = [w_hwio[kh, kw] for kh in range(kh_) for kw in range(kw_)]
    wp = jnp.concatenate(rows, axis=0)                         # (25*cin, cout)
    wp = jnp.pad(wp, ((0, 0), (0, nout - cout)))               # lane-dense N
    return wp.astype(jnp.bfloat16)                             # bf16 MXU operand (cast once)


def pack_bias(b, nout):
    return jnp.pad(b.astype(jnp.float32), (0, nout - b.shape[0])).reshape(1, nout)


def pack_input(x_nhwc):
    """Zero-pad by 2 and fold BOTH stride-2 parities into the lane axis (lane-dense input):
       out[n, r, c, (2p+e)*cin + ch] = x_pad[n, 2r+p, 2c+e, ch]."""
    n, h, w, c = x_nhwc.shape
    hp, wp = h + 2 * PAD, w + 2 * PAD
    hpe, wpe = hp + hp % 2, wp + wp % 2
    xp = jnp.pad(x_nhwc, ((0, 0), (PAD, PAD + hpe - hp), (PAD, PAD + wpe - wp), (0, 0)))
    x6 = xp.reshape(n, hpe // 2, 2, wpe // 2, 2, c)
    x6 = jnp.transpose(x6, (0, 1, 3, 2, 4, 5))                 # (n, r, c, p, e, ch)
    return x6.reshape(n, hpe // 2, wpe // 2, 4 * c).astype(jnp.bfloat16)


# ---------------------------------------------------------------------------
# Fused Pallas kernel: all 4 layers, one batch element per grid step, strip-tiled M
# ---------------------------------------------------------------------------
def _dis_conv_fused_kernel(*refs, dims, strips):
    """refs = [x, w1, b1, w2, b2, w3, b3, w4, b4, out, phase0, phase1, patch1..patch4].

    dims[l]   = (h, w, cin, cout, nout): layer l input spatial/channel dims, padded out lanes.
    strips[l] = output-row strip height of layer l.

    Layouts:
      x (layer-1 input) : (1, hp2, wp2, 4*cin0) bf16, x[0,r,c,(2p+e)*cin0+ch] = x_pad[2r+p,2c+e,ch]
      phase scratch     : (2, HP2, WP2, 2*C) bf16,   [p,r,c,e*cin+ch]        = x_pad[2r+p,2c+e,ch]
      packed weights    : (25*cin, nout) bf16, kh-major / kw(0..4) / cin-inner row order
      patch scratch     : per-layer (th, wo, 25*cin) bf16 im2row staging (K order = weight rows)
    """
    n_layers = len(dims)
    x_ref = refs[0]
    wrefs = [refs[1 + 2 * l] for l in range(n_layers)]
    brefs = [refs[2 + 2 * l] for l in range(n_layers)]
    o_ref = refs[1 + 2 * n_layers]
    phase = [refs[2 + 2 * n_layers], refs[3 + 2 * n_layers]]
    patch_scr = list(refs[4 + 2 * n_layers:])

    for li, (h, w, cin, cout, nout) in enumerate(dims):
        ho, wo = _out_size(h), _out_size(w)
        last = li + 1 == n_layers
        src = None if li == 0 else phase[(li - 1) % 2]     # this layer's input phase buffer
        dst = None if last else phase[li % 2]              # next layer's input phase buffer
        patch = patch_scr[li]
        w_pk = wrefs[li][...]                              # (25*cin, nout) bf16
        b_pk = brefs[li][...]                              # (1, nout) f32

        if not last:
            # Zero only the 1-element border frame of the next layer's phase window; the
            # interior is fully overwritten by the strip repacks below.
            hp2n, wp2n, c2n = _folded_size(ho), _folded_size(wo), 2 * cout
            zrow = jnp.zeros((2, 1, wp2n, c2n), jnp.bfloat16)
            zcol = jnp.zeros((2, hp2n, 1, c2n), jnp.bfloat16)
            dst[:, 0:1, 0:wp2n, 0:c2n] = zrow
            dst[:, hp2n - 1:hp2n, 0:wp2n, 0:c2n] = zrow
            dst[:, 0:hp2n, 0:1, 0:c2n] = zcol
            dst[:, 0:hp2n, wp2n - 1:wp2n, 0:c2n] = zcol

        th = strips[li]
        for i0 in range(0, ho, th):
            ths = min(th, ho - i0)

            # ---- im2row strip (K = 25*cin): 10 copies of width 2*cin (kw pairs 0/1, 2/3)
            #      plus 5 of width cin (kw=4); all contiguous static slices. ----
            k = 0
            for kh in range(KH):
                dh, p = kh // 2, kh % 2
                r0 = i0 + dh
                for dk in range(3):
                    width = 2 * cin if dk < 2 else cin
                    if li == 0:
                        lane0 = 2 * p * cin                  # read the input ref directly
                        tap = x_ref[0, r0:r0 + ths, dk:dk + wo, lane0:lane0 + width]
                    else:
                        tap = src[p, r0:r0 + ths, dk:dk + wo, 0:width]
                    patch[0:ths, 0:wo, k:k + width] = tap
                    k += width

            # ---- one MXU matmul per strip: bf16 operands, f32 accumulate ----
            lhs = patch[0:ths, 0:wo, 0:k].reshape(ths * wo, k)
            acc = jnp.dot(lhs, w_pk, preferred_element_type=jnp.float32) + b_pk
            y = jnp.where(acc >= 0, acc, NEG_SLOPE * acc)    # LeakyReLU(0.2), f32

            if last:
                o_ref[0, i0 * wo:(i0 + ths) * wo, :] = y     # lane-dense f32 store
            else:
                # ---- repack strip into the next layer's phase buffer:
                #      leading-dim reshapes + 4 block stores (no per-column scatter). ----
                z = y[:, 0:cout].astype(jnp.bfloat16).reshape(ths, wo, cout)
                if wo % 2:
                    z = jnp.concatenate(
                        [z, jnp.zeros((ths, 1, cout), jnp.bfloat16)], axis=1)
                if ths % 2:          # only the final strip of a layer can be odd
                    z = jnp.concatenate(
                        [z, jnp.zeros((1, z.shape[1], cout), jnp.bfloat16)], axis=0)
                h2s, w2s = z.shape[0] // 2, z.shape[1] // 2
                zr = z.reshape(h2s, 2, z.shape[1], cout)     # split row parity (leading dims)
                r0d = 1 + i0 // 2
                for p in range(2):
                    zp = zr[:, p].reshape(h2s, w2s, 2, cout)  # split col parity (last dim fixed)
                    for e in range(2):
                        dst[p, r0d:r0d + h2s, 1:1 + w2s,
                            e * cout:(e + 1) * cout] = zp[:, :, e, :]


# ---------------------------------------------------------------------------
# DisConvModule forward (NCHW in / NCHW out, like the PyTorch module)
# ---------------------------------------------------------------------------
def dis_conv_module_forward(x_nchw, params):
    x = jnp.transpose(x_nchw, (0, 2, 3, 1))                    # NCHW -> NHWC
    n, h, w, cin0 = x.shape
    n_layers = len(params)

    xin = pack_input(x)                                        # (n, hp2_0, wp2_0, 4*cin0) bf16
    _, hp2_0, wp2_0, lanes0 = xin.shape

    dims, strips, flat_wb, wb_specs, patch_shapes = [], [], [], [], []
    hh, ww = h, w
    for (wt, b) in params:
        cin, cout = wt.shape[2], wt.shape[3]
        nout = _round_up(max(cout, LANES), LANES)              # cout > 128 supported (N=256 dot)
        dims.append((hh, ww, cin, cout, nout))
        ho_l, wo_l = _out_size(hh), _out_size(ww)
        th_l = _strip_rows(ho_l, wo_l, cin)
        strips.append(th_l)
        patch_shapes.append((th_l, wo_l, 25 * cin))
        wp_, bp_ = pack_weight(wt, nout), pack_bias(b, nout)
        flat_wb += [wp_, bp_]
        # TODO(synk): pipeline_mode=pl.Buffered(1) on these constant-index blocks would halve
        # their resident VMEM; left at the default to keep lowering maximally portable.
        wb_specs += [pl.BlockSpec(wp_.shape, lambda i: (0, 0)),
                     pl.BlockSpec(bp_.shape, lambda i: (0, 0))]
        hh, ww = ho_l, wo_l
    ho4, wo4 = hh, ww
    cout4, nout4 = dims[-1][3], dims[-1][4]
    m_out = ho4 * wo4

    # ping-pong phase scratch: buffer (li % 2) holds layer li's output = layer (li+1)'s input
    def _phase_shape(buf_idx):
        ls = [l for l in range(1, n_layers) if (l - 1) % 2 == buf_idx]
        if not ls:
            return (2, 2, 2, 2)
        return (2,
                max(_folded_size(dims[l][0]) for l in ls),
                max(_folded_size(dims[l][1]) for l in ls),
                max(2 * dims[l][2] for l in ls))

    phase_shapes = [_phase_shape(0), _phase_shape(1)]
    scratch_shapes = ([pltpu.VMEM(s, jnp.bfloat16) for s in phase_shapes]
                      + [pltpu.VMEM(s, jnp.bfloat16) for s in patch_shapes])

    # generation-aware VMEM budget from padded (sublane/lane-rounded) tile sizes
    in_block = _padded_vmem_bytes((1, hp2_0, wp2_0, lanes0), jnp.bfloat16)
    out_block = _padded_vmem_bytes((1, m_out, nout4), jnp.float32)
    wb_bytes = sum(_padded_vmem_bytes(a.shape, a.dtype) for a in flat_wb)
    scr_bytes = sum(_padded_vmem_bytes(s, jnp.bfloat16) for s in phase_shapes + patch_shapes)
    required = 2 * (in_block + out_block + wb_bytes) + scr_bytes     # x2: double-buffered blocks
    cap = _vmem_capacity_bytes()
    vmem_limit = int(min(int(cap * 0.85), max(32 * 2 ** 20, required + (4 << 20))))

    kernel = functools.partial(_dis_conv_fused_kernel,
                               dims=tuple(dims), strips=tuple(strips))
    out = pl.pallas_call(
        kernel,
        out_shape=jax.ShapeDtypeStruct((n, m_out, nout4), jnp.float32),
        grid=(n,),
        in_specs=[pl.BlockSpec((1, hp2_0, wp2_0, lanes0), lambda i: (i, 0, 0, 0))] + wb_specs,
        out_specs=pl.BlockSpec((1, m_out, nout4), lambda i: (i, 0, 0)),
        scratch_shapes=scratch_shapes,
        compiler_params=pltpu.CompilerParams(
            dimension_semantics=("parallel",),
            vmem_limit_bytes=vmem_limit,
        ),
    )(xin, *flat_wb)

    y = out[:, :, :cout4].reshape(n, ho4, wo4, cout4)          # drop the lane padding
    return jnp.transpose(y, (0, 3, 1, 2))                      # NHWC -> NCHW


# ---------------------------------------------------------------------------
# Params + reference (same rounding points as the kernel: bf16 MXU operands, f32 accum)
# ---------------------------------------------------------------------------
def init_dis_conv_module_params(key, input_dim, cnum, k=5):
    dims = [(input_dim, cnum), (cnum, cnum * 2), (cnum * 2, cnum * 4), (cnum * 4, cnum * 4)]
    params = []
    for (cin, cout) in dims:
        key, kw_, kb_ = jax.random.split(key, 3)
        fan_in = cin * k * k
        scale = 1.0 / jnp.sqrt(jnp.float32(fan_in))
        w = jax.random.uniform(kw_, (k, k, cin, cout), jnp.float32, -scale, scale)   # HWIO
        b = jax.random.uniform(kb_, (cout,), jnp.float32, -scale, scale)
        params.append((w, b))
    return params


def dis_conv_module_ref(x_nchw, params):
    x = jnp.transpose(x_nchw, (0, 2, 3, 1))
    for (wt, b) in params:
        y = jax.lax.conv_general_dilated(
            x.astype(jnp.bfloat16), wt.astype(jnp.bfloat16),
            window_strides=(STRIDE, STRIDE), padding=[(PAD, PAD), (PAD, PAD)],
            dimension_numbers=("NHWC", "HWIO", "NHWC"),
            preferred_element_type=jnp.float32)
        y = y + b[None, None, None, :]
        x = jnp.where(y >= 0, y, NEG_SLOPE * y)
    return jnp.transpose(x, (0, 3, 1, 2))


if __name__ == "__main__":
    key = jax.random.PRNGKey(0)
    k_x, k_p = jax.random.split(key)

    batch, input_dim, H, W = 2, 4, 16, 16
    cnum = 8

    x = jax.random.normal(k_x, (batch, input_dim, H, W), jnp.float32)
    params = init_dis_conv_module_params(k_p, input_dim, cnum)

    out = jax.block_until_ready(dis_conv_module_forward(x, params))
    ref = jax.block_until_ready(dis_conv_module_ref(x, params))

    assert out.shape == (batch, cnum * 4, 1, 1), out.shape
    err = float(jnp.max(jnp.abs(out - ref)))
    assert jnp.allclose(out, ref, rtol=2e-3, atol=2e-3), err

    print("KERNEL_OK")
</pallas_src>

<mosaic_0001>
module attributes {stable_mosaic.version = 11 : i64} {
  func.func @_dis_conv_fused_kernel(%arg0: i32, %arg1: memref<1x10x10x16xbf16, #tpu.memory_space<vmem>>, %arg2: memref<100x128xbf16, #tpu.memory_space<vmem>>, %arg3: memref<1x128xf32, #tpu.memory_space<vmem>>, %arg4: memref<200x128xbf16, #tpu.memory_space<vmem>>, %arg5: memref<1x128xf32, #tpu.memory_space<vmem>>, %arg6: memref<400x128xbf16, #tpu.memory_space<vmem>>, %arg7: memref<1x128xf32, #tpu.memory_space<vmem>>, %arg8: memref<800x128xbf16, #tpu.memory_space<vmem>>, %arg9: memref<1x128xf32, #tpu.memory_space<vmem>>, %arg10: memref<1x1x128xf32, #tpu.memory_space<vmem>>, %arg11: memref<2x6x6x64xbf16, #tpu.memory_space<vmem>>, %arg12: memref<2x4x4x32xbf16, #tpu.memory_space<vmem>>, %arg13: memref<8x8x100xbf16, #tpu.memory_space<vmem>>, %arg14: memref<4x4x200xbf16, #tpu.memory_space<vmem>>, %arg15: memref<2x2x400xbf16, #tpu.memory_space<vmem>>, %arg16: memref<1x1x800xbf16, #tpu.memory_space<vmem>>) attributes {dimension_semantics = [#tpu.dimension_semantics<parallel>], iteration_bounds = array<i64: 2>, scalar_prefetch = 0 : i64, scratch_operands = 6 : i64, tpu.core_type = #tpu.core_type<tc>, window_params = [{transform_indices = @transform_0, window_bounds = array<i64: 1, 10, 10, 16>}, {pipeline_mode = #tpu.pipeline_mode<synchronous>, transform_indices = @transform_1, window_bounds = array<i64: 100, 128>}, {pipeline_mode = #tpu.pipeline_mode<synchronous>, transform_indices = @transform_2, window_bounds = array<i64: 1, 128>}, {pipeline_mode = #tpu.pipeline_mode<synchronous>, transform_indices = @transform_3, window_bounds = array<i64: 200, 128>}, {pipeline_mode = #tpu.pipeline_mode<synchronous>, transform_indices = @transform_4, window_bounds = array<i64: 1, 128>}, {pipeline_mode = #tpu.pipeline_mode<synchronous>, transform_indices = @transform_5, window_bounds = array<i64: 400, 128>}, {pipeline_mode = #tpu.pipeline_mode<synchronous>, transform_indices = @transform_6, window_bounds = array<i64: 1, 128>}, {pipeline_mode = #tpu.pipeline_mode<synchronous>, transform_indices = @transform_7, window_bounds = array<i64: 800, 128>}, {pipeline_mode = #tpu.pipeline_mode<synchronous>, transform_indices = @transform_8, window_bounds = array<i64: 1, 128>}, {transform_indices = @transform_9, window_bounds = array<i64: 1, 1, 128>}]} {
    %c0 = arith.constant 0 : index
    %c0_0 = arith.constant 0 : index
    %0 = vector.load %arg2[%c0, %c0_0] : memref<100x128xbf16, #tpu.memory_space<vmem>>, vector<100x128xbf16>
    %c0_1 = arith.constant 0 : index
    %c0_2 = arith.constant 0 : index
    %1 = vector.load %arg3[%c0_1, %c0_2] : memref<1x128xf32, #tpu.memory_space<vmem>>, vector<1x128xf32>
    %cst = arith.constant 0.000000e+00 : bf16
    %2 = vector.broadcast %cst : bf16 to vector<2x1x6x16xbf16>
    %cst_3 = arith.constant 0.000000e+00 : bf16
    %3 = vector.broadcast %cst_3 : bf16 to vector<2x6x1x16xbf16>
    %c0_4 = arith.constant 0 : index
    %c0_5 = arith.constant 0 : index
    %c0_6 = arith.constant 0 : index
    %c0_7 = arith.constant 0 : index
    %4 = vector.load %arg11[%c0_4, %c0_5, %c0_6, %c0_7] : memref<2x6x6x64xbf16, #tpu.memory_space<vmem>>, vector<2x1x6x16xbf16>
    tpu.vector_store %arg11[%c0_4, %c0_5, %c0_6, %c0_7], %2 {strides = array<i32>} : memref<2x6x6x64xbf16, #tpu.memory_space<vmem>>, vector<2x1x6x16xbf16>,
    %c0_8 = arith.constant 0 : index
    %c5 = arith.constant 5 : index
    %c0_9 = arith.constant 0 : index
    %c0_10 = arith.constant 0 : index
    %5 = vector.load %arg11[%c0_8, %c5, %c0_9, %c0_10] : memref<2x6x6x64xbf16, #tpu.memory_space<vmem>>, vector<2x1x6x16xbf16>
    tpu.vector_store %arg11[%c0_8, %c5, %c0_9, %c0_10], %2 {strides = array<i32>} : memref<2x6x6x64xbf16, #tpu.memory_space<vmem>>, vector<2x1x6x16xbf16>,
    %c0_11 = arith.constant 0 : index
    %c0_12 = arith.constant 0 : index
    %c0_13 = arith.constant 0 : index
    %c0_14 = arith.constant 0 : index
    %6 = vector.load %arg11[%c0_11, %c0_12, %c0_13, %c0_14] : memref<2x6x6x64xbf16, #tpu.memory_space<vmem>>, vector<2x6x1x16xbf16>
    tpu.vector_store %arg11[%c0_11, %c0_12, %c0_13, %c0_14], %3 {strides = array<i32>} : memref<2x6x6x64xbf16, #tpu.memory_space<vmem>>, vector<2x6x1x16xbf16>,
    %c0_15 = arith.constant 0 : index
    %c0_16 = arith.constant 0 : index
    %c5_17 = arith.constant 5 : index
    %c0_18 = arith.constant 0 : index
    %7 = vector.load %arg11[%c0_15, %c0_16, %c5_17, %c0_18] : memref<2x6x6x64xbf16, #tpu.memory_space<vmem>>, vector<2x6x1x16xbf16>
    tpu.vector_store %arg11[%c0_15, %c0_16, %c5_17, %c0_18], %3 {strides = array<i32>} : memref<2x6x6x64xbf16, #tpu.memory_space<vmem>>, vector<2x6x1x16xbf16>,
    %c0_19 = arith.constant 0 : index
    %c0_20 = arith.constant 0 : index
    %c0_21 = arith.constant 0 : index
    %c0_22 = arith.constant 0 : index
    %8 = vector.load %arg1[%c0_19, %c0_20, %c0_21, %c0_22] : memref<1x10x10x16xbf16, #tpu.memory_space<vmem>>, vector<1x8x8x8xbf16>
    %9 = vector.shape_cast %8 : vector<1x8x8x8xbf16> to vector<8x8x8xbf16>
    %c0_23 = arith.constant 0 : index
    %c0_24 = arith.constant 0 : index
    %c0_25 = arith.constant 0 : index
    %10 = vector.load %arg13[%c0_23, %c0_24, %c0_25] : memref<8x8x100xbf16, #tpu.memory_space<vmem>>, vector<8x8x8xbf16>
    tpu.vector_store %arg13[%c0_23, %c0_24, %c0_25], %9 {strides = array<i32>} : memref<8x8x100xbf16, #tpu.memory_space<vmem>>, vector<8x8x8xbf16>,
    %c0_26 = arith.constant 0 : index
    %c0_27 = arith.constant 0 : index
    %c1 = arith.constant 1 : index
    %c0_28 = arith.constant 0 : index
    %11 = vector.load %arg1[%c0_26, %c0_27, %c1, %c0_28] : memref<1x10x10x16xbf16, #tpu.memory_space<vmem>>, vector<1x8x8x8xbf16>
    %12 = vector.shape_cast %11 : vector<1x8x8x8xbf16> to vector<8x8x8xbf16>
    %c0_29 = arith.constant 0 : index
    %c0_30 = arith.constant 0 : index
    %c8 = arith.constant 8 : index
    %13 = vector.load %arg13[%c0_29, %c0_30, %c8] : memref<8x8x100xbf16, #tpu.memory_space<vmem>>, vector<8x8x8xbf16>
    tpu.vector_store %arg13[%c0_29, %c0_30, %c8], %12 {strides = array<i32>} : memref<8x8x100xbf16, #tpu.memory_space<vmem>>, vector<8x8x8xbf16>,
    %c0_31 = arith.constant 0 : index
    %c0_32 = arith.constant 0 : index
    %c2 = arith.constant 2 : index
    %c0_33 = arith.constant 0 : index
    %14 = vector.load %arg1[%c0_31, %c0_32, %c2, %c0_33] : memref<1x10x10x16xbf16, #tpu.memory_space<vmem>>, vector<1x8x8x4xbf16>
    %15 = vector.shape_cast %14 : vector<1x8x8x4xbf16> to vector<8x8x4xbf16>
    %c0_34 = arith.constant 0 : index
    %c0_35 = arith.constant 0 : index
    %c16 = arith.constant 16 : index
    %16 = vector.load %arg13[%c0_34, %c0_35, %c16] : memref<8x8x100xbf16, #tpu.memory_space<vmem>>, vector<8x8x4xbf16>
    tpu.vector_store %arg13[%c0_34, %c0_35, %c16], %15 {strides = array<i32>} : memref<8x8x100xbf16, #tpu.memory_space<vmem>>, vector<8x8x4xbf16>,
    %c0_36 = arith.constant 0 : index
    %c0_37 = arith.constant 0 : index
    %c0_38 = arith.constant 0 : index
    %c8_39 = arith.constant 8 : index
    %17 = vector.load %arg1[%c0_36, %c0_37, %c0_38, %c8_39] : memref<1x10x10x16xbf16, #tpu.memory_space<vmem>>, vector<1x8x8x8xbf16>
    %18 = vector.shape_cast %17 : vector<1x8x8x8xbf16> to vector<8x8x8xbf16>
    %c0_40 = arith.constant 0 : index
    %c0_41 = arith.constant 0 : index
    %c20 = arith.constant 20 : index
    %19 = vector.load %arg13[%c0_40, %c0_41, %c20] : memref<8x8x100xbf16, #tpu.memory_space<vmem>>, vector<8x8x8xbf16>
    tpu.vector_store %arg13[%c0_40, %c0_41, %c20], %18 {strides = array<i32>} : memref<8x8x100xbf16, #tpu.memory_space<vmem>>, vector<8x8x8xbf16>,
    %c0_42 = arith.constant 0 : index
    %c0_43 = arith.constant 0 : index
    %c1_44 = arith.constant 1 : index
    %c8_45 = arith.constant 8 : index
    %20 = vector.load %arg1[%c0_42, %c0_43, %c1_44, %c8_45] : memref<1x10x10x16xbf16, #tpu.memory_space<vmem>>, vector<1x8x8x8xbf16>
    %21 = vector.shape_cast %20 : vector<1x8x8x8xbf16> to vector<8x8x8xbf16>
    %c0_46 = arith.constant 0 : index
    %c0_47 = arith.constant 0 : index
    %c28 = arith.constant 28 : index
    %22 = vector.load %arg13[%c0_46, %c0_47, %c28] : memref<8x8x100xbf16, #tpu.memory_space<vmem>>, vector<8x8x8xbf16>
    tpu.vector_store %arg13[%c0_46, %c0_47, %c28], %21 {strides = array<i32>} : memref<8x8x100xbf16, #tpu.memory_space<vmem>>, vector<8x8x8xbf16>,
    %c0_48 = arith.constant 0 : index
    %c0_49 = arith.constant 0 : index
    %c2_50 = arith.constant 2 : index
    %c8_51 = arith.constant 8 : index
    %23 = vector.load %arg1[%c0_48, %c0_49, %c2_50, %c8_51] : memref<1x10x10x16xbf16, #tpu.memory_space<vmem>>, vector<1x8x8x4xbf16>
    %24 = vector.shape_cast %23 : vector<1x8x8x4xbf16> to vector<8x8x4xbf16>
    %c0_52 = arith.constant 0 : index
    %c0_53 = arith.constant 0 : index
    %c36 = arith.constant 36 : index
    %25 = vector.load %arg13[%c0_52, %c0_53, %c36] : memref<8x8x100xbf16, #tpu.memory_space<vmem>>, vector<8x8x4xbf16>
    tpu.vector_store %arg13[%c0_52, %c0_53, %c36], %24 {strides = array<i32>} : memref<8x8x100xbf16, #tpu.memory_space<vmem>>, vector<8x8x4xbf16>,
    %c0_54 = arith.constant 0 : index
    %c1_55 = arith.constant 1 : index
    %c0_56 = arith.constant 0 : index
    %c0_57 = arith.constant 0 : index
    %26 = vector.load %arg1[%c0_54, %c1_55, %c0_56, %c0_57] : memref<1x10x10x16xbf16, #tpu.memory_space<vmem>>, vector<1x8x8x8xbf16>
    %27 = vector.shape_cast %26 : vector<1x8x8x8xbf16> to vector<8x8x8xbf16>
    %c0_58 = arith.constant 0 : index
    %c0_59 = arith.constant 0 : index
    %c40 = arith.constant 40 : index
    %28 = vector.load %arg13[%c0_58, %c0_59, %c40] : memref<8x8x100xbf16, #tpu.memory_space<vmem>>, vector<8x8x8xbf16>
    tpu.vector_store %arg13[%c0_58, %c0_59, %c40], %27 {strides = array<i32>} : memref<8x8x100xbf16, #tpu.memory_space<vmem>>, vector<8x8x8xbf16>,
    %c0_60 = arith.constant 0 : index
    %c1_61 = arith.constant 1 : index
    %c1_62 = arith.constant 1 : index
    %c0_63 = arith.constant 0 : index
    %29 = vector.load %arg1[%c0_60, %c1_61, %c1_62, %c0_63] : memref<1x10x10x16xbf16, #tpu.memory_space<vmem>>, vector<1x8x8x8xbf16>
    %30 = vector.shape_cast %29 : vector<1x8x8x8xbf16> to vector<8x8x8xbf16>
    %c0_64 = arith.constant 0 : index
    %c0_65 = arith.constant 0 : index
    %c48 = arith.constant 48 : index
    %31 = vector.load %arg13[%c0_64, %c0_65, %c48] : memref<8x8x100xbf16, #tpu.memory_space<vmem>>, vector<8x8x8xbf16>
    tpu.vector_store %arg13[%c0_64, %c0_65, %c48], %30 {strides = array<i32>} : memref<8x8x100xbf16, #tpu.memory_space<vmem>>, vector<8x8x8xbf16>,
    %c0_66 = arith.constant 0 : index
    %c1_67 = arith.constant 1 : index
    %c2_68 = arith.constant 2 : index
    %c0_69 = arith.constant 0 : index
    %32 = vector.load %arg1[%c0_66, %c1_67, %c2_68, %c0_69] : memref<1x10x10x16xbf16, #tpu.memory_space<vmem>>, vector<1x8x8x4xbf16>
    %33 = vector.shape_cast %32 : vector<1x8x8x4xbf16> to vector<8x8x4xbf16>
    %c0_70 = arith.constant 0 : index
    %c0_71 = arith.constant 0 : index
    %c56 = arith.constant 56 : index
    %34 = vector.load %arg13[%c0_70, %c0_71, %c56] : memref<8x8x100xbf16, #tpu.memory_space<vmem>>, vector<8x8x4xbf16>
    tpu.vector_store %arg13[%c0_70, %c0_71, %c56], %33 {strides = array<i32>} : memref<8x8x100xbf16, #tpu.memory_space<vmem>>, vector<8x8x4xbf16>,
    %c0_72 = arith.constant 0 : index
    %c1_73 = arith.constant 1 : index
    %c0_74 = arith.constant 0 : index
    %c8_75 = arith.constant 8 : index
    %35 = vector.load %arg1[%c0_72, %c1_73, %c0_74, %c8_75] : memref<1x10x10x16xbf16, #tpu.memory_space<vmem>>, vector<1x8x8x8xbf16>
    %36 = vector.shape_cast %35 : vector<1x8x8x8xbf16> to vector<8x8x8xbf16>
    %c0_76 = arith.constant 0 : index
    %c0_77 = arith.constant 0 : index
    %c60 = arith.constant 60 : index
    %37 = vector.load %arg13[%c0_76, %c0_77, %c60] : memref<8x8x100xbf16, #tpu.memory_space<vmem>>, vector<8x8x8xbf16>
    tpu.vector_store %arg13[%c0_76, %c0_77, %c60], %36 {strides = array<i32>} : memref<8x8x100xbf16, #tpu.memory_space<vmem>>, vector<8x8x8xbf16>,
    %c0_78 = arith.constant 0 : index
    %c1_79 = arith.constant 1 : index
    %c1_80 = arith.constant 1 : index
    %c8_81 = arith.constant 8 : index
    %38 = vector.load %arg1[%c0_78, %c1_79, %c1_80, %c8_81] : memref<1x10x10x16xbf16, #tpu.memory_space<vmem>>, vector<1x8x8x8xbf16>
    %39 = vector.shape_cast %38 : vector<1x8x8x8xbf16> to vector<8x8x8xbf16>
    %c0_82 = arith.constant 0 : index
    %c0_83 = arith.constant 0 : index
    %c68 = arith.constant 68 : index
    %40 = vector.load %arg13[%c0_82, %c0_83, %c68] : memref<8x8x100xbf16, #tpu.memory_space<vmem>>, vector<8x8x8xbf16>
    tpu.vector_store %arg13[%c0_82, %c0_83, %c68], %39 {strides = array<i32>} : memref<8x8x100xbf16, #tpu.memory_space<vmem>>, vector<8x8x8xbf16>,
    %c0_84 = arith.constant 0 : index
    %c1_85 = arith.constant 1 : index
    %c2_86 = arith.constant 2 : index
    %c8_87 = arith.constant 8 : index
    %41 = vector.load %arg1[%c0_84, %c1_85, %c2_86, %c8_87] : memref<1x10x10x16xbf16, #tpu.memory_space<vmem>>, vector<1x8x8x4xbf16>
    %42 = vector.shape_cast %41 : vector<1x8x8x4xbf16> to vector<8x8x4xbf16>
    %c0_88 = arith.constant 0 : index
    %c0_89 = arith.constant 0 : index
    %c76 = arith.constant 76 : index
    %43 = vector.load %arg13[%c0_88, %c0_89, %c76] : memref<8x8x100xbf16, #tpu.memory_space<vmem>>, vector<8x8x4xbf16>
    tpu.vector_store %arg13[%c0_88, %c0_89, %c76], %42 {strides = array<i32>} : memref<8x8x100xbf16, #tpu.memory_space<vmem>>, vector<8x8x4xbf16>,
    %c0_90 = arith.constant 0 : index
    %c2_91 = arith.constant 2 : index
    %c0_92 = arith.constant 0 : index
    %c0_93 = arith.constant 0 : index
    %44 = vector.load %arg1[%c0_90, %c2_91, %c0_92, %c0_93] : memref<1x10x10x16xbf16, #tpu.memory_space<vmem>>, vector<1x8x8x8xbf16>
    %45 = vector.shape_cast %44 : vector<1x8x8x8xbf16> to vector<8x8x8xbf16>
    %c0_94 = arith.constant 0 : index
    %c0_95 = arith.constant 0 : index
    %c80 = arith.constant 80 : index
    %46 = vector.load %arg13[%c0_94, %c0_95, %c80] : memref<8x8x100xbf16, #tpu.memory_space<vmem>>, vector<8x8x8xbf16>
    tpu.vector_store %arg13[%c0_94, %c0_95, %c80], %45 {strides = array<i32>} : memref<8x8x100xbf16, #tpu.memory_space<vmem>>, vector<8x8x8xbf16>,
    %c0_96 = arith.constant 0 : index
    %c2_97 = arith.constant 2 : index
    %c1_98 = arith.constant 1 : index
    %c0_99 = arith.constant 0 : index
    %47 = vector.load %arg1[%c0_96, %c2_97, %c1_98, %c0_99] : memref<1x10x10x16xbf16, #tpu.memory_space<vmem>>, vector<1x8x8x8xbf16>
    %48 = vector.shape_cast %47 : vector<1x8x8x8xbf16> to vector<8x8x8xbf16>
    %c0_100 = arith.constant 0 : index
    %c0_101 = arith.constant 0 : index
    %c88 = arith.constant 88 : index
    %49 = vector.load %arg13[%c0_100, %c0_101, %c88] : memref<8x8x100xbf16, #tpu.memory_space<vmem>>, vector<8x8x8xbf16>
    tpu.vector_store %arg13[%c0_100, %c0_101, %c88], %48 {strides = array<i32>} : memref<8x8x100xbf16, #tpu.memory_space<vmem>>, vector<8x8x8xbf16>,
    %c0_102 = arith.constant 0 : index
    %c2_103 = arith.constant 2 : index
    %c2_104 = arith.constant 2 : index
    %c0_105 = arith.constant 0 : index
    %50 = vector.load %arg1[%c0_102, %c2_103, %c2_104, %c0_105] : memref<1x10x10x16xbf16, #tpu.memory_space<vmem>>, vector<1x8x8x4xbf16>
    %51 = vector.shape_cast %50 : vector<1x8x8x4xbf16> to vector<8x8x4xbf16>
    %c0_106 = arith.constant 0 : index
    %c0_107 = arith.constant 0 : index
    %c96 = arith.constant 96 : index
    %52 = vector.load %arg13[%c0_106, %c0_107, %c96] : memref<8x8x100xbf16, #tpu.memory_space<vmem>>, vector<8x8x4xbf16>
    tpu.vector_store %arg13[%c0_106, %c0_107, %c96], %51 {strides = array<i32>} : memref<8x8x100xbf16, #tpu.memory_space<vmem>>, vector<8x8x4xbf16>,
    %c0_108 = arith.constant 0 : index
    %c0_109 = arith.constant 0 : index
    %c0_110 = arith.constant 0 : index
    %53 = vector.load %arg13[%c0_108, %c0_109, %c0_110] : memref<8x8x100xbf16, #tpu.memory_space<vmem>>, vector<8x8x100xbf16>
    %54 = vector.shape_cast %53 : vector<8x8x100xbf16> to vector<64x100xbf16>
    %cst_111 = arith.constant dense<0.000000e+00> : vector<64x128xf32>
    %55 = tpu.matmul %54, %0, %cst_111 {dimension_numbers = #tpu.dot_dimension_numbers<[1], [0], [0], [1], [0, 0, 1, 1], [], []>} : vector<64x100xbf16>, vector<100x128xbf16>, vector<64x128xf32> -> vector<64x128xf32>
    %56 = vector.broadcast %1 : vector<1x128xf32> to vector<64x128xf32>
    %57 = arith.addf %55, %56 : vector<64x128xf32>
    %cst_112 = arith.constant 0.000000e+00 : f32
    %58 = vector.broadcast %cst_112 : f32 to vector<64x128xf32>
    %59 = arith.cmpf oge, %57, %58 : vector<64x128xf32>
    %cst_113 = arith.constant 2.000000e-01 : f32
    %60 = vector.broadcast %cst_113 : f32 to vector<64x128xf32>
    %61 = arith.mulf %60, %57 : vector<64x128xf32>
    %62 = arith.select %59, %57, %61 : vector<64x128xi1>, vector<64x128xf32>
    %63 = vector.extract_strided_slice %62 {offsets = [0, 0], sizes = [64, 8], strides = [1, 1]} : vector<64x128xf32> to vector<64x8xf32>
    %64 = arith.truncf %63 : vector<64x8xf32> to vector<64x8xbf16>
    %65 = vector.shape_cast %64 : vector<64x8xbf16> to vector<8x8x8xbf16>
    %66 = vector.shape_cast %65 : vector<8x8x8xbf16> to vector<4x2x8x8xbf16>
    %67 = vector.extract_strided_slice %66 {offsets = [0, 0, 0, 0], sizes = [4, 1, 8, 8], strides = [1, 1, 1, 1]} : vector<4x2x8x8xbf16> to vector<4x1x8x8xbf16>
    %68 = vector.shape_cast %67 : vector<4x1x8x8xbf16> to vector<4x8x8xbf16>
    %69 = vector.shape_cast %68 : vector<4x8x8xbf16> to vector<4x4x2x8xbf16>
    %70 = vector.extract_strided_slice %69 {offsets = [0, 0, 0, 0], sizes = [4, 4, 1, 8], strides = [1, 1, 1, 1]} : vector<4x4x2x8xbf16> to vector<4x4x1x8xbf16>
    %71 = vector.shape_cast %70 : vector<4x4x1x8xbf16> to vector<4x4x8xbf16>
    %c0_114 = arith.constant 0 : index
    %c1_115 = arith.constant 1 : index
    %c1_116 = arith.constant 1 : index
    %c0_117 = arith.constant 0 : index
    %72 = vector.load %arg11[%c0_114, %c1_115, %c1_116, %c0_117] : memref<2x6x6x64xbf16, #tpu.memory_space<vmem>>, vector<1x4x4x8xbf16>
    %73 = vector.shape_cast %72 : vector<1x4x4x8xbf16> to vector<4x4x8xbf16>
    %74 = vector.shape_cast %71 : vector<4x4x8xbf16> to vector<1x4x4x8xbf16>
    tpu.vector_store %arg11[%c0_114, %c1_115, %c1_116, %c0_117], %74 {strides = array<i32>} : memref<2x6x6x64xbf16, #tpu.memory_space<vmem>>, vector<1x4x4x8xbf16>,
    %75 = vector.extract_strided_slice %69 {offsets = [0, 0, 1, 0], sizes = [4, 4, 1, 8], strides = [1, 1, 1, 1]} : vector<4x4x2x8xbf16> to vector<4x4x1x8xbf16>
    %76 = vector.shape_cast %75 : vector<4x4x1x8xbf16> to vector<4x4x8xbf16>
    %c0_118 = arith.constant 0 : index
    %c1_119 = arith.constant 1 : index
    %c1_120 = arith.constant 1 : index
    %c8_121 = arith.constant 8 : index
    %77 = vector.load %arg11[%c0_118, %c1_119, %c1_120, %c8_121] : memref<2x6x6x64xbf16, #tpu.memory_space<vmem>>, vector<1x4x4x8xbf16>
    %78 = vector.shape_cast %77 : vector<1x4x4x8xbf16> to vector<4x4x8xbf16>
    %79 = vector.shape_cast %76 : vector<4x4x8xbf16> to vector<1x4x4x8xbf16>
    tpu.vector_store %arg11[%c0_118, %c1_119, %c1_120, %c8_121], %79 {strides = array<i32>} : memref<2x6x6x64xbf16, #tpu.memory_space<vmem>>, vector<1x4x4x8xbf16>,
    %80 = vector.extract_strided_slice %66 {offsets = [0, 1, 0, 0], sizes = [4, 1, 8, 8], strides = [1, 1, 1, 1]} : vector<4x2x8x8xbf16> to vector<4x1x8x8xbf16>
    %81 = vector.shape_cast %80 : vector<4x1x8x8xbf16> to vector<4x8x8xbf16>
    %82 = vector.shape_cast %81 : vector<4x8x8xbf16> to vector<4x4x2x8xbf16>
    %83 = vector.extract_strided_slice %82 {offsets = [0, 0, 0, 0], sizes = [4, 4, 1, 8], strides = [1, 1, 1, 1]} : vector<4x4x2x8xbf16> to vector<4x4x1x8xbf16>
    %84 = vector.shape_cast %83 : vector<4x4x1x8xbf16> to vector<4x4x8xbf16>
    %c1_122 = arith.constant 1 : index
    %c1_123 = arith.constant 1 : index
    %c1_124 = arith.constant 1 : index
    %c0_125 = arith.constant 0 : index
    %85 = vector.load %arg11[%c1_122, %c1_123, %c1_124, %c0_125] : memref<2x6x6x64xbf16, #tpu.memory_space<vmem>>, vector<1x4x4x8xbf16>
    %86 = vector.shape_cast %85 : vector<1x4x4x8xbf16> to vector<4x4x8xbf16>
    %87 = vector.shape_cast %84 : vector<4x4x8xbf16> to vector<1x4x4x8xbf16>
    tpu.vector_store %arg11[%c1_122, %c1_123, %c1_124, %c0_125], %87 {strides = array<i32>} : memref<2x6x6x64xbf16, #tpu.memory_space<vmem>>, vector<1x4x4x8xbf16>,
    %88 = vector.extract_strided_slice %82 {offsets = [0, 0, 1, 0], sizes = [4, 4, 1, 8], strides = [1, 1, 1, 1]} : vector<4x4x2x8xbf16> to vector<4x4x1x8xbf16>
    %89 = vector.shape_cast %88 : vector<4x4x1x8xbf16> to vector<4x4x8xbf16>
    %c1_126 = arith.constant 1 : index
    %c1_127 = arith.constant 1 : index
    %c1_128 = arith.constant 1 : index
    %c8_129 = arith.constant 8 : index
    %90 = vector.load %arg11[%c1_126, %c1_127, %c1_128, %c8_129] : memref<2x6x6x64xbf16, #tpu.memory_space<vmem>>, vector<1x4x4x8xbf16>
    %91 = vector.shape_cast %90 : vector<1x4x4x8xbf16> to vector<4x4x8xbf16>
    %92 = vector.shape_cast %89 : vector<4x4x8xbf16> to vector<1x4x4x8xbf16>
    tpu.vector_store %arg11[%c1_126, %c1_127, %c1_128, %c8_129], %92 {strides = array<i32>} : memref<2x6x6x64xbf16, #tpu.memory_space<vmem>>, vector<1x4x4x8xbf16>,
    %c0_130 = arith.constant 0 : index
    %c0_131 = arith.constant 0 : index
    %93 = vector.load %arg4[%c0_130, %c0_131] : memref<200x128xbf16, #tpu.memory_space<vmem>>, vector<200x128xbf16>
    %c0_132 = arith.constant 0 : index
    %c0_133 = arith.constant 0 : index
    %94 = vector.load %arg5[%c0_132, %c0_133] : memref<1x128xf32, #tpu.memory_space<vmem>>, vector<1x128xf32>
    %cst_134 = arith.constant 0.000000e+00 : bf16
    %95 = vector.broadcast %cst_134 : bf16 to vector<2x1x4x32xbf16>
    %cst_135 = arith.constant 0.000000e+00 : bf16
    %96 = vector.broadcast %cst_135 : bf16 to vector<2x4x1x32xbf16>
    %c0_136 = arith.constant 0 : index
    %c0_137 = arith.constant 0 : index
    %c0_138 = arith.constant 0 : index
    %c0_139 = arith.constant 0 : index
    %97 = vector.load %arg12[%c0_136, %c0_137, %c0_138, %c0_139] : memref<2x4x4x32xbf16, #tpu.memory_space<vmem>>, vector<2x1x4x32xbf16>
    tpu.vector_store %arg12[%c0_136, %c0_137, %c0_138, %c0_139], %95 {strides = array<i32>} : memref<2x4x4x32xbf16, #tpu.memory_space<vmem>>, vector<2x1x4x32xbf16>,
    %c0_140 = arith.constant 0 : index
    %c3 = arith.constant 3 : index
    %c0_141 = arith.constant 0 : index
    %c0_142 = arith.constant 0 : index
    %98 = vector.load %arg12[%c0_140, %c3, %c0_141, %c0_142] : memref<2x4x4x32xbf16, #tpu.memory_space<vmem>>, vector<2x1x4x32xbf16>
    tpu.vector_store %arg12[%c0_140, %c3, %c0_141, %c0_142], %95 {strides = array<i32>} : memref<2x4x4x32xbf16, #tpu.memory_space<vmem>>, vector<2x1x4x32xbf16>,
    %c0_143 = arith.constant 0 : index
    %c0_144 = arith.constant 0 : index
    %c0_145 = arith.constant 0 : index
    %c0_146 = arith.constant 0 : index
    %99 = vector.load %arg12[%c0_143, %c0_144, %c0_145, %c0_146] : memref<2x4x4x32xbf16, #tpu.memory_space<vmem>>, vector<2x4x1x32xbf16>
    tpu.vector_store %arg12[%c0_143, %c0_144, %c0_145, %c0_146], %96 {strides = array<i32>} : memref<2x4x4x32xbf16, #tpu.memory_space<vmem>>, vector<2x4x1x32xbf16>,
    %c0_147 = arith.constant 0 : index
    %c0_148 = arith.constant 0 : index
    %c3_149 = arith.constant 3 : index
    %c0_150 = arith.constant 0 : index
    %100 = vector.load %arg12[%c0_147, %c0_148, %c3_149, %c0_150] : memref<2x4x4x32xbf16, #tpu.memory_space<vmem>>, vector<2x4x1x32xbf16>
    tpu.vector_store %arg12[%c0_147, %c0_148, %c3_149, %c0_150], %96 {strides = array<i32>} : memref<2x4x4x32xbf16, #tpu.memory_space<vmem>>, vector<2x4x1x32xbf16>,
    %c0_151 = arith.constant 0 : index
    %c0_152 = arith.constant 0 : index
    %c0_153 = arith.constant 0 : index
    %c0_154 = arith.constant 0 : index
    %101 = vector.load %arg11[%c0_151, %c0_152, %c0_153, %c0_154] : memref<2x6x6x64xbf16, #tpu.memory_space<vmem>>, vector<1x4x4x16xbf16>
    %102 = vector.shape_cast %101 : vector<1x4x4x16xbf16> to vector<4x4x16xbf16>
    %c0_155 = arith.constant 0 : index
    %c0_156 = arith.constant 0 : index
    %c0_157 = arith.constant 0 : index
    %103 = vector.load %arg14[%c0_155, %c0_156, %c0_157] : memref<4x4x200xbf16, #tpu.memory_space<vmem>>, vector<4x4x16xbf16>
    tpu.vector_store %arg14[%c0_155, %c0_156, %c0_157], %102 {strides = array<i32>} : memref<4x4x200xbf16, #tpu.memory_space<vmem>>, vector<4x4x16xbf16>,
    %c0_158 = arith.constant 0 : index
    %c0_159 = arith.constant 0 : index
    %c1_160 = arith.constant 1 : index
    %c0_161 = arith.constant 0 : index
    %104 = vector.load %arg11[%c0_158, %c0_159, %c1_160, %c0_161] : memref<2x6x6x64xbf16, #tpu.memory_space<vmem>>, vector<1x4x4x16xbf16>
    %105 = vector.shape_cast %104 : vector<1x4x4x16xbf16> to vector<4x4x16xbf16>
    %c0_162 = arith.constant 0 : index
    %c0_163 = arith.constant 0 : index
    %c16_164 = arith.constant 16 : index
    %106 = vector.load %arg14[%c0_162, %c0_163, %c16_164] : memref<4x4x200xbf16, #tpu.memory_space<vmem>>, vector<4x4x16xbf16>
    tpu.vector_store %arg14[%c0_162, %c0_163, %c16_164], %105 {strides = array<i32>} : memref<4x4x200xbf16, #tpu.memory_space<vmem>>, vector<4x4x16xbf16>,
    %c0_165 = arith.constant 0 : index
    %c0_166 = arith.constant 0 : index
    %c2_167 = arith.constant 2 : index
    %c0_168 = arith.constant 0 : index
    %107 = vector.load %arg11[%c0_165, %c0_166, %c2_167, %c0_168] : memref<2x6x6x64xbf16, #tpu.memory_space<vmem>>, vector<1x4x4x8xbf16>
    %108 = vector.shape_cast %107 : vector<1x4x4x8xbf16> to vector<4x4x8xbf16>
    %c0_169 = arith.constant 0 : index
    %c0_170 = arith.constant 0 : index
    %c32 = arith.constant 32 : index
    %109 = vector.load %arg14[%c0_169, %c0_170, %c32] : memref<4x4x200xbf16, #tpu.memory_space<vmem>>, vector<4x4x8xbf16>
    tpu.vector_store %arg14[%c0_169, %c0_170, %c32], %108 {strides = array<i32>} : memref<4x4x200xbf16, #tpu.memory_space<vmem>>, vector<4x4x8xbf16>,
    %c1_171 = arith.constant 1 : index
    %c0_172 = arith.constant 0 : index
    %c0_173 = arith.constant 0 : index
    %c0_174 = arith.constant 0 : index
    %110 = vector.load %arg11[%c1_171, %c0_172, %c0_173, %c0_174] : memref<2x6x6x64xbf16, #tpu.memory_space<vmem>>, vector<1x4x4x16xbf16>
    %111 = vector.shape_cast %110 : vector<1x4x4x16xbf16> to vector<4x4x16xbf16>
    %c0_175 = arith.constant 0 : index
    %c0_176 = arith.constant 0 : index
    %c40_177 = arith.constant 40 : index
    %112 = vector.load %arg14[%c0_175, %c0_176, %c40_177] : memref<4x4x200xbf16, #tpu.memory_space<vmem>>, vector<4x4x16xbf16>
    tpu.vector_store %arg14[%c0_175, %c0_176, %c40_177], %111 {strides = array<i32>} : memref<4x4x200xbf16, #tpu.memory_space<vmem>>, vector<4x4x16xbf16>,
    %c1_178 = arith.constant 1 : index
    %c0_179 = arith.constant 0 : index
    %c1_180 = arith.constant 1 : index
    %c0_181 = arith.constant 0 : index
    %113 = vector.load %arg11[%c1_178, %c0_179, %c1_180, %c0_181] : memref<2x6x6x64xbf16, #tpu.memory_space<vmem>>, vector<1x4x4x16xbf16>
    %114 = vector.shape_cast %113 : vector<1x4x4x16xbf16> to vector<4x4x16xbf16>
    %c0_182 = arith.constant 0 : index
    %c0_183 = arith.constant 0 : index
    %c56_184 = arith.constant 56 : index
    %115 = vector.load %arg14[%c0_182, %c0_183, %c56_184] : memref<4x4x200xbf16, #tpu.memory_space<vmem>>, vector<4x4x16xbf16>
    tpu.vector_store %arg14[%c0_182, %c0_183, %c56_184], %114 {strides = array<i32>} : memref<4x4x200xbf16, #tpu.memory_space<vmem>>, vector<4x4x16xbf16>,
    %c1_185 = arith.constant 1 : index
    %c0_186 = arith.constant 0 : index
    %c2_187 = arith.constant 2 : index
    %c0_188 = arith.constant 0 : index
    %116 = vector.load %arg11[%c1_185, %c0_186, %c2_187, %c0_188] : memref<2x6x6x64xbf16, #tpu.memory_space<vmem>>, vector<1x4x4x8xbf16>
    %117 = vector.shape_cast %116 : vector<1x4x4x8xbf16> to vector<4x4x8xbf16>
    %c0_189 = arith.constant 0 : index
    %c0_190 = arith.constant 0 : index
    %c72 = arith.constant 72 : index
    %118 = vector.load %arg14[%c0_189, %c0_190, %c72] : memref<4x4x200xbf16, #tpu.memory_space<vmem>>, vector<4x4x8xbf16>
    tpu.vector_store %arg14[%c0_189, %c0_190, %c72], %117 {strides = array<i32>} : memref<4x4x200xbf16, #tpu.memory_space<vmem>>, vector<4x4x8xbf16>,
    %c0_191 = arith.constant 0 : index
    %c1_192 = arith.constant 1 : index
    %c0_193 = arith.constant 0 : index
    %c0_194 = arith.constant 0 : index
    %119 = vector.load %arg11[%c0_191, %c1_192, %c0_193, %c0_194] : memref<2x6x6x64xbf16, #tpu.memory_space<vmem>>, vector<1x4x4x16xbf16>
    %120 = vector.shape_cast %119 : vector<1x4x4x16xbf16> to vector<4x4x16xbf16>
    %c0_195 = arith.constant 0 : index
    %c0_196 = arith.constant 0 : index
    %c80_197 = arith.constant 80 : index
    %121 = vector.load %arg14[%c0_195, %c0_196, %c80_197] : memref<4x4x200xbf16, #tpu.memory_space<vmem>>, vector<4x4x16xbf16>
    tpu.vector_store %arg14[%c0_195, %c0_196, %c80_197], %120 {strides = array<i32>} : memref<4x4x200xbf16, #tpu.memory_space<vmem>>, vector<4x4x16xbf16>,
    %c0_198 = arith.constant 0 : index
    %c1_199 = arith.constant 1 : index
    %c1_200 = arith.constant 1 : index
    %c0_201 = arith.constant 0 : index
    %122 = vector.load %arg11[%c0_198, %c1_199, %c1_200, %c0_201] : memref<2x6x6x64xbf16, #tpu.memory_space<vmem>>, vector<1x4x4x16xbf16>
    %123 = vector.shape_cast %122 : vector<1x4x4x16xbf16> to vector<4x4x16xbf16>
    %c0_202 = arith.constant 0 : index
    %c0_203 = arith.constant 0 : index
    %c96_204 = arith.constant 96 : index
    %124 = vector.load %arg14[%c0_202, %c0_203, %c96_204] : memref<4x4x200xbf16, #tpu.memory_space<vmem>>, vector<4x4x16xbf16>
    tpu.vector_store %arg14[%c0_202, %c0_203, %c96_204], %123 {strides = array<i32>} : memref<4x4x200xbf16, #tpu.memory_space<vmem>>, vector<4x4x16xbf16>,
    %c0_205 = arith.constant 0 : index
    %c1_206 = arith.constant 1 : index
    %c2_207 = arith.constant 2 : index
    %c0_208 = arith.constant 0 : index
    %125 = vector.load %arg11[%c0_205, %c1_206, %c2_207, %c0_208] : memref<2x6x6x64xbf16, #tpu.memory_space<vmem>>, vector<1x4x4x8xbf16>
    %126 = vector.shape_cast %125 : vector<1x4x4x8xbf16> to vector<4x4x8xbf16>
    %c0_209 = arith.constant 0 : index
    %c0_210 = arith.constant 0 : index
    %c112 = arith.constant 112 : index
    %127 = vector.load %arg14[%c0_209, %c0_210, %c112] : memref<4x4x200xbf16, #tpu.memory_space<vmem>>, vector<4x4x8xbf16>
    tpu.vector_store %arg14[%c0_209, %c0_210, %c112], %126 {strides = array<i32>} : memref<4x4x200xbf16, #tpu.memory_space<vmem>>, vector<4x4x8xbf16>,
    %c1_211 = arith.constant 1 : index
    %c1_212 = arith.constant 1 : index
    %c0_213 = arith.constant 0 : index
    %c0_214 = arith.constant 0 : index
    %128 = vector.load %arg11[%c1_211, %c1_212, %c0_213, %c0_214] : memref<2x6x6x64xbf16, #tpu.memory_space<vmem>>, vector<1x4x4x16xbf16>
    %129 = vector.shape_cast %128 : vector<1x4x4x16xbf16> to vector<4x4x16xbf16>
    %c0_215 = arith.constant 0 : index
    %c0_216 = arith.constant 0 : index
    %c120 = arith.constant 120 : index
    %130 = vector.load %arg14[%c0_215, %c0_216, %c120] : memref<4x4x200xbf16, #tpu.memory_space<vmem>>, vector<4x4x16xbf16>
    tpu.vector_store %arg14[%c0_215, %c0_216, %c120], %129 {strides = array<i32>} : memref<4x4x200xbf16, #tpu.memory_space<vmem>>, vector<4x4x16xbf16>,
    %c1_217 = arith.constant 1 : index
    %c1_218 = arith.constant 1 : index
    %c1_219 = arith.constant 1 : index
    %c0_220 = arith.constant 0 : index
    %131 = vector.load %arg11[%c1_217, %c1_218, %c1_219, %c0_220] : memref<2x6x6x64xbf16, #tpu.memory_space<vmem>>, vector<1x4x4x16xbf16>
    %132 = vector.shape_cast %131 : vector<1x4x4x16xbf16> to vector<4x4x16xbf16>
    %c0_221 = arith.constant 0 : index
    %c0_222 = arith.constant 0 : index
    %c136 = arith.constant 136 : index
    %133 = vector.load %arg14[%c0_221, %c0_222, %c136] : memref<4x4x200xbf16, #tpu.memory_space<vmem>>, vector<4x4x16xbf16>
    tpu.vector_store %arg14[%c0_221, %c0_222, %c136], %132 {strides = array<i32>} : memref<4x4x200xbf16, #tpu.memory_space<vmem>>, vector<4x4x16xbf16>,
    %c1_223 = arith.constant 1 : index
    %c1_224 = arith.constant 1 : index
    %c2_225 = arith.constant 2 : index
    %c0_226 = arith.constant 0 : index
    %134 = vector.load %arg11[%c1_223, %c1_224, %c2_225, %c0_226] : memref<2x6x6x64xbf16, #tpu.memory_space<vmem>>, vector<1x4x4x8xbf16>
    %135 = vector.shape_cast %134 : vector<1x4x4x8xbf16> to vector<4x4x8xbf16>
    %c0_227 = arith.constant 0 : index
    %c0_228 = arith.constant 0 : index
    %c152 = arith.constant 152 : index
    %136 = vector.load %arg14[%c0_227, %c0_228, %c152] : memref<4x4x200xbf16, #tpu.memory_space<vmem>>, vector<4x4x8xbf16>
    tpu.vector_store %arg14[%c0_227, %c0_228, %c152], %135 {strides = array<i32>} : memref<4x4x200xbf16, #tpu.memory_space<vmem>>, vector<4x4x8xbf16>,
    %c0_229 = arith.constant 0 : index
    %c2_230 = arith.constant 2 : index
    %c0_231 = arith.constant 0 : index
    %c0_232 = arith.constant 0 : index
    %137 = vector.load %arg11[%c0_229, %c2_230, %c0_231, %c0_232] : memref<2x6x6x64xbf16, #tpu.memory_space<vmem>>, vector<1x4x4x16xbf16>
    %138 = vector.shape_cast %137 : vector<1x4x4x16xbf16> to vector<4x4x16xbf16>
    %c0_233 = arith.constant 0 : index
    %c0_234 = arith.constant 0 : index
    %c160 = arith.constant 160 : index
    %139 = vector.load %arg14[%c0_233, %c0_234, %c160] : memref<4x4x200xbf16, #tpu.memory_space<vmem>>, vector<4x4x16xbf16>
    tpu.vector_store %arg14[%c0_233, %c0_234, %c160], %138 {strides = array<i32>} : memref<4x4x200xbf16, #tpu.memory_space<vmem>>, vector<4x4x16xbf16>,
    %c0_235 = arith.constant 0 : index
    %c2_236 = arith.constant 2 : index
    %c1_237 = arith.constant 1 : index
    %c0_238 = arith.constant 0 : index
    %140 = vector.load %arg11[%c0_235, %c2_236, %c1_237, %c0_238] : memref<2x6x6x64xbf16, #tpu.memory_space<vmem>>, vector<1x4x4x16xbf16>
    %141 = vector.shape_cast %140 : vector<1x4x4x16xbf16> to vector<4x4x16xbf16>
    %c0_239 = arith.constant 0 : index
    %c0_240 = arith.constant 0 : index
    %c176 = arith.constant 176 : index
    %142 = vector.load %arg14[%c0_239, %c0_240, %c176] : memref<4x4x200xbf16, #tpu.memory_space<vmem>>, vector<4x4x16xbf16>
    tpu.vector_store %arg14[%c0_239, %c0_240, %c176], %141 {strides = array<i32>} : memref<4x4x200xbf16, #tpu.memory_space<vmem>>, vector<4x4x16xbf16>,
    %c0_241 = arith.constant 0 : index
    %c2_242 = arith.constant 2 : index
    %c2_243 = arith.constant 2 : index
    %c0_244 = arith.constant 0 : index
    %143 = vector.load %arg11[%c0_241, %c2_242, %c2_243, %c0_244] : memref<2x6x6x64xbf16, #tpu.memory_space<vmem>>, vector<1x4x4x8xbf16>
    %144 = vector.shape_cast %143 : vector<1x4x4x8xbf16> to vector<4x4x8xbf16>
    %c0_245 = arith.constant 0 : index
    %c0_246 = arith.constant 0 : index
    %c192 = arith.constant 192 : index
    %145 = vector.load %arg14[%c0_245, %c0_246, %c192] : memref<4x4x200xbf16, #tpu.memory_space<vmem>>, vector<4x4x8xbf16>
    tpu.vector_store %arg14[%c0_245, %c0_246, %c192], %144 {strides = array<i32>} : memref<4x4x200xbf16, #tpu.memory_space<vmem>>, vector<4x4x8xbf16>,
    %c0_247 = arith.constant 0 : index
    %c0_248 = arith.constant 0 : index
    %c0_249 = arith.constant 0 : index
    %146 = vector.load %arg14[%c0_247, %c0_248, %c0_249] : memref<4x4x200xbf16, #tpu.memory_space<vmem>>, vector<4x4x200xbf16>
    %147 = vector.shape_cast %146 : vector<4x4x200xbf16> to vector<16x200xbf16>
    %cst_250 = arith.constant dense<0.000000e+00> : vector<16x128xf32>
    %148 = tpu.matmul %147, %93, %cst_250 {dimension_numbers = #tpu.dot_dimension_numbers<[1], [0], [0], [1], [0, 0, 1, 1], [], []>} : vector<16x200xbf16>, vector<200x128xbf16>, vector<16x128xf32> -> vector<16x128xf32>
    %149 = vector.broadcast %94 : vector<1x128xf32> to vector<16x128xf32>
    %150 = arith.addf %148, %149 : vector<16x128xf32>
    %cst_251 = arith.constant 0.000000e+00 : f32
    %151 = vector.broadcast %cst_251 : f32 to vector<16x128xf32>
    %152 = arith.cmpf oge, %150, %151 : vector<16x128xf32>
    %cst_252 = arith.constant 2.000000e-01 : f32
    %153 = vector.broadcast %cst_252 : f32 to vector<16x128xf32>
    %154 = arith.mulf %153, %150 : vector<16x128xf32>
    %155 = arith.select %152, %150, %154 : vector<16x128xi1>, vector<16x128xf32>
    %156 = vector.extract_strided_slice %155 {offsets = [0, 0], sizes = [16, 16], strides = [1, 1]} : vector<16x128xf32> to vector<16x16xf32>
    %157 = arith.truncf %156 : vector<16x16xf32> to vector<16x16xbf16>
    %158 = vector.shape_cast %157 : vector<16x16xbf16> to vector<4x4x16xbf16>
    %159 = vector.shape_cast %158 : vector<4x4x16xbf16> to vector<2x2x4x16xbf16>
    %160 = vector.extract_strided_slice %159 {offsets = [0, 0, 0, 0], sizes = [2, 1, 4, 16], strides = [1, 1, 1, 1]} : vector<2x2x4x16xbf16> to vector<2x1x4x16xbf16>
    %161 = vector.shape_cast %160 : vector<2x1x4x16xbf16> to vector<2x4x16xbf16>
    %162 = vector.shape_cast %161 : vector<2x4x16xbf16> to vector<2x2x2x16xbf16>
    %163 = vector.extract_strided_slice %162 {offsets = [0, 0, 0, 0], sizes = [2, 2, 1, 16], strides = [1, 1, 1, 1]} : vector<2x2x2x16xbf16> to vector<2x2x1x16xbf16>
    %164 = vector.shape_cast %163 : vector<2x2x1x16xbf16> to vector<2x2x16xbf16>
    %c0_253 = arith.constant 0 : index
    %c1_254 = arith.constant 1 : index
    %c1_255 = arith.constant 1 : index
    %c0_256 = arith.constant 0 : index
    %165 = vector.load %arg12[%c0_253, %c1_254, %c1_255, %c0_256] : memref<2x4x4x32xbf16, #tpu.memory_space<vmem>>, vector<1x2x2x16xbf16>
    %166 = vector.shape_cast %165 : vector<1x2x2x16xbf16> to vector<2x2x16xbf16>
    %167 = vector.shape_cast %164 : vector<2x2x16xbf16> to vector<1x2x2x16xbf16>
    tpu.vector_store %arg12[%c0_253, %c1_254, %c1_255, %c0_256], %167 {strides = array<i32>} : memref<2x4x4x32xbf16, #tpu.memory_space<vmem>>, vector<1x2x2x16xbf16>,
    %168 = vector.extract_strided_slice %162 {offsets = [0, 0, 1, 0], sizes = [2, 2, 1, 16], strides = [1, 1, 1, 1]} : vector<2x2x2x16xbf16> to vector<2x2x1x16xbf16>
    %169 = vector.shape_cast %168 : vector<2x2x1x16xbf16> to vector<2x2x16xbf16>
    %c0_257 = arith.constant 0 : index
    %c1_258 = arith.constant 1 : index
    %c1_259 = arith.constant 1 : index
    %c16_260 = arith.constant 16 : index
    %170 = vector.load %arg12[%c0_257, %c1_258, %c1_259, %c16_260] : memref<2x4x4x32xbf16, #tpu.memory_space<vmem>>, vector<1x2x2x16xbf16>
    %171 = vector.shape_cast %170 : vector<1x2x2x16xbf16> to vector<2x2x16xbf16>
    %172 = vector.shape_cast %169 : vector<2x2x16xbf16> to vector<1x2x2x16xbf16>
    tpu.vector_store %arg12[%c0_257, %c1_258, %c1_259, %c16_260], %172 {strides = array<i32>} : memref<2x4x4x32xbf16, #tpu.memory_space<vmem>>, vector<1x2x2x16xbf16>,
    %173 = vector.extract_strided_slice %159 {offsets = [0, 1, 0, 0], sizes = [2, 1, 4, 16], strides = [1, 1, 1, 1]} : vector<2x2x4x16xbf16> to vector<2x1x4x16xbf16>
    %174 = vector.shape_cast %173 : vector<2x1x4x16xbf16> to vector<2x4x16xbf16>
    %175 = vector.shape_cast %174 : vector<2x4x16xbf16> to vector<2x2x2x16xbf16>
    %176 = vector.extract_strided_slice %175 {offsets = [0, 0, 0, 0], sizes = [2, 2, 1, 16], strides = [1, 1, 1, 1]} : vector<2x2x2x16xbf16> to vector<2x2x1x16xbf16>
    %177 = vector.shape_cast %176 : vector<2x2x1x16xbf16> to vector<2x2x16xbf16>
    %c1_261 = arith.constant 1 : index
    %c1_262 = arith.constant 1 : index
    %c1_263 = arith.constant 1 : index
    %c0_264 = arith.constant 0 : index
    %178 = vector.load %arg12[%c1_261, %c1_262, %c1_263, %c0_264] : memref<2x4x4x32xbf16, #tpu.memory_space<vmem>>, vector<1x2x2x16xbf16>
    %179 = vector.shape_cast %178 : vector<1x2x2x16xbf16> to vector<2x2x16xbf16>
    %180 = vector.shape_cast %177 : vector<2x2x16xbf16> to vector<1x2x2x16xbf16>
    tpu.vector_store %arg12[%c1_261, %c1_262, %c1_263, %c0_264], %180 {strides = array<i32>} : memref<2x4x4x32xbf16, #tpu.memory_space<vmem>>, vector<1x2x2x16xbf16>,
    %181 = vector.extract_strided_slice %175 {offsets = [0, 0, 1, 0], sizes = [2, 2, 1, 16], strides = [1, 1, 1, 1]} : vector<2x2x2x16xbf16> to vector<2x2x1x16xbf16>
    %182 = vector.shape_cast %181 : vector<2x2x1x16xbf16> to vector<2x2x16xbf16>
    %c1_265 = arith.constant 1 : index
    %c1_266 = arith.constant 1 : index
    %c1_267 = arith.constant 1 : index
    %c16_268 = arith.constant 16 : index
    %183 = vector.load %arg12[%c1_265, %c1_266, %c1_267, %c16_268] : memref<2x4x4x32xbf16, #tpu.memory_space<vmem>>, vector<1x2x2x16xbf16>
    %184 = vector.shape_cast %183 : vector<1x2x2x16xbf16> to vector<2x2x16xbf16>
    %185 = vector.shape_cast %182 : vector<2x2x16xbf16> to vector<1x2x2x16xbf16>
    tpu.vector_store %arg12[%c1_265, %c1_266, %c1_267, %c16_268], %185 {strides = array<i32>} : memref<2x4x4x32xbf16, #tpu.memory_space<vmem>>, vector<1x2x2x16xbf16>,
    %c0_269 = arith.constant 0 : index
    %c0_270 = arith.constant 0 : index
    %186 = vector.load %arg6[%c0_269, %c0_270] : memref<400x128xbf16, #tpu.memory_space<vmem>>, vector<400x128xbf16>
    %c0_271 = arith.constant 0 : index
    %c0_272 = arith.constant 0 : index
    %187 = vector.load %arg7[%c0_271, %c0_272] : memref<1x128xf32, #tpu.memory_space<vmem>>, vector<1x128xf32>
    %cst_273 = arith.constant 0.000000e+00 : bf16
    %188 = vector.broadcast %cst_273 : bf16 to vector<2x1x3x64xbf16>
    %cst_274 = arith.constant 0.000000e+00 : bf16
    %189 = vector.broadcast %cst_274 : bf16 to vector<2x3x1x64xbf16>
    %c0_275 = arith.constant 0 : index
    %c0_276 = arith.constant 0 : index
    %c0_277 = arith.constant 0 : index
    %c0_278 = arith.constant 0 : index
    %190 = vector.load %arg11[%c0_275, %c0_276, %c0_277, %c0_278] : memref<2x6x6x64xbf16, #tpu.memory_space<vmem>>, vector<2x1x3x64xbf16>
    tpu.vector_store %arg11[%c0_275, %c0_276, %c0_277, %c0_278], %188 {strides = array<i32>} : memref<2x6x6x64xbf16, #tpu.memory_space<vmem>>, vector<2x1x3x64xbf16>,
    %c0_279 = arith.constant 0 : index
    %c2_280 = arith.constant 2 : index
    %c0_281 = arith.constant 0 : index
    %c0_282 = arith.constant 0 : index
    %191 = vector.load %arg11[%c0_279, %c2_280, %c0_281, %c0_282] : memref<2x6x6x64xbf16, #tpu.memory_space<vmem>>, vector<2x1x3x64xbf16>
    tpu.vector_store %arg11[%c0_279, %c2_280, %c0_281, %c0_282], %188 {strides = array<i32>} : memref<2x6x6x64xbf16, #tpu.memory_space<vmem>>, vector<2x1x3x64xbf16>,
    %c0_283 = arith.constant 0 : index
    %c0_284 = arith.constant 0 : index
    %c0_285 = arith.constant 0 : index
    %c0_286 = arith.constant 0 : index
    %192 = vector.load %arg11[%c0_283, %c0_284, %c0_285, %c0_286] : memref<2x6x6x64xbf16, #tpu.memory_space<vmem>>, vector<2x3x1x64xbf16>
    tpu.vector_store %arg11[%c0_283, %c0_284, %c0_285, %c0_286], %189 {strides = array<i32>} : memref<2x6x6x64xbf16, #tpu.memory_space<vmem>>, vector<2x3x1x64xbf16>,
    %c0_287 = arith.constant 0 : index
    %c0_288 = arith.constant 0 : index
    %c2_289 = arith.constant 2 : index
    %c0_290 = arith.constant 0 : index
    %193 = vector.load %arg11[%c0_287, %c0_288, %c2_289, %c0_290] : memref<2x6x6x64xbf16, #tpu.memory_space<vmem>>, vector<2x3x1x64xbf16>
    tpu.vector_store %arg11[%c0_287, %c0_288, %c2_289, %c0_290], %189 {strides = array<i32>} : memref<2x6x6x64xbf16, #tpu.memory_space<vmem>>, vector<2x3x1x64xbf16>,
    %c0_291 = arith.constant 0 : index
    %c0_292 = arith.constant 0 : index
    %c0_293 = arith.constant 0 : index
    %c0_294 = arith.constant 0 : index
    %194 = vector.load %arg12[%c0_291, %c0_292, %c0_293, %c0_294] : memref<2x4x4x32xbf16, #tpu.memory_space<vmem>>, vector<1x2x2x32xbf16>
    %195 = vector.shape_cast %194 : vector<1x2x2x32xbf16> to vector<2x2x32xbf16>
    %c0_295 = arith.constant 0 : index
    %c0_296 = arith.constant 0 : index
    %c0_297 = arith.constant 0 : index
    %196 = vector.load %arg15[%c0_295, %c0_296, %c0_297] : memref<2x2x400xbf16, #tpu.memory_space<vmem>>, vector<2x2x32xbf16>
    tpu.vector_store %arg15[%c0_295, %c0_296, %c0_297], %195 {strides = array<i32>} : memref<2x2x400xbf16, #tpu.memory_space<vmem>>, vector<2x2x32xbf16>,
    %c0_298 = arith.constant 0 : index
    %c0_299 = arith.constant 0 : index
    %c1_300 = arith.constant 1 : index
    %c0_301 = arith.constant 0 : index
    %197 = vector.load %arg12[%c0_298, %c0_299, %c1_300, %c0_301] : memref<2x4x4x32xbf16, #tpu.memory_space<vmem>>, vector<1x2x2x32xbf16>
    %198 = vector.shape_cast %197 : vector<1x2x2x32xbf16> to vector<2x2x32xbf16>
    %c0_302 = arith.constant 0 : index
    %c0_303 = arith.constant 0 : index
    %c32_304 = arith.constant 32 : index
    %199 = vector.load %arg15[%c0_302, %c0_303, %c32_304] : memref<2x2x400xbf16, #tpu.memory_space<vmem>>, vector<2x2x32xbf16>
    tpu.vector_store %arg15[%c0_302, %c0_303, %c32_304], %198 {strides = array<i32>} : memref<2x2x400xbf16, #tpu.memory_space<vmem>>, vector<2x2x32xbf16>,
    %c0_305 = arith.constant 0 : index
    %c0_306 = arith.constant 0 : index
    %c2_307 = arith.constant 2 : index
    %c0_308 = arith.constant 0 : index
    %200 = vector.load %arg12[%c0_305, %c0_306, %c2_307, %c0_308] : memref<2x4x4x32xbf16, #tpu.memory_space<vmem>>, vector<1x2x2x16xbf16>
    %201 = vector.shape_cast %200 : vector<1x2x2x16xbf16> to vector<2x2x16xbf16>
    %c0_309 = arith.constant 0 : index
    %c0_310 = arith.constant 0 : index
    %c64 = arith.constant 64 : index
    %202 = vector.load %arg15[%c0_309, %c0_310, %c64] : memref<2x2x400xbf16, #tpu.memory_space<vmem>>, vector<2x2x16xbf16>
    tpu.vector_store %arg15[%c0_309, %c0_310, %c64], %201 {strides = array<i32>} : memref<2x2x400xbf16, #tpu.memory_space<vmem>>, vector<2x2x16xbf16>,
    %c1_311 = arith.constant 1 : index
    %c0_312 = arith.constant 0 : index
    %c0_313 = arith.constant 0 : index
    %c0_314 = arith.constant 0 : index
    %203 = vector.load %arg12[%c1_311, %c0_312, %c0_313, %c0_314] : memref<2x4x4x32xbf16, #tpu.memory_space<vmem>>, vector<1x2x2x32xbf16>
    %204 = vector.shape_cast %203 : vector<1x2x2x32xbf16> to vector<2x2x32xbf16>
    %c0_315 = arith.constant 0 : index
    %c0_316 = arith.constant 0 : index
    %c80_317 = arith.constant 80 : index
    %205 = vector.load %arg15[%c0_315, %c0_316, %c80_317] : memref<2x2x400xbf16, #tpu.memory_space<vmem>>, vector<2x2x32xbf16>
    tpu.vector_store %arg15[%c0_315, %c0_316, %c80_317], %204 {strides = array<i32>} : memref<2x2x400xbf16, #tpu.memory_space<vmem>>, vector<2x2x32xbf16>,
    %c1_318 = arith.constant 1 : index
    %c0_319 = arith.constant 0 : index
    %c1_320 = arith.constant 1 : index
    %c0_321 = arith.constant 0 : index
    %206 = vector.load %arg12[%c1_318, %c0_319, %c1_320, %c0_321] : memref<2x4x4x32xbf16, #tpu.memory_space<vmem>>, vector<1x2x2x32xbf16>
    %207 = vector.shape_cast %206 : vector<1x2x2x32xbf16> to vector<2x2x32xbf16>
    %c0_322 = arith.constant 0 : index
    %c0_323 = arith.constant 0 : index
    %c112_324 = arith.constant 112 : index
    %208 = vector.load %arg15[%c0_322, %c0_323, %c112_324] : memref<2x2x400xbf16, #tpu.memory_space<vmem>>, vector<2x2x32xbf16>
    tpu.vector_store %arg15[%c0_322, %c0_323, %c112_324], %207 {strides = array<i32>} : memref<2x2x400xbf16, #tpu.memory_space<vmem>>, vector<2x2x32xbf16>,
    %c1_325 = arith.constant 1 : index
    %c0_326 = arith.constant 0 : index
    %c2_327 = arith.constant 2 : index
    %c0_328 = arith.constant 0 : index
    %209 = vector.load %arg12[%c1_325, %c0_326, %c2_327, %c0_328] : memref<2x4x4x32xbf16, #tpu.memory_space<vmem>>, vector<1x2x2x16xbf16>
    %210 = vector.shape_cast %209 : vector<1x2x2x16xbf16> to vector<2x2x16xbf16>
    %c0_329 = arith.constant 0 : index
    %c0_330 = arith.constant 0 : index
    %c144 = arith.constant 144 : index
    %211 = vector.load %arg15[%c0_329, %c0_330, %c144] : memref<2x2x400xbf16, #tpu.memory_space<vmem>>, vector<2x2x16xbf16>
    tpu.vector_store %arg15[%c0_329, %c0_330, %c144], %210 {strides = array<i32>} : memref<2x2x400xbf16, #tpu.memory_space<vmem>>, vector<2x2x16xbf16>,
    %c0_331 = arith.constant 0 : index
    %c1_332 = arith.constant 1 : index
    %c0_333 = arith.constant 0 : index
    %c0_334 = arith.constant 0 : index
    %212 = vector.load %arg12[%c0_331, %c1_332, %c0_333, %c0_334] : memref<2x4x4x32xbf16, #tpu.memory_space<vmem>>, vector<1x2x2x32xbf16>
    %213 = vector.shape_cast %212 : vector<1x2x2x32xbf16> to vector<2x2x32xbf16>
    %c0_335 = arith.constant 0 : index
    %c0_336 = arith.constant 0 : index
    %c160_337 = arith.constant 160 : index
    %214 = vector.load %arg15[%c0_335, %c0_336, %c160_337] : memref<2x2x400xbf16, #tpu.memory_space<vmem>>, vector<2x2x32xbf16>
    tpu.vector_store %arg15[%c0_335, %c0_336, %c160_337], %213 {strides = array<i32>} : memref<2x2x400xbf16, #tpu.memory_space<vmem>>, vector<2x2x32xbf16>,
    %c0_338 = arith.constant 0 : index
    %c1_339 = arith.constant 1 : index
    %c1_340 = arith.constant 1 : index
    %c0_341 = arith.constant 0 : index
    %215 = vector.load %arg12[%c0_338, %c1_339, %c1_340, %c0_341] : memref<2x4x4x32xbf16, #tpu.memory_space<vmem>>, vector<1x2x2x32xbf16>
    %216 = vector.shape_cast %215 : vector<1x2x2x32xbf16> to vector<2x2x32xbf16>
    %c0_342 = arith.constant 0 : index
    %c0_343 = arith.constant 0 : index
    %c192_344 = arith.constant 192 : index
    %217 = vector.load %arg15[%c0_342, %c0_343, %c192_344] : memref<2x2x400xbf16, #tpu.memory_space<vmem>>, vector<2x2x32xbf16>
    tpu.vector_store %arg15[%c0_342, %c0_343, %c192_344], %216 {strides = array<i32>} : memref<2x2x400xbf16, #tpu.memory_space<vmem>>, vector<2x2x32xbf16>,
    %c0_345 = arith.constant 0 : index
    %c1_346 = arith.constant 1 : index
    %c2_347 = arith.constant 2 : index
    %c0_348 = arith.constant 0 : index
    %218 = vector.load %arg12[%c0_345, %c1_346, %c2_347, %c0_348] : memref<2x4x4x32xbf16, #tpu.memory_space<vmem>>, vector<1x2x2x16xbf16>
    %219 = vector.shape_cast %218 : vector<1x2x2x16xbf16> to vector<2x2x16xbf16>
    %c0_349 = arith.constant 0 : index
    %c0_350 = arith.constant 0 : index
    %c224 = arith.constant 224 : index
    %220 = vector.load %arg15[%c0_349, %c0_350, %c224] : memref<2x2x400xbf16, #tpu.memory_space<vmem>>, vector<2x2x16xbf16>
    tpu.vector_store %arg15[%c0_349, %c0_350, %c224], %219 {strides = array<i32>} : memref<2x2x400xbf16, #tpu.memory_space<vmem>>, vector<2x2x16xbf16>,
    %c1_351 = arith.constant 1 : index
    %c1_352 = arith.constant 1 : index
    %c0_353 = arith.constant 0 : index
    %c0_354 = arith.constant 0 : index
    %221 = vector.load %arg12[%c1_351, %c1_352, %c0_353, %c0_354] : memref<2x4x4x32xbf16, #tpu.memory_space<vmem>>, vector<1x2x2x32xbf16>
    %222 = vector.shape_cast %221 : vector<1x2x2x32xbf16> to vector<2x2x32xbf16>
    %c0_355 = arith.constant 0 : index
    %c0_356 = arith.constant 0 : index
    %c240 = arith.constant 240 : index
    %223 = vector.load %arg15[%c0_355, %c0_356, %c240] : memref<2x2x400xbf16, #tpu.memory_space<vmem>>, vector<2x2x32xbf16>
    tpu.vector_store %arg15[%c0_355, %c0_356, %c240], %222 {strides = array<i32>} : memref<2x2x400xbf16, #tpu.memory_space<vmem>>, vector<2x2x32xbf16>,
    %c1_357 = arith.constant 1 : index
    %c1_358 = arith.constant 1 : index
    %c1_359 = arith.constant 1 : index
    %c0_360 = arith.constant 0 : index
    %224 = vector.load %arg12[%c1_357, %c1_358, %c1_359, %c0_360] : memref<2x4x4x32xbf16, #tpu.memory_space<vmem>>, vector<1x2x2x32xbf16>
    %225 = vector.shape_cast %224 : vector<1x2x2x32xbf16> to vector<2x2x32xbf16>
    %c0_361 = arith.constant 0 : index
    %c0_362 = arith.constant 0 : index
    %c272 = arith.constant 272 : index
    %226 = vector.load %arg15[%c0_361, %c0_362, %c272] : memref<2x2x400xbf16, #tpu.memory_space<vmem>>, vector<2x2x32xbf16>
    tpu.vector_store %arg15[%c0_361, %c0_362, %c272], %225 {strides = array<i32>} : memref<2x2x400xbf16, #tpu.memory_space<vmem>>, vector<2x2x32xbf16>,
    %c1_363 = arith.constant 1 : index
    %c1_364 = arith.constant 1 : index
    %c2_365 = arith.constant 2 : index
    %c0_366 = arith.constant 0 : index
    %227 = vector.load %arg12[%c1_363, %c1_364, %c2_365, %c0_366] : memref<2x4x4x32xbf16, #tpu.memory_space<vmem>>, vector<1x2x2x16xbf16>
    %228 = vector.shape_cast %227 : vector<1x2x2x16xbf16> to vector<2x2x16xbf16>
    %c0_367 = arith.constant 0 : index
    %c0_368 = arith.constant 0 : index
    %c304 = arith.constant 304 : index
    %229 = vector.load %arg15[%c0_367, %c0_368, %c304] : memref<2x2x400xbf16, #tpu.memory_space<vmem>>, vector<2x2x16xbf16>
    tpu.vector_store %arg15[%c0_367, %c0_368, %c304], %228 {strides = array<i32>} : memref<2x2x400xbf16, #tpu.memory_space<vmem>>, vector<2x2x16xbf16>,
    %c0_369 = arith.constant 0 : index
    %c2_370 = arith.constant 2 : index
    %c0_371 = arith.constant 0 : index
    %c0_372 = arith.constant 0 : index
    %230 = vector.load %arg12[%c0_369, %c2_370, %c0_371, %c0_372] : memref<2x4x4x32xbf16, #tpu.memory_space<vmem>>, vector<1x2x2x32xbf16>
    %231 = vector.shape_cast %230 : vector<1x2x2x32xbf16> to vector<2x2x32xbf16>
    %c0_373 = arith.constant 0 : index
    %c0_374 = arith.constant 0 : index
    %c320 = arith.constant 320 : index
    %232 = vector.load %arg15[%c0_373, %c0_374, %c320] : memref<2x2x400xbf16, #tpu.memory_space<vmem>>, vector<2x2x32xbf16>
    tpu.vector_store %arg15[%c0_373, %c0_374, %c320], %231 {strides = array<i32>} : memref<2x2x400xbf16, #tpu.memory_space<vmem>>, vector<2x2x32xbf16>,
    %c0_375 = arith.constant 0 : index
    %c2_376 = arith.constant 2 : index
    %c1_377 = arith.constant 1 : index
    %c0_378 = arith.constant 0 : index
    %233 = vector.load %arg12[%c0_375, %c2_376, %c1_377, %c0_378] : memref<2x4x4x32xbf16, #tpu.memory_space<vmem>>, vector<1x2x2x32xbf16>
    %234 = vector.shape_cast %233 : vector<1x2x2x32xbf16> to vector<2x2x32xbf16>
    %c0_379 = arith.constant 0 : index
    %c0_380 = arith.constant 0 : index
    %c352 = arith.constant 352 : index
    %235 = vector.load %arg15[%c0_379, %c0_380, %c352] : memref<2x2x400xbf16, #tpu.memory_space<vmem>>, vector<2x2x32xbf16>
    tpu.vector_store %arg15[%c0_379, %c0_380, %c352], %234 {strides = array<i32>} : memref<2x2x400xbf16, #tpu.memory_space<vmem>>, vector<2x2x32xbf16>,
    %c0_381 = arith.constant 0 : index
    %c2_382 = arith.constant 2 : index
    %c2_383 = arith.constant 2 : index
    %c0_384 = arith.constant 0 : index
    %236 = vector.load %arg12[%c0_381, %c2_382, %c2_383, %c0_384] : memref<2x4x4x32xbf16, #tpu.memory_space<vmem>>, vector<1x2x2x16xbf16>
    %237 = vector.shape_cast %236 : vector<1x2x2x16xbf16> to vector<2x2x16xbf16>
    %c0_385 = arith.constant 0 : index
    %c0_386 = arith.constant 0 : index
    %c384 = arith.constant 384 : index
    %238 = vector.load %arg15[%c0_385, %c0_386, %c384] : memref<2x2x400xbf16, #tpu.memory_space<vmem>>, vector<2x2x16xbf16>
    tpu.vector_store %arg15[%c0_385, %c0_386, %c384], %237 {strides = array<i32>} : memref<2x2x400xbf16, #tpu.memory_space<vmem>>, vector<2x2x16xbf16>,
    %c0_387 = arith.constant 0 : index
    %c0_388 = arith.constant 0 : index
    %c0_389 = arith.constant 0 : index
    %239 = vector.load %arg15[%c0_387, %c0_388, %c0_389] : memref<2x2x400xbf16, #tpu.memory_space<vmem>>, vector<2x2x400xbf16>
    %240 = vector.shape_cast %239 : vector<2x2x400xbf16> to vector<4x400xbf16>
    %cst_390 = arith.constant dense<0.000000e+00> : vector<4x128xf32>
    %241 = tpu.matmul %240, %186, %cst_390 {dimension_numbers = #tpu.dot_dimension_numbers<[1], [0], [0], [1], [0, 0, 1, 1], [], []>} : vector<4x400xbf16>, vector<400x128xbf16>, vector<4x128xf32> -> vector<4x128xf32>
    %242 = vector.broadcast %187 : vector<1x128xf32> to vector<4x128xf32>
    %243 = arith.addf %241, %242 : vector<4x128xf32>
    %cst_391 = arith.constant 0.000000e+00 : f32
    %244 = vector.broadcast %cst_391 : f32 to vector<4x128xf32>
    %245 = arith.cmpf oge, %243, %244 : vector<4x128xf32>
    %cst_392 = arith.constant 2.000000e-01 : f32
    %246 = vector.broadcast %cst_392 : f32 to vector<4x128xf32>
    %247 = arith.mulf %246, %243 : vector<4x128xf32>
    %248 = arith.select %245, %243, %247 : vector<4x128xi1>, vector<4x128xf32>
    %249 = vector.extract_strided_slice %248 {offsets = [0, 0], sizes = [4, 32], strides = [1, 1]} : vector<4x128xf32> to vector<4x32xf32>
    %250 = arith.truncf %249 : vector<4x32xf32> to vector<4x32xbf16>
    %251 = vector.shape_cast %250 : vector<4x32xbf16> to vector<2x2x32xbf16>
    %252 = vector.shape_cast %251 : vector<2x2x32xbf16> to vector<1x2x2x32xbf16>
    %253 = vector.extract_strided_slice %252 {offsets = [0, 0, 0, 0], sizes = [1, 1, 2, 32], strides = [1, 1, 1, 1]} : vector<1x2x2x32xbf16> to vector<1x1x2x32xbf16>
    %254 = vector.shape_cast %253 : vector<1x1x2x32xbf16> to vector<1x2x32xbf16>
    %255 = vector.shape_cast %254 : vector<1x2x32xbf16> to vector<1x1x2x32xbf16>
    %256 = vector.extract_strided_slice %255 {offsets = [0, 0, 0, 0], sizes = [1, 1, 1, 32], strides = [1, 1, 1, 1]} : vector<1x1x2x32xbf16> to vector<1x1x1x32xbf16>
    %257 = vector.shape_cast %256 : vector<1x1x1x32xbf16> to vector<1x1x32xbf16>
    %c0_393 = arith.constant 0 : index
    %c1_394 = arith.constant 1 : index
    %c1_395 = arith.constant 1 : index
    %c0_396 = arith.constant 0 : index
    %258 = vector.load %arg11[%c0_393, %c1_394, %c1_395, %c0_396] : memref<2x6x6x64xbf16, #tpu.memory_space<vmem>>, vector<1x1x1x32xbf16>
    %259 = vector.shape_cast %258 : vector<1x1x1x32xbf16> to vector<1x1x32xbf16>
    %260 = vector.shape_cast %257 : vector<1x1x32xbf16> to vector<1x1x1x32xbf16>
    tpu.vector_store %arg11[%c0_393, %c1_394, %c1_395, %c0_396], %260 {strides = array<i32>} : memref<2x6x6x64xbf16, #tpu.memory_space<vmem>>, vector<1x1x1x32xbf16>,
    %261 = vector.extract_strided_slice %255 {offsets = [0, 0, 1, 0], sizes = [1, 1, 1, 32], strides = [1, 1, 1, 1]} : vector<1x1x2x32xbf16> to vector<1x1x1x32xbf16>
    %262 = vector.shape_cast %261 : vector<1x1x1x32xbf16> to vector<1x1x32xbf16>
    %c0_397 = arith.constant 0 : index
    %c1_398 = arith.constant 1 : index
    %c1_399 = arith.constant 1 : index
    %c32_400 = arith.constant 32 : index
    %263 = vector.load %arg11[%c0_397, %c1_398, %c1_399, %c32_400] : memref<2x6x6x64xbf16, #tpu.memory_space<vmem>>, vector<1x1x1x32xbf16>
    %264 = vector.shape_cast %263 : vector<1x1x1x32xbf16> to vector<1x1x32xbf16>
    %265 = vector.shape_cast %262 : vector<1x1x32xbf16> to vector<1x1x1x32xbf16>
    tpu.vector_store %arg11[%c0_397, %c1_398, %c1_399, %c32_400], %265 {strides = array<i32>} : memref<2x6x6x64xbf16, #tpu.memory_space<vmem>>, vector<1x1x1x32xbf16>,
    %266 = vector.extract_strided_slice %252 {offsets = [0, 1, 0, 0], sizes = [1, 1, 2, 32], strides = [1, 1, 1, 1]} : vector<1x2x2x32xbf16> to vector<1x1x2x32xbf16>
    %267 = vector.shape_cast %266 : vector<1x1x2x32xbf16> to vector<1x2x32xbf16>
    %268 = vector.shape_cast %267 : vector<1x2x32xbf16> to vector<1x1x2x32xbf16>
    %269 = vector.extract_strided_slice %268 {offsets = [0, 0, 0, 0], sizes = [1, 1, 1, 32], strides = [1, 1, 1, 1]} : vector<1x1x2x32xbf16> to vector<1x1x1x32xbf16>
    %270 = vector.shape_cast %269 : vector<1x1x1x32xbf16> to vector<1x1x32xbf16>
    %c1_401 = arith.constant 1 : index
    %c1_402 = arith.constant 1 : index
    %c1_403 = arith.constant 1 : index
    %c0_404 = arith.constant 0 : index
    %271 = vector.load %arg11[%c1_401, %c1_402, %c1_403, %c0_404] : memref<2x6x6x64xbf16, #tpu.memory_space<vmem>>, vector<1x1x1x32xbf16>
    %272 = vector.shape_cast %271 : vector<1x1x1x32xbf16> to vector<1x1x32xbf16>
    %273 = vector.shape_cast %270 : vector<1x1x32xbf16> to vector<1x1x1x32xbf16>
    tpu.vector_store %arg11[%c1_401, %c1_402, %c1_403, %c0_404], %273 {strides = array<i32>} : memref<2x6x6x64xbf16, #tpu.memory_space<vmem>>, vector<1x1x1x32xbf16>,
    %274 = vector.extract_strided_slice %268 {offsets = [0, 0, 1, 0], sizes = [1, 1, 1, 32], strides = [1, 1, 1, 1]} : vector<1x1x2x32xbf16> to vector<1x1x1x32xbf16>
    %275 = vector.shape_cast %274 : vector<1x1x1x32xbf16> to vector<1x1x32xbf16>
    %c1_405 = arith.constant 1 : index
    %c1_406 = arith.constant 1 : index
    %c1_407 = arith.constant 1 : index
    %c32_408 = arith.constant 32 : index
    %276 = vector.load %arg11[%c1_405, %c1_406, %c1_407, %c32_408] : memref<2x6x6x64xbf16, #tpu.memory_space<vmem>>, vector<1x1x1x32xbf16>
    %277 = vector.shape_cast %276 : vector<1x1x1x32xbf16> to vector<1x1x32xbf16>
    %278 = vector.shape_cast %275 : vector<1x1x32xbf16> to vector<1x1x1x32xbf16>
    tpu.vector_store %arg11[%c1_405, %c1_406, %c1_407, %c32_408], %278 {strides = array<i32>} : memref<2x6x6x64xbf16, #tpu.memory_space<vmem>>, vector<1x1x1x32xbf16>,
    %c0_409 = arith.constant 0 : index
    %c0_410 = arith.constant 0 : index
    %279 = vector.load %arg8[%c0_409, %c0_410] : memref<800x128xbf16, #tpu.memory_space<vmem>>, vector<800x128xbf16>
    %c0_411 = arith.constant 0 : index
    %c0_412 = arith.constant 0 : index
    %280 = vector.load %arg9[%c0_411, %c0_412] : memref<1x128xf32, #tpu.memory_space<vmem>>, vector<1x128xf32>
    %c0_413 = arith.constant 0 : index
    %c0_414 = arith.constant 0 : index
    %c0_415 = arith.constant 0 : index
    %c0_416 = arith.constant 0 : index
    %281 = vector.load %arg11[%c0_413, %c0_414, %c0_415, %c0_416] : memref<2x6x6x64xbf16, #tpu.memory_space<vmem>>, vector<1x1x1x64xbf16>
    %282 = vector.shape_cast %281 : vector<1x1x1x64xbf16> to vector<1x1x64xbf16>
    %c0_417 = arith.constant 0 : index
    %c0_418 = arith.constant 0 : index
    %c0_419 = arith.constant 0 : index
    %283 = vector.load %arg16[%c0_417, %c0_418, %c0_419] : memref<1x1x800xbf16, #tpu.memory_space<vmem>>, vector<1x1x64xbf16>
    tpu.vector_store %arg16[%c0_417, %c0_418, %c0_419], %282 {strides = array<i32>} : memref<1x1x800xbf16, #tpu.memory_space<vmem>>, vector<1x1x64xbf16>,
    %c0_420 = arith.constant 0 : index
    %c0_421 = arith.constant 0 : index
    %c1_422 = arith.constant 1 : index
    %c0_423 = arith.constant 0 : index
    %284 = vector.load %arg11[%c0_420, %c0_421, %c1_422, %c0_423] : memref<2x6x6x64xbf16, #tpu.memory_space<vmem>>, vector<1x1x1x64xbf16>
    %285 = vector.shape_cast %284 : vector<1x1x1x64xbf16> to vector<1x1x64xbf16>
    %c0_424 = arith.constant 0 : index
    %c0_425 = arith.constant 0 : index
    %c64_426 = arith.constant 64 : index
    %286 = vector.load %arg16[%c0_424, %c0_425, %c64_426] : memref<1x1x800xbf16, #tpu.memory_space<vmem>>, vector<1x1x64xbf16>
    tpu.vector_store %arg16[%c0_424, %c0_425, %c64_426], %285 {strides = array<i32>} : memref<1x1x800xbf16, #tpu.memory_space<vmem>>, vector<1x1x64xbf16>,
    %c0_427 = arith.constant 0 : index
    %c0_428 = arith.constant 0 : index
    %c2_429 = arith.constant 2 : index
    %c0_430 = arith.constant 0 : index
    %287 = vector.load %arg11[%c0_427, %c0_428, %c2_429, %c0_430] : memref<2x6x6x64xbf16, #tpu.memory_space<vmem>>, vector<1x1x1x32xbf16>
    %288 = vector.shape_cast %287 : vector<1x1x1x32xbf16> to vector<1x1x32xbf16>
    %c0_431 = arith.constant 0 : index
    %c0_432 = arith.constant 0 : index
    %c128 = arith.constant 128 : index
    %289 = vector.load %arg16[%c0_431, %c0_432, %c128] : memref<1x1x800xbf16, #tpu.memory_space<vmem>>, vector<1x1x32xbf16>
    tpu.vector_store %arg16[%c0_431, %c0_432, %c128], %288 {strides = array<i32>} : memref<1x1x800xbf16, #tpu.memory_space<vmem>>, vector<1x1x32xbf16>,
    %c1_433 = arith.constant 1 : index
    %c0_434 = arith.constant 0 : index
    %c0_435 = arith.constant 0 : index
    %c0_436 = arith.constant 0 : index
    %290 = vector.load %arg11[%c1_433, %c0_434, %c0_435, %c0_436] : memref<2x6x6x64xbf16, #tpu.memory_space<vmem>>, vector<1x1x1x64xbf16>
    %291 = vector.shape_cast %290 : vector<1x1x1x64xbf16> to vector<1x1x64xbf16>
    %c0_437 = arith.constant 0 : index
    %c0_438 = arith.constant 0 : index
    %c160_439 = arith.constant 160 : index
    %292 = vector.load %arg16[%c0_437, %c0_438, %c160_439] : memref<1x1x800xbf16, #tpu.memory_space<vmem>>, vector<1x1x64xbf16>
    tpu.vector_store %arg16[%c0_437, %c0_438, %c160_439], %291 {strides = array<i32>} : memref<1x1x800xbf16, #tpu.memory_space<vmem>>, vector<1x1x64xbf16>,
    %c1_440 = arith.constant 1 : index
    %c0_441 = arith.constant 0 : index
    %c1_442 = arith.constant 1 : index
    %c0_443 = arith.constant 0 : index
    %293 = vector.load %arg11[%c1_440, %c0_441, %c1_442, %c0_443] : memref<2x6x6x64xbf16, #tpu.memory_space<vmem>>, vector<1x1x1x64xbf16>
    %294 = vector.shape_cast %293 : vector<1x1x1x64xbf16> to vector<1x1x64xbf16>
    %c0_444 = arith.constant 0 : index
    %c0_445 = arith.constant 0 : index
    %c224_446 = arith.constant 224 : index
    %295 = vector.load %arg16[%c0_444, %c0_445, %c224_446] : memref<1x1x800xbf16, #tpu.memory_space<vmem>>, vector<1x1x64xbf16>
    tpu.vector_store %arg16[%c0_444, %c0_445, %c224_446], %294 {strides = array<i32>} : memref<1x1x800xbf16, #tpu.memory_space<vmem>>, vector<1x1x64xbf16>,
    %c1_447 = arith.constant 1 : index
    %c0_448 = arith.constant 0 : index
    %c2_449 = arith.constant 2 : index
    %c0_450 = arith.constant 0 : index
    %296 = vector.load %arg11[%c1_447, %c0_448, %c2_449, %c0_450] : memref<2x6x6x64xbf16, #tpu.memory_space<vmem>>, vector<1x1x1x32xbf16>
    %297 = vector.shape_cast %296 : vector<1x1x1x32xbf16> to vector<1x1x32xbf16>
    %c0_451 = arith.constant 0 : index
    %c0_452 = arith.constant 0 : index
    %c288 = arith.constant 288 : index
    %298 = vector.load %arg16[%c0_451, %c0_452, %c288] : memref<1x1x800xbf16, #tpu.memory_space<vmem>>, vector<1x1x32xbf16>
    tpu.vector_store %arg16[%c0_451, %c0_452, %c288], %297 {strides = array<i32>} : memref<1x1x800xbf16, #tpu.memory_space<vmem>>, vector<1x1x32xbf16>,
    %c0_453 = arith.constant 0 : index
    %c1_454 = arith.constant 1 : index
    %c0_455 = arith.constant 0 : index
    %c0_456 = arith.constant 0 : index
    %299 = vector.load %arg11[%c0_453, %c1_454, %c0_455, %c0_456] : memref<2x6x6x64xbf16, #tpu.memory_space<vmem>>, vector<1x1x1x64xbf16>
    %300 = vector.shape_cast %299 : vector<1x1x1x64xbf16> to vector<1x1x64xbf16>
    %c0_457 = arith.constant 0 : index
    %c0_458 = arith.constant 0 : index
    %c320_459 = arith.constant 320 : index
    %301 = vector.load %arg16[%c0_457, %c0_458, %c320_459] : memref<1x1x800xbf16, #tpu.memory_space<vmem>>, vector<1x1x64xbf16>
    tpu.vector_store %arg16[%c0_457, %c0_458, %c320_459], %300 {strides = array<i32>} : memref<1x1x800xbf16, #tpu.memory_space<vmem>>, vector<1x1x64xbf16>,
    %c0_460 = arith.constant 0 : index
    %c1_461 = arith.constant 1 : index
    %c1_462 = arith.constant 1 : index
    %c0_463 = arith.constant 0 : index
    %302 = vector.load %arg11[%c0_460, %c1_461, %c1_462, %c0_463] : memref<2x6x6x64xbf16, #tpu.memory_space<vmem>>, vector<1x1x1x64xbf16>
    %303 = vector.shape_cast %302 : vector<1x1x1x64xbf16> to vector<1x1x64xbf16>
    %c0_464 = arith.constant 0 : index
    %c0_465 = arith.constant 0 : index
    %c384_466 = arith.constant 384 : index
    %304 = vector.load %arg16[%c0_464, %c0_465, %c384_466] : memref<1x1x800xbf16, #tpu.memory_space<vmem>>, vector<1x1x64xbf16>
    tpu.vector_store %arg16[%c0_464, %c0_465, %c384_466], %303 {strides = array<i32>} : memref<1x1x800xbf16, #tpu.memory_space<vmem>>, vector<1x1x64xbf16>,
    %c0_467 = arith.constant 0 : index
    %c1_468 = arith.constant 1 : index
    %c2_469 = arith.constant 2 : index
    %c0_470 = arith.constant 0 : index
    %305 = vector.load %arg11[%c0_467, %c1_468, %c2_469, %c0_470] : memref<2x6x6x64xbf16, #tpu.memory_space<vmem>>, vector<1x1x1x32xbf16>
    %306 = vector.shape_cast %305 : vector<1x1x1x32xbf16> to vector<1x1x32xbf16>
    %c0_471 = arith.constant 0 : index
    %c0_472 = arith.constant 0 : index
    %c448 = arith.constant 448 : index
    %307 = vector.load %arg16[%c0_471, %c0_472, %c448] : memref<1x1x800xbf16, #tpu.memory_space<vmem>>, vector<1x1x32xbf16>
    tpu.vector_store %arg16[%c0_471, %c0_472, %c448], %306 {strides = array<i32>} : memref<1x1x800xbf16, #tpu.memory_space<vmem>>, vector<1x1x32xbf16>,
    %c1_473 = arith.constant 1 : index
    %c1_474 = arith.constant 1 : index
    %c0_475 = arith.constant 0 : index
    %c0_476 = arith.constant 0 : index
    %308 = vector.load %arg11[%c1_473, %c1_474, %c0_475, %c0_476] : memref<2x6x6x64xbf16, #tpu.memory_space<vmem>>, vector<1x1x1x64xbf16>
    %309 = vector.shape_cast %308 : vector<1x1x1x64xbf16> to vector<1x1x64xbf16>
    %c0_477 = arith.constant 0 : index
    %c0_478 = arith.constant 0 : index
    %c480 = arith.constant 480 : index
    %310 = vector.load %arg16[%c0_477, %c0_478, %c480] : memref<1x1x800xbf16, #tpu.memory_space<vmem>>, vector<1x1x64xbf16>
    tpu.vector_store %arg16[%c0_477, %c0_478, %c480], %309 {strides = array<i32>} : memref<1x1x800xbf16, #tpu.memory_space<vmem>>, vector<1x1x64xbf16>,
    %c1_479 = arith.constant 1 : index
    %c1_480 = arith.constant 1 : index
    %c1_481 = arith.constant 1 : index
    %c0_482 = arith.constant 0 : index
    %311 = vector.load %arg11[%c1_479, %c1_480, %c1_481, %c0_482] : memref<2x6x6x64xbf16, #tpu.memory_space<vmem>>, vector<1x1x1x64xbf16>
    %312 = vector.shape_cast %311 : vector<1x1x1x64xbf16> to vector<1x1x64xbf16>
    %c0_483 = arith.constant 0 : index
    %c0_484 = arith.constant 0 : index
    %c544 = arith.constant 544 : index
    %313 = vector.load %arg16[%c0_483, %c0_484, %c544] : memref<1x1x800xbf16, #tpu.memory_space<vmem>>, vector<1x1x64xbf16>
    tpu.vector_store %arg16[%c0_483, %c0_484, %c544], %312 {strides = array<i32>} : memref<1x1x800xbf16, #tpu.memory_space<vmem>>, vector<1x1x64xbf16>,
    %c1_485 = arith.constant 1 : index
    %c1_486 = arith.constant 1 : index
    %c2_487 = arith.constant 2 : index
    %c0_488 = arith.constant 0 : index
    %314 = vector.load %arg11[%c1_485, %c1_486, %c2_487, %c0_488] : memref<2x6x6x64xbf16, #tpu.memory_space<vmem>>, vector<1x1x1x32xbf16>
    %315 = vector.shape_cast %314 : vector<1x1x1x32xbf16> to vector<1x1x32xbf16>
    %c0_489 = arith.constant 0 : index
    %c0_490 = arith.constant 0 : index
    %c608 = arith.constant 608 : index
    %316 = vector.load %arg16[%c0_489, %c0_490, %c608] : memref<1x1x800xbf16, #tpu.memory_space<vmem>>, vector<1x1x32xbf16>
    tpu.vector_store %arg16[%c0_489, %c0_490, %c608], %315 {strides = array<i32>} : memref<1x1x800xbf16, #tpu.memory_space<vmem>>, vector<1x1x32xbf16>,
    %c0_491 = arith.constant 0 : index
    %c2_492 = arith.constant 2 : index
    %c0_493 = arith.constant 0 : index
    %c0_494 = arith.constant 0 : index
    %317 = vector.load %arg11[%c0_491, %c2_492, %c0_493, %c0_494] : memref<2x6x6x64xbf16, #tpu.memory_space<vmem>>, vector<1x1x1x64xbf16>
    %318 = vector.shape_cast %317 : vector<1x1x1x64xbf16> to vector<1x1x64xbf16>
    %c0_495 = arith.constant 0 : index
    %c0_496 = arith.constant 0 : index
    %c640 = arith.constant 640 : index
    %319 = vector.load %arg16[%c0_495, %c0_496, %c640] : memref<1x1x800xbf16, #tpu.memory_space<vmem>>, vector<1x1x64xbf16>
    tpu.vector_store %arg16[%c0_495, %c0_496, %c640], %318 {strides = array<i32>} : memref<1x1x800xbf16, #tpu.memory_space<vmem>>, vector<1x1x64xbf16>,
    %c0_497 = arith.constant 0 : index
    %c2_498 = arith.constant 2 : index
    %c1_499 = arith.constant 1 : index
    %c0_500 = arith.constant 0 : index
    %320 = vector.load %arg11[%c0_497, %c2_498, %c1_499, %c0_500] : memref<2x6x6x64xbf16, #tpu.memory_space<vmem>>, vector<1x1x1x64xbf16>
    %321 = vector.shape_cast %320 : vector<1x1x1x64xbf16> to vector<1x1x64xbf16>
    %c0_501 = arith.constant 0 : index
    %c0_502 = arith.constant 0 : index
    %c704 = arith.constant 704 : index
    %322 = vector.load %arg16[%c0_501, %c0_502, %c704] : memref<1x1x800xbf16, #tpu.memory_space<vmem>>, vector<1x1x64xbf16>
    tpu.vector_store %arg16[%c0_501, %c0_502, %c704], %321 {strides = array<i32>} : memref<1x1x800xbf16, #tpu.memory_space<vmem>>, vector<1x1x64xbf16>,
    %c0_503 = arith.constant 0 : index
    %c2_504 = arith.constant 2 : index
    %c2_505 = arith.constant 2 : index
    %c0_506 = arith.constant 0 : index
    %323 = vector.load %arg11[%c0_503, %c2_504, %c2_505, %c0_506] : memref<2x6x6x64xbf16, #tpu.memory_space<vmem>>, vector<1x1x1x32xbf16>
    %324 = vector.shape_cast %323 : vector<1x1x1x32xbf16> to vector<1x1x32xbf16>
    %c0_507 = arith.constant 0 : index
    %c0_508 = arith.constant 0 : index
    %c768 = arith.constant 768 : index
    %325 = vector.load %arg16[%c0_507, %c0_508, %c768] : memref<1x1x800xbf16, #tpu.memory_space<vmem>>, vector<1x1x32xbf16>
    tpu.vector_store %arg16[%c0_507, %c0_508, %c768], %324 {strides = array<i32>} : memref<1x1x800xbf16, #tpu.memory_space<vmem>>, vector<1x1x32xbf16>,
    %c0_509 = arith.constant 0 : index
    %c0_510 = arith.constant 0 : index
    %c0_511 = arith.constant 0 : index
    %326 = vector.load %arg16[%c0_509, %c0_510, %c0_511] : memref<1x1x800xbf16, #tpu.memory_space<vmem>>, vector<1x1x800xbf16>
    %327 = vector.shape_cast %326 : vector<1x1x800xbf16> to vector<1x800xbf16>
    %cst_512 = arith.constant dense<0.000000e+00> : vector<1x128xf32>
    %328 = tpu.matmul %327, %279, %cst_512 {dimension_numbers = #tpu.dot_dimension_numbers<[1], [0], [0], [1], [0, 0, 1, 1], [], []>} : vector<1x800xbf16>, vector<800x128xbf16>, vector<1x128xf32> -> vector<1x128xf32>
    %329 = arith.addf %328, %280 : vector<1x128xf32>
    %cst_513 = arith.constant 0.000000e+00 : f32
    %330 = vector.broadcast %cst_513 : f32 to vector<1x128xf32>
    %331 = arith.cmpf oge, %329, %330 : vector<1x128xf32>
    %cst_514 = arith.constant 2.000000e-01 : f32
    %332 = vector.broadcast %cst_514 : f32 to vector<1x128xf32>
    %333 = arith.mulf %332, %329 : vector<1x128xf32>
    %334 = arith.select %331, %329, %333 : vector<1x128xi1>, vector<1x128xf32>
    %c0_515 = arith.constant 0 : index
    %c0_516 = arith.constant 0 : index
    %c0_517 = arith.constant 0 : index
    %335 = vector.load %arg10[%c0_515, %c0_516, %c0_517] : memref<1x1x128xf32, #tpu.memory_space<vmem>>, vector<1x1x128xf32>
    %336 = vector.shape_cast %335 : vector<1x1x128xf32> to vector<1x128xf32>
    %337 = vector.shape_cast %334 : vector<1x128xf32> to vector<1x1x128xf32>
    tpu.vector_store %arg10[%c0_515, %c0_516, %c0_517], %337 {strides = array<i32>} : memref<1x1x128xf32, #tpu.memory_space<vmem>>, vector<1x1x128xf32>,
    return
  }
  func.func @transform_0(%arg0: i32) -> (i32, i32, i32, i32) {
    %c0_i32 = arith.constant 0 : i32
    %c0_i32_0 = arith.constant 0 : i32
    %c0_i32_1 = arith.constant 0 : i32
    %c0_i32_2 = arith.constant 0 : i32
    return %arg0, %c0_i32, %c0_i32_0, %c0_i32_1 : i32, i32, i32, i32
  }
  func.func @transform_1(%arg0: i32) -> (i32, i32) {
    %c0_i32 = arith.constant 0 : i32
    %c0_i32_0 = arith.constant 0 : i32
    %c0_i32_1 = arith.constant 0 : i32
    return %c0_i32, %c0_i32_0 : i32, i32
  }
  func.func @transform_2(%arg0: i32) -> (i32, i32) {
    %c0_i32 = arith.constant 0 : i32
    %c0_i32_0 = arith.constant 0 : i32
    %c0_i32_1 = arith.constant 0 : i32
    return %c0_i32, %c0_i32_0 : i32, i32
  }
  func.func @transform_3(%arg0: i32) -> (i32, i32) {
    %c0_i32 = arith.constant 0 : i32
    %c0_i32_0 = arith.constant 0 : i32
    %c0_i32_1 = arith.constant 0 : i32
    return %c0_i32, %c0_i32_0 : i32, i32
  }
  func.func @transform_4(%arg0: i32) -> (i32, i32) {
    %c0_i32 = arith.constant 0 : i32
    %c0_i32_0 = arith.constant 0 : i32
    %c0_i32_1 = arith.constant 0 : i32
    return %c0_i32, %c0_i32_0 : i32, i32
  }
  func.func @transform_5(%arg0: i32) -> (i32, i32) {
    %c0_i32 = arith.constant 0 : i32
    %c0_i32_0 = arith.constant 0 : i32
    %c0_i32_1 = arith.constant 0 : i32
    return %c0_i32, %c0_i32_0 : i32, i32
  }
  func.func @transform_6(%arg0: i32) -> (i32, i32) {
    %c0_i32 = arith.constant 0 : i32
    %c0_i32_0 = arith.constant 0 : i32
    %c0_i32_1 = arith.constant 0 : i32
    return %c0_i32, %c0_i32_0 : i32, i32
  }
  func.func @transform_7(%arg0: i32) -> (i32, i32) {
    %c0_i32 = arith.constant 0 : i32
    %c0_i32_0 = arith.constant 0 : i32
    %c0_i32_1 = arith.constant 0 : i32
    return %c0_i32, %c0_i32_0 : i32, i32
  }
  func.func @transform_8(%arg0: i32) -> (i32, i32) {
    %c0_i32 = arith.constant 0 : i32
    %c0_i32_0 = arith.constant 0 : i32
    %c0_i32_1 = arith.constant 0 : i32
    return %c0_i32, %c0_i32_0 : i32, i32
  }
  func.func @transform_9(%arg0: i32) -> (i32, i32, i32) {
    %c0_i32 = arith.constant 0 : i32
    %c0_i32_0 = arith.constant 0 : i32
    %c0_i32_1 = arith.constant 0 : i32
    return %arg0, %c0_i32, %c0_i32_0 : i32, i32, i32
  }
}

</mosaic_0001>

<llo_original>
// kernel: tpu_custom_call.1
$region0: #{tpu_custom_call.1}
  #allocation0 [shape = 'u32[]', space=smem, size = 0x4, offset = 0x4, fixed_abs, tag = 'smem constant byte address 0x4 - core index']
  #allocation1 [shape = 'u32[144,128]{1,0:T(1,128)}', space=vmem, size = 0x12000, scoped, tag = 'internal scratch']
  #allocation2 [shape = 'bf16[2,6,6,64]{3,2,1,0:T(8,128)(2,1)}', space=vmem, size = 0x6000, scoped, tag = 'scratch operand']
  #allocation3 [shape = 'bf16[2,4,4,32]{3,2,1,0:T(4,128)(2,1)}', space=vmem, size = 0x2000, scoped, tag = 'scratch operand']
  #allocation4 [shape = 'bf16[8,8,100]{2,1,0:T(8,128)(2,1)}', space=vmem, size = 0x4000, scoped, tag = 'scratch operand']
  #allocation5 [shape = 'bf16[4,4,200]{2,1,0:T(4,128)(2,1)}', space=vmem, size = 0x2000, scoped, tag = 'scratch operand']
  #allocation6 [shape = 'bf16[2,2,400]{2,1,0:T(2,128)(2,1)}', space=vmem, size = 0x1000, scoped, tag = 'scratch operand']
  #allocation7 [shape = 'bf16[1,1,800]{2,1,0:T(2,128)(2,1)}', space=vmem, size = 0xe00, scoped, tag = 'scratch operand']
  %s0 = inlined_call_operand.vmem [shape: bf16[2,10,10,16], index: 0, kind: input, shape index: {}]
  %s1 = inlined_call_operand.vmem [shape: bf16[100,128], index: 1, kind: input, shape index: {}]
  %s2 = inlined_call_operand.vmem [shape: f32[1,128], index: 2, kind: input, shape index: {}]
  %s3 = inlined_call_operand.hbm [shape: bf16[200,128], index: 3, kind: input, shape index: {}]
  %s4 = inlined_call_operand.vmem [shape: f32[1,128], index: 4, kind: input, shape index: {}]
  %s5 = inlined_call_operand.vmem [shape: bf16[400,128], index: 5, kind: input, shape index: {}]
  %s6 = inlined_call_operand.vmem [shape: f32[1,128], index: 6, kind: input, shape index: {}]
  %s7 = inlined_call_operand.hbm [shape: bf16[800,128], index: 7, kind: input, shape index: {}]
  %s8 = inlined_call_operand.vmem [shape: f32[1,128], index: 8, kind: input, shape index: {}]
  %s9 = inlined_call_operand.hbm [shape: f32[2,1,128], index: 9, kind: output, shape index: {}]
  %s10 = sld [smem:[#allocation0]]
  $region77: #{tpu_custom_call.1} parent=0
    _
  %s12 = ssub.s32 1, %s10
  %s13 = scalar_select 0, %s12, %s10
  $region1: #{tpu_custom_call.1} parent=0
    #allocation8 [shape = 'u8[51200]{0}', space=vmem, size = 0xc800, scoped, tag = 'input window, operand 3, single buffered']
    #allocation9 [shape = 's32[2]{0}', space=sflag, size = 0x8, scoped, tag = 'scoped memory for tpu_custom_call.1']
    #allocation10 [shape = 's32[2]{0}', space=sflag, size = 0x8, scoped, tag = 'scoped memory for tpu_custom_call.1']
    #allocation11 [shape = 'u8[204800]{0}', space=vmem, size = 0x32000, scoped, tag = 'input window, operand 7, single buffered']
    #allocation12 [shape = 's32[1]{0}', space=sflag, size = 0x4, scoped, tag = 'scoped memory for tpu_custom_call.1']
    #allocation13 [shape = 'u8[1024]{0}', space=vmem, size = 0x400, scoped, tag = 'output window, operand 0']
    %14 = vsyncpa [#allocation9], 0
    %15 = vsyncpa [#allocation12], 0
    %16 = vsyncpa [#allocation10], 0
    %s17 = scalar_lea.sflag [#allocation10], 1
    %18 = vsyncpa %s17, 0
    loop: start=0, step=1, limit=4
    $region2: #{tpu_custom_call.1} parent=1 // loop_pre_header
      _
    $region3: #{tpu_custom_call.1} parent=1 // loop_header
      %s20 = sphi 0, %s24
      %p21 = scmp.ge.s32.totalorder %s20, 4
      %s30 = sphi 0, %s32
      %s33 = sphi 0, %s30
      %s34 = sphi 0, %s33
      %s50 = sphi 0, %s34
      %s54 = sphi 0, %s54
      %s56 = sphi 0, %s54
      %s57 = sphi 0, %s56
      %s71 = sphi 0, %s57
      %s75 = sphi 0, %s75
      %s77 = sphi 0, %s75
      %s78 = sphi 0, %s77
      %s92 = sphi 0, %s78
      %s96 = sphi 0, %s96
      %s98 = sphi 0, %s96
      %s99 = sphi 0, %s98
      %s113 = sphi 0, %s99
      %s117 = sphi 0, %s117
      %s119 = sphi 0, %s117
      %s120 = sphi 0, %s119
      %s134 = sphi 0, %s120
      %s138 = sphi 0, %s138
      %s140 = sphi 0, %s138
      %s141 = sphi 0, %s140
      %s155 = sphi 0, %s141
      %s159 = sphi 0, %s159
      %s161 = sphi 0, %s159
      %s162 = sphi 0, %s161
      %s176 = sphi 0, %s162
      %s180 = sphi 0, %s180
      %s182 = sphi 0, %s180
      %s183 = sphi 0, %s182
      %s197 = sphi 0, %s183
      %s201 = sphi 0, %s201
      %s203 = sphi 0, %s201
      %s204 = sphi 0, %s203
      %s218 = sphi 0, %s204
      %s224 = sphi 0, %s226
      %s227 = sphi 0, %s224
      %s228 = sphi 0, %s227
      %s244 = sphi 0, %s228
    $region4: #{tpu_custom_call.1} parent=1 // loop_header_branch
      %23 = sbr.rel (%p21) target = $region8
    $region5: #{tpu_custom_call.1} parent=1 // loop_body
      %s25 = ssub.s32 %s20, 1
      %s26 = ssub.s32 %s20, 2
      %s27 = sadd.s32 %s20, 1
      %s28 = ssub.s32 %s20, %s27
      %p29 = scmp.eq.s32.totalorder %s28, 0
      %s31 = sadd.s32 %s30, 1
      %s32 = scalar_select %p29, %s30, %s31
      %p35 = pneg %p29
      %p36 = scmp.eq.s32.totalorder %s20, 1
      %p37 = por %p35, %p36
      %p38 = scmp.ne.s32.totalorder %s30, %s33
      %p39 = scmp.eq.s32.totalorder %s20, 0
      %p40 = por %p38, %p39
      %p41 = scmp.ne.s32.totalorder %s30, %s33
      %p42 = scmp.eq.s32.totalorder %s25, 1
      %p43 = por %p41, %p42
      %p44 = scmp.ne.s32.totalorder %s33, %s34
      %p45 = scmp.eq.s32.totalorder %s25, 0
      %p46 = por %p44, %p45
      %p47 = scmp.ne.s32.totalorder %s33, %s34
      %p48 = scmp.eq.s32.totalorder %s26, 1
      %p49 = por %p47, %p48
      %p51 = scmp.ne.s32.totalorder %s34, %s50
      %p52 = scmp.eq.s32.totalorder %s26, 0
      %p53 = por %p51, %p52
      %s55 = sadd.s32 %s54, 1
      %p58 = scmp.eq.s32.totalorder %s20, 1
      %p59 = scmp.ne.s32.totalorder %s54, %s56
      %p60 = scmp.eq.s32.totalorder %s20, 0
      %p61 = por %p59, %p60
      %p62 = scmp.ne.s32.totalorder %s54, %s56
      %p63 = scmp.eq.s32.totalorder %s25, 1
      %p64 = por %p62, %p63
      %p65 = scmp.ne.s32.totalorder %s56, %s57
      %p66 = scmp.eq.s32.totalorder %s25, 0
      %p67 = por %p65, %p66
      %p68 = scmp.ne.s32.totalorder %s56, %s57
      %p69 = scmp.eq.s32.totalorder %s26, 1
      %p70 = por %p68, %p69
      %p72 = scmp.ne.s32.totalorder %s57, %s71
      %p73 = scmp.eq.s32.totalorder %s26, 0
      %p74 = por %p72, %p73
      %s76 = sadd.s32 %s75, 1
      %p79 = scmp.eq.s32.totalorder %s20, 1
      %p80 = scmp.ne.s32.totalorder %s75, %s77
      %p81 = scmp.eq.s32.totalorder %s20, 0
      %p82 = por %p80, %p81
      %p83 = scmp.ne.s32.totalorder %s75, %s77
      %p84 = scmp.eq.s32.totalorder %s25, 1
      %p85 = por %p83, %p84
      %p86 = scmp.ne.s32.totalorder %s77, %s78
      %p87 = scmp.eq.s32.totalorder %s25, 0
      %p88 = por %p86, %p87
      %p89 = scmp.ne.s32.totalorder %s77, %s78
      %p90 = scmp.eq.s32.totalorder %s26, 1
      %p91 = por %p89, %p90
      %p93 = scmp.ne.s32.totalorder %s78, %s92
      %p94 = scmp.eq.s32.totalorder %s26, 0
      %p95 = por %p93, %p94
      %s97 = sadd.s32 %s96, 1
      %p100 = scmp.eq.s32.totalorder %s20, 1
      %p101 = scmp.ne.s32.totalorder %s96, %s98
      %p102 = scmp.eq.s32.totalorder %s20, 0
      %p103 = por %p101, %p102
      %p104 = scmp.ne.s32.totalorder %s96, %s98
      %p105 = scmp.eq.s32.totalorder %s25, 1
      %p106 = por %p104, %p105
      %p107 = scmp.ne.s32.totalorder %s98, %s99
      %p108 = scmp.eq.s32.totalorder %s25, 0
      %p109 = por %p107, %p108
      %p110 = scmp.ne.s32.totalorder %s98, %s99
      %p111 = scmp.eq.s32.totalorder %s26, 1
      %p112 = por %p110, %p111
      %p114 = scmp.ne.s32.totalorder %s99, %s113
      %p115 = scmp.eq.s32.totalorder %s26, 0
      %p116 = por %p114, %p115
      %s118 = sadd.s32 %s117, 1
      %p121 = scmp.eq.s32.totalorder %s20, 1
      %p122 = scmp.ne.s32.totalorder %s117, %s119
      %p123 = scmp.eq.s32.totalorder %s20, 0
      %p124 = por %p122, %p123
      %p125 = scmp.ne.s32.totalorder %s117, %s119
      %p126 = scmp.eq.s32.totalorder %s25, 1
      %p127 = por %p125, %p126
      %p128 = scmp.ne.s32.totalorder %s119, %s120
      %p129 = scmp.eq.s32.totalorder %s25, 0
      %p130 = por %p128, %p129
      %p131 = scmp.ne.s32.totalorder %s119, %s120
      %p132 = scmp.eq.s32.totalorder %s26, 1
      %p133 = por %p131, %p132
      %p135 = scmp.ne.s32.totalorder %s120, %s134
      %p136 = scmp.eq.s32.totalorder %s26, 0
      %p137 = por %p135, %p136
      %s139 = sadd.s32 %s138, 1
      %p142 = scmp.eq.s32.totalorder %s20, 1
      %p143 = scmp.ne.s32.totalorder %s138, %s140
      %p144 = scmp.eq.s32.totalorder %s20, 0
      %p145 = por %p143, %p144
      %p146 = scmp.ne.s32.totalorder %s138, %s140
      %p147 = scmp.eq.s32.totalorder %s25, 1
      %p148 = por %p146, %p147
      %p149 = scmp.ne.s32.totalorder %s140, %s141
      %p150 = scmp.eq.s32.totalorder %s25, 0
      %p151 = por %p149, %p150
      %p152 = scmp.ne.s32.totalorder %s140, %s141
      %p153 = scmp.eq.s32.totalorder %s26, 1
      %p154 = por %p152, %p153
      %p156 = scmp.ne.s32.totalorder %s141, %s155
      %p157 = scmp.eq.s32.totalorder %s26, 0
      %p158 = por %p156, %p157
      %s160 = sadd.s32 %s159, 1
      %p163 = scmp.eq.s32.totalorder %s20, 1
      %p164 = scmp.ne.s32.totalorder %s159, %s161
      %p165 = scmp.eq.s32.totalorder %s20, 0
      %p166 = por %p164, %p165
      %p167 = scmp.ne.s32.totalorder %s159, %s161
      %p168 = scmp.eq.s32.totalorder %s25, 1
      %p169 = por %p167, %p168
      %p170 = scmp.ne.s32.totalorder %s161, %s162
      %p171 = scmp.eq.s32.totalorder %s25, 0
      %p172 = por %p170, %p171
      %p173 = scmp.ne.s32.totalorder %s161, %s162
      %p174 = scmp.eq.s32.totalorder %s26, 1
      %p175 = por %p173, %p174
      %p177 = scmp.ne.s32.totalorder %s162, %s176
      %p178 = scmp.eq.s32.totalorder %s26, 0
      %p179 = por %p177, %p178
      %s181 = sadd.s32 %s180, 1
      %p184 = scmp.eq.s32.totalorder %s20, 1
      %p185 = scmp.ne.s32.totalorder %s180, %s182
      %p186 = scmp.eq.s32.totalorder %s20, 0
      %p187 = por %p185, %p186
      %p188 = scmp.ne.s32.totalorder %s180, %s182
      %p189 = scmp.eq.s32.totalorder %s25, 1
      %p190 = por %p188, %p189
      %p191 = scmp.ne.s32.totalorder %s182, %s183
      %p192 = scmp.eq.s32.totalorder %s25, 0
      %p193 = por %p191, %p192
      %p194 = scmp.ne.s32.totalorder %s182, %s183
      %p195 = scmp.eq.s32.totalorder %s26, 1
      %p196 = por %p194, %p195
      %p198 = scmp.ne.s32.totalorder %s183, %s197
      %p199 = scmp.eq.s32.totalorder %s26, 0
      %p200 = por %p198, %p199
      %s202 = sadd.s32 %s201, 1
      %p205 = scmp.eq.s32.totalorder %s20, 1
      %p206 = scmp.ne.s32.totalorder %s201, %s203
      %p207 = scmp.eq.s32.totalorder %s20, 0
      %p208 = por %p206, %p207
      %p209 = scmp.ne.s32.totalorder %s201, %s203
      %p210 = scmp.eq.s32.totalorder %s25, 1
      %p211 = por %p209, %p210
      %p212 = scmp.ne.s32.totalorder %s203, %s204
      %p213 = scmp.eq.s32.totalorder %s25, 0
      %p214 = por %p212, %p213
      %p215 = scmp.ne.s32.totalorder %s203, %s204
      %p216 = scmp.eq.s32.totalorder %s26, 1
      %p217 = por %p215, %p216
      %p219 = scmp.ne.s32.totalorder %s204, %s218
      %p220 = scmp.eq.s32.totalorder %s26, 0
      %p221 = por %p219, %p220
      %s222 = ssub.s32 %s20, %s27
      %p223 = scmp.eq.s32.totalorder %s222, 0
      %s225 = sadd.s32 %s224, 1
      %s226 = scalar_select %p223, %s224, %s225
      %p229 = pneg %p223
      %p230 = scmp.eq.s32.totalorder %s20, 1
      %p231 = por %p229, %p230
      %p232 = scmp.ne.s32.totalorder %s224, %s227
      %p233 = scmp.eq.s32.totalorder %s20, 0
      %p234 = por %p232, %p233
      %p235 = scmp.ne.s32.totalorder %s224, %s227
      %p236 = scmp.eq.s32.totalorder %s25, 1
      %p237 = por %p235, %p236
      %p238 = scmp.ne.s32.totalorder %s227, %s228
      %p239 = scmp.eq.s32.totalorder %s25, 0
      %p240 = por %p238, %p239
      %p241 = scmp.ne.s32.totalorder %s227, %s228
      %p242 = scmp.eq.s32.totalorder %s26, 1
      %p243 = por %p241, %p242
      %p245 = scmp.ne.s32.totalorder %s228, %s244
      %p246 = scmp.eq.s32.totalorder %s26, 0
      %p247 = por %p245, %p246
      %p248 = scmp.le.s32.totalorder 1, %s20
      %p249 = scmp.lt.s32.totalorder %s20, 3
      %p250 = pnand %p248, %p249
      %p251 = pneg %p250
      // Predicated region
      $region9: #{tpu_custom_call.1} parent=5 // pred_check
        _
      $region10: #{tpu_custom_call.1} parent=5 // pred_check_branch
        %253 = sbr.rel (%p250) target = $region12
      $region11: #{tpu_custom_call.1} parent=5 // pred_region
        %s254 = ssub.s32 %s20, 1
        // Predicated region
        $region13: #{tpu_custom_call.1} parent=11 // pred_check
          %p255 = pneg %p67
        $region14: #{tpu_custom_call.1} parent=11 // pred_check_branch
          %257 = sbr.rel (%p255) target = $region16
        $region15: #{tpu_custom_call.1} parent=11 // pred_region
          _
        $region16: #{tpu_custom_call.1} parent=11 // pred_fallthru
          _
        // Predicated region
        $region17: #{tpu_custom_call.1} parent=11 // pred_check
          %p258 = pneg %p88
        $region18: #{tpu_custom_call.1} parent=11 // pred_check_branch
          %260 = sbr.rel (%p258) target = $region20
        $region19: #{tpu_custom_call.1} parent=11 // pred_region
          _
        $region20: #{tpu_custom_call.1} parent=11 // pred_fallthru
          _
        // Predicated region
        $region21: #{tpu_custom_call.1} parent=11 // pred_check
          %p261 = pneg %p109
        $region22: #{tpu_custom_call.1} parent=11 // pred_check_branch
          %263 = sbr.rel (%p261) target = $region24
        $region23: #{tpu_custom_call.1} parent=11 // pred_region
          %s265 = ssub.s32 1600, 1600
          %266 = vsyncadd [#allocation9], %s265
          %s267 = sshll.u32 [#allocation8], 4
          %s268 = int_to_ptr.vmem [resolvable:$true] %s267
          %273 = dma.hbm_to_vmem [thread:$0]  %s3, 1600, %s268, [#allocation9], 64, 64, 4
        $region24: #{tpu_custom_call.1} parent=11 // pred_fallthru
          _
        // Predicated region
        $region25: #{tpu_custom_call.1} parent=11 // pred_check
          %p274 = pneg %p130
        $region26: #{tpu_custom_call.1} parent=11 // pred_check_branch
          %276 = sbr.rel (%p274) target = $region28
        $region27: #{tpu_custom_call.1} parent=11 // pred_region
          _
        $region28: #{tpu_custom_call.1} parent=11 // pred_fallthru
          _
        // Predicated region
        $region29: #{tpu_custom_call.1} parent=11 // pred_check
          %p277 = pneg %p151
        $region30: #{tpu_custom_call.1} parent=11 // pred_check_branch
          %279 = sbr.rel (%p277) target = $region32
        $region31: #{tpu_custom_call.1} parent=11 // pred_region
          _
        $region32: #{tpu_custom_call.1} parent=11 // pred_fallthru
          _
        // Predicated region
        $region33: #{tpu_custom_call.1} parent=11 // pred_check
          %p280 = pneg %p172
        $region34: #{tpu_custom_call.1} parent=11 // pred_check_branch
          %282 = sbr.rel (%p280) target = $region36
        $region35: #{tpu_custom_call.1} parent=11 // pred_region
          _
        $region36: #{tpu_custom_call.1} parent=11 // pred_fallthru
          _
        // Predicated region
        $region37: #{tpu_custom_call.1} parent=11 // pred_check
          %p283 = pneg %p193
        $region38: #{tpu_custom_call.1} parent=11 // pred_check_branch
          %285 = sbr.rel (%p283) target = $region40
        $region39: #{tpu_custom_call.1} parent=11 // pred_region
          %s287 = ssub.s32 6400, 6400
          %288 = vsyncadd [#allocation12], %s287
          %s289 = sshll.u32 [#allocation11], 4
          %s290 = int_to_ptr.vmem [resolvable:$true] %s289
          %295 = dma.hbm_to_vmem [thread:$0]  %s7, 6400, %s290, [#allocation12], 64, 64, 4
        $region40: #{tpu_custom_call.1} parent=11 // pred_fallthru
          _
        // Predicated region
        $region41: #{tpu_custom_call.1} parent=11 // pred_check
          %p296 = pneg %p214
        $region42: #{tpu_custom_call.1} parent=11 // pred_check_branch
          %298 = sbr.rel (%p296) target = $region44
        $region43: #{tpu_custom_call.1} parent=11 // pred_region
          _
        $region44: #{tpu_custom_call.1} parent=11 // pred_fallthru
          _
      $region12: #{tpu_custom_call.1} parent=5 // pred_fallthru
        _
      %p299 = scmp.lt.s32.totalorder %s20, 2
      // Predicated region
      $region45: #{tpu_custom_call.1} parent=5 // pred_check
        %p300 = pneg %p299
      $region46: #{tpu_custom_call.1} parent=5 // pred_check_branch
        %302 = sbr.rel (%p300) target = $region48
      $region47: #{tpu_custom_call.1} parent=5 // pred_region
        // Predicated region
        $region49: #{tpu_custom_call.1} parent=47 // pred_check
          %p303 = pneg %p40
        $region50: #{tpu_custom_call.1} parent=47 // pred_check_branch
          %305 = sbr.rel (%p303) target = $region52
        $region51: #{tpu_custom_call.1} parent=47 // pred_region
          %p306 = scmp.lt.s32.totalorder %s20, 1
          %s307 = scalar_select %p306, %s20, 1
          %s308 = smul.addr %s307, 20
          %s309 = smul.addr %s308, 4
          %s310 = scalar_lea.vmem %s0, %s309
        $region52: #{tpu_custom_call.1} parent=47 // pred_fallthru
          _
      $region48: #{tpu_custom_call.1} parent=5 // pred_fallthru
        _
      %p311 = scmp.le.s32.totalorder 1, %s20
      %p312 = scmp.lt.s32.totalorder %s20, 3
      %p313 = pnand %p311, %p312
      %p314 = pneg %p313
      // Predicated region
      $region53: #{tpu_custom_call.1} parent=5 // pred_check
        _
      $region54: #{tpu_custom_call.1} parent=5 // pred_check_branch
        %316 = sbr.rel (%p313) target = $region56
      $region55: #{tpu_custom_call.1} parent=5 // pred_region
        %s317 = ssub.s32 %s20, 1
        // Predicated region
        $region57: #{tpu_custom_call.1} parent=55 // pred_check
          %p318 = pneg %p109
        $region58: #{tpu_custom_call.1} parent=55 // pred_check_branch
          %320 = sbr.rel (%p318) target = $region60
        $region59: #{tpu_custom_call.1} parent=55 // pred_region
          %321 = dma.done [#allocation9], 1600
        $region60: #{tpu_custom_call.1} parent=55 // pred_fallthru
          _
        // Predicated region
        $region61: #{tpu_custom_call.1} parent=55 // pred_check
          %p322 = pneg %p193
        $region62: #{tpu_custom_call.1} parent=55 // pred_check_branch
          %324 = sbr.rel (%p322) target = $region64
        $region63: #{tpu_custom_call.1} parent=55 // pred_region
          %325 = dma.done [#allocation12], 6400
        $region64: #{tpu_custom_call.1} parent=55 // pred_fallthru
          _
        %p326 = scmp.lt.s32.totalorder %s25, 1
        %s327 = scalar_select %p326, %s25, 1
        %s328 = smul.addr %s327, 20
        %s329 = smul.addr %s328, 4
        %s330 = scalar_lea.vmem %s0, %s329
        %p331 = pneg %p46
        %p332 = pneg %p43
        %p333 = pneg %p67
        %p334 = pneg %p64
        %p335 = pneg %p88
        %p336 = pneg %p85
        %p337 = pneg %p109
        %p338 = pneg %p106
        %p339 = pneg %p130
        %p340 = pneg %p127
        %p341 = pneg %p151
        %p342 = pneg %p148
        %p343 = pneg %p172
        %p344 = pneg %p169
        %p345 = pneg %p193
        %p346 = pneg %p190
        %p347 = pneg %p214
        %p348 = pneg %p211
        %p349 = pneg %p240
        %p350 = pneg %p237
        %s351 = sand.u32 %s227, 1
        %s352 = scalar_lea.sflag [#allocation10], %s351
        %s353 = sand.u32 %s227, 1
        %s354 = scalar_lea.vmem [#allocation13], %s353
        %p355 = scmp.lt.s32.totalorder %s25, 1
        %s356 = scalar_select %p355, %s25, 1
        %s357 = smul.addr %s356, 20
        %s358 = smul.addr %s357, 4
        %s359 = scalar_lea.vmem %s0, %s358
        %v361 = vld [vmem:[%s1] sm:$0xf]
        %v362 = vld [vmem:[%s1 + $0x4] sm:$0xf]
        %v363 = vld [vmem:[%s1 + $0x8] sm:$0xf]
        %v364 = vld [vmem:[%s1 + $0xc] sm:$0xf]
        %v365 = vld [vmem:[%s1 + $0x10] sm:$0xf]
        %v366 = vld [vmem:[%s1 + $0x14] sm:$0xf]
        %v367 = vld [vmem:[%s1 + $0x18] sm:$0xf]
        %v368 = vld [vmem:[%s1 + $0x1c] sm:$0xf]
        %v369 = vld [vmem:[%s1 + $0x20] sm:$0xf]
        %v370 = vld [vmem:[%s1 + $0x24] sm:$0xf]
        %v371 = vld [vmem:[%s1 + $0x28] sm:$0xf]
        %v372 = vld [vmem:[%s1 + $0x2c] sm:$0xf]
        %v373 = vld [vmem:[%s1 + $0x30] sm:$0x3]
        %v374 = vld [vmem:[%s2] sm:$0x1]
        %vm375 = vcmask 124928
        %376 = vst.msk [vmem:[#allocation2] sm:$0x7] %vm375, 0
        %377 = vst.msk [vmem:[#allocation2 + $0x18] sm:$0x7] %vm375, 0
        %s378 = scalar_lea.vmem [#allocation2], 20
        %379 = vst.msk [vmem:[%s378] sm:$0x7] %vm375, 0
        %380 = vst.msk [vmem:[%s378 + $0x18] sm:$0x7] %vm375, 0
        %vm381 = vcmask 122880
        %vm382 = vsmask.f32 256
        %vm383 = vmand %vm381, %vm382
        %v384 = vld [vmem:[#allocation2] sm:$0x1]
        %v385 = vsel %vm383, 0, %v384
        %386 = vst [vmem:[#allocation2] sm:$0x1] %v385
        %v387 = vld [vmem:[#allocation2 + $0x4] sm:$0x1]
        %v388 = vsel %vm383, 0, %v387
        %389 = vst [vmem:[#allocation2 + $0x4] sm:$0x1] %v388
        %v390 = vld [vmem:[#allocation2 + $0x8] sm:$0x1]
        %v391 = vsel %vm383, 0, %v390
        %392 = vst [vmem:[#allocation2 + $0x8] sm:$0x1] %v391
        %v393 = vld [vmem:[#allocation2 + $0xc] sm:$0x1]
        %v394 = vsel %vm383, 0, %v393
        %395 = vst [vmem:[#allocation2 + $0xc] sm:$0x1] %v394
        %v396 = vld [vmem:[#allocation2 + $0x10] sm:$0x1]
        %v397 = vsel %vm383, 0, %v396
        %398 = vst [vmem:[#allocation2 + $0x10] sm:$0x1] %v397
        %v399 = vld [vmem:[#allocation2 + $0x14] sm:$0x1]
        %v400 = vsel %vm383, 0, %v399
        %401 = vst [vmem:[#allocation2 + $0x14] sm:$0x1] %v400
        %v402 = vld [vmem:[#allocation2 + $0x18] sm:$0x1]
        %v403 = vsel %vm383, 0, %v402
        %404 = vst [vmem:[#allocation2 + $0x18] sm:$0x1] %v403
        %v405 = vld [vmem:[#allocation2 + $0x1c] sm:$0x1]
        %v406 = vsel %vm383, 0, %v405
        %407 = vst [vmem:[#allocation2 + $0x1c] sm:$0x1] %v406
        %v408 = vld [vmem:[#allocation2 + $0x20] sm:$0x1]
        %v409 = vsel %vm383, 0, %v408
        %410 = vst [vmem:[#allocation2 + $0x20] sm:$0x1] %v409
        %v411 = vld [vmem:[#allocation2 + $0x24] sm:$0x1]
        %v412 = vsel %vm383, 0, %v411
        %413 = vst [vmem:[#allocation2 + $0x24] sm:$0x1] %v412
        %v414 = vld [vmem:[#allocation2 + $0x28] sm:$0x1]
        %v415 = vsel %vm383, 0, %v414
        %416 = vst [vmem:[#allocation2 + $0x28] sm:$0x1] %v415
        %v417 = vld [vmem:[#allocation2 + $0x2c] sm:$0x1]
        %v418 = vsel %vm383, 0, %v417
        %419 = vst [vmem:[#allocation2 + $0x2c] sm:$0x1] %v418
        %vm420 = vcmask 124930
        %vm421 = vsmask.f32 7946
        %vm422 = vmand %vm420, %vm421
        %v423 = vld [vmem:[#allocation2] sm:$0x4]
        %v424 = vsel %vm422, 0, %v423
        %425 = vst [vmem:[#allocation2] sm:$0x4] %v424
        %v426 = vld [vmem:[#allocation2 + $0x4] sm:$0x4]
        %v427 = vsel %vm422, 0, %v426
        %428 = vst [vmem:[#allocation2 + $0x4] sm:$0x4] %v427
        %v429 = vld [vmem:[#allocation2 + $0x8] sm:$0x4]
        %v430 = vsel %vm422, 0, %v429
        %431 = vst [vmem:[#allocation2 + $0x8] sm:$0x4] %v430
        %v432 = vld [vmem:[#allocation2 + $0xc] sm:$0x4]
        %v433 = vsel %vm422, 0, %v432
        %434 = vst [vmem:[#allocation2 + $0xc] sm:$0x4] %v433
        %v435 = vld [vmem:[#allocation2 + $0x10] sm:$0x4]
        %v436 = vsel %vm422, 0, %v435
        %437 = vst [vmem:[#allocation2 + $0x10] sm:$0x4] %v436
        %v438 = vld [vmem:[#allocation2 + $0x14] sm:$0x4]
        %v439 = vsel %vm422, 0, %v438
        %440 = vst [vmem:[#allocation2 + $0x14] sm:$0x4] %v439
        %v441 = vld [vmem:[#allocation2 + $0x18] sm:$0x4]
        %v442 = vsel %vm422, 0, %v441
        %443 = vst [vmem:[#allocation2 + $0x18] sm:$0x4] %v442
        %v444 = vld [vmem:[#allocation2 + $0x1c] sm:$0x4]
        %v445 = vsel %vm422, 0, %v444
        %446 = vst [vmem:[#allocation2 + $0x1c] sm:$0x4] %v445
        %v447 = vld [vmem:[#allocation2 + $0x20] sm:$0x4]
        %v448 = vsel %vm422, 0, %v447
        %449 = vst [vmem:[#allocation2 + $0x20] sm:$0x4] %v448
        %v450 = vld [vmem:[#allocation2 + $0x24] sm:$0x4]
        %v451 = vsel %vm422, 0, %v450
        %452 = vst [vmem:[#allocation2 + $0x24] sm:$0x4] %v451
        %v453 = vld [vmem:[#allocation2 + $0x28] sm:$0x4]
        %v454 = vsel %vm422, 0, %v453
        %455 = vst [vmem:[#allocation2 + $0x28] sm:$0x4] %v454
        %v456 = vld [vmem:[#allocation2 + $0x2c] sm:$0x4]
        %v457 = vsel %vm422, 0, %v456
        %458 = vst [vmem:[#allocation2 + $0x2c] sm:$0x4] %v457
        %v459 = vld [vmem:[%s359] sm:$0xf]
        %v460 = vld [vmem:[%s359 + $0x8] sm:$0xf]
        %v461 = vld [vmem:[%s359 + $0x10] sm:$0xf]
        %v462 = vld [vmem:[%s359 + $0x18] sm:$0xf]
        %v463 = vld [vmem:[%s359 + $0x20] sm:$0xf]
        %v464 = vld [vmem:[%s359 + $0x28] sm:$0xf]
        %v465 = vld [vmem:[%s359 + $0x30] sm:$0xf]
        %v466 = vld [vmem:[%s359 + $0x38] sm:$0xf]
        %vm467 = vcmask 60416
        %468 = vst.msk [vmem:[#allocation4] sm:$0xf] %vm467, %v459
        %469 = vst.msk [vmem:[#allocation4 + $0x4] sm:$0xf] %vm467, %v460
        %470 = vst.msk [vmem:[#allocation4 + $0x8] sm:$0xf] %vm467, %v461
        %471 = vst.msk [vmem:[#allocation4 + $0xc] sm:$0xf] %vm467, %v462
        %472 = vst.msk [vmem:[#allocation4 + $0x10] sm:$0xf] %vm467, %v463
        %473 = vst.msk [vmem:[#allocation4 + $0x14] sm:$0xf] %vm467, %v464
        %474 = vst.msk [vmem:[#allocation4 + $0x18] sm:$0xf] %vm467, %v465
        %475 = vst.msk [vmem:[#allocation4 + $0x1c] sm:$0xf] %vm467, %v466
        %v476 = vld [vmem:[%s359] sm:$0xf]
        %v477 = vld [vmem:[%s359 + $0x4] sm:$0x1]
        %v478 = vld [vmem:[%s359 + $0x8] sm:$0xf]
        %v479 = vld [vmem:[%s359 + $0xc] sm:$0x1]
        %v480 = vld [vmem:[%s359 + $0x10] sm:$0xf]
        %v481 = vld [vmem:[%s359 + $0x14] sm:$0x1]
        %v482 = vld [vmem:[%s359 + $0x18] sm:$0xf]
        %v483 = vld [vmem:[%s359 + $0x1c] sm:$0x1]
        %v484 = vld [vmem:[%s359 + $0x20] sm:$0xf]
        %v485 = vld [vmem:[%s359 + $0x24] sm:$0x1]
        %v486 = vld [vmem:[%s359 + $0x28] sm:$0xf]
        %v487 = vld [vmem:[%s359 + $0x2c] sm:$0x1]
        %v488 = vld [vmem:[%s359 + $0x30] sm:$0xf]
        %v489 = vld [vmem:[%s359 + $0x34] sm:$0x1]
        %v490 = vld [vmem:[%s359 + $0x38] sm:$0xf]
        %v491 = vld [vmem:[%s359 + $0x3c] sm:$0x1]
        %vm492 = vsmask.f32 3328
        %vm493 = vsmask.f32 7440
        %vm494 = vmor %vm492, %vm493
        %v496 = vshrl.u32 %v476, 16
        %v498 = vrot.slane %v496, 4
        %v499 = vshll.u32 %v476, 16
        %v501 = vrot.slane %v499, 5
        %v502 = vor.u32 %v498, %v501
        %v503 = vrot.slane %v502, 4
        %v505 = vshll.u32 %v477, 16
        %v507 = vrot.slane %v505, 5
        %v508 = vsel %vm494, %v503, %v507
        %v510 = vshrl.u32 %v478, 16
        %v512 = vrot.slane %v510, 4
        %v513 = vshll.u32 %v478, 16
        %v515 = vrot.slane %v513, 5
        %v516 = vor.u32 %v512, %v515
        %v517 = vrot.slane %v516, 4
        %v519 = vshll.u32 %v479, 16
        %v521 = vrot.slane %v519, 5
        %v522 = vsel %vm494, %v517, %v521
        %v524 = vshrl.u32 %v480, 16
        %v526 = vrot.slane %v524, 4
        %v527 = vshll.u32 %v480, 16
        %v529 = vrot.slane %v527, 5
        %v530 = vor.u32 %v526, %v529
        %v531 = vrot.slane %v530, 4
        %v533 = vshll.u32 %v481, 16
        %v535 = vrot.slane %v533, 5
        %v536 = vsel %vm494, %v531, %v535
        %v538 = vshrl.u32 %v482, 16
        %v540 = vrot.slane %v538, 4
        %v541 = vshll.u32 %v482, 16
        %v543 = vrot.slane %v541, 5
        %v544 = vor.u32 %v540, %v543
        %v545 = vrot.slane %v544, 4
        %v547 = vshll.u32 %v483, 16
        %v549 = vrot.slane %v547, 5
        %v550 = vsel %vm494, %v545, %v549
        %v552 = vshrl.u32 %v484, 16
        %v554 = vrot.slane %v552, 4
        %v555 = vshll.u32 %v484, 16
        %v557 = vrot.slane %v555, 5
        %v558 = vor.u32 %v554, %v557
        %v559 = vrot.slane %v558, 4
        %v561 = vshll.u32 %v485, 16
        %v563 = vrot.slane %v561, 5
        %v564 = vsel %vm494, %v559, %v563
        %v566 = vshrl.u32 %v486, 16
        %v568 = vrot.slane %v566, 4
        %v569 = vshll.u32 %v486, 16
        %v571 = vrot.slane %v569, 5
        %v572 = vor.u32 %v568, %v571
        %v573 = vrot.slane %v572, 4
        %v575 = vshll.u32 %v487, 16
        %v577 = vrot.slane %v575, 5
        %v578 = vsel %vm494, %v573, %v577
        %v580 = vshrl.u32 %v488, 16
        %v582 = vrot.slane %v580, 4
        %v583 = vshll.u32 %v488, 16
        %v585 = vrot.slane %v583, 5
        %v586 = vor.u32 %v582, %v585
        %v587 = vrot.slane %v586, 4
        %v589 = vshll.u32 %v489, 16
        %v591 = vrot.slane %v589, 5
        %v592 = vsel %vm494, %v587, %v591
        %v594 = vshrl.u32 %v490, 16
        %v596 = vrot.slane %v594, 4
        %v597 = vshll.u32 %v490, 16
        %v599 = vrot.slane %v597, 5
        %v600 = vor.u32 %v596, %v599
        %v601 = vrot.slane %v600, 4
        %v603 = vshll.u32 %v491, 16
        %v605 = vrot.slane %v603, 5
        %v606 = vsel %vm494, %v601, %v605
        %607 = vrot.lane.b32.xlu0 %v508, 8
        %v608 = vpop.permute.xlu0 %607
        %609 = vrot.lane.b32.xlu0 %v522, 8
        %v610 = vpop.permute.xlu0 %609
        %611 = vrot.lane.b32.xlu0 %v536, 8
        %v612 = vpop.permute.xlu0 %611
        %613 = vrot.lane.b32.xlu0 %v550, 8
        %v614 = vpop.permute.xlu0 %613
        %615 = vrot.lane.b32.xlu0 %v564, 8
        %v616 = vpop.permute.xlu0 %615
        %617 = vrot.lane.b32.xlu0 %v578, 8
        %v618 = vpop.permute.xlu0 %617
        %619 = vrot.lane.b32.xlu0 %v592, 8
        %v620 = vpop.permute.xlu0 %619
        %621 = vrot.lane.b32.xlu0 %v606, 8
        %v622 = vpop.permute.xlu0 %621
        %vm631 = vcmask 126016
        %632 = vst.msk [vmem:[#allocation4] sm:$0xf] %vm631, %v608
        %633 = vst.msk [vmem:[#allocation4 + $0x4] sm:$0xf] %vm631, %v610
        %634 = vst.msk [vmem:[#allocation4 + $0x8] sm:$0xf] %vm631, %v612
        %635 = vst.msk [vmem:[#allocation4 + $0xc] sm:$0xf] %vm631, %v614
        %636 = vst.msk [vmem:[#allocation4 + $0x10] sm:$0xf] %vm631, %v616
        %637 = vst.msk [vmem:[#allocation4 + $0x14] sm:$0xf] %vm631, %v618
        %638 = vst.msk [vmem:[#allocation4 + $0x18] sm:$0xf] %vm631, %v620
        %639 = vst.msk [vmem:[#allocation4 + $0x1c] sm:$0xf] %vm631, %v622
        %v640 = vld [vmem:[%s359] sm:$0xe]
        %v641 = vld [vmem:[%s359 + $0x4] sm:$0x1]
        %v642 = vld [vmem:[%s359 + $0x8] sm:$0xe]
        %v643 = vld [vmem:[%s359 + $0xc] sm:$0x1]
        %v644 = vld [vmem:[%s359 + $0x10] sm:$0xe]
        %v645 = vld [vmem:[%s359 + $0x14] sm:$0x1]
        %v646 = vld [vmem:[%s359 + $0x18] sm:$0xe]
        %v647 = vld [vmem:[%s359 + $0x1c] sm:$0x1]
        %v648 = vld [vmem:[%s359 + $0x20] sm:$0xe]
        %v649 = vld [vmem:[%s359 + $0x24] sm:$0x1]
        %v650 = vld [vmem:[%s359 + $0x28] sm:$0xe]
        %v651 = vld [vmem:[%s359 + $0x2c] sm:$0x1]
        %v652 = vld [vmem:[%s359 + $0x30] sm:$0xe]
        %v653 = vld [vmem:[%s359 + $0x34] sm:$0x1]
        %v654 = vld [vmem:[%s359 + $0x38] sm:$0xe]
        %v655 = vld [vmem:[%s359 + $0x3c] sm:$0x1]
        %vm672 = vcmask 1042432
        %vm673 = vcmask 1046532
        %vm674 = vmor %vm672, %vm673
        %v675 = vrot.slane %v640, 5
        %v676 = vrot.slane %v675, 4
        %v677 = vrot.slane %v641, 5
        %v678 = vsel %vm674, %v676, %v677
        %v679 = vrot.slane %v642, 5
        %v680 = vrot.slane %v679, 4
        %v681 = vrot.slane %v643, 5
        %v682 = vsel %vm674, %v680, %v681
        %v683 = vrot.slane %v644, 5
        %v684 = vrot.slane %v683, 4
        %v685 = vrot.slane %v645, 5
        %v686 = vsel %vm674, %v684, %v685
        %v687 = vrot.slane %v646, 5
        %v688 = vrot.slane %v687, 4
        %v689 = vrot.slane %v647, 5
        %v690 = vsel %vm674, %v688, %v689
        %v691 = vrot.slane %v648, 5
        %v692 = vrot.slane %v691, 4
        %v693 = vrot.slane %v649, 5
        %v694 = vsel %vm674, %v692, %v693
        %v695 = vrot.slane %v650, 5
        %v696 = vrot.slane %v695, 4
        %v697 = vrot.slane %v651, 5
        %v698 = vsel %vm674, %v696, %v697
        %v699 = vrot.slane %v652, 5
        %v700 = vrot.slane %v699, 4
        %v701 = vrot.slane %v653, 5
        %v702 = vsel %vm674, %v700, %v701
        %v703 = vrot.slane %v654, 5
        %v704 = vrot.slane %v703, 4
        %v705 = vrot.slane %v655, 5
        %v706 = vsel %vm674, %v704, %v705
        %707 = vrot.lane.b32.xlu0 %v678, 16
        %v708 = vpop.permute.xlu0 %707
        %709 = vrot.lane.b32.xlu0 %v682, 16
        %v710 = vpop.permute.xlu0 %709
        %711 = vrot.lane.b32.xlu0 %v686, 16
        %v712 = vpop.permute.xlu0 %711
        %713 = vrot.lane.b32.xlu0 %v690, 16
        %v714 = vpop.permute.xlu0 %713
        %715 = vrot.lane.b32.xlu0 %v694, 16
        %v716 = vpop.permute.xlu0 %715
        %717 = vrot.lane.b32.xlu0 %v698, 16
        %v718 = vpop.permute.xlu0 %717
        %719 = vrot.lane.b32.xlu0 %v702, 16
        %v720 = vpop.permute.xlu0 %719
        %721 = vrot.lane.b32.xlu0 %v706, 16
        %v722 = vpop.permute.xlu0 %721
        %vm731 = vcmask 158848
        %732 = vst.msk [vmem:[#allocation4] sm:$0xf] %vm731, %v708
        %733 = vst.msk [vmem:[#allocation4 + $0x4] sm:$0xf] %vm731, %v710
        %734 = vst.msk [vmem:[#allocation4 + $0x8] sm:$0xf] %vm731, %v712
        %735 = vst.msk [vmem:[#allocation4 + $0xc] sm:$0xf] %vm731, %v714
        %736 = vst.msk [vmem:[#allocation4 + $0x10] sm:$0xf] %vm731, %v716
        %737 = vst.msk [vmem:[#allocation4 + $0x14] sm:$0xf] %vm731, %v718
        %738 = vst.msk [vmem:[#allocation4 + $0x18] sm:$0xf] %vm731, %v720
        %739 = vst.msk [vmem:[#allocation4 + $0x1c] sm:$0xf] %vm731, %v722
        %v740 = vld [vmem:[%s359] sm:$0xf]
        %v741 = vld [vmem:[%s359 + $0x8] sm:$0xf]
        %v742 = vld [vmem:[%s359 + $0x10] sm:$0xf]
        %v743 = vld [vmem:[%s359 + $0x18] sm:$0xf]
        %v744 = vld [vmem:[%s359 + $0x20] sm:$0xf]
        %v745 = vld [vmem:[%s359 + $0x28] sm:$0xf]
        %v746 = vld [vmem:[%s359 + $0x30] sm:$0xf]
        %v747 = vld [vmem:[%s359 + $0x38] sm:$0xf]
        %756 = vrot.lane.b32.xlu0 %v740, 12
        %v757 = vpop.permute.xlu0 %756
        %758 = vrot.lane.b32.xlu0 %v741, 12
        %v759 = vpop.permute.xlu0 %758
        %760 = vrot.lane.b32.xlu0 %v742, 12
        %v761 = vpop.permute.xlu0 %760
        %762 = vrot.lane.b32.xlu0 %v743, 12
        %v763 = vpop.permute.xlu0 %762
        %764 = vrot.lane.b32.xlu0 %v744, 12
        %v765 = vpop.permute.xlu0 %764
        %766 = vrot.lane.b32.xlu0 %v745, 12
        %v767 = vpop.permute.xlu0 %766
        %768 = vrot.lane.b32.xlu0 %v746, 12
        %v769 = vpop.permute.xlu0 %768
        %770 = vrot.lane.b32.xlu0 %v747, 12
        %v771 = vpop.permute.xlu0 %770
        %vm780 = vcmask 224416
        %781 = vst.msk [vmem:[#allocation4] sm:$0xf] %vm780, %v757
        %782 = vst.msk [vmem:[#allocation4 + $0x4] sm:$0xf] %vm780, %v759
        %783 = vst.msk [vmem:[#allocation4 + $0x8] sm:$0xf] %vm780, %v761
        %784 = vst.msk [vmem:[#allocation4 + $0xc] sm:$0xf] %vm780, %v763
        %785 = vst.msk [vmem:[#allocation4 + $0x10] sm:$0xf] %vm780, %v765
        %786 = vst.msk [vmem:[#allocation4 + $0x14] sm:$0xf] %vm780, %v767
        %787 = vst.msk [vmem:[#allocation4 + $0x18] sm:$0xf] %vm780, %v769
        %788 = vst.msk [vmem:[#allocation4 + $0x1c] sm:$0xf] %vm780, %v771
        %v789 = vld [vmem:[%s359] sm:$0xf]
        %v790 = vld [vmem:[%s359 + $0x4] sm:$0x1]
        %v791 = vld [vmem:[%s359 + $0x8] sm:$0xf]
        %v792 = vld [vmem:[%s359 + $0xc] sm:$0x1]
        %v793 = vld [vmem:[%s359 + $0x10] sm:$0xf]
        %v794 = vld [vmem:[%s359 + $0x14] sm:$0x1]
        %v795 = vld [vmem:[%s359 + $0x18] sm:$0xf]
        %v796 = vld [vmem:[%s359 + $0x1c] sm:$0x1]
        %v797 = vld [vmem:[%s359 + $0x20] sm:$0xf]
        %v798 = vld [vmem:[%s359 + $0x24] sm:$0x1]
        %v799 = vld [vmem:[%s359 + $0x28] sm:$0xf]
        %v800 = vld [vmem:[%s359 + $0x2c] sm:$0x1]
        %v801 = vld [vmem:[%s359 + $0x30] sm:$0xf]
        %v802 = vld [vmem:[%s359 + $0x34] sm:$0x1]
        %v803 = vld [vmem:[%s359 + $0x38] sm:$0xf]
        %v804 = vld [vmem:[%s359 + $0x3c] sm:$0x1]
        %v806 = vshrl.u32 %v789, 16
        %v808 = vrot.slane %v806, 4
        %v809 = vshll.u32 %v789, 16
        %v811 = vrot.slane %v809, 5
        %v812 = vor.u32 %v808, %v811
        %v813 = vrot.slane %v812, 4
        %v815 = vshll.u32 %v790, 16
        %v817 = vrot.slane %v815, 5
        %v818 = vsel %vm494, %v813, %v817
        %v820 = vshrl.u32 %v791, 16
        %v822 = vrot.slane %v820, 4
        %v823 = vshll.u32 %v791, 16
        %v825 = vrot.slane %v823, 5
        %v826 = vor.u32 %v822, %v825
        %v827 = vrot.slane %v826, 4
        %v829 = vshll.u32 %v792, 16
        %v831 = vrot.slane %v829, 5
        %v832 = vsel %vm494, %v827, %v831
        %v834 = vshrl.u32 %v793, 16
        %v836 = vrot.slane %v834, 4
        %v837 = vshll.u32 %v793, 16
        %v839 = vrot.slane %v837, 5
        %v840 = vor.u32 %v836, %v839
        %v841 = vrot.slane %v840, 4
        %v843 = vshll.u32 %v794, 16
        %v845 = vrot.slane %v843, 5
        %v846 = vsel %vm494, %v841, %v845
        %v848 = vshrl.u32 %v795, 16
        %v850 = vrot.slane %v848, 4
        %v851 = vshll.u32 %v795, 16
        %v853 = vrot.slane %v851, 5
        %v854 = vor.u32 %v850, %v853
        %v855 = vrot.slane %v854, 4
        %v857 = vshll.u32 %v796, 16
        %v859 = vrot.slane %v857, 5
        %v860 = vsel %vm494, %v855, %v859
        %v862 = vshrl.u32 %v797, 16
        %v864 = vrot.slane %v862, 4
        %v865 = vshll.u32 %v797, 16
        %v867 = vrot.slane %v865, 5
        %v868 = vor.u32 %v864, %v867
        %v869 = vrot.slane %v868, 4
        %v871 = vshll.u32 %v798, 16
        %v873 = vrot.slane %v871, 5
        %v874 = vsel %vm494, %v869, %v873
        %v876 = vshrl.u32 %v799, 16
        %v878 = vrot.slane %v876, 4
        %v879 = vshll.u32 %v799, 16
        %v881 = vrot.slane %v879, 5
        %v882 = vor.u32 %v878, %v881
        %v883 = vrot.slane %v882, 4
        %v885 = vshll.u32 %v800, 16
        %v887 = vrot.slane %v885, 5
        %v888 = vsel %vm494, %v883, %v887
        %v890 = vshrl.u32 %v801, 16
        %v892 = vrot.slane %v890, 4
        %v893 = vshll.u32 %v801, 16
        %v895 = vrot.slane %v893, 5
        %v896 = vor.u32 %v892, %v895
        %v897 = vrot.slane %v896, 4
        %v899 = vshll.u32 %v802, 16
        %v901 = vrot.slane %v899, 5
        %v902 = vsel %vm494, %v897, %v901
        %v904 = vshrl.u32 %v803, 16
        %v906 = vrot.slane %v904, 4
        %v907 = vshll.u32 %v803, 16
        %v909 = vrot.slane %v907, 5
        %v910 = vor.u32 %v906, %v909
        %v911 = vrot.slane %v910, 4
        %v913 = vshll.u32 %v804, 16
        %v915 = vrot.slane %v913, 5
        %v916 = vsel %vm494, %v911, %v915
        %917 = vrot.lane.b32.xlu0 %v818, 20
        %v918 = vpop.permute.xlu0 %917
        %919 = vrot.lane.b32.xlu0 %v832, 20
        %v920 = vpop.permute.xlu0 %919
        %921 = vrot.lane.b32.xlu0 %v846, 20
        %v922 = vpop.permute.xlu0 %921
        %923 = vrot.lane.b32.xlu0 %v860, 20
        %v924 = vpop.permute.xlu0 %923
        %925 = vrot.lane.b32.xlu0 %v874, 20
        %v926 = vpop.permute.xlu0 %925
        %927 = vrot.lane.b32.xlu0 %v888, 20
        %v928 = vpop.permute.xlu0 %927
        %929 = vrot.lane.b32.xlu0 %v902, 20
        %v930 = vpop.permute.xlu0 %929
        %931 = vrot.lane.b32.xlu0 %v916, 20
        %v932 = vpop.permute.xlu0 %931
        %vm941 = vcmask 290016
        %942 = vst.msk [vmem:[#allocation4] sm:$0xf] %vm941, %v918
        %943 = vst.msk [vmem:[#allocation4 + $0x4] sm:$0xf] %vm941, %v920
        %944 = vst.msk [vmem:[#allocation4 + $0x8] sm:$0xf] %vm941, %v922
        %945 = vst.msk [vmem:[#allocation4 + $0xc] sm:$0xf] %vm941, %v924
        %946 = vst.msk [vmem:[#allocation4 + $0x10] sm:$0xf] %vm941, %v926
        %947 = vst.msk [vmem:[#allocation4 + $0x14] sm:$0xf] %vm941, %v928
        %948 = vst.msk [vmem:[#allocation4 + $0x18] sm:$0xf] %vm941, %v930
        %949 = vst.msk [vmem:[#allocation4 + $0x1c] sm:$0xf] %vm941, %v932
        %v950 = vld [vmem:[%s359] sm:$0xe]
        %v951 = vld [vmem:[%s359 + $0x4] sm:$0x1]
        %v952 = vld [vmem:[%s359 + $0x8] sm:$0xe]
        %v953 = vld [vmem:[%s359 + $0xc] sm:$0x1]
        %v954 = vld [vmem:[%s359 + $0x10] sm:$0xe]
        %v955 = vld [vmem:[%s359 + $0x14] sm:$0x1]
        %v956 = vld [vmem:[%s359 + $0x18] sm:$0xe]
        %v957 = vld [vmem:[%s359 + $0x1c] sm:$0x1]
        %v958 = vld [vmem:[%s359 + $0x20] sm:$0xe]
        %v959 = vld [vmem:[%s359 + $0x24] sm:$0x1]
        %v960 = vld [vmem:[%s359 + $0x28] sm:$0xe]
        %v961 = vld [vmem:[%s359 + $0x2c] sm:$0x1]
        %v962 = vld [vmem:[%s359 + $0x30] sm:$0xe]
        %v963 = vld [vmem:[%s359 + $0x34] sm:$0x1]
        %v964 = vld [vmem:[%s359 + $0x38] sm:$0xe]
        %v965 = vld [vmem:[%s359 + $0x3c] sm:$0x1]
        %v982 = vrot.slane %v950, 5
        %v983 = vrot.slane %v982, 4
        %v984 = vrot.slane %v951, 5
        %v985 = vsel %vm674, %v983, %v984
        %v986 = vrot.slane %v952, 5
        %v987 = vrot.slane %v986, 4
        %v988 = vrot.slane %v953, 5
        %v989 = vsel %vm674, %v987, %v988
        %v990 = vrot.slane %v954, 5
        %v991 = vrot.slane %v990, 4
        %v992 = vrot.slane %v955, 5
        %v993 = vsel %vm674, %v991, %v992
        %v994 = vrot.slane %v956, 5
        %v995 = vrot.slane %v994, 4
        %v996 = vrot.slane %v957, 5
        %v997 = vsel %vm674, %v995, %v996
        %v998 = vrot.slane %v958, 5
        %v999 = vrot.slane %v998, 4
        %v1000 = vrot.slane %v959, 5
        %v1001 = vsel %vm674, %v999, %v1000
        %v1002 = vrot.slane %v960, 5
        %v1003 = vrot.slane %v1002, 4
        %v1004 = vrot.slane %v961, 5
        %v1005 = vsel %vm674, %v1003, %v1004
        %v1006 = vrot.slane %v962, 5
        %v1007 = vrot.slane %v1006, 4
        %v1008 = vrot.slane %v963, 5
        %v1009 = vsel %vm674, %v1007, %v1008
        %v1010 = vrot.slane %v964, 5
        %v1011 = vrot.slane %v1010, 4
        %v1012 = vrot.slane %v965, 5
        %v1013 = vsel %vm674, %v1011, %v1012
        %1014 = vrot.lane.b32.xlu0 %v985, 28
        %v1015 = vpop.permute.xlu0 %1014
        %1016 = vrot.lane.b32.xlu0 %v989, 28
        %v1017 = vpop.permute.xlu0 %1016
        %1018 = vrot.lane.b32.xlu0 %v993, 28
        %v1019 = vpop.permute.xlu0 %1018
        %1020 = vrot.lane.b32.xlu0 %v997, 28
        %v1021 = vpop.permute.xlu0 %1020
        %1022 = vrot.lane.b32.xlu0 %v1001, 28
        %v1023 = vpop.permute.xlu0 %1022
        %1024 = vrot.lane.b32.xlu0 %v1005, 28
        %v1025 = vpop.permute.xlu0 %1024
        %1026 = vrot.lane.b32.xlu0 %v1009, 28
        %v1027 = vpop.permute.xlu0 %1026
        %1028 = vrot.lane.b32.xlu0 %v1013, 28
        %v1029 = vpop.permute.xlu0 %1028
        %vm1038 = vcmask 322848
        %1039 = vst.msk [vmem:[#allocation4] sm:$0xf] %vm1038, %v1015
        %1040 = vst.msk [vmem:[#allocation4 + $0x4] sm:$0xf] %vm1038, %v1017
        %1041 = vst.msk [vmem:[#allocation4 + $0x8] sm:$0xf] %vm1038, %v1019
        %1042 = vst.msk [vmem:[#allocation4 + $0xc] sm:$0xf] %vm1038, %v1021
        %1043 = vst.msk [vmem:[#allocation4 + $0x10] sm:$0xf] %vm1038, %v1023
        %1044 = vst.msk [vmem:[#allocation4 + $0x14] sm:$0xf] %vm1038, %v1025
        %1045 = vst.msk [vmem:[#allocation4 + $0x18] sm:$0xf] %vm1038, %v1027
        %1046 = vst.msk [vmem:[#allocation4 + $0x1c] sm:$0xf] %vm1038, %v1029
        %s1047 = scalar_lea.vmem %s359, 8
        %v1048 = vld [vmem:[%s1047] sm:$0xf]
        %v1049 = vld [vmem:[%s1047 + $0x8] sm:$0xf]
        %v1050 = vld [vmem:[%s1047 + $0x10] sm:$0xf]
        %v1051 = vld [vmem:[%s1047 + $0x18] sm:$0xf]
        %v1052 = vld [vmem:[%s1047 + $0x20] sm:$0xf]
        %v1053 = vld [vmem:[%s1047 + $0x28] sm:$0xf]
        %v1054 = vld [vmem:[%s1047 + $0x30] sm:$0xf]
        %v1055 = vld [vmem:[%s1047 + $0x38] sm:$0xf]
        %1064 = vrot.lane.b32.xlu0 %v1048, 40
        %v1065 = vpop.permute.xlu0 %1064
        %1066 = vrot.lane.b32.xlu0 %v1049, 40
        %v1067 = vpop.permute.xlu0 %1066
        %1068 = vrot.lane.b32.xlu0 %v1050, 40
        %v1069 = vpop.permute.xlu0 %1068
        %1070 = vrot.lane.b32.xlu0 %v1051, 40
        %v1071 = vpop.permute.xlu0 %1070
        %1072 = vrot.lane.b32.xlu0 %v1052, 40
        %v1073 = vpop.permute.xlu0 %1072
        %1074 = vrot.lane.b32.xlu0 %v1053, 40
        %v1075 = vpop.permute.xlu0 %1074
        %1076 = vrot.lane.b32.xlu0 %v1054, 40
        %v1077 = vpop.permute.xlu0 %1076
        %1078 = vrot.lane.b32.xlu0 %v1055, 40
        %v1079 = vpop.permute.xlu0 %1078
        %vm1088 = vcmask 388416
        %1089 = vst.msk [vmem:[#allocation4] sm:$0xf] %vm1088, %v1065
        %1090 = vst.msk [vmem:[#allocation4 + $0x4] sm:$0xf] %vm1088, %v1067
        %1091 = vst.msk [vmem:[#allocation4 + $0x8] sm:$0xf] %vm1088, %v1069
        %1092 = vst.msk [vmem:[#allocation4 + $0xc] sm:$0xf] %vm1088, %v1071
        %1093 = vst.msk [vmem:[#allocation4 + $0x10] sm:$0xf] %vm1088, %v1073
        %1094 = vst.msk [vmem:[#allocation4 + $0x14] sm:$0xf] %vm1088, %v1075
        %1095 = vst.msk [vmem:[#allocation4 + $0x18] sm:$0xf] %vm1088, %v1077
        %1096 = vst.msk [vmem:[#allocation4 + $0x1c] sm:$0xf] %vm1088, %v1079
        %v1097 = vld [vmem:[%s1047] sm:$0xf]
        %v1098 = vld [vmem:[%s1047 + $0x4] sm:$0x1]
        %v1099 = vld [vmem:[%s1047 + $0x8] sm:$0xf]
        %v1100 = vld [vmem:[%s1047 + $0xc] sm:$0x1]
        %v1101 = vld [vmem:[%s1047 + $0x10] sm:$0xf]
        %v1102 = vld [vmem:[%s1047 + $0x14] sm:$0x1]
        %v1103 = vld [vmem:[%s1047 + $0x18] sm:$0xf]
        %v1104 = vld [vmem:[%s1047 + $0x1c] sm:$0x1]
        %v1105 = vld [vmem:[%s1047 + $0x20] sm:$0xf]
        %v1106 = vld [vmem:[%s1047 + $0x24] sm:$0x1]
        %v1107 = vld [vmem:[%s1047 + $0x28] sm:$0xf]
        %v1108 = vld [vmem:[%s1047 + $0x2c] sm:$0x1]
        %v1109 = vld [vmem:[%s1047 + $0x30] sm:$0xf]
        %v1110 = vld [vmem:[%s1047 + $0x34] sm:$0x1]
        %v1111 = vld [vmem:[%s1047 + $0x38] sm:$0xf]
        %v1112 = vld [vmem:[%s1047 + $0x3c] sm:$0x1]
        %v1114 = vshrl.u32 %v1097, 16
        %v1116 = vrot.slane %v1114, 4
        %v1117 = vshll.u32 %v1097, 16
        %v1119 = vrot.slane %v1117, 5
        %v1120 = vor.u32 %v1116, %v1119
        %v1121 = vrot.slane %v1120, 4
        %v1123 = vshll.u32 %v1098, 16
        %v1125 = vrot.slane %v1123, 5
        %v1126 = vsel %vm494, %v1121, %v1125
        %v1128 = vshrl.u32 %v1099, 16
        %v1130 = vrot.slane %v1128, 4
        %v1131 = vshll.u32 %v1099, 16
        %v1133 = vrot.slane %v1131, 5
        %v1134 = vor.u32 %v1130, %v1133
        %v1135 = vrot.slane %v1134, 4
        %v1137 = vshll.u32 %v1100, 16
        %v1139 = vrot.slane %v1137, 5
        %v1140 = vsel %vm494, %v1135, %v1139
        %v1142 = vshrl.u32 %v1101, 16
        %v1144 = vrot.slane %v1142, 4
        %v1145 = vshll.u32 %v1101, 16
        %v1147 = vrot.slane %v1145, 5
        %v1148 = vor.u32 %v1144, %v1147
        %v1149 = vrot.slane %v1148, 4
        %v1151 = vshll.u32 %v1102, 16
        %v1153 = vrot.slane %v1151, 5
        %v1154 = vsel %vm494, %v1149, %v1153
        %v1156 = vshrl.u32 %v1103, 16
        %v1158 = vrot.slane %v1156, 4
        %v1159 = vshll.u32 %v1103, 16
        %v1161 = vrot.slane %v1159, 5
        %v1162 = vor.u32 %v1158, %v1161
        %v1163 = vrot.slane %v1162, 4
        %v1165 = vshll.u32 %v1104, 16
        %v1167 = vrot.slane %v1165, 5
        %v1168 = vsel %vm494, %v1163, %v1167
        %v1170 = vshrl.u32 %v1105, 16
        %v1172 = vrot.slane %v1170, 4
        %v1173 = vshll.u32 %v1105, 16
        %v1175 = vrot.slane %v1173, 5
        %v1176 = vor.u32 %v1172, %v1175
        %v1177 = vrot.slane %v1176, 4
        %v1179 = vshll.u32 %v1106, 16
        %v1181 = vrot.slane %v1179, 5
        %v1182 = vsel %vm494, %v1177, %v1181
        %v1184 = vshrl.u32 %v1107, 16
        %v1186 = vrot.slane %v1184, 4
        %v1187 = vshll.u32 %v1107, 16
        %v1189 = vrot.slane %v1187, 5
        %v1190 = vor.u32 %v1186, %v1189
        %v1191 = vrot.slane %v1190, 4
        %v1193 = vshll.u32 %v1108, 16
        %v1195 = vrot.slane %v1193, 5
        %v1196 = vsel %vm494, %v1191, %v1195
        %v1198 = vshrl.u32 %v1109, 16
        %v1200 = vrot.slane %v1198, 4
        %v1201 = vshll.u32 %v1109, 16
        %v1203 = vrot.slane %v1201, 5
        %v1204 = vor.u32 %v1200, %v1203
        %v1205 = vrot.slane %v1204, 4
        %v1207 = vshll.u32 %v1110, 16
        %v1209 = vrot.slane %v1207, 5
        %v1210 = vsel %vm494, %v1205, %v1209
        %v1212 = vshrl.u32 %v1111, 16
        %v1214 = vrot.slane %v1212, 4
        %v1215 = vshll.u32 %v1111, 16
        %v1217 = vrot.slane %v1215, 5
        %v1218 = vor.u32 %v1214, %v1217
        %v1219 = vrot.slane %v1218, 4
        %v1221 = vshll.u32 %v1112, 16
        %v1223 = vrot.slane %v1221, 5
        %v1224 = vsel %vm494, %v1219, %v1223
        %1225 = vrot.lane.b32.xlu0 %v1126, 48
        %v1226 = vpop.permute.xlu0 %1225
        %1227 = vrot.lane.b32.xlu0 %v1140, 48
        %v1228 = vpop.permute.xlu0 %1227
        %1229 = vrot.lane.b32.xlu0 %v1154, 48
        %v1230 = vpop.permute.xlu0 %1229
        %1231 = vrot.lane.b32.xlu0 %v1168, 48
        %v1232 = vpop.permute.xlu0 %1231
        %1233 = vrot.lane.b32.xlu0 %v1182, 48
        %v1234 = vpop.permute.xlu0 %1233
        %1235 = vrot.lane.b32.xlu0 %v1196, 48
        %v1236 = vpop.permute.xlu0 %1235
        %1237 = vrot.lane.b32.xlu0 %v1210, 48
        %v1238 = vpop.permute.xlu0 %1237
        %1239 = vrot.lane.b32.xlu0 %v1224, 48
        %v1240 = vpop.permute.xlu0 %1239
        %vm1249 = vcmask 454016
        %1250 = vst.msk [vmem:[#allocation4] sm:$0xf] %vm1249, %v1226
        %1251 = vst.msk [vmem:[#allocation4 + $0x4] sm:$0xf] %vm1249, %v1228
        %1252 = vst.msk [vmem:[#allocation4 + $0x8] sm:$0xf] %vm1249, %v1230
        %1253 = vst.msk [vmem:[#allocation4 + $0xc] sm:$0xf] %vm1249, %v1232
        %1254 = vst.msk [vmem:[#allocation4 + $0x10] sm:$0xf] %vm1249, %v1234
        %1255 = vst.msk [vmem:[#allocation4 + $0x14] sm:$0xf] %vm1249, %v1236
        %1256 = vst.msk [vmem:[#allocation4 + $0x18] sm:$0xf] %vm1249, %v1238
        %1257 = vst.msk [vmem:[#allocation4 + $0x1c] sm:$0xf] %vm1249, %v1240
        %v1258 = vld [vmem:[%s1047] sm:$0xe]
        %v1259 = vld [vmem:[%s1047 + $0x4] sm:$0x1]
        %v1260 = vld [vmem:[%s1047 + $0x8] sm:$0xe]
        %v1261 = vld [vmem:[%s1047 + $0xc] sm:$0x1]
        %v1262 = vld [vmem:[%s1047 + $0x10] sm:$0xe]
        %v1263 = vld [vmem:[%s1047 + $0x14] sm:$0x1]
        %v1264 = vld [vmem:[%s1047 + $0x18] sm:$0xe]
        %v1265 = vld [vmem:[%s1047 + $0x1c] sm:$0x1]
        %v1266 = vld [vmem:[%s1047 + $0x20] sm:$0xe]
        %v1267 = vld [vmem:[%s1047 + $0x24] sm:$0x1]
        %v1268 = vld [vmem:[%s1047 + $0x28] sm:$0xe]
        %v1269 = vld [vmem:[%s1047 + $0x2c] sm:$0x1]
        %v1270 = vld [vmem:[%s1047 + $0x30] sm:$0xe]
        %v1271 = vld [vmem:[%s1047 + $0x34] sm:$0x1]
        %v1272 = vld [vmem:[%s1047 + $0x38] sm:$0xe]
        %v1273 = vld [vmem:[%s1047 + $0x3c] sm:$0x1]
        %v1290 = vrot.slane %v1258, 5
        %v1291 = vrot.slane %v1290, 4
        %v1292 = vrot.slane %v1259, 5
        %v1293 = vsel %vm674, %v1291, %v1292
        %v1294 = vrot.slane %v1260, 5
        %v1295 = vrot.slane %v1294, 4
        %v1296 = vrot.slane %v1261, 5
        %v1297 = vsel %vm674, %v1295, %v1296
        %v1298 = vrot.slane %v1262, 5
        %v1299 = vrot.slane %v1298, 4
        %v1300 = vrot.slane %v1263, 5
        %v1301 = vsel %vm674, %v1299, %v1300
        %v1302 = vrot.slane %v1264, 5
        %v1303 = vrot.slane %v1302, 4
        %v1304 = vrot.slane %v1265, 5
        %v1305 = vsel %vm674, %v1303, %v1304
        %v1306 = vrot.slane %v1266, 5
        %v1307 = vrot.slane %v1306, 4
        %v1308 = vrot.slane %v1267, 5
        %v1309 = vsel %vm674, %v1307, %v1308
        %v1310 = vrot.slane %v1268, 5
        %v1311 = vrot.slane %v1310, 4
        %v1312 = vrot.slane %v1269, 5
        %v1313 = vsel %vm674, %v1311, %v1312
        %v1314 = vrot.slane %v1270, 5
        %v1315 = vrot.slane %v1314, 4
        %v1316 = vrot.slane %v1271, 5
        %v1317 = vsel %vm674, %v1315, %v1316
        %v1318 = vrot.slane %v1272, 5
        %v1319 = vrot.slane %v1318, 4
        %v1320 = vrot.slane %v1273, 5
        %v1321 = vsel %vm674, %v1319, %v1320
        %1322 = vrot.lane.b32.xlu0 %v1293, 56
        %v1323 = vpop.permute.xlu0 %1322
        %1324 = vrot.lane.b32.xlu0 %v1297, 56
        %v1325 = vpop.permute.xlu0 %1324
        %1326 = vrot.lane.b32.xlu0 %v1301, 56
        %v1327 = vpop.permute.xlu0 %1326
        %1328 = vrot.lane.b32.xlu0 %v1305, 56
        %v1329 = vpop.permute.xlu0 %1328
        %1330 = vrot.lane.b32.xlu0 %v1309, 56
        %v1331 = vpop.permute.xlu0 %1330
        %1332 = vrot.lane.b32.xlu0 %v1313, 56
        %v1333 = vpop.permute.xlu0 %1332
        %1334 = vrot.lane.b32.xlu0 %v1317, 56
        %v1335 = vpop.permute.xlu0 %1334
        %1336 = vrot.lane.b32.xlu0 %v1321, 56
        %v1337 = vpop.permute.xlu0 %1336
        %vm1346 = vcmask 486848
        %1347 = vst.msk [vmem:[#allocation4] sm:$0xf] %vm1346, %v1323
        %1348 = vst.msk [vmem:[#allocation4 + $0x4] sm:$0xf] %vm1346, %v1325
        %1349 = vst.msk [vmem:[#allocation4 + $0x8] sm:$0xf] %vm1346, %v1327
        %1350 = vst.msk [vmem:[#allocation4 + $0xc] sm:$0xf] %vm1346, %v1329
        %1351 = vst.msk [vmem:[#allocation4 + $0x10] sm:$0xf] %vm1346, %v1331
        %1352 = vst.msk [vmem:[#allocation4 + $0x14] sm:$0xf] %vm1346, %v1333
        %1353 = vst.msk [vmem:[#allocation4 + $0x18] sm:$0xf] %vm1346, %v1335
        %1354 = vst.msk [vmem:[#allocation4 + $0x1c] sm:$0xf] %vm1346, %v1337
        %v1355 = vld [vmem:[%s1047] sm:$0xf]
        %v1356 = vld [vmem:[%s1047 + $0x8] sm:$0xf]
        %v1357 = vld [vmem:[%s1047 + $0x10] sm:$0xf]
        %v1358 = vld [vmem:[%s1047 + $0x18] sm:$0xf]
        %v1359 = vld [vmem:[%s1047 + $0x20] sm:$0xf]
        %v1360 = vld [vmem:[%s1047 + $0x28] sm:$0xf]
        %v1361 = vld [vmem:[%s1047 + $0x30] sm:$0xf]
        %v1362 = vld [vmem:[%s1047 + $0x38] sm:$0xf]
        %1371 = vrot.lane.b32.xlu0 %v1355, 52
        %v1372 = vpop.permute.xlu0 %1371
        %1373 = vrot.lane.b32.xlu0 %v1356, 52
        %v1374 = vpop.permute.xlu0 %1373
        %1375 = vrot.lane.b32.xlu0 %v1357, 52
        %v1376 = vpop.permute.xlu0 %1375
        %1377 = vrot.lane.b32.xlu0 %v1358, 52
        %v1378 = vpop.permute.xlu0 %1377
        %1379 = vrot.lane.b32.xlu0 %v1359, 52
        %v1380 = vpop.permute.xlu0 %1379
        %1381 = vrot.lane.b32.xlu0 %v1360, 52
        %v1382 = vpop.permute.xlu0 %1381
        %1383 = vrot.lane.b32.xlu0 %v1361, 52
        %v1384 = vpop.permute.xlu0 %1383
        %1385 = vrot.lane.b32.xlu0 %v1362, 52
        %v1386 = vpop.permute.xlu0 %1385
        %vm1395 = vcmask 552416
        %1396 = vst.msk [vmem:[#allocation4] sm:$0xf] %vm1395, %v1372
        %1397 = vst.msk [vmem:[#allocation4 + $0x4] sm:$0xf] %vm1395, %v1374
        %1398 = vst.msk [vmem:[#allocation4 + $0x8] sm:$0xf] %vm1395, %v1376
        %1399 = vst.msk [vmem:[#allocation4 + $0xc] sm:$0xf] %vm1395, %v1378
        %1400 = vst.msk [vmem:[#allocation4 + $0x10] sm:$0xf] %vm1395, %v1380
        %1401 = vst.msk [vmem:[#allocation4 + $0x14] sm:$0xf] %vm1395, %v1382
        %1402 = vst.msk [vmem:[#allocation4 + $0x18] sm:$0xf] %vm1395, %v1384
        %1403 = vst.msk [vmem:[#allocation4 + $0x1c] sm:$0xf] %vm1395, %v1386
        %v1404 = vld [vmem:[%s1047] sm:$0xf]
        %v1405 = vld [vmem:[%s1047 + $0x4] sm:$0x1]
        %v1406 = vld [vmem:[%s1047 + $0x8] sm:$0xf]
        %v1407 = vld [vmem:[%s1047 + $0xc] sm:$0x1]
        %v1408 = vld [vmem:[%s1047 + $0x10] sm:$0xf]
        %v1409 = vld [vmem:[%s1047 + $0x14] sm:$0x1]
        %v1410 = vld [vmem:[%s1047 + $0x18] sm:$0xf]
        %v1411 = vld [vmem:[%s1047 + $0x1c] sm:$0x1]
        %v1412 = vld [vmem:[%s1047 + $0x20] sm:$0xf]
        %v1413 = vld [vmem:[%s1047 + $0x24] sm:$0x1]
        %v1414 = vld [vmem:[%s1047 + $0x28] sm:$0xf]
        %v1415 = vld [vmem:[%s1047 + $0x2c] sm:$0x1]
        %v1416 = vld [vmem:[%s1047 + $0x30] sm:$0xf]
        %v1417 = vld [vmem:[%s1047 + $0x34] sm:$0x1]
        %v1418 = vld [vmem:[%s1047 + $0x38] sm:$0xf]
        %v1419 = vld [vmem:[%s1047 + $0x3c] sm:$0x1]
        %v1421 = vshrl.u32 %v1404, 16
        %v1423 = vrot.slane %v1421, 4
        %v1424 = vshll.u32 %v1404, 16
        %v1426 = vrot.slane %v1424, 5
        %v1427 = vor.u32 %v1423, %v1426
        %v1428 = vrot.slane %v1427, 4
        %v1430 = vshll.u32 %v1405, 16
        %v1432 = vrot.slane %v1430, 5
        %v1433 = vsel %vm494, %v1428, %v1432
        %v1435 = vshrl.u32 %v1406, 16
        %v1437 = vrot.slane %v1435, 4
        %v1438 = vshll.u32 %v1406, 16
        %v1440 = vrot.slane %v1438, 5
        %v1441 = vor.u32 %v1437, %v1440
        %v1442 = vrot.slane %v1441, 4
        %v1444 = vshll.u32 %v1407, 16
        %v1446 = vrot.slane %v1444, 5
        %v1447 = vsel %vm494, %v1442, %v1446
        %v1449 = vshrl.u32 %v1408, 16
        %v1451 = vrot.slane %v1449, 4
        %v1452 = vshll.u32 %v1408, 16
        %v1454 = vrot.slane %v1452, 5
        %v1455 = vor.u32 %v1451, %v1454
        %v1456 = vrot.slane %v1455, 4
        %v1458 = vshll.u32 %v1409, 16
        %v1460 = vrot.slane %v1458, 5
        %v1461 = vsel %vm494, %v1456, %v1460
        %v1463 = vshrl.u32 %v1410, 16
        %v1465 = vrot.slane %v1463, 4
        %v1466 = vshll.u32 %v1410, 16
        %v1468 = vrot.slane %v1466, 5
        %v1469 = vor.u32 %v1465, %v1468
        %v1470 = vrot.slane %v1469, 4
        %v1472 = vshll.u32 %v1411, 16
        %v1474 = vrot.slane %v1472, 5
        %v1475 = vsel %vm494, %v1470, %v1474
        %v1477 = vshrl.u32 %v1412, 16
        %v1479 = vrot.slane %v1477, 4
        %v1480 = vshll.u32 %v1412, 16
        %v1482 = vrot.slane %v1480, 5
        %v1483 = vor.u32 %v1479, %v1482
        %v1484 = vrot.slane %v1483, 4
        %v1486 = vshll.u32 %v1413, 16
        %v1488 = vrot.slane %v1486, 5
        %v1489 = vsel %vm494, %v1484, %v1488
        %v1491 = vshrl.u32 %v1414, 16
        %v1493 = vrot.slane %v1491, 4
        %v1494 = vshll.u32 %v1414, 16
        %v1496 = vrot.slane %v1494, 5
        %v1497 = vor.u32 %v1493, %v1496
        %v1498 = vrot.slane %v1497, 4
        %v1500 = vshll.u32 %v1415, 16
        %v1502 = vrot.slane %v1500, 5
        %v1503 = vsel %vm494, %v1498, %v1502
        %v1505 = vshrl.u32 %v1416, 16
        %v1507 = vrot.slane %v1505, 4
        %v1508 = vshll.u32 %v1416, 16
        %v1510 = vrot.slane %v1508, 5
        %v1511 = vor.u32 %v1507, %v1510
        %v1512 = vrot.slane %v1511, 4
        %v1514 = vshll.u32 %v1417, 16
        %v1516 = vrot.slane %v1514, 5
        %v1517 = vsel %vm494, %v1512, %v1516
        %v1519 = vshrl.u32 %v1418, 16
        %v1521 = vrot.slane %v1519, 4
        %v1522 = vshll.u32 %v1418, 16
        %v1524 = vrot.slane %v1522, 5
        %v1525 = vor.u32 %v1521, %v1524
        %v1526 = vrot.slane %v1525, 4
        %v1528 = vshll.u32 %v1419, 16
        %v1530 = vrot.slane %v1528, 5
        %v1531 = vsel %vm494, %v1526, %v1530
        %1532 = vrot.lane.b32.xlu0 %v1433, 60
        %v1533 = vpop.permute.xlu0 %1532
        %1534 = vrot.lane.b32.xlu0 %v1447, 60
        %v1535 = vpop.permute.xlu0 %1534
        %1536 = vrot.lane.b32.xlu0 %v1461, 60
        %v1537 = vpop.permute.xlu0 %1536
        %1538 = vrot.lane.b32.xlu0 %v1475, 60
        %v1539 = vpop.permute.xlu0 %1538
        %1540 = vrot.lane.b32.xlu0 %v1489, 60
        %v1541 = vpop.permute.xlu0 %1540
        %1542 = vrot.lane.b32.xlu0 %v1503, 60
        %v1543 = vpop.permute.xlu0 %1542
        %1544 = vrot.lane.b32.xlu0 %v1517, 60
        %v1545 = vpop.permute.xlu0 %1544
        %1546 = vrot.lane.b32.xlu0 %v1531, 60
        %v1547 = vpop.permute.xlu0 %1546
        %vm1556 = vcmask 618016
        %1557 = vst.msk [vmem:[#allocation4] sm:$0xf] %vm1556, %v1533
        %1558 = vst.msk [vmem:[#allocation4 + $0x4] sm:$0xf] %vm1556, %v1535
        %1559 = vst.msk [vmem:[#allocation4 + $0x8] sm:$0xf] %vm1556, %v1537
        %1560 = vst.msk [vmem:[#allocation4 + $0xc] sm:$0xf] %vm1556, %v1539
        %1561 = vst.msk [vmem:[#allocation4 + $0x10] sm:$0xf] %vm1556, %v1541
        %1562 = vst.msk [vmem:[#allocation4 + $0x14] sm:$0xf] %vm1556, %v1543
        %1563 = vst.msk [vmem:[#allocation4 + $0x18] sm:$0xf] %vm1556, %v1545
        %1564 = vst.msk [vmem:[#allocation4 + $0x1c] sm:$0xf] %vm1556, %v1547
        %v1565 = vld [vmem:[%s1047] sm:$0xe]
        %v1566 = vld [vmem:[%s1047 + $0x4] sm:$0x1]
        %v1567 = vld [vmem:[%s1047 + $0x8] sm:$0xe]
        %v1568 = vld [vmem:[%s1047 + $0xc] sm:$0x1]
        %v1569 = vld [vmem:[%s1047 + $0x10] sm:$0xe]
        %v1570 = vld [vmem:[%s1047 + $0x14] sm:$0x1]
        %v1571 = vld [vmem:[%s1047 + $0x18] sm:$0xe]
        %v1572 = vld [vmem:[%s1047 + $0x1c] sm:$0x1]
        %v1573 = vld [vmem:[%s1047 + $0x20] sm:$0xe]
        %v1574 = vld [vmem:[%s1047 + $0x24] sm:$0x1]
        %v1575 = vld [vmem:[%s1047 + $0x28] sm:$0xe]
        %v1576 = vld [vmem:[%s1047 + $0x2c] sm:$0x1]
        %v1577 = vld [vmem:[%s1047 + $0x30] sm:$0xe]
        %v1578 = vld [vmem:[%s1047 + $0x34] sm:$0x1]
        %v1579 = vld [vmem:[%s1047 + $0x38] sm:$0xe]
        %v1580 = vld [vmem:[%s1047 + $0x3c] sm:$0x1]
        %v1597 = vrot.slane %v1565, 5
        %v1598 = vrot.slane %v1597, 4
        %v1599 = vrot.slane %v1566, 5
        %v1600 = vsel %vm674, %v1598, %v1599
        %v1601 = vrot.slane %v1567, 5
        %v1602 = vrot.slane %v1601, 4
        %v1603 = vrot.slane %v1568, 5
        %v1604 = vsel %vm674, %v1602, %v1603
        %v1605 = vrot.slane %v1569, 5
        %v1606 = vrot.slane %v1605, 4
        %v1607 = vrot.slane %v1570, 5
        %v1608 = vsel %vm674, %v1606, %v1607
        %v1609 = vrot.slane %v1571, 5
        %v1610 = vrot.slane %v1609, 4
        %v1611 = vrot.slane %v1572, 5
        %v1612 = vsel %vm674, %v1610, %v1611
        %v1613 = vrot.slane %v1573, 5
        %v1614 = vrot.slane %v1613, 4
        %v1615 = vrot.slane %v1574, 5
        %v1616 = vsel %vm674, %v1614, %v1615
        %v1617 = vrot.slane %v1575, 5
        %v1618 = vrot.slane %v1617, 4
        %v1619 = vrot.slane %v1576, 5
        %v1620 = vsel %vm674, %v1618, %v1619
        %v1621 = vrot.slane %v1577, 5
        %v1622 = vrot.slane %v1621, 4
        %v1623 = vrot.slane %v1578, 5
        %v1624 = vsel %vm674, %v1622, %v1623
        %v1625 = vrot.slane %v1579, 5
        %v1626 = vrot.slane %v1625, 4
        %v1627 = vrot.slane %v1580, 5
        %v1628 = vsel %vm674, %v1626, %v1627
        %1629 = vrot.lane.b32.xlu0 %v1600, 68
        %v1630 = vpop.permute.xlu0 %1629
        %1631 = vrot.lane.b32.xlu0 %v1604, 68
        %v1632 = vpop.permute.xlu0 %1631
        %1633 = vrot.lane.b32.xlu0 %v1608, 68
        %v1634 = vpop.permute.xlu0 %1633
        %1635 = vrot.lane.b32.xlu0 %v1612, 68
        %v1636 = vpop.permute.xlu0 %1635
        %1637 = vrot.lane.b32.xlu0 %v1616, 68
        %v1638 = vpop.permute.xlu0 %1637
        %1639 = vrot.lane.b32.xlu0 %v1620, 68
        %v1640 = vpop.permute.xlu0 %1639
        %1641 = vrot.lane.b32.xlu0 %v1624, 68
        %v1642 = vpop.permute.xlu0 %1641
        %1643 = vrot.lane.b32.xlu0 %v1628, 68
        %v1644 = vpop.permute.xlu0 %1643
        %vm1653 = vcmask 650848
        %1654 = vst.msk [vmem:[#allocation4] sm:$0xf] %vm1653, %v1630
        %1655 = vst.msk [vmem:[#allocation4 + $0x4] sm:$0xf] %vm1653, %v1632
        %1656 = vst.msk [vmem:[#allocation4 + $0x8] sm:$0xf] %vm1653, %v1634
        %1657 = vst.msk [vmem:[#allocation4 + $0xc] sm:$0xf] %vm1653, %v1636
        %1658 = vst.msk [vmem:[#allocation4 + $0x10] sm:$0xf] %vm1653, %v1638
        %1659 = vst.msk [vmem:[#allocation4 + $0x14] sm:$0xf] %vm1653, %v1640
        %1660 = vst.msk [vmem:[#allocation4 + $0x18] sm:$0xf] %vm1653, %v1642
        %1661 = vst.msk [vmem:[#allocation4 + $0x1c] sm:$0xf] %vm1653, %v1644
        %s1662 = scalar_lea.vmem %s359, 16
        %v1663 = vld [vmem:[%s1662] sm:$0xf]
        %v1664 = vld [vmem:[%s1662 + $0x8] sm:$0xf]
        %v1665 = vld [vmem:[%s1662 + $0x10] sm:$0xf]
        %v1666 = vld [vmem:[%s1662 + $0x18] sm:$0xf]
        %v1667 = vld [vmem:[%s1662 + $0x20] sm:$0xf]
        %v1668 = vld [vmem:[%s1662 + $0x28] sm:$0xf]
        %v1669 = vld [vmem:[%s1662 + $0x30] sm:$0xf]
        %v1670 = vld [vmem:[%s1662 + $0x38] sm:$0xf]
        %1679 = vrot.lane.b32.xlu0 %v1663, 80
        %v1680 = vpop.permute.xlu0 %1679
        %1681 = vrot.lane.b32.xlu0 %v1664, 80
        %v1682 = vpop.permute.xlu0 %1681
        %1683 = vrot.lane.b32.xlu0 %v1665, 80
        %v1684 = vpop.permute.xlu0 %1683
        %1685 = vrot.lane.b32.xlu0 %v1666, 80
        %v1686 = vpop.permute.xlu0 %1685
        %1687 = vrot.lane.b32.xlu0 %v1667, 80
        %v1688 = vpop.permute.xlu0 %1687
        %1689 = vrot.lane.b32.xlu0 %v1668, 80
        %v1690 = vpop.permute.xlu0 %1689
        %1691 = vrot.lane.b32.xlu0 %v1669, 80
        %v1692 = vpop.permute.xlu0 %1691
        %1693 = vrot.lane.b32.xlu0 %v1670, 80
        %v1694 = vpop.permute.xlu0 %1693
        %vm1703 = vcmask 716416
        %1704 = vst.msk [vmem:[#allocation4] sm:$0xf] %vm1703, %v1680
        %1705 = vst.msk [vmem:[#allocation4 + $0x4] sm:$0xf] %vm1703, %v1682
        %1706 = vst.msk [vmem:[#allocation4 + $0x8] sm:$0xf] %vm1703, %v1684
        %1707 = vst.msk [vmem:[#allocation4 + $0xc] sm:$0xf] %vm1703, %v1686
        %1708 = vst.msk [vmem:[#allocation4 + $0x10] sm:$0xf] %vm1703, %v1688
        %1709 = vst.msk [vmem:[#allocation4 + $0x14] sm:$0xf] %vm1703, %v1690
        %1710 = vst.msk [vmem:[#allocation4 + $0x18] sm:$0xf] %vm1703, %v1692
        %1711 = vst.msk [vmem:[#allocation4 + $0x1c] sm:$0xf] %vm1703, %v1694
        %v1712 = vld [vmem:[%s1662] sm:$0xf]
        %v1713 = vld [vmem:[%s1662 + $0x4] sm:$0x1]
        %v1714 = vld [vmem:[%s1662 + $0x8] sm:$0xf]
        %v1715 = vld [vmem:[%s1662 + $0xc] sm:$0x1]
        %v1716 = vld [vmem:[%s1662 + $0x10] sm:$0xf]
        %v1717 = vld [vmem:[%s1662 + $0x14] sm:$0x1]
        %v1718 = vld [vmem:[%s1662 + $0x18] sm:$0xf]
        %v1719 = vld [vmem:[%s1662 + $0x1c] sm:$0x1]
        %v1720 = vld [vmem:[%s1662 + $0x20] sm:$0xf]
        %v1721 = vld [vmem:[%s1662 + $0x24] sm:$0x1]
        %v1722 = vld [vmem:[%s1662 + $0x28] sm:$0xf]
        %v1723 = vld [vmem:[%s1662 + $0x2c] sm:$0x1]
        %v1724 = vld [vmem:[%s1662 + $0x30] sm:$0xf]
        %v1725 = vld [vmem:[%s1662 + $0x34] sm:$0x1]
        %v1726 = vld [vmem:[%s1662 + $0x38] sm:$0xf]
        %v1727 = vld [vmem:[%s1662 + $0x3c] sm:$0x1]
        %v1729 = vshrl.u32 %v1712, 16
        %v1731 = vrot.slane %v1729, 4
        %v1732 = vshll.u32 %v1712, 16
        %v1734 = vrot.slane %v1732, 5
        %v1735 = vor.u32 %v1731, %v1734
        %v1736 = vrot.slane %v1735, 4
        %v1738 = vshll.u32 %v1713, 16
        %v1740 = vrot.slane %v1738, 5
        %v1741 = vsel %vm494, %v1736, %v1740
        %v1743 = vshrl.u32 %v1714, 16
        %v1745 = vrot.slane %v1743, 4
        %v1746 = vshll.u32 %v1714, 16
        %v1748 = vrot.slane %v1746, 5
        %v1749 = vor.u32 %v1745, %v1748
        %v1750 = vrot.slane %v1749, 4
        %v1752 = vshll.u32 %v1715, 16
        %v1754 = vrot.slane %v1752, 5
        %v1755 = vsel %vm494, %v1750, %v1754
        %v1757 = vshrl.u32 %v1716, 16
        %v1759 = vrot.slane %v1757, 4
        %v1760 = vshll.u32 %v1716, 16
        %v1762 = vrot.slane %v1760, 5
        %v1763 = vor.u32 %v1759, %v1762
        %v1764 = vrot.slane %v1763, 4
        %v1766 = vshll.u32 %v1717, 16
        %v1768 = vrot.slane %v1766, 5
        %v1769 = vsel %vm494, %v1764, %v1768
        %v1771 = vshrl.u32 %v1718, 16
        %v1773 = vrot.slane %v1771, 4
        %v1774 = vshll.u32 %v1718, 16
        %v1776 = vrot.slane %v1774, 5
        %v1777 = vor.u32 %v1773, %v1776
        %v1778 = vrot.slane %v1777, 4
        %v1780 = vshll.u32 %v1719, 16
        %v1782 = vrot.slane %v1780, 5
        %v1783 = vsel %vm494, %v1778, %v1782
        %v1785 = vshrl.u32 %v1720, 16
        %v1787 = vrot.slane %v1785, 4
        %v1788 = vshll.u32 %v1720, 16
        %v1790 = vrot.slane %v1788, 5
        %v1791 = vor.u32 %v1787, %v1790
        %v1792 = vrot.slane %v1791, 4
        %v1794 = vshll.u32 %v1721, 16
        %v1796 = vrot.slane %v1794, 5
        %v1797 = vsel %vm494, %v1792, %v1796
        %v1799 = vshrl.u32 %v1722, 16
        %v1801 = vrot.slane %v1799, 4
        %v1802 = vshll.u32 %v1722, 16
        %v1804 = vrot.slane %v1802, 5
        %v1805 = vor.u32 %v1801, %v1804
        %v1806 = vrot.slane %v1805, 4
        %v1808 = vshll.u32 %v1723, 16
        %v1810 = vrot.slane %v1808, 5
        %v1811 = vsel %vm494, %v1806, %v1810
        %v1813 = vshrl.u32 %v1724, 16
        %v1815 = vrot.slane %v1813, 4
        %v1816 = vshll.u32 %v1724, 16
        %v1818 = vrot.slane %v1816, 5
        %v1819 = vor.u32 %v1815, %v1818
        %v1820 = vrot.slane %v1819, 4
        %v1822 = vshll.u32 %v1725, 16
        %v1824 = vrot.slane %v1822, 5
        %v1825 = vsel %vm494, %v1820, %v1824
        %v1827 = vshrl.u32 %v1726, 16
        %v1829 = vrot.slane %v1827, 4
        %v1830 = vshll.u32 %v1726, 16
        %v1832 = vrot.slane %v1830, 5
        %v1833 = vor.u32 %v1829, %v1832
        %v1834 = vrot.slane %v1833, 4
        %v1836 = vshll.u32 %v1727, 16
        %v1838 = vrot.slane %v1836, 5
        %v1839 = vsel %vm494, %v1834, %v1838
        %1840 = vrot.lane.b32.xlu0 %v1741, 88
        %v1841 = vpop.permute.xlu0 %1840
        %1842 = vrot.lane.b32.xlu0 %v1755, 88
        %v1843 = vpop.permute.xlu0 %1842
        %1844 = vrot.lane.b32.xlu0 %v1769, 88
        %v1845 = vpop.permute.xlu0 %1844
        %1846 = vrot.lane.b32.xlu0 %v1783, 88
        %v1847 = vpop.permute.xlu0 %1846
        %1848 = vrot.lane.b32.xlu0 %v1797, 88
        %v1849 = vpop.permute.xlu0 %1848
        %1850 = vrot.lane.b32.xlu0 %v1811, 88
        %v1851 = vpop.permute.xlu0 %1850
        %1852 = vrot.lane.b32.xlu0 %v1825, 88
        %v1853 = vpop.permute.xlu0 %1852
        %1854 = vrot.lane.b32.xlu0 %v1839, 88
        %v1855 = vpop.permute.xlu0 %1854
        %vm1864 = vcmask 782016
        %1865 = vst.msk [vmem:[#allocation4] sm:$0xf] %vm1864, %v1841
        %1866 = vst.msk [vmem:[#allocation4 + $0x4] sm:$0xf] %vm1864, %v1843
        %1867 = vst.msk [vmem:[#allocation4 + $0x8] sm:$0xf] %vm1864, %v1845
        %1868 = vst.msk [vmem:[#allocation4 + $0xc] sm:$0xf] %vm1864, %v1847
        %1869 = vst.msk [vmem:[#allocation4 + $0x10] sm:$0xf] %vm1864, %v1849
        %1870 = vst.msk [vmem:[#allocation4 + $0x14] sm:$0xf] %vm1864, %v1851
        %1871 = vst.msk [vmem:[#allocation4 + $0x18] sm:$0xf] %vm1864, %v1853
        %1872 = vst.msk [vmem:[#allocation4 + $0x1c] sm:$0xf] %vm1864, %v1855
        %v1873 = vld [vmem:[%s1662] sm:$0xe]
        %v1874 = vld [vmem:[%s1662 + $0x4] sm:$0x1]
        %v1875 = vld [vmem:[%s1662 + $0x8] sm:$0xe]
        %v1876 = vld [vmem:[%s1662 + $0xc] sm:$0x1]
        %v1877 = vld [vmem:[%s1662 + $0x10] sm:$0xe]
        %v1878 = vld [vmem:[%s1662 + $0x14] sm:$0x1]
        %v1879 = vld [vmem:[%s1662 + $0x18] sm:$0xe]
        %v1880 = vld [vmem:[%s1662 + $0x1c] sm:$0x1]
        %v1881 = vld [vmem:[%s1662 + $0x20] sm:$0xe]
        %v1882 = vld [vmem:[%s1662 + $0x24] sm:$0x1]
        %v1883 = vld [vmem:[%s1662 + $0x28] sm:$0xe]
        %v1884 = vld [vmem:[%s1662 + $0x2c] sm:$0x1]
        %v1885 = vld [vmem:[%s1662 + $0x30] sm:$0xe]
        %v1886 = vld [vmem:[%s1662 + $0x34] sm:$0x1]
        %v1887 = vld [vmem:[%s1662 + $0x38] sm:$0xe]
        %v1888 = vld [vmem:[%s1662 + $0x3c] sm:$0x1]
        %v1905 = vrot.slane %v1873, 5
        %v1906 = vrot.slane %v1905, 4
        %v1907 = vrot.slane %v1874, 5
        %v1908 = vsel %vm674, %v1906, %v1907
        %v1909 = vrot.slane %v1875, 5
        %v1910 = vrot.slane %v1909, 4
        %v1911 = vrot.slane %v1876, 5
        %v1912 = vsel %vm674, %v1910, %v1911
        %v1913 = vrot.slane %v1877, 5
        %v1914 = vrot.slane %v1913, 4
        %v1915 = vrot.slane %v1878, 5
        %v1916 = vsel %vm674, %v1914, %v1915
        %v1917 = vrot.slane %v1879, 5
        %v1918 = vrot.slane %v1917, 4
        %v1919 = vrot.slane %v1880, 5
        %v1920 = vsel %vm674, %v1918, %v1919
        %v1921 = vrot.slane %v1881, 5
        %v1922 = vrot.slane %v1921, 4
        %v1923 = vrot.slane %v1882, 5
        %v1924 = vsel %vm674, %v1922, %v1923
        %v1925 = vrot.slane %v1883, 5
        %v1926 = vrot.slane %v1925, 4
        %v1927 = vrot.slane %v1884, 5
        %v1928 = vsel %vm674, %v1926, %v1927
        %v1929 = vrot.slane %v1885, 5
        %v1930 = vrot.slane %v1929, 4
        %v1931 = vrot.slane %v1886, 5
        %v1932 = vsel %vm674, %v1930, %v1931
        %v1933 = vrot.slane %v1887, 5
        %v1934 = vrot.slane %v1933, 4
        %v1935 = vrot.slane %v1888, 5
        %v1936 = vsel %vm674, %v1934, %v1935
        %1937 = vrot.lane.b32.xlu0 %v1908, 96
        %v1938 = vpop.permute.xlu0 %1937
        %1939 = vrot.lane.b32.xlu0 %v1912, 96
        %v1940 = vpop.permute.xlu0 %1939
        %1941 = vrot.lane.b32.xlu0 %v1916, 96
        %v1942 = vpop.permute.xlu0 %1941
        %1943 = vrot.lane.b32.xlu0 %v1920, 96
        %v1944 = vpop.permute.xlu0 %1943
        %1945 = vrot.lane.b32.xlu0 %v1924, 96
        %v1946 = vpop.permute.xlu0 %1945
        %1947 = vrot.lane.b32.xlu0 %v1928, 96
        %v1948 = vpop.permute.xlu0 %1947
        %1949 = vrot.lane.b32.xlu0 %v1932, 96
        %v1950 = vpop.permute.xlu0 %1949
        %1951 = vrot.lane.b32.xlu0 %v1936, 96
        %v1952 = vpop.permute.xlu0 %1951
        %vm1961 = vcmask 814848
        %1962 = vst.msk [vmem:[#allocation4] sm:$0xf] %vm1961, %v1938
        %1963 = vst.msk [vmem:[#allocation4 + $0x4] sm:$0xf] %vm1961, %v1940
        %1964 = vst.msk [vmem:[#allocation4 + $0x8] sm:$0xf] %vm1961, %v1942
        %1965 = vst.msk [vmem:[#allocation4 + $0xc] sm:$0xf] %vm1961, %v1944
        %1966 = vst.msk [vmem:[#allocation4 + $0x10] sm:$0xf] %vm1961, %v1946
        %1967 = vst.msk [vmem:[#allocation4 + $0x14] sm:$0xf] %vm1961, %v1948
        %1968 = vst.msk [vmem:[#allocation4 + $0x18] sm:$0xf] %vm1961, %v1950
        %1969 = vst.msk [vmem:[#allocation4 + $0x1c] sm:$0xf] %vm1961, %v1952
        %v1970 = vld [vmem:[#allocation4] sm:$0xf]
        %v1971 = vld [vmem:[#allocation4 + $0x4] sm:$0xf]
        %v1972 = vld [vmem:[#allocation4 + $0x8] sm:$0xf]
        %v1973 = vld [vmem:[#allocation4 + $0xc] sm:$0xf]
        %v1974 = vld [vmem:[#allocation4 + $0x10] sm:$0xf]
        %v1975 = vld [vmem:[#allocation4 + $0x14] sm:$0xf]
        %v1976 = vld [vmem:[#allocation4 + $0x18] sm:$0xf]
        %v1977 = vld [vmem:[#allocation4 + $0x1c] sm:$0xf]
        %v1979 = vlaneseq
        %v1980 = vshrl.u32 %v1979, 7
        %v1981 = vsub.s32 0, %v1980
        %v1982 = vrot.slane %v374, %v1981
        %v1992 = vunpack.c.l.b16 %v1970
        %v1993 = vunpack.c.l.b16 %v1971
        %v1994 = vunpack.c.l.b16 %v1972
        %v1995 = vunpack.c.l.b16 %v1973
        %v1996 = vunpack.c.l.b16 %v1974
        %v1997 = vunpack.c.l.b16 %v1975
        %v1998 = vunpack.c.l.b16 %v1976
        %v1999 = vunpack.c.l.b16 %v1977
        %v2000 = vpack.c.b16 %v1993, %v1992
        %v2001 = vpack.c.b16 %v1995, %v1994
        %v2002 = vpack.c.b16 %v1997, %v1996
        %v2003 = vpack.c.b16 %v1999, %v1998
        %v2017 = vunpack.c.l.b16 %v361
        %v2018 = vunpack.c.l.b16 %v362
        %v2019 = vunpack.c.l.b16 %v363
        %v2020 = vunpack.c.l.b16 %v364
        %v2021 = vunpack.c.l.b16 %v365
        %v2022 = vunpack.c.l.b16 %v366
        %v2023 = vunpack.c.l.b16 %v367
        %v2024 = vunpack.c.l.b16 %v368
        %v2025 = vunpack.c.l.b16 %v369
        %v2026 = vunpack.c.l.b16 %v370
        %v2027 = vunpack.c.l.b16 %v371
        %v2028 = vunpack.c.l.b16 %v372
        %v2029 = vunpack.c.l.b16 %v373
        %v2030 = vpack.c.b16 %v2018, %v2017
        %v2031 = vpack.c.b16 %v2020, %v2019
        %v2032 = vpack.c.b16 %v2022, %v2021
        %v2033 = vpack.c.b16 %v2024, %v2023
        %v2034 = vpack.c.b16 %v2026, %v2025
        %v2035 = vpack.c.b16 %v2028, %v2027
        %v2036 = vpack.c.b16 %v2029, %v2029
        %vm2043 = vcmask 818176
        %v2045 = vsel %vm2043, %v2000, 0
        %v2048 = vsel %vm2043, %v2001, 0
        %v2051 = vsel %vm2043, %v2002, 0
        %v2054 = vsel %vm2043, %v2003, 0
        %vm2056 = vcmask 1041408
        %v2058 = vsel %vm2056, %v2036, 0
        %2060 = vmatprep.subr.bf16.mxu0 0
        %2061 = vmatpush1.bf16.msra.mxu0 0
        %2062 = vmatprep.subr.bf16.mxu0 0
        %2063 = vmatpush1.bf16.msra.mxu0 %v2058
        %2064 = vmatprep.subr.bf16.mxu0 0
        %2065 = vmatpush1.bf16.msra.mxu0 %v2035
        %2066 = vmatprep.subr.bf16.mxu0 0
        %2067 = vmatpush1.bf16.msra.mxu0 %v2034
        %2068 = vmatprep.subr.bf16.mxu0 0
        %2069 = vmatpush1.bf16.msra.mxu0 %v2033
        %2070 = vmatprep.subr.bf16.mxu0 0
        %2071 = vmatpush1.bf16.msra.mxu0 %v2032
        %2072 = vmatprep.subr.bf16.mxu0 0
        %2073 = vmatpush1.bf16.msra.mxu0 %v2031
        %2074 = vmatprep.subr.bf16.mxu0 0
        %2075 = vmatpush1.bf16.msra.mxu0 %v2030
        %2076 = vmatprep.subr.bf16.mxu0 0
        %2077 = vmatpush2.bf16.msra.mxu0 0
        %2078 = vmatprep.subr.bf16.mxu0 0
        %2079 = vmatpush2.bf16.msra.mxu0 0
        %2080 = vmatprep.subr.bf16.mxu0 0
        %2081 = vmatpush2.bf16.msra.mxu0 0
        %2082 = vmatprep.subr.bf16.mxu0 0
        %2083 = vmatpush2.bf16.msra.mxu0 0
        %2084 = vmatprep.subr.bf16.mxu0 0
        %2085 = vmatpush2.bf16.msra.mxu0 0
        %2086 = vmatprep.subr.bf16.mxu0 0
        %2087 = vmatpush2.bf16.msra.mxu0 0
        %2088 = vmatprep.subr.bf16.mxu0 0
        %2089 = vmatpush2.bf16.msra.mxu0 0
        %2090 = vmatprep.subr.bf16.mxu0 0
        %2091 = vmatpush2.bf16.msra.mxu0 0
        %2092 = vmatprep.mubr.bf16.mxu0 0
        %2093 = vmatmul.mubr.bf16.gmra.mxu0 %v2045
        %v2094 = vpop.f32.mrf.mxu0
        %v2095 = vadd.f32 %v1982, %v2094
        %v2096 = vpop.f32.mrf.mxu0
        %v2097 = vpop.f32.mrf.mxu0
        %v2098 = vadd.f32 %v1982, %v2097
        %v2099 = vpop.f32.mrf.mxu0
        %2100 = vmatprep.mubr.bf16.mxu0 0
        %2101 = vmatmul.mubr.bf16.gmra.mxu0 %v2048
        %v2102 = vpop.f32.mrf.mxu0
        %v2103 = vadd.f32 %v1982, %v2102
        %v2104 = vpop.f32.mrf.mxu0
        %v2105 = vpop.f32.mrf.mxu0
        %v2106 = vadd.f32 %v1982, %v2105
        %v2107 = vpop.f32.mrf.mxu0
        %2108 = vmatprep.mubr.bf16.mxu0 0
        %2109 = vmatmul.mubr.bf16.gmra.mxu0 %v2051
        %v2110 = vpop.f32.mrf.mxu0
        %v2111 = vadd.f32 %v1982, %v2110
        %v2112 = vpop.f32.mrf.mxu0
        %v2113 = vpop.f32.mrf.mxu0
        %v2114 = vadd.f32 %v1982, %v2113
        %v2115 = vpop.f32.mrf.mxu0
        %2116 = vmatprep.mubr.bf16.mxu0 0
        %2117 = vmatmul.mubr.bf16.gmra.mxu0 %v2054
        %v2118 = vpop.f32.mrf.mxu0
        %v2119 = vadd.f32 %v1982, %v2118
        %v2120 = vpop.f32.mrf.mxu0
        %v2121 = vpop.f32.mrf.mxu0
        %v2122 = vadd.f32 %v1982, %v2121
        %v2123 = vpop.f32.mrf.mxu0
        %2124 = vdwg.mxu0
        %vm2125 = vcmp.ge.f32.partialorder %v2095, 0.0
        %vm2126 = vcmp.ge.f32.partialorder %v2098, 0.0
        %vm2127 = vcmp.ge.f32.partialorder %v2103, 0.0
        %vm2128 = vcmp.ge.f32.partialorder %v2106, 0.0
        %vm2129 = vcmp.ge.f32.partialorder %v2111, 0.0
        %vm2130 = vcmp.ge.f32.partialorder %v2114, 0.0
        %vm2131 = vcmp.ge.f32.partialorder %v2119, 0.0
        %vm2132 = vcmp.ge.f32.partialorder %v2122, 0.0
        %v2133 = vmul.f32 %v2095, 0.2
        %v2134 = vmul.f32 %v2098, 0.2
        %v2135 = vmul.f32 %v2103, 0.2
        %v2136 = vmul.f32 %v2106, 0.2
        %v2137 = vmul.f32 %v2111, 0.2
        %v2138 = vmul.f32 %v2114, 0.2
        %v2139 = vmul.f32 %v2119, 0.2
        %v2140 = vmul.f32 %v2122, 0.2
        %v2141 = vsel %vm2125, %v2095, %v2133
        %v2142 = vsel %vm2126, %v2098, %v2134
        %v2143 = vsel %vm2127, %v2103, %v2135
        %v2144 = vsel %vm2128, %v2106, %v2136
        %v2145 = vsel %vm2129, %v2111, %v2137
        %v2146 = vsel %vm2130, %v2114, %v2138
        %v2147 = vsel %vm2131, %v2119, %v2139
        %v2148 = vsel %vm2132, %v2122, %v2140
        %v2149 = vpack.c.bf16 %v2142, %v2141
        %v2150 = vpack.c.bf16 %v2144, %v2143
        %v2151 = vpack.c.bf16 %v2146, %v2145
        %v2152 = vpack.c.bf16 %v2148, %v2147
        %v2157 = vunpack.c.l.b16 %v2149
        %v2158 = vunpack.c.h.b16 %v2149
        %v2159 = vunpack.c.l.b16 %v2150
        %v2160 = vunpack.c.h.b16 %v2150
        %v2161 = vunpack.c.l.b16 %v2151
        %v2162 = vunpack.c.h.b16 %v2151
        %v2163 = vunpack.c.l.b16 %v2152
        %v2164 = vunpack.c.h.b16 %v2152
        %v2165 = vpack.c.b16 %v2157, %v2157
        %v2166 = vpack.c.b16 %v2158, %v2158
        %v2167 = vpack.c.b16 %v2159, %v2159
        %v2168 = vpack.c.b16 %v2160, %v2160
        %v2169 = vpack.c.b16 %v2161, %v2161
        %v2170 = vpack.c.b16 %v2162, %v2162
        %v2171 = vpack.c.b16 %v2163, %v2163
        %v2172 = vpack.c.b16 %v2164, %v2164
        %v2174 = vunpack.c.l.s4 1966171168
        %v2175 = vunpack.c.0.s8 %v2174
        %v2176 = vlaneseq
        %v2177 = vshrl.u32 %v2176, 7
        %v2178 = vsub.s32 %v2175, %v2177
        %v2179 = vrot.slane %v2165, %v2178
        %v2180 = vcombine.high %v2179, %v2179
        %v2182 = vunpack.c.l.s4 1966171168
        %v2183 = vunpack.c.0.s8 %v2182
        %v2184 = vlaneseq
        %v2185 = vshrl.u32 %v2184, 7
        %v2186 = vsub.s32 %v2183, %v2185
        %v2187 = vrot.slane %v2179, %v2186
        %v2189 = vunpack.c.l.s4 1966171168
        %v2190 = vunpack.c.0.s8 %v2189
        %v2191 = vlaneseq
        %v2192 = vshrl.u32 %v2191, 7
        %v2193 = vsub.s32 %v2190, %v2192
        %v2194 = vrot.slane %v2180, %v2193
        %v2195 = vcombine.high %v2187, %v2187
        %v2196 = vcombine.high %v2194, %v2194
        %v2198 = vunpack.c.l.s4 1966171168
        %v2199 = vunpack.c.0.s8 %v2198
        %v2200 = vlaneseq
        %v2201 = vshrl.u32 %v2200, 7
        %v2202 = vsub.s32 %v2199, %v2201
        %v2203 = vrot.slane %v2167, %v2202
        %v2204 = vcombine.high %v2203, %v2203
        %v2206 = vunpack.c.l.s4 1966171168
        %v2207 = vunpack.c.0.s8 %v2206
        %v2208 = vlaneseq
        %v2209 = vshrl.u32 %v2208, 7
        %v2210 = vsub.s32 %v2207, %v2209
        %v2211 = vrot.slane %v2203, %v2210
        %v2213 = vunpack.c.l.s4 1966171168
        %v2214 = vunpack.c.0.s8 %v2213
        %v2215 = vlaneseq
        %v2216 = vshrl.u32 %v2215, 7
        %v2217 = vsub.s32 %v2214, %v2216
        %v2218 = vrot.slane %v2204, %v2217
        %v2219 = vcombine.high %v2211, %v2211
        %v2220 = vcombine.high %v2218, %v2218
        %v2222 = vunpack.c.l.s4 1966171168
        %v2223 = vunpack.c.0.s8 %v2222
        %v2224 = vlaneseq
        %v2225 = vshrl.u32 %v2224, 7
        %v2226 = vsub.s32 %v2223, %v2225
        %v2227 = vrot.slane %v2169, %v2226
        %v2228 = vcombine.high %v2227, %v2227
        %v2230 = vunpack.c.l.s4 1966171168
        %v2231 = vunpack.c.0.s8 %v2230
        %v2232 = vlaneseq
        %v2233 = vshrl.u32 %v2232, 7
        %v2234 = vsub.s32 %v2231, %v2233
        %v2235 = vrot.slane %v2227, %v2234
        %v2237 = vunpack.c.l.s4 1966171168
        %v2238 = vunpack.c.0.s8 %v2237
        %v2239 = vlaneseq
        %v2240 = vshrl.u32 %v2239, 7
        %v2241 = vsub.s32 %v2238, %v2240
        %v2242 = vrot.slane %v2228, %v2241
        %v2243 = vcombine.high %v2235, %v2235
        %v2244 = vcombine.high %v2242, %v2242
        %v2246 = vunpack.c.l.s4 1966171168
        %v2247 = vunpack.c.0.s8 %v2246
        %v2248 = vlaneseq
        %v2249 = vshrl.u32 %v2248, 7
        %v2250 = vsub.s32 %v2247, %v2249
        %v2251 = vrot.slane %v2171, %v2250
        %v2252 = vcombine.high %v2251, %v2251
        %v2254 = vunpack.c.l.s4 1966171168
        %v2255 = vunpack.c.0.s8 %v2254
        %v2256 = vlaneseq
        %v2257 = vshrl.u32 %v2256, 7
        %v2258 = vsub.s32 %v2255, %v2257
        %v2259 = vrot.slane %v2251, %v2258
        %v2261 = vunpack.c.l.s4 1966171168
        %v2262 = vunpack.c.0.s8 %v2261
        %v2263 = vlaneseq
        %v2264 = vshrl.u32 %v2263, 7
        %v2265 = vsub.s32 %v2262, %v2264
        %v2266 = vrot.slane %v2252, %v2265
        %v2267 = vcombine.high %v2259, %v2259
        %v2268 = vcombine.high %v2266, %v2266
        %v2270 = vunpack.c.l.s4 1935823168
        %v2271 = vunpack.c.0.s8 %v2270
        %v2272 = vlaneseq
        %v2273 = vshrl.u32 %v2272, 7
        %v2274 = vsub.s32 %v2271, %v2273
        %v2275 = vrot.slane %v2187, %v2274
        %v2277 = vunpack.c.l.s4 1935823168
        %v2278 = vunpack.c.0.s8 %v2277
        %v2279 = vlaneseq
        %v2280 = vshrl.u32 %v2279, 7
        %v2281 = vsub.s32 %v2278, %v2280
        %v2282 = vrot.slane %v2275, %v2281
        %v2284 = vunpack.c.l.s4 1935823168
        %v2285 = vunpack.c.0.s8 %v2284
        %v2286 = vlaneseq
        %v2287 = vshrl.u32 %v2286, 7
        %v2288 = vsub.s32 %v2285, %v2287
        %v2289 = vrot.slane %v2194, %v2288
        %v2291 = vunpack.c.l.s4 1935823168
        %v2292 = vunpack.c.0.s8 %v2291
        %v2293 = vlaneseq
        %v2294 = vshrl.u32 %v2293, 7
        %v2295 = vsub.s32 %v2292, %v2294
        %v2296 = vrot.slane %v2289, %v2295
        %v2298 = vunpack.c.l.s4 1935823168
        %v2299 = vunpack.c.0.s8 %v2298
        %v2300 = vlaneseq
        %v2301 = vshrl.u32 %v2300, 7
        %v2302 = vsub.s32 %v2299, %v2301
        %v2303 = vrot.slane %v2195, %v2302
        %v2305 = vunpack.c.l.s4 1935823168
        %v2306 = vunpack.c.0.s8 %v2305
        %v2307 = vlaneseq
        %v2308 = vshrl.u32 %v2307, 7
        %v2309 = vsub.s32 %v2306, %v2308
        %v2310 = vrot.slane %v2303, %v2309
        %v2312 = vunpack.c.l.s4 1935823168
        %v2313 = vunpack.c.0.s8 %v2312
        %v2314 = vlaneseq
        %v2315 = vshrl.u32 %v2314, 7
        %v2316 = vsub.s32 %v2313, %v2315
        %v2317 = vrot.slane %v2196, %v2316
        %v2319 = vunpack.c.l.s4 1935823168
        %v2320 = vunpack.c.0.s8 %v2319
        %v2321 = vlaneseq
        %v2322 = vshrl.u32 %v2321, 7
        %v2323 = vsub.s32 %v2320, %v2322
        %v2324 = vrot.slane %v2317, %v2323
        %v2326 = vunpack.c.l.s4 1935823168
        %v2327 = vunpack.c.0.s8 %v2326
        %v2328 = vlaneseq
        %v2329 = vshrl.u32 %v2328, 7
        %v2330 = vsub.s32 %v2327, %v2329
        %v2331 = vrot.slane %v2211, %v2330
        %v2333 = vunpack.c.l.s4 1935823168
        %v2334 = vunpack.c.0.s8 %v2333
        %v2335 = vlaneseq
        %v2336 = vshrl.u32 %v2335, 7
        %v2337 = vsub.s32 %v2334, %v2336
        %v2338 = vrot.slane %v2331, %v2337
        %v2340 = vunpack.c.l.s4 1935823168
        %v2341 = vunpack.c.0.s8 %v2340
        %v2342 = vlaneseq
        %v2343 = vshrl.u32 %v2342, 7
        %v2344 = vsub.s32 %v2341, %v2343
        %v2345 = vrot.slane %v2218, %v2344
        %v2347 = vunpack.c.l.s4 1935823168
        %v2348 = vunpack.c.0.s8 %v2347
        %v2349 = vlaneseq
        %v2350 = vshrl.u32 %v2349, 7
        %v2351 = vsub.s32 %v2348, %v2350
        %v2352 = vrot.slane %v2345, %v2351
        %v2354 = vunpack.c.l.s4 1935823168
        %v2355 = vunpack.c.0.s8 %v2354
        %v2356 = vlaneseq
        %v2357 = vshrl.u32 %v2356, 7
        %v2358 = vsub.s32 %v2355, %v2357
        %v2359 = vrot.slane %v2219, %v2358
        %v2361 = vunpack.c.l.s4 1935823168
        %v2362 = vunpack.c.0.s8 %v2361
        %v2363 = vlaneseq
        %v2364 = vshrl.u32 %v2363, 7
        %v2365 = vsub.s32 %v2362, %v2364
        %v2366 = vrot.slane %v2359, %v2365
        %v2368 = vunpack.c.l.s4 1935823168
        %v2369 = vunpack.c.0.s8 %v2368
        %v2370 = vlaneseq
        %v2371 = vshrl.u32 %v2370, 7
        %v2372 = vsub.s32 %v2369, %v2371
        %v2373 = vrot.slane %v2220, %v2372
        %v2375 = vunpack.c.l.s4 1935823168
        %v2376 = vunpack.c.0.s8 %v2375
        %v2377 = vlaneseq
        %v2378 = vshrl.u32 %v2377, 7
        %v2379 = vsub.s32 %v2376, %v2378
        %v2380 = vrot.slane %v2373, %v2379
        %v2382 = vunpack.c.l.s4 1935823168
        %v2383 = vunpack.c.0.s8 %v2382
        %v2384 = vlaneseq
        %v2385 = vshrl.u32 %v2384, 7
        %v2386 = vsub.s32 %v2383, %v2385
        %v2387 = vrot.slane %v2235, %v2386
        %v2389 = vunpack.c.l.s4 1935823168
        %v2390 = vunpack.c.0.s8 %v2389
        %v2391 = vlaneseq
        %v2392 = vshrl.u32 %v2391, 7
        %v2393 = vsub.s32 %v2390, %v2392
        %v2394 = vrot.slane %v2387, %v2393
        %v2396 = vunpack.c.l.s4 1935823168
        %v2397 = vunpack.c.0.s8 %v2396
        %v2398 = vlaneseq
        %v2399 = vshrl.u32 %v2398, 7
        %v2400 = vsub.s32 %v2397, %v2399
        %v2401 = vrot.slane %v2242, %v2400
        %v2403 = vunpack.c.l.s4 1935823168
        %v2404 = vunpack.c.0.s8 %v2403
        %v2405 = vlaneseq
        %v2406 = vshrl.u32 %v2405, 7
        %v2407 = vsub.s32 %v2404, %v2406
        %v2408 = vrot.slane %v2401, %v2407
        %v2410 = vunpack.c.l.s4 1935823168
        %v2411 = vunpack.c.0.s8 %v2410
        %v2412 = vlaneseq
        %v2413 = vshrl.u32 %v2412, 7
        %v2414 = vsub.s32 %v2411, %v2413
        %v2415 = vrot.slane %v2243, %v2414
        %v2417 = vunpack.c.l.s4 1935823168
        %v2418 = vunpack.c.0.s8 %v2417
        %v2419 = vlaneseq
        %v2420 = vshrl.u32 %v2419, 7
        %v2421 = vsub.s32 %v2418, %v2420
        %v2422 = vrot.slane %v2415, %v2421
        %v2424 = vunpack.c.l.s4 1935823168
        %v2425 = vunpack.c.0.s8 %v2424
        %v2426 = vlaneseq
        %v2427 = vshrl.u32 %v2426, 7
        %v2428 = vsub.s32 %v2425, %v2427
        %v2429 = vrot.slane %v2244, %v2428
        %v2431 = vunpack.c.l.s4 1935823168
        %v2432 = vunpack.c.0.s8 %v2431
        %v2433 = vlaneseq
        %v2434 = vshrl.u32 %v2433, 7
        %v2435 = vsub.s32 %v2432, %v2434
        %v2436 = vrot.slane %v2429, %v2435
        %v2438 = vunpack.c.l.s4 1935823168
        %v2439 = vunpack.c.0.s8 %v2438
        %v2440 = vlaneseq
        %v2441 = vshrl.u32 %v2440, 7
        %v2442 = vsub.s32 %v2439, %v2441
        %v2443 = vrot.slane %v2259, %v2442
        %v2445 = vunpack.c.l.s4 1935823168
        %v2446 = vunpack.c.0.s8 %v2445
        %v2447 = vlaneseq
        %v2448 = vshrl.u32 %v2447, 7
        %v2449 = vsub.s32 %v2446, %v2448
        %v2450 = vrot.slane %v2443, %v2449
        %v2452 = vunpack.c.l.s4 1935823168
        %v2453 = vunpack.c.0.s8 %v2452
        %v2454 = vlaneseq
        %v2455 = vshrl.u32 %v2454, 7
        %v2456 = vsub.s32 %v2453, %v2455
        %v2457 = vrot.slane %v2266, %v2456
        %v2459 = vunpack.c.l.s4 1935823168
        %v2460 = vunpack.c.0.s8 %v2459
        %v2461 = vlaneseq
        %v2462 = vshrl.u32 %v2461, 7
        %v2463 = vsub.s32 %v2460, %v2462
        %v2464 = vrot.slane %v2457, %v2463
        %v2466 = vunpack.c.l.s4 1935823168
        %v2467 = vunpack.c.0.s8 %v2466
        %v2468 = vlaneseq
        %v2469 = vshrl.u32 %v2468, 7
        %v2470 = vsub.s32 %v2467, %v2469
        %v2471 = vrot.slane %v2267, %v2470
        %v2473 = vunpack.c.l.s4 1935823168
        %v2474 = vunpack.c.0.s8 %v2473
        %v2475 = vlaneseq
        %v2476 = vshrl.u32 %v2475, 7
        %v2477 = vsub.s32 %v2474, %v2476
        %v2478 = vrot.slane %v2471, %v2477
        %v2480 = vunpack.c.l.s4 1935823168
        %v2481 = vunpack.c.0.s8 %v2480
        %v2482 = vlaneseq
        %v2483 = vshrl.u32 %v2482, 7
        %v2484 = vsub.s32 %v2481, %v2483
        %v2485 = vrot.slane %v2268, %v2484
        %v2487 = vunpack.c.l.s4 1935823168
        %v2488 = vunpack.c.0.s8 %v2487
        %v2489 = vlaneseq
        %v2490 = vshrl.u32 %v2489, 7
        %v2491 = vsub.s32 %v2488, %v2490
        %v2492 = vrot.slane %v2485, %v2491
        %v2493 = vunpack.c.l.b16 %v2282
        %v2494 = vunpack.c.l.b16 %v2296
        %v2495 = vunpack.c.l.b16 %v2310
        %v2496 = vunpack.c.l.b16 %v2324
        %v2497 = vunpack.c.l.b16 %v2338
        %v2498 = vunpack.c.l.b16 %v2352
        %v2499 = vunpack.c.l.b16 %v2366
        %v2500 = vunpack.c.l.b16 %v2380
        %v2501 = vunpack.c.l.b16 %v2394
        %v2502 = vunpack.c.l.b16 %v2408
        %v2503 = vunpack.c.l.b16 %v2422
        %v2504 = vunpack.c.l.b16 %v2436
        %v2505 = vunpack.c.l.b16 %v2450
        %v2506 = vunpack.c.l.b16 %v2464
        %v2507 = vunpack.c.l.b16 %v2478
        %v2508 = vunpack.c.l.b16 %v2492
        %v2509 = vrot.slane %v2493, 7
        %v2510 = vrot.slane %v2494, 6
        %vm2511 = vcmask 1042434
        %v2512 = vsel %vm2511, %v2510, %v2509
        %v2513 = vrot.slane %v2495, 5
        %vm2514 = vcmask 1043459
        %v2515 = vsel %vm2514, %v2513, %v2512
        %v2516 = vrot.slane %v2496, 4
        %vm2517 = vcmask 1044484
        %v2518 = vsel %vm2517, %v2516, %v2515
        %v2519 = vrot.slane %v2497, 7
        %v2520 = vrot.slane %v2498, 6
        %v2521 = vsel %vm2511, %v2520, %v2519
        %v2522 = vrot.slane %v2499, 5
        %v2523 = vsel %vm2514, %v2522, %v2521
        %v2524 = vrot.slane %v2500, 4
        %v2525 = vsel %vm2517, %v2524, %v2523
        %v2526 = vrot.slane %v2501, 7
        %v2527 = vrot.slane %v2502, 6
        %v2528 = vsel %vm2511, %v2527, %v2526
        %v2529 = vrot.slane %v2503, 5
        %v2530 = vsel %vm2514, %v2529, %v2528
        %v2531 = vrot.slane %v2504, 4
        %v2532 = vsel %vm2517, %v2531, %v2530
        %v2533 = vrot.slane %v2505, 7
        %v2534 = vrot.slane %v2506, 6
        %v2535 = vsel %vm2511, %v2534, %v2533
        %v2536 = vrot.slane %v2507, 5
        %v2537 = vsel %vm2514, %v2536, %v2535
        %v2538 = vrot.slane %v2508, 4
        %v2539 = vsel %vm2517, %v2538, %v2537
        %v2540 = vpack.c.b16 %v2518, %v2518
        %v2541 = vpack.c.b16 %v2525, %v2525
        %v2542 = vpack.c.b16 %v2532, %v2532
        %v2543 = vpack.c.b16 %v2539, %v2539
        %s2548 = scalar_lea.vmem [#allocation2], 4
        %vm2549 = vcmask 59392
        %vm2550 = vsmask.f32 2306
        %vm2551 = vmand %vm2549, %vm2550
        %v2552 = vld [vmem:[%s2548] sm:$0x7]
        %v2553 = vsel %vm2551, %v2540, %v2552
        %2554 = vst [vmem:[%s2548] sm:$0x7] %v2553
        %v2555 = vld [vmem:[%s2548 + $0x4] sm:$0x7]
        %v2556 = vsel %vm2551, %v2541, %v2555
        %2557 = vst [vmem:[%s2548 + $0x4] sm:$0x7] %v2556
        %v2558 = vld [vmem:[%s2548 + $0x8] sm:$0x7]
        %v2559 = vsel %vm2551, %v2542, %v2558
        %2560 = vst [vmem:[%s2548 + $0x8] sm:$0x7] %v2559
        %v2561 = vld [vmem:[%s2548 + $0xc] sm:$0x7]
        %v2562 = vsel %vm2551, %v2543, %v2561
        %2563 = vst [vmem:[%s2548 + $0xc] sm:$0x7] %v2562
        %v2564 = vrot.slane %v2494, 7
        %v2565 = vsel %vm2511, %v2564, %v2493
        %v2566 = vrot.slane %v2495, 6
        %v2567 = vsel %vm2514, %v2566, %v2565
        %v2568 = vrot.slane %v2496, 5
        %v2569 = vsel %vm2517, %v2568, %v2567
        %v2570 = vrot.slane %v2498, 7
        %v2571 = vsel %vm2511, %v2570, %v2497
        %v2572 = vrot.slane %v2499, 6
        %v2573 = vsel %vm2514, %v2572, %v2571
        %v2574 = vrot.slane %v2500, 5
        %v2575 = vsel %vm2517, %v2574, %v2573
        %v2576 = vrot.slane %v2502, 7
        %v2577 = vsel %vm2511, %v2576, %v2501
        %v2578 = vrot.slane %v2503, 6
        %v2579 = vsel %vm2514, %v2578, %v2577
        %v2580 = vrot.slane %v2504, 5
        %v2581 = vsel %vm2517, %v2580, %v2579
        %v2582 = vrot.slane %v2506, 7
        %v2583 = vsel %vm2511, %v2582, %v2505
        %v2584 = vrot.slane %v2507, 6
        %v2585 = vsel %vm2514, %v2584, %v2583
        %v2586 = vrot.slane %v2508, 5
        %v2587 = vsel %vm2517, %v2586, %v2585
        %v2588 = vpack.c.b16 %v2569, %v2569
        %v2589 = vpack.c.b16 %v2575, %v2575
        %v2590 = vpack.c.b16 %v2581, %v2581
        %v2591 = vpack.c.b16 %v2587, %v2587
        %2592 = vrot.lane.b32.xlu0 %v2588, 8
        %v2593 = vpop.permute.xlu0 %2592
        %2594 = vrot.lane.b32.xlu0 %v2589, 8
        %v2595 = vpop.permute.xlu0 %2594
        %2596 = vrot.lane.b32.xlu0 %v2590, 8
        %v2597 = vpop.permute.xlu0 %2596
        %2598 = vrot.lane.b32.xlu0 %v2591, 8
        %v2599 = vpop.permute.xlu0 %2598
        %vm2604 = vcmask 124992
        %vm2605 = vmand %vm2604, %vm2550
        %v2606 = vld [vmem:[%s2548] sm:$0x7]
        %v2607 = vsel %vm2605, %v2593, %v2606
        %2608 = vst [vmem:[%s2548] sm:$0x7] %v2607
        %v2609 = vld [vmem:[%s2548 + $0x4] sm:$0x7]
        %v2610 = vsel %vm2605, %v2595, %v2609
        %2611 = vst [vmem:[%s2548 + $0x4] sm:$0x7] %v2610
        %v2612 = vld [vmem:[%s2548 + $0x8] sm:$0x7]
        %v2613 = vsel %vm2605, %v2597, %v2612
        %2614 = vst [vmem:[%s2548 + $0x8] sm:$0x7] %v2613
        %v2615 = vld [vmem:[%s2548 + $0xc] sm:$0x7]
        %v2616 = vsel %vm2605, %v2599, %v2615
        %2617 = vst [vmem:[%s2548 + $0xc] sm:$0x7] %v2616
        %v2619 = vunpack.c.l.s4 1966171168
        %v2620 = vunpack.c.0.s8 %v2619
        %v2621 = vlaneseq
        %v2622 = vshrl.u32 %v2621, 7
        %v2623 = vsub.s32 %v2620, %v2622
        %v2624 = vrot.slane %v2166, %v2623
        %v2625 = vcombine.high %v2624, %v2624
        %v2627 = vunpack.c.l.s4 1966171168
        %v2628 = vunpack.c.0.s8 %v2627
        %v2629 = vlaneseq
        %v2630 = vshrl.u32 %v2629, 7
        %v2631 = vsub.s32 %v2628, %v2630
        %v2632 = vrot.slane %v2624, %v2631
        %v2634 = vunpack.c.l.s4 1966171168
        %v2635 = vunpack.c.0.s8 %v2634
        %v2636 = vlaneseq
        %v2637 = vshrl.u32 %v2636, 7
        %v2638 = vsub.s32 %v2635, %v2637
        %v2639 = vrot.slane %v2625, %v2638
        %v2640 = vcombine.high %v2632, %v2632
        %v2641 = vcombine.high %v2639, %v2639
        %v2643 = vunpack.c.l.s4 1966171168
        %v2644 = vunpack.c.0.s8 %v2643
        %v2645 = vlaneseq
        %v2646 = vshrl.u32 %v2645, 7
        %v2647 = vsub.s32 %v2644, %v2646
        %v2648 = vrot.slane %v2168, %v2647
        %v2649 = vcombine.high %v2648, %v2648
        %v2651 = vunpack.c.l.s4 1966171168
        %v2652 = vunpack.c.0.s8 %v2651
        %v2653 = vlaneseq
        %v2654 = vshrl.u32 %v2653, 7
        %v2655 = vsub.s32 %v2652, %v2654
        %v2656 = vrot.slane %v2648, %v2655
        %v2658 = vunpack.c.l.s4 1966171168
        %v2659 = vunpack.c.0.s8 %v2658
        %v2660 = vlaneseq
        %v2661 = vshrl.u32 %v2660, 7
        %v2662 = vsub.s32 %v2659, %v2661
        %v2663 = vrot.slane %v2649, %v2662
        %v2664 = vcombine.high %v2656, %v2656
        %v2665 = vcombine.high %v2663, %v2663
        %v2667 = vunpack.c.l.s4 1966171168
        %v2668 = vunpack.c.0.s8 %v2667
        %v2669 = vlaneseq
        %v2670 = vshrl.u32 %v2669, 7
        %v2671 = vsub.s32 %v2668, %v2670
        %v2672 = vrot.slane %v2170, %v2671
        %v2673 = vcombine.high %v2672, %v2672
        %v2675 = vunpack.c.l.s4 1966171168
        %v2676 = vunpack.c.0.s8 %v2675
        %v2677 = vlaneseq
        %v2678 = vshrl.u32 %v2677, 7
        %v2679 = vsub.s32 %v2676, %v2678
        %v2680 = vrot.slane %v2672, %v2679
        %v2682 = vunpack.c.l.s4 1966171168
        %v2683 = vunpack.c.0.s8 %v2682
        %v2684 = vlaneseq
        %v2685 = vshrl.u32 %v2684, 7
        %v2686 = vsub.s32 %v2683, %v2685
        %v2687 = vrot.slane %v2673, %v2686
        %v2688 = vcombine.high %v2680, %v2680
        %v2689 = vcombine.high %v2687, %v2687
        %v2691 = vunpack.c.l.s4 1966171168
        %v2692 = vunpack.c.0.s8 %v2691
        %v2693 = vlaneseq
        %v2694 = vshrl.u32 %v2693, 7
        %v2695 = vsub.s32 %v2692, %v2694
        %v2696 = vrot.slane %v2172, %v2695
        %v2697 = vcombine.high %v2696, %v2696
        %v2699 = vunpack.c.l.s4 1966171168
        %v2700 = vunpack.c.0.s8 %v2699
        %v2701 = vlaneseq
        %v2702 = vshrl.u32 %v2701, 7
        %v2703 = vsub.s32 %v2700, %v2702
        %v2704 = vrot.slane %v2696, %v2703
        %v2706 = vunpack.c.l.s4 1966171168
        %v2707 = vunpack.c.0.s8 %v2706
        %v2708 = vlaneseq
        %v2709 = vshrl.u32 %v2708, 7
        %v2710 = vsub.s32 %v2707, %v2709
        %v2711 = vrot.slane %v2697, %v2710
        %v2712 = vcombine.high %v2704, %v2704
        %v2713 = vcombine.high %v2711, %v2711
        %v2715 = vunpack.c.l.s4 1935823168
        %v2716 = vunpack.c.0.s8 %v2715
        %v2717 = vlaneseq
        %v2718 = vshrl.u32 %v2717, 7
        %v2719 = vsub.s32 %v2716, %v2718
        %v2720 = vrot.slane %v2632, %v2719
        %v2722 = vunpack.c.l.s4 1935823168
        %v2723 = vunpack.c.0.s8 %v2722
        %v2724 = vlaneseq
        %v2725 = vshrl.u32 %v2724, 7
        %v2726 = vsub.s32 %v2723, %v2725
        %v2727 = vrot.slane %v2720, %v2726
        %v2729 = vunpack.c.l.s4 1935823168
        %v2730 = vunpack.c.0.s8 %v2729
        %v2731 = vlaneseq
        %v2732 = vshrl.u32 %v2731, 7
        %v2733 = vsub.s32 %v2730, %v2732
        %v2734 = vrot.slane %v2639, %v2733
        %v2736 = vunpack.c.l.s4 1935823168
        %v2737 = vunpack.c.0.s8 %v2736
        %v2738 = vlaneseq
        %v2739 = vshrl.u32 %v2738, 7
        %v2740 = vsub.s32 %v2737, %v2739
        %v2741 = vrot.slane %v2734, %v2740
        %v2743 = vunpack.c.l.s4 1935823168
        %v2744 = vunpack.c.0.s8 %v2743
        %v2745 = vlaneseq
        %v2746 = vshrl.u32 %v2745, 7
        %v2747 = vsub.s32 %v2744, %v2746
        %v2748 = vrot.slane %v2640, %v2747
        %v2750 = vunpack.c.l.s4 1935823168
        %v2751 = vunpack.c.0.s8 %v2750
        %v2752 = vlaneseq
        %v2753 = vshrl.u32 %v2752, 7
        %v2754 = vsub.s32 %v2751, %v2753
        %v2755 = vrot.slane %v2748, %v2754
        %v2757 = vunpack.c.l.s4 1935823168
        %v2758 = vunpack.c.0.s8 %v2757
        %v2759 = vlaneseq
        %v2760 = vshrl.u32 %v2759, 7
        %v2761 = vsub.s32 %v2758, %v2760
        %v2762 = vrot.slane %v2641, %v2761
        %v2764 = vunpack.c.l.s4 1935823168
        %v2765 = vunpack.c.0.s8 %v2764
        %v2766 = vlaneseq
        %v2767 = vshrl.u32 %v2766, 7
        %v2768 = vsub.s32 %v2765, %v2767
        %v2769 = vrot.slane %v2762, %v2768
        %v2771 = vunpack.c.l.s4 1935823168
        %v2772 = vunpack.c.0.s8 %v2771
        %v2773 = vlaneseq
        %v2774 = vshrl.u32 %v2773, 7
        %v2775 = vsub.s32 %v2772, %v2774
        %v2776 = vrot.slane %v2656, %v2775
        %v2778 = vunpack.c.l.s4 1935823168
        %v2779 = vunpack.c.0.s8 %v2778
        %v2780 = vlaneseq
        %v2781 = vshrl.u32 %v2780, 7
        %v2782 = vsub.s32 %v2779, %v2781
        %v2783 = vrot.slane %v2776, %v2782
        %v2785 = vunpack.c.l.s4 1935823168
        %v2786 = vunpack.c.0.s8 %v2785
        %v2787 = vlaneseq
        %v2788 = vshrl.u32 %v2787, 7
        %v2789 = vsub.s32 %v2786, %v2788
        %v2790 = vrot.slane %v2663, %v2789
        %v2792 = vunpack.c.l.s4 1935823168
        %v2793 = vunpack.c.0.s8 %v2792
        %v2794 = vlaneseq
        %v2795 = vshrl.u32 %v2794, 7
        %v2796 = vsub.s32 %v2793, %v2795
        %v2797 = vrot.slane %v2790, %v2796
        %v2799 = vunpack.c.l.s4 1935823168
        %v2800 = vunpack.c.0.s8 %v2799
        %v2801 = vlaneseq
        %v2802 = vshrl.u32 %v2801, 7
        %v2803 = vsub.s32 %v2800, %v2802
        %v2804 = vrot.slane %v2664, %v2803
        %v2806 = vunpack.c.l.s4 1935823168
        %v2807 = vunpack.c.0.s8 %v2806
        %v2808 = vlaneseq
        %v2809 = vshrl.u32 %v2808, 7
        %v2810 = vsub.s32 %v2807, %v2809
        %v2811 = vrot.slane %v2804, %v2810
        %v2813 = vunpack.c.l.s4 1935823168
        %v2814 = vunpack.c.0.s8 %v2813
        %v2815 = vlaneseq
        %v2816 = vshrl.u32 %v2815, 7
        %v2817 = vsub.s32 %v2814, %v2816
        %v2818 = vrot.slane %v2665, %v2817
        %v2820 = vunpack.c.l.s4 1935823168
        %v2821 = vunpack.c.0.s8 %v2820
        %v2822 = vlaneseq
        %v2823 = vshrl.u32 %v2822, 7
        %v2824 = vsub.s32 %v2821, %v2823
        %v2825 = vrot.slane %v2818, %v2824
        %v2827 = vunpack.c.l.s4 1935823168
        %v2828 = vunpack.c.0.s8 %v2827
        %v2829 = vlaneseq
        %v2830 = vshrl.u32 %v2829, 7
        %v2831 = vsub.s32 %v2828, %v2830
        %v2832 = vrot.slane %v2680, %v2831
        %v2834 = vunpack.c.l.s4 1935823168
        %v2835 = vunpack.c.0.s8 %v2834
        %v2836 = vlaneseq
        %v2837 = vshrl.u32 %v2836, 7
        %v2838 = vsub.s32 %v2835, %v2837
        %v2839 = vrot.slane %v2832, %v2838
        %v2841 = vunpack.c.l.s4 1935823168
        %v2842 = vunpack.c.0.s8 %v2841
        %v2843 = vlaneseq
        %v2844 = vshrl.u32 %v2843, 7
        %v2845 = vsub.s32 %v2842, %v2844
        %v2846 = vrot.slane %v2687, %v2845
        %v2848 = vunpack.c.l.s4 1935823168
        %v2849 = vunpack.c.0.s8 %v2848
        %v2850 = vlaneseq
        %v2851 = vshrl.u32 %v2850, 7
        %v2852 = vsub.s32 %v2849, %v2851
        %v2853 = vrot.slane %v2846, %v2852
        %v2855 = vunpack.c.l.s4 1935823168
        %v2856 = vunpack.c.0.s8 %v2855
        %v2857 = vlaneseq
        %v2858 = vshrl.u32 %v2857, 7
        %v2859 = vsub.s32 %v2856, %v2858
        %v2860 = vrot.slane %v2688, %v2859
        %v2862 = vunpack.c.l.s4 1935823168
        %v2863 = vunpack.c.0.s8 %v2862
        %v2864 = vlaneseq
        %v2865 = vshrl.u32 %v2864, 7
        %v2866 = vsub.s32 %v2863, %v2865
        %v2867 = vrot.slane %v2860, %v2866
        %v2869 = vunpack.c.l.s4 1935823168
        %v2870 = vunpack.c.0.s8 %v2869
        %v2871 = vlaneseq
        %v2872 = vshrl.u32 %v2871, 7
        %v2873 = vsub.s32 %v2870, %v2872
        %v2874 = vrot.slane %v2689, %v2873
        %v2876 = vunpack.c.l.s4 1935823168
        %v2877 = vunpack.c.0.s8 %v2876
        %v2878 = vlaneseq
        %v2879 = vshrl.u32 %v2878, 7
        %v2880 = vsub.s32 %v2877, %v2879
        %v2881 = vrot.slane %v2874, %v2880
        %v2883 = vunpack.c.l.s4 1935823168
        %v2884 = vunpack.c.0.s8 %v2883
        %v2885 = vlaneseq
        %v2886 = vshrl.u32 %v2885, 7
        %v2887 = vsub.s32 %v2884, %v2886
        %v2888 = vrot.slane %v2704, %v2887
        %v2890 = vunpack.c.l.s4 1935823168
        %v2891 = vunpack.c.0.s8 %v2890
        %v2892 = vlaneseq
        %v2893 = vshrl.u32 %v2892, 7
        %v2894 = vsub.s32 %v2891, %v2893
        %v2895 = vrot.slane %v2888, %v2894
        %v2897 = vunpack.c.l.s4 1935823168
        %v2898 = vunpack.c.0.s8 %v2897
        %v2899 = vlaneseq
        %v2900 = vshrl.u32 %v2899, 7
        %v2901 = vsub.s32 %v2898, %v2900
        %v2902 = vrot.slane %v2711, %v2901
        %v2904 = vunpack.c.l.s4 1935823168
        %v2905 = vunpack.c.0.s8 %v2904
        %v2906 = vlaneseq
        %v2907 = vshrl.u32 %v2906, 7
        %v2908 = vsub.s32 %v2905, %v2907
        %v2909 = vrot.slane %v2902, %v2908
        %v2911 = vunpack.c.l.s4 1935823168
        %v2912 = vunpack.c.0.s8 %v2911
        %v2913 = vlaneseq
        %v2914 = vshrl.u32 %v2913, 7
        %v2915 = vsub.s32 %v2912, %v2914
        %v2916 = vrot.slane %v2712, %v2915
        %v2918 = vunpack.c.l.s4 1935823168
        %v2919 = vunpack.c.0.s8 %v2918
        %v2920 = vlaneseq
        %v2921 = vshrl.u32 %v2920, 7
        %v2922 = vsub.s32 %v2919, %v2921
        %v2923 = vrot.slane %v2916, %v2922
        %v2925 = vunpack.c.l.s4 1935823168
        %v2926 = vunpack.c.0.s8 %v2925
        %v2927 = vlaneseq
        %v2928 = vshrl.u32 %v2927, 7
        %v2929 = vsub.s32 %v2926, %v2928
        %v2930 = vrot.slane %v2713, %v2929
        %v2932 = vunpack.c.l.s4 1935823168
        %v2933 = vunpack.c.0.s8 %v2932
        %v2934 = vlaneseq
        %v2935 = vshrl.u32 %v2934, 7
        %v2936 = vsub.s32 %v2933, %v2935
        %v2937 = vrot.slane %v2930, %v2936
        %v2938 = vunpack.c.l.b16 %v2727
        %v2939 = vunpack.c.l.b16 %v2741
        %v2940 = vunpack.c.l.b16 %v2755
        %v2941 = vunpack.c.l.b16 %v2769
        %v2942 = vunpack.c.l.b16 %v2783
        %v2943 = vunpack.c.l.b16 %v2797
        %v2944 = vunpack.c.l.b16 %v2811
        %v2945 = vunpack.c.l.b16 %v2825
        %v2946 = vunpack.c.l.b16 %v2839
        %v2947 = vunpack.c.l.b16 %v2853
        %v2948 = vunpack.c.l.b16 %v2867
        %v2949 = vunpack.c.l.b16 %v2881
        %v2950 = vunpack.c.l.b16 %v2895
        %v2951 = vunpack.c.l.b16 %v2909
        %v2952 = vunpack.c.l.b16 %v2923
        %v2953 = vunpack.c.l.b16 %v2937
        %v2954 = vrot.slane %v2938, 7
        %v2955 = vrot.slane %v2939, 6
        %v2956 = vsel %vm2511, %v2955, %v2954
        %v2957 = vrot.slane %v2940, 5
        %v2958 = vsel %vm2514, %v2957, %v2956
        %v2959 = vrot.slane %v2941, 4
        %v2960 = vsel %vm2517, %v2959, %v2958
        %v2961 = vrot.slane %v2942, 7
        %v2962 = vrot.slane %v2943, 6
        %v2963 = vsel %vm2511, %v2962, %v2961
        %v2964 = vrot.slane %v2944, 5
        %v2965 = vsel %vm2514, %v2964, %v2963
        %v2966 = vrot.slane %v2945, 4
        %v2967 = vsel %vm2517, %v2966, %v2965
        %v2968 = vrot.slane %v2946, 7
        %v2969 = vrot.slane %v2947, 6
        %v2970 = vsel %vm2511, %v2969, %v2968
        %v2971 = vrot.slane %v2948, 5
        %v2972 = vsel %vm2514, %v2971, %v2970
        %v2973 = vrot.slane %v2949, 4
        %v2974 = vsel %vm2517, %v2973, %v2972
        %v2975 = vrot.slane %v2950, 7
        %v2976 = vrot.slane %v2951, 6
        %v2977 = vsel %vm2511, %v2976, %v2975
        %v2978 = vrot.slane %v2952, 5
        %v2979 = vsel %vm2514, %v2978, %v2977
        %v2980 = vrot.slane %v2953, 4
        %v2981 = vsel %vm2517, %v2980, %v2979
        %v2982 = vpack.c.b16 %v2960, %v2960
        %v2983 = vpack.c.b16 %v2967, %v2967
        %v2984 = vpack.c.b16 %v2974, %v2974
        %v2985 = vpack.c.b16 %v2981, %v2981
        %s2990 = scalar_lea.vmem [#allocation2], 28
        %v2991 = vld [vmem:[%s2990] sm:$0x7]
        %v2992 = vsel %vm2551, %v2982, %v2991
        %2993 = vst [vmem:[%s2990] sm:$0x7] %v2992
        %v2994 = vld [vmem:[%s2990 + $0x4] sm:$0x7]
        %v2995 = vsel %vm2551, %v2983, %v2994
        %2996 = vst [vmem:[%s2990 + $0x4] sm:$0x7] %v2995
        %v2997 = vld [vmem:[%s2990 + $0x8] sm:$0x7]
        %v2998 = vsel %vm2551, %v2984, %v2997
        %2999 = vst [vmem:[%s2990 + $0x8] sm:$0x7] %v2998
        %v3000 = vld [vmem:[%s2990 + $0xc] sm:$0x7]
        %v3001 = vsel %vm2551, %v2985, %v3000
        %3002 = vst [vmem:[%s2990 + $0xc] sm:$0x7] %v3001
        %v3003 = vrot.slane %v2939, 7
        %v3004 = vsel %vm2511, %v3003, %v2938
        %v3005 = vrot.slane %v2940, 6
        %v3006 = vsel %vm2514, %v3005, %v3004
        %v3007 = vrot.slane %v2941, 5
        %v3008 = vsel %vm2517, %v3007, %v3006
        %v3009 = vrot.slane %v2943, 7
        %v3010 = vsel %vm2511, %v3009, %v2942
        %v3011 = vrot.slane %v2944, 6
        %v3012 = vsel %vm2514, %v3011, %v3010
        %v3013 = vrot.slane %v2945, 5
        %v3014 = vsel %vm2517, %v3013, %v3012
        %v3015 = vrot.slane %v2947, 7
        %v3016 = vsel %vm2511, %v3015, %v2946
        %v3017 = vrot.slane %v2948, 6
        %v3018 = vsel %vm2514, %v3017, %v3016
        %v3019 = vrot.slane %v2949, 5
        %v3020 = vsel %vm2517, %v3019, %v3018
        %v3021 = vrot.slane %v2951, 7
        %v3022 = vsel %vm2511, %v3021, %v2950
        %v3023 = vrot.slane %v2952, 6
        %v3024 = vsel %vm2514, %v3023, %v3022
        %v3025 = vrot.slane %v2953, 5
        %v3026 = vsel %vm2517, %v3025, %v3024
        %v3027 = vpack.c.b16 %v3008, %v3008
        %v3028 = vpack.c.b16 %v3014, %v3014
        %v3029 = vpack.c.b16 %v3020, %v3020
        %v3030 = vpack.c.b16 %v3026, %v3026
        %3031 = vrot.lane.b32.xlu0 %v3027, 8
        %v3032 = vpop.permute.xlu0 %3031
        %3033 = vrot.lane.b32.xlu0 %v3028, 8
        %v3034 = vpop.permute.xlu0 %3033
        %3035 = vrot.lane.b32.xlu0 %v3029, 8
        %v3036 = vpop.permute.xlu0 %3035
        %3037 = vrot.lane.b32.xlu0 %v3030, 8
        %v3038 = vpop.permute.xlu0 %3037
        %v3043 = vld [vmem:[%s2990] sm:$0x7]
        %v3044 = vsel %vm2605, %v3032, %v3043
        %3045 = vst [vmem:[%s2990] sm:$0x7] %v3044
        %v3046 = vld [vmem:[%s2990 + $0x4] sm:$0x7]
        %v3047 = vsel %vm2605, %v3034, %v3046
        %3048 = vst [vmem:[%s2990 + $0x4] sm:$0x7] %v3047
        %v3049 = vld [vmem:[%s2990 + $0x8] sm:$0x7]
        %v3050 = vsel %vm2605, %v3036, %v3049
        %3051 = vst [vmem:[%s2990 + $0x8] sm:$0x7] %v3050
        %v3052 = vld [vmem:[%s2990 + $0xc] sm:$0x7]
        %v3053 = vsel %vm2605, %v3038, %v3052
        %3054 = vst [vmem:[%s2990 + $0xc] sm:$0x7] %v3053
        %v3055 = vld [vmem:[#allocation8] sm:$0xf]
        %v3056 = vld [vmem:[#allocation8 + $0x4] sm:$0xf]
        %v3057 = vld [vmem:[#allocation8 + $0x8] sm:$0xf]
        %v3058 = vld [vmem:[#allocation8 + $0xc] sm:$0xf]
        %v3059 = vld [vmem:[#allocation8 + $0x10] sm:$0xf]
        %v3060 = vld [vmem:[#allocation8 + $0x14] sm:$0xf]
        %v3061 = vld [vmem:[#allocation8 + $0x18] sm:$0xf]
        %v3062 = vld [vmem:[#allocation8 + $0x1c] sm:$0xf]
        %v3063 = vld [vmem:[#allocation8 + $0x20] sm:$0xf]
        %v3064 = vld [vmem:[#allocation8 + $0x24] sm:$0xf]
        %v3065 = vld [vmem:[#allocation8 + $0x28] sm:$0xf]
        %v3066 = vld [vmem:[#allocation8 + $0x2c] sm:$0xf]
        %v3067 = vld [vmem:[#allocation8 + $0x30] sm:$0xf]
        %v3068 = vld [vmem:[#allocation8 + $0x34] sm:$0xf]
        %v3069 = vld [vmem:[#allocation8 + $0x38] sm:$0xf]
        %v3070 = vld [vmem:[#allocation8 + $0x3c] sm:$0xf]
        %v3071 = vld [vmem:[#allocation8 + $0x40] sm:$0xf]
        %v3072 = vld [vmem:[#allocation8 + $0x44] sm:$0xf]
        %v3073 = vld [vmem:[#allocation8 + $0x48] sm:$0xf]
        %v3074 = vld [vmem:[#allocation8 + $0x4c] sm:$0xf]
        %v3075 = vld [vmem:[#allocation8 + $0x50] sm:$0xf]
        %v3076 = vld [vmem:[#allocation8 + $0x54] sm:$0xf]
        %v3077 = vld [vmem:[#allocation8 + $0x58] sm:$0xf]
        %v3078 = vld [vmem:[#allocation8 + $0x5c] sm:$0xf]
        %v3079 = vld [vmem:[#allocation8 + $0x60] sm:$0xf]
        %v3080 = vld [vmem:[%s4] sm:$0x1]
        %vm3081 = vcmask 254976
        %3082 = vst.msk [vmem:[#allocation3] sm:$0x3] %vm3081, 0
        %3083 = vst.msk [vmem:[#allocation3 + $0x8] sm:$0x3] %vm3081, 0
        %s3084 = scalar_lea.vmem [#allocation3], 6
        %3085 = vst.msk [vmem:[%s3084] sm:$0x3] %vm3081, 0
        %3086 = vst.msk [vmem:[%s3084 + $0x8] sm:$0x3] %vm3081, 0
        %vm3087 = vcmask 253952
        %vm3088 = vmand %vm3087, %vm382
        %v3089 = vld [vmem:[#allocation3] sm:$0x1]
        %v3090 = vsel %vm3088, 0, %v3089
        %3091 = vst [vmem:[#allocation3] sm:$0x1] %v3090
        %v3092 = vld [vmem:[#allocation3 + $0x2] sm:$0x1]
        %v3093 = vsel %vm3088, 0, %v3092
        %3094 = vst [vmem:[#allocation3 + $0x2] sm:$0x1] %v3093
        %v3095 = vld [vmem:[#allocation3 + $0x4] sm:$0x1]
        %v3096 = vsel %vm3088, 0, %v3095
        %3097 = vst [vmem:[#allocation3 + $0x4] sm:$0x1] %v3096
        %v3098 = vld [vmem:[#allocation3 + $0x6] sm:$0x1]
        %v3099 = vsel %vm3088, 0, %v3098
        %3100 = vst [vmem:[#allocation3 + $0x6] sm:$0x1] %v3099
        %v3101 = vld [vmem:[#allocation3 + $0x8] sm:$0x1]
        %v3102 = vsel %vm3088, 0, %v3101
        %3103 = vst [vmem:[#allocation3 + $0x8] sm:$0x1] %v3102
        %v3104 = vld [vmem:[#allocation3 + $0xa] sm:$0x1]
        %v3105 = vsel %vm3088, 0, %v3104
        %3106 = vst [vmem:[#allocation3 + $0xa] sm:$0x1] %v3105
        %v3107 = vld [vmem:[#allocation3 + $0xc] sm:$0x1]
        %v3108 = vsel %vm3088, 0, %v3107
        %3109 = vst [vmem:[#allocation3 + $0xc] sm:$0x1] %v3108
        %v3110 = vld [vmem:[#allocation3 + $0xe] sm:$0x1]
        %v3111 = vsel %vm3088, 0, %v3110
        %3112 = vst [vmem:[#allocation3 + $0xe] sm:$0x1] %v3111
        %vm3113 = vcmask 254977
        %vm3114 = vsmask.f32 7942
        %vm3115 = vmand %vm3113, %vm3114
        %v3116 = vld [vmem:[#allocation3] sm:$0x2]
        %v3117 = vsel %vm3115, 0, %v3116
        %3118 = vst [vmem:[#allocation3] sm:$0x2] %v3117
        %v3119 = vld [vmem:[#allocation3 + $0x2] sm:$0x2]
        %v3120 = vsel %vm3115, 0, %v3119
        %3121 = vst [vmem:[#allocation3 + $0x2] sm:$0x2] %v3120
        %v3122 = vld [vmem:[#allocation3 + $0x4] sm:$0x2]
        %v3123 = vsel %vm3115, 0, %v3122
        %3124 = vst [vmem:[#allocation3 + $0x4] sm:$0x2] %v3123
        %v3125 = vld [vmem:[#allocation3 + $0x6] sm:$0x2]
        %v3126 = vsel %vm3115, 0, %v3125
        %3127 = vst [vmem:[#allocation3 + $0x6] sm:$0x2] %v3126
        %v3128 = vld [vmem:[#allocation3 + $0x8] sm:$0x2]
        %v3129 = vsel %vm3115, 0, %v3128
        %3130 = vst [vmem:[#allocation3 + $0x8] sm:$0x2] %v3129
        %v3131 = vld [vmem:[#allocation3 + $0xa] sm:$0x2]
        %v3132 = vsel %vm3115, 0, %v3131
        %3133 = vst [vmem:[#allocation3 + $0xa] sm:$0x2] %v3132
        %v3134 = vld [vmem:[#allocation3 + $0xc] sm:$0x2]
        %v3135 = vsel %vm3115, 0, %v3134
        %3136 = vst [vmem:[#allocation3 + $0xc] sm:$0x2] %v3135
        %v3137 = vld [vmem:[#allocation3 + $0xe] sm:$0x2]
        %v3138 = vsel %vm3115, 0, %v3137
        %3139 = vst [vmem:[#allocation3 + $0xe] sm:$0x2] %v3138
        %v3140 = vld [vmem:[#allocation2] sm:$0x3]
        %v3141 = vld [vmem:[#allocation2 + $0x4] sm:$0x3]
        %v3142 = vld [vmem:[#allocation2 + $0x8] sm:$0x3]
        %v3143 = vld [vmem:[#allocation2 + $0xc] sm:$0x3]
        %vm3144 = vcmask 123904
        %3145 = vst.msk [vmem:[#allocation5] sm:$0x3] %vm3144, %v3140
        %3146 = vst.msk [vmem:[#allocation5 + $0x4] sm:$0x3] %vm3144, %v3141
        %3147 = vst.msk [vmem:[#allocation5 + $0x8] sm:$0x3] %vm3144, %v3142
        %3148 = vst.msk [vmem:[#allocation5 + $0xc] sm:$0x3] %vm3144, %v3143
        %v3149 = vld [vmem:[#allocation2] sm:$0x7]
        %v3150 = vld [vmem:[#allocation2 + $0x4] sm:$0x7]
        %v3151 = vld [vmem:[#allocation2 + $0x8] sm:$0x7]
        %v3152 = vld [vmem:[#allocation2 + $0xc] sm:$0x7]
        %v3158 = vunpack.c.l.s4 1983009808
        %v3159 = vunpack.c.0.s8 %v3158
        %v3160 = vlaneseq
        %v3161 = vshrl.u32 %v3160, 7
        %v3162 = vsub.s32 %v3159, %v3161
        %v3163 = vrot.slane %v3149, %v3162
        %v3164 = vcombine.high %v3163, %v3163
        %v3166 = vunpack.c.l.s4 1983009808
        %v3167 = vunpack.c.0.s8 %v3166
        %v3168 = vlaneseq
        %v3169 = vshrl.u32 %v3168, 7
        %v3170 = vsub.s32 %v3167, %v3169
        %v3171 = vrot.slane %v3150, %v3170
        %v3172 = vcombine.high %v3171, %v3171
        %v3174 = vunpack.c.l.s4 1983009808
        %v3175 = vunpack.c.0.s8 %v3174
        %v3176 = vlaneseq
        %v3177 = vshrl.u32 %v3176, 7
        %v3178 = vsub.s32 %v3175, %v3177
        %v3179 = vrot.slane %v3151, %v3178
        %v3180 = vcombine.high %v3179, %v3179
        %v3182 = vunpack.c.l.s4 1983009808
        %v3183 = vunpack.c.0.s8 %v3182
        %v3184 = vlaneseq
        %v3185 = vshrl.u32 %v3184, 7
        %v3186 = vsub.s32 %v3183, %v3185
        %v3187 = vrot.slane %v3152, %v3186
        %v3188 = vcombine.high %v3187, %v3187
        %vm3189 = vsmask.f32 1280
        %vm3190 = vsmask.f32 3336
        %vm3191 = vmor %vm3189, %vm3190
        %vm3192 = vsmask.f32 5392
        %vm3193 = vmor %vm3191, %vm3192
        %vm3194 = vsmask.f32 7448
        %vm3195 = vmor %vm3193, %vm3194
        %v3197 = vshrl.u32 %v3163, 16
        %v3199 = vrot.slane %v3197, 6
        %v3200 = vshll.u32 %v3163, 16
        %v3202 = vrot.slane %v3200, 7
        %v3203 = vor.u32 %v3199, %v3202
        %v3204 = vrot.slane %v3203, 2
        %v3206 = vshll.u32 %v3164, 16
        %v3208 = vrot.slane %v3206, 7
        %v3209 = vsel %vm3195, %v3204, %v3208
        %v3211 = vshrl.u32 %v3171, 16
        %v3213 = vrot.slane %v3211, 6
        %v3214 = vshll.u32 %v3171, 16
        %v3216 = vrot.slane %v3214, 7
        %v3217 = vor.u32 %v3213, %v3216
        %v3218 = vrot.slane %v3217, 2
        %v3220 = vshll.u32 %v3172, 16
        %v3222 = vrot.slane %v3220, 7
        %v3223 = vsel %vm3195, %v3218, %v3222
        %v3225 = vshrl.u32 %v3179, 16
        %v3227 = vrot.slane %v3225, 6
        %v3228 = vshll.u32 %v3179, 16
        %v3230 = vrot.slane %v3228, 7
        %v3231 = vor.u32 %v3227, %v3230
        %v3232 = vrot.slane %v3231, 2
        %v3234 = vshll.u32 %v3180, 16
        %v3236 = vrot.slane %v3234, 7
        %v3237 = vsel %vm3195, %v3232, %v3236
        %v3239 = vshrl.u32 %v3187, 16
        %v3241 = vrot.slane %v3239, 6
        %v3242 = vshll.u32 %v3187, 16
        %v3244 = vrot.slane %v3242, 7
        %v3245 = vor.u32 %v3241, %v3244
        %v3246 = vrot.slane %v3245, 2
        %v3248 = vshll.u32 %v3188, 16
        %v3250 = vrot.slane %v3248, 7
        %v3251 = vsel %vm3195, %v3246, %v3250
        %3252 = vrot.lane.b32.xlu0 %v3209, 16
        %v3253 = vpop.permute.xlu0 %3252
        %3254 = vrot.lane.b32.xlu0 %v3223, 16
        %v3255 = vpop.permute.xlu0 %3254
        %3256 = vrot.lane.b32.xlu0 %v3237, 16
        %v3257 = vpop.permute.xlu0 %3256
        %3258 = vrot.lane.b32.xlu0 %v3251, 16
        %v3259 = vpop.permute.xlu0 %3258
        %vm3264 = vcmask 255104
        %3265 = vst.msk [vmem:[#allocation5] sm:$0x3] %vm3264, %v3253
        %3266 = vst.msk [vmem:[#allocation5 + $0x4] sm:$0x3] %vm3264, %v3255
        %3267 = vst.msk [vmem:[#allocation5 + $0x8] sm:$0x3] %vm3264, %v3257
        %3268 = vst.msk [vmem:[#allocation5 + $0xc] sm:$0x3] %vm3264, %v3259
        %v3269 = vld [vmem:[#allocation2] sm:$0x6]
        %v3270 = vld [vmem:[#allocation2 + $0x4] sm:$0x6]
        %v3271 = vld [vmem:[#allocation2 + $0x8] sm:$0x6]
        %v3272 = vld [vmem:[#allocation2 + $0xc] sm:$0x6]
        %v3278 = vunpack.c.l.s4 1983009808
        %v3279 = vunpack.c.0.s8 %v3278
        %v3280 = vlaneseq
        %v3281 = vshrl.u32 %v3280, 7
        %v3282 = vsub.s32 %v3279, %v3281
        %v3283 = vrot.slane %v3269, %v3282
        %v3284 = vcombine.high %v3283, %v3283
        %v3286 = vunpack.c.l.s4 1983009808
        %v3287 = vunpack.c.0.s8 %v3286
        %v3288 = vlaneseq
        %v3289 = vshrl.u32 %v3288, 7
        %v3290 = vsub.s32 %v3287, %v3289
        %v3291 = vrot.slane %v3270, %v3290
        %v3292 = vcombine.high %v3291, %v3291
        %v3294 = vunpack.c.l.s4 1983009808
        %v3295 = vunpack.c.0.s8 %v3294
        %v3296 = vlaneseq
        %v3297 = vshrl.u32 %v3296, 7
        %v3298 = vsub.s32 %v3295, %v3297
        %v3299 = vrot.slane %v3271, %v3298
        %v3300 = vcombine.high %v3299, %v3299
        %v3302 = vunpack.c.l.s4 1983009808
        %v3303 = vunpack.c.0.s8 %v3302
        %v3304 = vlaneseq
        %v3305 = vshrl.u32 %v3304, 7
        %v3306 = vsub.s32 %v3303, %v3305
        %v3307 = vrot.slane %v3272, %v3306
        %v3308 = vcombine.high %v3307, %v3307
        %vm3309 = vcmask 1040384
        %vm3310 = vcmask 1042434
        %vm3311 = vmor %vm3309, %vm3310
        %vm3312 = vcmask 1044484
        %vm3313 = vmor %vm3311, %vm3312
        %vm3314 = vcmask 1046534
        %vm3315 = vmor %vm3313, %vm3314
        %v3316 = vrot.slane %v3283, 7
        %v3317 = vrot.slane %v3316, 2
        %v3318 = vrot.slane %v3284, 7
        %v3319 = vsel %vm3315, %v3317, %v3318
        %v3320 = vrot.slane %v3291, 7
        %v3321 = vrot.slane %v3320, 2
        %v3322 = vrot.slane %v3292, 7
        %v3323 = vsel %vm3315, %v3321, %v3322
        %v3324 = vrot.slane %v3299, 7
        %v3325 = vrot.slane %v3324, 2
        %v3326 = vrot.slane %v3300, 7
        %v3327 = vsel %vm3315, %v3325, %v3326
        %v3328 = vrot.slane %v3307, 7
        %v3329 = vrot.slane %v3328, 2
        %v3330 = vrot.slane %v3308, 7
        %v3331 = vsel %vm3315, %v3329, %v3330
        %3332 = vrot.lane.b32.xlu0 %v3319, 32
        %v3333 = vpop.permute.xlu0 %3332
        %3334 = vrot.lane.b32.xlu0 %v3323, 32
        %v3335 = vpop.permute.xlu0 %3334
        %3336 = vrot.lane.b32.xlu0 %v3327, 32
        %v3337 = vpop.permute.xlu0 %3336
        %3338 = vrot.lane.b32.xlu0 %v3331, 32
        %v3339 = vpop.permute.xlu0 %3338
        %vm3344 = vcmask 320768
        %3345 = vst.msk [vmem:[#allocation5] sm:$0x3] %vm3344, %v3333
        %3346 = vst.msk [vmem:[#allocation5 + $0x4] sm:$0x3] %vm3344, %v3335
        %3347 = vst.msk [vmem:[#allocation5 + $0x8] sm:$0x3] %vm3344, %v3337
        %3348 = vst.msk [vmem:[#allocation5 + $0xc] sm:$0x3] %vm3344, %v3339
        %s3349 = scalar_lea.vmem [#allocation2], 24
        %v3350 = vld [vmem:[%s3349] sm:$0x3]
        %v3351 = vld [vmem:[%s3349 + $0x4] sm:$0x3]
        %v3352 = vld [vmem:[%s3349 + $0x8] sm:$0x3]
        %v3353 = vld [vmem:[%s3349 + $0xc] sm:$0x3]
        %v3359 = vunpack.c.l.s4 1983009808
        %v3360 = vunpack.c.0.s8 %v3359
        %v3361 = vlaneseq
        %v3362 = vshrl.u32 %v3361, 7
        %v3363 = vsub.s32 %v3360, %v3362
        %v3364 = vrot.slane %v3350, %v3363
        %v3366 = vunpack.c.l.s4 1983009808
        %v3367 = vunpack.c.0.s8 %v3366
        %v3368 = vlaneseq
        %v3369 = vshrl.u32 %v3368, 7
        %v3370 = vsub.s32 %v3367, %v3369
        %v3371 = vrot.slane %v3351, %v3370
        %v3373 = vunpack.c.l.s4 1983009808
        %v3374 = vunpack.c.0.s8 %v3373
        %v3375 = vlaneseq
        %v3376 = vshrl.u32 %v3375, 7
        %v3377 = vsub.s32 %v3374, %v3376
        %v3378 = vrot.slane %v3352, %v3377
        %v3380 = vunpack.c.l.s4 1983009808
        %v3381 = vunpack.c.0.s8 %v3380
        %v3382 = vlaneseq
        %v3383 = vshrl.u32 %v3382, 7
        %v3384 = vsub.s32 %v3381, %v3383
        %v3385 = vrot.slane %v3353, %v3384
        %3386 = vrot.lane.b32.xlu0 %v3364, 40
        %v3387 = vpop.permute.xlu0 %3386
        %3388 = vrot.lane.b32.xlu0 %v3371, 40
        %v3389 = vpop.permute.xlu0 %3388
        %3390 = vrot.lane.b32.xlu0 %v3378, 40
        %v3391 = vpop.permute.xlu0 %3390
        %3392 = vrot.lane.b32.xlu0 %v3385, 40
        %v3393 = vpop.permute.xlu0 %3392
        %vm3398 = vcmask 451904
        %3399 = vst.msk [vmem:[#allocation5] sm:$0x3] %vm3398, %v3387
        %3400 = vst.msk [vmem:[#allocation5 + $0x4] sm:$0x3] %vm3398, %v3389
        %3401 = vst.msk [vmem:[#allocation5 + $0x8] sm:$0x3] %vm3398, %v3391
        %3402 = vst.msk [vmem:[#allocation5 + $0xc] sm:$0x3] %vm3398, %v3393
        %v3403 = vld [vmem:[%s3349] sm:$0x7]
        %v3404 = vld [vmem:[%s3349 + $0x4] sm:$0x7]
        %v3405 = vld [vmem:[%s3349 + $0x8] sm:$0x7]
        %v3406 = vld [vmem:[%s3349 + $0xc] sm:$0x7]
        %v3412 = vunpack.c.l.s4 1983009808
        %v3413 = vunpack.c.0.s8 %v3412
        %v3414 = vlaneseq
        %v3415 = vshrl.u32 %v3414, 7
        %v3416 = vsub.s32 %v3413, %v3415
        %v3417 = vrot.slane %v3403, %v3416
        %v3418 = vcombine.high %v3417, %v3417
        %v3420 = vunpack.c.l.s4 1983009808
        %v3421 = vunpack.c.0.s8 %v3420
        %v3422 = vlaneseq
        %v3423 = vshrl.u32 %v3422, 7
        %v3424 = vsub.s32 %v3421, %v3423
        %v3425 = vrot.slane %v3404, %v3424
        %v3426 = vcombine.high %v3425, %v3425
        %v3428 = vunpack.c.l.s4 1983009808
        %v3429 = vunpack.c.0.s8 %v3428
        %v3430 = vlaneseq
        %v3431 = vshrl.u32 %v3430, 7
        %v3432 = vsub.s32 %v3429, %v3431
        %v3433 = vrot.slane %v3405, %v3432
        %v3434 = vcombine.high %v3433, %v3433
        %v3436 = vunpack.c.l.s4 1983009808
        %v3437 = vunpack.c.0.s8 %v3436
        %v3438 = vlaneseq
        %v3439 = vshrl.u32 %v3438, 7
        %v3440 = vsub.s32 %v3437, %v3439
        %v3441 = vrot.slane %v3406, %v3440
        %v3442 = vcombine.high %v3441, %v3441
        %v3444 = vshrl.u32 %v3417, 16
        %v3446 = vrot.slane %v3444, 6
        %v3447 = vshll.u32 %v3417, 16
        %v3449 = vrot.slane %v3447, 7
        %v3450 = vor.u32 %v3446, %v3449
        %v3451 = vrot.slane %v3450, 2
        %v3453 = vshll.u32 %v3418, 16
        %v3455 = vrot.slane %v3453, 7
        %v3456 = vsel %vm3195, %v3451, %v3455
        %v3458 = vshrl.u32 %v3425, 16
        %v3460 = vrot.slane %v3458, 6
        %v3461 = vshll.u32 %v3425, 16
        %v3463 = vrot.slane %v3461, 7
        %v3464 = vor.u32 %v3460, %v3463
        %v3465 = vrot.slane %v3464, 2
        %v3467 = vshll.u32 %v3426, 16
        %v3469 = vrot.slane %v3467, 7
        %v3470 = vsel %vm3195, %v3465, %v3469
        %v3472 = vshrl.u32 %v3433, 16
        %v3474 = vrot.slane %v3472, 6
        %v3475 = vshll.u32 %v3433, 16
        %v3477 = vrot.slane %v3475, 7
        %v3478 = vor.u32 %v3474, %v3477
        %v3479 = vrot.slane %v3478, 2
        %v3481 = vshll.u32 %v3434, 16
        %v3483 = vrot.slane %v3481, 7
        %v3484 = vsel %vm3195, %v3479, %v3483
        %v3486 = vshrl.u32 %v3441, 16
        %v3488 = vrot.slane %v3486, 6
        %v3489 = vshll.u32 %v3441, 16
        %v3491 = vrot.slane %v3489, 7
        %v3492 = vor.u32 %v3488, %v3491
        %v3493 = vrot.slane %v3492, 2
        %v3495 = vshll.u32 %v3442, 16
        %v3497 = vrot.slane %v3495, 7
        %v3498 = vsel %vm3195, %v3493, %v3497
        %3499 = vrot.lane.b32.xlu0 %v3456, 56
        %v3500 = vpop.permute.xlu0 %3499
        %3501 = vrot.lane.b32.xlu0 %v3470, 56
        %v3502 = vpop.permute.xlu0 %3501
        %3503 = vrot.lane.b32.xlu0 %v3484, 56
        %v3504 = vpop.permute.xlu0 %3503
        %3505 = vrot.lane.b32.xlu0 %v3498, 56
        %v3506 = vpop.permute.xlu0 %3505
        %vm3511 = vcmask 583104
        %3512 = vst.msk [vmem:[#allocation5] sm:$0x3] %vm3511, %v3500
        %3513 = vst.msk [vmem:[#allocation5 + $0x4] sm:$0x3] %vm3511, %v3502
        %3514 = vst.msk [vmem:[#allocation5 + $0x8] sm:$0x3] %vm3511, %v3504
        %3515 = vst.msk [vmem:[#allocation5 + $0xc] sm:$0x3] %vm3511, %v3506
        %v3516 = vld [vmem:[%s3349] sm:$0x6]
        %v3517 = vld [vmem:[%s3349 + $0x4] sm:$0x6]
        %v3518 = vld [vmem:[%s3349 + $0x8] sm:$0x6]
        %v3519 = vld [vmem:[%s3349 + $0xc] sm:$0x6]
        %v3525 = vunpack.c.l.s4 1983009808
        %v3526 = vunpack.c.0.s8 %v3525
        %v3527 = vlaneseq
        %v3528 = vshrl.u32 %v3527, 7
        %v3529 = vsub.s32 %v3526, %v3528
        %v3530 = vrot.slane %v3516, %v3529
        %v3531 = vcombine.high %v3530, %v3530
        %v3533 = vunpack.c.l.s4 1983009808
        %v3534 = vunpack.c.0.s8 %v3533
        %v3535 = vlaneseq
        %v3536 = vshrl.u32 %v3535, 7
        %v3537 = vsub.s32 %v3534, %v3536
        %v3538 = vrot.slane %v3517, %v3537
        %v3539 = vcombine.high %v3538, %v3538
        %v3541 = vunpack.c.l.s4 1983009808
        %v3542 = vunpack.c.0.s8 %v3541
        %v3543 = vlaneseq
        %v3544 = vshrl.u32 %v3543, 7
        %v3545 = vsub.s32 %v3542, %v3544
        %v3546 = vrot.slane %v3518, %v3545
        %v3547 = vcombine.high %v3546, %v3546
        %v3549 = vunpack.c.l.s4 1983009808
        %v3550 = vunpack.c.0.s8 %v3549
        %v3551 = vlaneseq
        %v3552 = vshrl.u32 %v3551, 7
        %v3553 = vsub.s32 %v3550, %v3552
        %v3554 = vrot.slane %v3519, %v3553
        %v3555 = vcombine.high %v3554, %v3554
        %v3556 = vrot.slane %v3530, 7
        %v3557 = vrot.slane %v3556, 2
        %v3558 = vrot.slane %v3531, 7
        %v3559 = vsel %vm3315, %v3557, %v3558
        %v3560 = vrot.slane %v3538, 7
        %v3561 = vrot.slane %v3560, 2
        %v3562 = vrot.slane %v3539, 7
        %v3563 = vsel %vm3315, %v3561, %v3562
        %v3564 = vrot.slane %v3546, 7
        %v3565 = vrot.slane %v3564, 2
        %v3566 = vrot.slane %v3547, 7
        %v3567 = vsel %vm3315, %v3565, %v3566
        %v3568 = vrot.slane %v3554, 7
        %v3569 = vrot.slane %v3568, 2
        %v3570 = vrot.slane %v3555, 7
        %v3571 = vsel %vm3315, %v3569, %v3570
        %3572 = vrot.lane.b32.xlu0 %v3559, 72
        %v3573 = vpop.permute.xlu0 %3572
        %3574 = vrot.lane.b32.xlu0 %v3563, 72
        %v3575 = vpop.permute.xlu0 %3574
        %3576 = vrot.lane.b32.xlu0 %v3567, 72
        %v3577 = vpop.permute.xlu0 %3576
        %3578 = vrot.lane.b32.xlu0 %v3571, 72
        %v3579 = vpop.permute.xlu0 %3578
        %vm3584 = vcmask 648768
        %3585 = vst.msk [vmem:[#allocation5] sm:$0x3] %vm3584, %v3573
        %3586 = vst.msk [vmem:[#allocation5 + $0x4] sm:$0x3] %vm3584, %v3575
        %3587 = vst.msk [vmem:[#allocation5 + $0x8] sm:$0x3] %vm3584, %v3577
        %3588 = vst.msk [vmem:[#allocation5 + $0xc] sm:$0x3] %vm3584, %v3579
        %v3589 = vld [vmem:[%s2548] sm:$0x3]
        %v3590 = vld [vmem:[%s2548 + $0x4] sm:$0x3]
        %v3591 = vld [vmem:[%s2548 + $0x8] sm:$0x3]
        %v3592 = vld [vmem:[%s2548 + $0xc] sm:$0x3]
        %v3598 = vunpack.c.l.s4 1983009808
        %v3599 = vunpack.c.0.s8 %v3598
        %v3600 = vlaneseq
        %v3601 = vshrl.u32 %v3600, 7
        %v3602 = vsub.s32 %v3599, %v3601
        %v3603 = vrot.slane %v3589, %v3602
        %v3605 = vunpack.c.l.s4 1983009808
        %v3606 = vunpack.c.0.s8 %v3605
        %v3607 = vlaneseq
        %v3608 = vshrl.u32 %v3607, 7
        %v3609 = vsub.s32 %v3606, %v3608
        %v3610 = vrot.slane %v3590, %v3609
        %v3612 = vunpack.c.l.s4 1983009808
        %v3613 = vunpack.c.0.s8 %v3612
        %v3614 = vlaneseq
        %v3615 = vshrl.u32 %v3614, 7
        %v3616 = vsub.s32 %v3613, %v3615
        %v3617 = vrot.slane %v3591, %v3616
        %v3619 = vunpack.c.l.s4 1983009808
        %v3620 = vunpack.c.0.s8 %v3619
        %v3621 = vlaneseq
        %v3622 = vshrl.u32 %v3621, 7
        %v3623 = vsub.s32 %v3620, %v3622
        %v3624 = vrot.slane %v3592, %v3623
        %3625 = vrot.lane.b32.xlu0 %v3603, 80
        %v3626 = vpop.permute.xlu0 %3625
        %3627 = vrot.lane.b32.xlu0 %v3610, 80
        %v3628 = vpop.permute.xlu0 %3627
        %3629 = vrot.lane.b32.xlu0 %v3617, 80
        %v3630 = vpop.permute.xlu0 %3629
        %3631 = vrot.lane.b32.xlu0 %v3624, 80
        %v3632 = vpop.permute.xlu0 %3631
        %vm3637 = vcmask 779904
        %3638 = vst.msk [vmem:[#allocation5] sm:$0x3] %vm3637, %v3626
        %3639 = vst.msk [vmem:[#allocation5 + $0x4] sm:$0x3] %vm3637, %v3628
        %3640 = vst.msk [vmem:[#allocation5 + $0x8] sm:$0x3] %vm3637, %v3630
        %3641 = vst.msk [vmem:[#allocation5 + $0xc] sm:$0x3] %vm3637, %v3632
        %v3642 = vld [vmem:[%s2548] sm:$0x7]
        %v3643 = vld [vmem:[%s2548 + $0x4] sm:$0x7]
        %v3644 = vld [vmem:[%s2548 + $0x8] sm:$0x7]
        %v3645 = vld [vmem:[%s2548 + $0xc] sm:$0x7]
        %v3651 = vunpack.c.l.s4 1983009808
        %v3652 = vunpack.c.0.s8 %v3651
        %v3653 = vlaneseq
        %v3654 = vshrl.u32 %v3653, 7
        %v3655 = vsub.s32 %v3652, %v3654
        %v3656 = vrot.slane %v3642, %v3655
        %v3657 = vcombine.high %v3656, %v3656
        %v3659 = vunpack.c.l.s4 1983009808
        %v3660 = vunpack.c.0.s8 %v3659
        %v3661 = vlaneseq
        %v3662 = vshrl.u32 %v3661, 7
        %v3663 = vsub.s32 %v3660, %v3662
        %v3664 = vrot.slane %v3643, %v3663
        %v3665 = vcombine.high %v3664, %v3664
        %v3667 = vunpack.c.l.s4 1983009808
        %v3668 = vunpack.c.0.s8 %v3667
        %v3669 = vlaneseq
        %v3670 = vshrl.u32 %v3669, 7
        %v3671 = vsub.s32 %v3668, %v3670
        %v3672 = vrot.slane %v3644, %v3671
        %v3673 = vcombine.high %v3672, %v3672
        %v3675 = vunpack.c.l.s4 1983009808
        %v3676 = vunpack.c.0.s8 %v3675
        %v3677 = vlaneseq
        %v3678 = vshrl.u32 %v3677, 7
        %v3679 = vsub.s32 %v3676, %v3678
        %v3680 = vrot.slane %v3645, %v3679
        %v3681 = vcombine.high %v3680, %v3680
        %v3683 = vshrl.u32 %v3656, 16
        %v3685 = vrot.slane %v3683, 6
        %v3686 = vshll.u32 %v3656, 16
        %v3688 = vrot.slane %v3686, 7
        %v3689 = vor.u32 %v3685, %v3688
        %v3690 = vrot.slane %v3689, 2
        %v3692 = vshll.u32 %v3657, 16
        %v3694 = vrot.slane %v3692, 7
        %v3695 = vsel %vm3195, %v3690, %v3694
        %v3697 = vshrl.u32 %v3664, 16
        %v3699 = vrot.slane %v3697, 6
        %v3700 = vshll.u32 %v3664, 16
        %v3702 = vrot.slane %v3700, 7
        %v3703 = vor.u32 %v3699, %v3702
        %v3704 = vrot.slane %v3703, 2
        %v3706 = vshll.u32 %v3665, 16
        %v3708 = vrot.slane %v3706, 7
        %v3709 = vsel %vm3195, %v3704, %v3708
        %v3711 = vshrl.u32 %v3672, 16
        %v3713 = vrot.slane %v3711, 6
        %v3714 = vshll.u32 %v3672, 16
        %v3716 = vrot.slane %v3714, 7
        %v3717 = vor.u32 %v3713, %v3716
        %v3718 = vrot.slane %v3717, 2
        %v3720 = vshll.u32 %v3673, 16
        %v3722 = vrot.slane %v3720, 7
        %v3723 = vsel %vm3195, %v3718, %v3722
        %v3725 = vshrl.u32 %v3680, 16
        %v3727 = vrot.slane %v3725, 6
        %v3728 = vshll.u32 %v3680, 16
        %v3730 = vrot.slane %v3728, 7
        %v3731 = vor.u32 %v3727, %v3730
        %v3732 = vrot.slane %v3731, 2
        %v3734 = vshll.u32 %v3681, 16
        %v3736 = vrot.slane %v3734, 7
        %v3737 = vsel %vm3195, %v3732, %v3736
        %3738 = vrot.lane.b32.xlu0 %v3695, 96
        %v3739 = vpop.permute.xlu0 %3738
        %3740 = vrot.lane.b32.xlu0 %v3709, 96
        %v3741 = vpop.permute.xlu0 %3740
        %3742 = vrot.lane.b32.xlu0 %v3723, 96
        %v3743 = vpop.permute.xlu0 %3742
        %3744 = vrot.lane.b32.xlu0 %v3737, 96
        %v3745 = vpop.permute.xlu0 %3744
        %vm3750 = vcmask 911104
        %3751 = vst.msk [vmem:[#allocation5] sm:$0x3] %vm3750, %v3739
        %3752 = vst.msk [vmem:[#allocation5 + $0x4] sm:$0x3] %vm3750, %v3741
        %3753 = vst.msk [vmem:[#allocation5 + $0x8] sm:$0x3] %vm3750, %v3743
        %3754 = vst.msk [vmem:[#allocation5 + $0xc] sm:$0x3] %vm3750, %v3745
        %v3755 = vld [vmem:[%s2548] sm:$0x6]
        %v3756 = vld [vmem:[%s2548 + $0x4] sm:$0x6]
        %v3757 = vld [vmem:[%s2548 + $0x8] sm:$0x6]
        %v3758 = vld [vmem:[%s2548 + $0xc] sm:$0x6]
        %v3764 = vunpack.c.l.s4 1983009808
        %v3765 = vunpack.c.0.s8 %v3764
        %v3766 = vlaneseq
        %v3767 = vshrl.u32 %v3766, 7
        %v3768 = vsub.s32 %v3765, %v3767
        %v3769 = vrot.slane %v3755, %v3768
        %v3770 = vcombine.high %v3769, %v3769
        %v3772 = vunpack.c.l.s4 1983009808
        %v3773 = vunpack.c.0.s8 %v3772
        %v3774 = vlaneseq
        %v3775 = vshrl.u32 %v3774, 7
        %v3776 = vsub.s32 %v3773, %v3775
        %v3777 = vrot.slane %v3756, %v3776
        %v3778 = vcombine.high %v3777, %v3777
        %v3780 = vunpack.c.l.s4 1983009808
        %v3781 = vunpack.c.0.s8 %v3780
        %v3782 = vlaneseq
        %v3783 = vshrl.u32 %v3782, 7
        %v3784 = vsub.s32 %v3781, %v3783
        %v3785 = vrot.slane %v3757, %v3784
        %v3786 = vcombine.high %v3785, %v3785
        %v3788 = vunpack.c.l.s4 1983009808
        %v3789 = vunpack.c.0.s8 %v3788
        %v3790 = vlaneseq
        %v3791 = vshrl.u32 %v3790, 7
        %v3792 = vsub.s32 %v3789, %v3791
        %v3793 = vrot.slane %v3758, %v3792
        %v3794 = vcombine.high %v3793, %v3793
        %v3795 = vrot.slane %v3769, 7
        %v3796 = vrot.slane %v3795, 2
        %v3797 = vrot.slane %v3770, 7
        %v3798 = vsel %vm3315, %v3796, %v3797
        %v3799 = vrot.slane %v3777, 7
        %v3800 = vrot.slane %v3799, 2
        %v3801 = vrot.slane %v3778, 7
        %v3802 = vsel %vm3315, %v3800, %v3801
        %v3803 = vrot.slane %v3785, 7
        %v3804 = vrot.slane %v3803, 2
        %v3805 = vrot.slane %v3786, 7
        %v3806 = vsel %vm3315, %v3804, %v3805
        %v3807 = vrot.slane %v3793, 7
        %v3808 = vrot.slane %v3807, 2
        %v3809 = vrot.slane %v3794, 7
        %v3810 = vsel %vm3315, %v3808, %v3809
        %3811 = vrot.lane.b32.xlu0 %v3798, 112
        %v3812 = vpop.permute.xlu0 %3811
        %3813 = vrot.lane.b32.xlu0 %v3802, 112
        %v3814 = vpop.permute.xlu0 %3813
        %3815 = vrot.lane.b32.xlu0 %v3806, 112
        %v3816 = vpop.permute.xlu0 %3815
        %3817 = vrot.lane.b32.xlu0 %v3810, 112
        %v3818 = vpop.permute.xlu0 %3817
        %vm3823 = vcmask 976768
        %3824 = vst.msk [vmem:[#allocation5] sm:$0x3] %vm3823, %v3812
        %3825 = vst.msk [vmem:[#allocation5 + $0x4] sm:$0x3] %vm3823, %v3814
        %3826 = vst.msk [vmem:[#allocation5 + $0x8] sm:$0x3] %vm3823, %v3816
        %3827 = vst.msk [vmem:[#allocation5 + $0xc] sm:$0x3] %vm3823, %v3818
        %v3828 = vld [vmem:[%s2990] sm:$0x3]
        %v3829 = vld [vmem:[%s2990 + $0x4] sm:$0x3]
        %v3830 = vld [vmem:[%s2990 + $0x8] sm:$0x3]
        %v3831 = vld [vmem:[%s2990 + $0xc] sm:$0x3]
        %v3837 = vunpack.c.l.s4 1983009808
        %v3838 = vunpack.c.0.s8 %v3837
        %v3839 = vlaneseq
        %v3840 = vshrl.u32 %v3839, 7
        %v3841 = vsub.s32 %v3838, %v3840
        %v3842 = vrot.slane %v3828, %v3841
        %v3844 = vunpack.c.l.s4 1983009808
        %v3845 = vunpack.c.0.s8 %v3844
        %v3846 = vlaneseq
        %v3847 = vshrl.u32 %v3846, 7
        %v3848 = vsub.s32 %v3845, %v3847
        %v3849 = vrot.slane %v3829, %v3848
        %v3851 = vunpack.c.l.s4 1983009808
        %v3852 = vunpack.c.0.s8 %v3851
        %v3853 = vlaneseq
        %v3854 = vshrl.u32 %v3853, 7
        %v3855 = vsub.s32 %v3852, %v3854
        %v3856 = vrot.slane %v3830, %v3855
        %v3858 = vunpack.c.l.s4 1983009808
        %v3859 = vunpack.c.0.s8 %v3858
        %v3860 = vlaneseq
        %v3861 = vshrl.u32 %v3860, 7
        %v3862 = vsub.s32 %v3859, %v3861
        %v3863 = vrot.slane %v3831, %v3862
        %3864 = vrot.lane.b32.xlu0 %v3842, 120
        %v3865 = vpop.permute.xlu0 %3864
        %3866 = vrot.lane.b32.xlu0 %v3849, 120
        %v3867 = vpop.permute.xlu0 %3866
        %3868 = vrot.lane.b32.xlu0 %v3856, 120
        %v3869 = vpop.permute.xlu0 %3868
        %3870 = vrot.lane.b32.xlu0 %v3863, 120
        %v3871 = vpop.permute.xlu0 %3870
        %v3872 = vrot.slane %v3865, 6
        %v3873 = vrot.slane %v3867, 6
        %v3874 = vrot.slane %v3869, 6
        %v3875 = vrot.slane %v3871, 6
        %vm3876 = vcmask 982016
        %v3877 = vsel %vm3876, %v3872, %v3865
        %v3878 = vsel %vm3876, %v3873, %v3867
        %v3879 = vsel %vm3876, %v3874, %v3869
        %v3880 = vsel %vm3876, %v3875, %v3871
        %vm3885 = vcmask 1042368
        %vm3886 = vcmask 60418
        %vm3887 = vmor %vm3886, %vm3885
        %3888 = vst.msk [vmem:[#allocation5] sm:$0xf] %vm3887, %v3877
        %3889 = vst.msk [vmem:[#allocation5 + $0x4] sm:$0xf] %vm3887, %v3878
        %3890 = vst.msk [vmem:[#allocation5 + $0x8] sm:$0xf] %vm3887, %v3879
        %3891 = vst.msk [vmem:[#allocation5 + $0xc] sm:$0xf] %vm3887, %v3880
        %v3892 = vld [vmem:[%s2990] sm:$0x7]
        %v3893 = vld [vmem:[%s2990 + $0x4] sm:$0x7]
        %v3894 = vld [vmem:[%s2990 + $0x8] sm:$0x7]
        %v3895 = vld [vmem:[%s2990 + $0xc] sm:$0x7]
        %v3901 = vunpack.c.l.s4 1983009808
        %v3902 = vunpack.c.0.s8 %v3901
        %v3903 = vlaneseq
        %v3904 = vshrl.u32 %v3903, 7
        %v3905 = vsub.s32 %v3902, %v3904
        %v3906 = vrot.slane %v3892, %v3905
        %v3907 = vcombine.high %v3906, %v3906
        %v3909 = vunpack.c.l.s4 1983009808
        %v3910 = vunpack.c.0.s8 %v3909
        %v3911 = vlaneseq
        %v3912 = vshrl.u32 %v3911, 7
        %v3913 = vsub.s32 %v3910, %v3912
        %v3914 = vrot.slane %v3893, %v3913
        %v3915 = vcombine.high %v3914, %v3914
        %v3917 = vunpack.c.l.s4 1983009808
        %v3918 = vunpack.c.0.s8 %v3917
        %v3919 = vlaneseq
        %v3920 = vshrl.u32 %v3919, 7
        %v3921 = vsub.s32 %v3918, %v3920
        %v3922 = vrot.slane %v3894, %v3921
        %v3923 = vcombine.high %v3922, %v3922
        %v3925 = vunpack.c.l.s4 1983009808
        %v3926 = vunpack.c.0.s8 %v3925
        %v3927 = vlaneseq
        %v3928 = vshrl.u32 %v3927, 7
        %v3929 = vsub.s32 %v3926, %v3928
        %v3930 = vrot.slane %v3895, %v3929
        %v3931 = vcombine.high %v3930, %v3930
        %v3933 = vshrl.u32 %v3906, 16
        %v3935 = vrot.slane %v3933, 6
        %v3936 = vshll.u32 %v3906, 16
        %v3938 = vrot.slane %v3936, 7
        %v3939 = vor.u32 %v3935, %v3938
        %v3940 = vrot.slane %v3939, 2
        %v3942 = vshll.u32 %v3907, 16
        %v3944 = vrot.slane %v3942, 7
        %v3945 = vsel %vm3195, %v3940, %v3944
        %v3947 = vshrl.u32 %v3914, 16
        %v3949 = vrot.slane %v3947, 6
        %v3950 = vshll.u32 %v3914, 16
        %v3952 = vrot.slane %v3950, 7
        %v3953 = vor.u32 %v3949, %v3952
        %v3954 = vrot.slane %v3953, 2
        %v3956 = vshll.u32 %v3915, 16
        %v3958 = vrot.slane %v3956, 7
        %v3959 = vsel %vm3195, %v3954, %v3958
        %v3961 = vshrl.u32 %v3922, 16
        %v3963 = vrot.slane %v3961, 6
        %v3964 = vshll.u32 %v3922, 16
        %v3966 = vrot.slane %v3964, 7
        %v3967 = vor.u32 %v3963, %v3966
        %v3968 = vrot.slane %v3967, 2
        %v3970 = vshll.u32 %v3923, 16
        %v3972 = vrot.slane %v3970, 7
        %v3973 = vsel %vm3195, %v3968, %v3972
        %v3975 = vshrl.u32 %v3930, 16
        %v3977 = vrot.slane %v3975, 6
        %v3978 = vshll.u32 %v3930, 16
        %v3980 = vrot.slane %v3978, 7
        %v3981 = vor.u32 %v3977, %v3980
        %v3982 = vrot.slane %v3981, 2
        %v3984 = vshll.u32 %v3931, 16
        %v3986 = vrot.slane %v3984, 7
        %v3987 = vsel %vm3195, %v3982, %v3986
        %3988 = vrot.lane.b32.xlu0 %v3945, 8
        %v3989 = vpop.permute.xlu0 %3988
        %3990 = vrot.lane.b32.xlu0 %v3959, 8
        %v3991 = vpop.permute.xlu0 %3990
        %3992 = vrot.lane.b32.xlu0 %v3973, 8
        %v3993 = vpop.permute.xlu0 %3992
        %3994 = vrot.lane.b32.xlu0 %v3987, 8
        %v3995 = vpop.permute.xlu0 %3994
        %vm4000 = vcmask 189504
        %4001 = vst.msk [vmem:[#allocation5 + $0x2] sm:$0x3] %vm4000, %v3989
        %4002 = vst.msk [vmem:[#allocation5 + $0x6] sm:$0x3] %vm4000, %v3991
        %4003 = vst.msk [vmem:[#allocation5 + $0xa] sm:$0x3] %vm4000, %v3993
        %4004 = vst.msk [vmem:[#allocation5 + $0xe] sm:$0x3] %vm4000, %v3995
        %v4005 = vld [vmem:[%s2990] sm:$0x6]
        %v4006 = vld [vmem:[%s2990 + $0x4] sm:$0x6]
        %v4007 = vld [vmem:[%s2990 + $0x8] sm:$0x6]
        %v4008 = vld [vmem:[%s2990 + $0xc] sm:$0x6]
        %v4014 = vunpack.c.l.s4 1983009808
        %v4015 = vunpack.c.0.s8 %v4014
        %v4016 = vlaneseq
        %v4017 = vshrl.u32 %v4016, 7
        %v4018 = vsub.s32 %v4015, %v4017
        %v4019 = vrot.slane %v4005, %v4018
        %v4020 = vcombine.high %v4019, %v4019
        %v4022 = vunpack.c.l.s4 1983009808
        %v4023 = vunpack.c.0.s8 %v4022
        %v4024 = vlaneseq
        %v4025 = vshrl.u32 %v4024, 7
        %v4026 = vsub.s32 %v4023, %v4025
        %v4027 = vrot.slane %v4006, %v4026
        %v4028 = vcombine.high %v4027, %v4027
        %v4030 = vunpack.c.l.s4 1983009808
        %v4031 = vunpack.c.0.s8 %v4030
        %v4032 = vlaneseq
        %v4033 = vshrl.u32 %v4032, 7
        %v4034 = vsub.s32 %v4031, %v4033
        %v4035 = vrot.slane %v4007, %v4034
        %v4036 = vcombine.high %v4035, %v4035
        %v4038 = vunpack.c.l.s4 1983009808
        %v4039 = vunpack.c.0.s8 %v4038
        %v4040 = vlaneseq
        %v4041 = vshrl.u32 %v4040, 7
        %v4042 = vsub.s32 %v4039, %v4041
        %v4043 = vrot.slane %v4008, %v4042
        %v4044 = vcombine.high %v4043, %v4043
        %v4045 = vrot.slane %v4019, 7
        %v4046 = vrot.slane %v4045, 2
        %v4047 = vrot.slane %v4020, 7
        %v4048 = vsel %vm3315, %v4046, %v4047
        %v4049 = vrot.slane %v4027, 7
        %v4050 = vrot.slane %v4049, 2
        %v4051 = vrot.slane %v4028, 7
        %v4052 = vsel %vm3315, %v4050, %v4051
        %v4053 = vrot.slane %v4035, 7
        %v4054 = vrot.slane %v4053, 2
        %v4055 = vrot.slane %v4036, 7
        %v4056 = vsel %vm3315, %v4054, %v4055
        %v4057 = vrot.slane %v4043, 7
        %v4058 = vrot.slane %v4057, 2
        %v4059 = vrot.slane %v4044, 7
        %v4060 = vsel %vm3315, %v4058, %v4059
        %4061 = vrot.lane.b32.xlu0 %v4048, 24
        %v4062 = vpop.permute.xlu0 %4061
        %4063 = vrot.lane.b32.xlu0 %v4052, 24
        %v4064 = vpop.permute.xlu0 %4063
        %4065 = vrot.lane.b32.xlu0 %v4056, 24
        %v4066 = vpop.permute.xlu0 %4065
        %4067 = vrot.lane.b32.xlu0 %v4060, 24
        %v4068 = vpop.permute.xlu0 %4067
        %vm4073 = vcmask 255168
        %4074 = vst.msk [vmem:[#allocation5 + $0x2] sm:$0x3] %vm4073, %v4062
        %4075 = vst.msk [vmem:[#allocation5 + $0x6] sm:$0x3] %vm4073, %v4064
        %4076 = vst.msk [vmem:[#allocation5 + $0xa] sm:$0x3] %vm4073, %v4066
        %4077 = vst.msk [vmem:[#allocation5 + $0xe] sm:$0x3] %vm4073, %v4068
        %s4078 = scalar_lea.vmem [#allocation2], 8
        %v4079 = vld [vmem:[%s4078] sm:$0x3]
        %v4080 = vld [vmem:[%s4078 + $0x4] sm:$0x3]
        %v4081 = vld [vmem:[%s4078 + $0x8] sm:$0x3]
        %v4082 = vld [vmem:[%s4078 + $0xc] sm:$0x3]
        %v4088 = vunpack.c.l.s4 1983009808
        %v4089 = vunpack.c.0.s8 %v4088
        %v4090 = vlaneseq
        %v4091 = vshrl.u32 %v4090, 7
        %v4092 = vsub.s32 %v4089, %v4091
        %v4093 = vrot.slane %v4079, %v4092
        %v4095 = vunpack.c.l.s4 1983009808
        %v4096 = vunpack.c.0.s8 %v4095
        %v4097 = vlaneseq
        %v4098 = vshrl.u32 %v4097, 7
        %v4099 = vsub.s32 %v4096, %v4098
        %v4100 = vrot.slane %v4080, %v4099
        %v4102 = vunpack.c.l.s4 1983009808
        %v4103 = vunpack.c.0.s8 %v4102
        %v4104 = vlaneseq
        %v4105 = vshrl.u32 %v4104, 7
        %v4106 = vsub.s32 %v4103, %v4105
        %v4107 = vrot.slane %v4081, %v4106
        %v4109 = vunpack.c.l.s4 1983009808
        %v4110 = vunpack.c.0.s8 %v4109
        %v4111 = vlaneseq
        %v4112 = vshrl.u32 %v4111, 7
        %v4113 = vsub.s32 %v4110, %v4112
        %v4114 = vrot.slane %v4082, %v4113
        %4115 = vrot.lane.b32.xlu0 %v4093, 32
        %v4116 = vpop.permute.xlu0 %4115
        %4117 = vrot.lane.b32.xlu0 %v4100, 32
        %v4118 = vpop.permute.xlu0 %4117
        %4119 = vrot.lane.b32.xlu0 %v4107, 32
        %v4120 = vpop.permute.xlu0 %4119
        %4121 = vrot.lane.b32.xlu0 %v4114, 32
        %v4122 = vpop.permute.xlu0 %4121
        %vm4127 = vcmask 386304
        %4128 = vst.msk [vmem:[#allocation5 + $0x2] sm:$0x3] %vm4127, %v4116
        %4129 = vst.msk [vmem:[#allocation5 + $0x6] sm:$0x3] %vm4127, %v4118
        %4130 = vst.msk [vmem:[#allocation5 + $0xa] sm:$0x3] %vm4127, %v4120
        %4131 = vst.msk [vmem:[#allocation5 + $0xe] sm:$0x3] %vm4127, %v4122
        %v4132 = vld [vmem:[%s4078] sm:$0x7]
        %v4133 = vld [vmem:[%s4078 + $0x4] sm:$0x7]
        %v4134 = vld [vmem:[%s4078 + $0x8] sm:$0x7]
        %v4135 = vld [vmem:[%s4078 + $0xc] sm:$0x7]
        %v4141 = vunpack.c.l.s4 1983009808
        %v4142 = vunpack.c.0.s8 %v4141
        %v4143 = vlaneseq
        %v4144 = vshrl.u32 %v4143, 7
        %v4145 = vsub.s32 %v4142, %v4144
        %v4146 = vrot.slane %v4132, %v4145
        %v4147 = vcombine.high %v4146, %v4146
        %v4149 = vunpack.c.l.s4 1983009808
        %v4150 = vunpack.c.0.s8 %v4149
        %v4151 = vlaneseq
        %v4152 = vshrl.u32 %v4151, 7
        %v4153 = vsub.s32 %v4150, %v4152
        %v4154 = vrot.slane %v4133, %v4153
        %v4155 = vcombine.high %v4154, %v4154
        %v4157 = vunpack.c.l.s4 1983009808
        %v4158 = vunpack.c.0.s8 %v4157
        %v4159 = vlaneseq
        %v4160 = vshrl.u32 %v4159, 7
        %v4161 = vsub.s32 %v4158, %v4160
        %v4162 = vrot.slane %v4134, %v4161
        %v4163 = vcombine.high %v4162, %v4162
        %v4165 = vunpack.c.l.s4 1983009808
        %v4166 = vunpack.c.0.s8 %v4165
        %v4167 = vlaneseq
        %v4168 = vshrl.u32 %v4167, 7
        %v4169 = vsub.s32 %v4166, %v4168
        %v4170 = vrot.slane %v4135, %v4169
        %v4171 = vcombine.high %v4170, %v4170
        %v4173 = vshrl.u32 %v4146, 16
        %v4175 = vrot.slane %v4173, 6
        %v4176 = vshll.u32 %v4146, 16
        %v4178 = vrot.slane %v4176, 7
        %v4179 = vor.u32 %v4175, %v4178
        %v4180 = vrot.slane %v4179, 2
        %v4182 = vshll.u32 %v4147, 16
        %v4184 = vrot.slane %v4182, 7
        %v4185 = vsel %vm3195, %v4180, %v4184
        %v4187 = vshrl.u32 %v4154, 16
        %v4189 = vrot.slane %v4187, 6
        %v4190 = vshll.u32 %v4154, 16
        %v4192 = vrot.slane %v4190, 7
        %v4193 = vor.u32 %v4189, %v4192
        %v4194 = vrot.slane %v4193, 2
        %v4196 = vshll.u32 %v4155, 16
        %v4198 = vrot.slane %v4196, 7
        %v4199 = vsel %vm3195, %v4194, %v4198
        %v4201 = vshrl.u32 %v4162, 16
        %v4203 = vrot.slane %v4201, 6
        %v4204 = vshll.u32 %v4162, 16
        %v4206 = vrot.slane %v4204, 7
        %v4207 = vor.u32 %v4203, %v4206
        %v4208 = vrot.slane %v4207, 2
        %v4210 = vshll.u32 %v4163, 16
        %v4212 = vrot.slane %v4210, 7
        %v4213 = vsel %vm3195, %v4208, %v4212
        %v4215 = vshrl.u32 %v4170, 16
        %v4217 = vrot.slane %v4215, 6
        %v4218 = vshll.u32 %v4170, 16
        %v4220 = vrot.slane %v4218, 7
        %v4221 = vor.u32 %v4217, %v4220
        %v4222 = vrot.slane %v4221, 2
        %v4224 = vshll.u32 %v4171, 16
        %v4226 = vrot.slane %v4224, 7
        %v4227 = vsel %vm3195, %v4222, %v4226
        %4228 = vrot.lane.b32.xlu0 %v4185, 48
        %v4229 = vpop.permute.xlu0 %4228
        %4230 = vrot.lane.b32.xlu0 %v4199, 48
        %v4231 = vpop.permute.xlu0 %4230
        %4232 = vrot.lane.b32.xlu0 %v4213, 48
        %v4233 = vpop.permute.xlu0 %4232
        %4234 = vrot.lane.b32.xlu0 %v4227, 48
        %v4235 = vpop.permute.xlu0 %4234
        %vm4240 = vcmask 517504
        %4241 = vst.msk [vmem:[#allocation5 + $0x2] sm:$0x3] %vm4240, %v4229
        %4242 = vst.msk [vmem:[#allocation5 + $0x6] sm:$0x3] %vm4240, %v4231
        %4243 = vst.msk [vmem:[#allocation5 + $0xa] sm:$0x3] %vm4240, %v4233
        %4244 = vst.msk [vmem:[#allocation5 + $0xe] sm:$0x3] %vm4240, %v4235
        %v4245 = vld [vmem:[%s4078] sm:$0x6]
        %v4246 = vld [vmem:[%s4078 + $0x4] sm:$0x6]
        %v4247 = vld [vmem:[%s4078 + $0x8] sm:$0x6]
        %v4248 = vld [vmem:[%s4078 + $0xc] sm:$0x6]
        %v4254 = vunpack.c.l.s4 1983009808
        %v4255 = vunpack.c.0.s8 %v4254
        %v4256 = vlaneseq
        %v4257 = vshrl.u32 %v4256, 7
        %v4258 = vsub.s32 %v4255, %v4257
        %v4259 = vrot.slane %v4245, %v4258
        %v4260 = vcombine.high %v4259, %v4259
        %v4262 = vunpack.c.l.s4 1983009808
        %v4263 = vunpack.c.0.s8 %v4262
        %v4264 = vlaneseq
        %v4265 = vshrl.u32 %v4264, 7
        %v4266 = vsub.s32 %v4263, %v4265
        %v4267 = vrot.slane %v4246, %v4266
        %v4268 = vcombine.high %v4267, %v4267
        %v4270 = vunpack.c.l.s4 1983009808
        %v4271 = vunpack.c.0.s8 %v4270
        %v4272 = vlaneseq
        %v4273 = vshrl.u32 %v4272, 7
        %v4274 = vsub.s32 %v4271, %v4273
        %v4275 = vrot.slane %v4247, %v4274
        %v4276 = vcombine.high %v4275, %v4275
        %v4278 = vunpack.c.l.s4 1983009808
        %v4279 = vunpack.c.0.s8 %v4278
        %v4280 = vlaneseq
        %v4281 = vshrl.u32 %v4280, 7
        %v4282 = vsub.s32 %v4279, %v4281
        %v4283 = vrot.slane %v4248, %v4282
        %v4284 = vcombine.high %v4283, %v4283
        %v4285 = vrot.slane %v4259, 7
        %v4286 = vrot.slane %v4285, 2
        %v4287 = vrot.slane %v4260, 7
        %v4288 = vsel %vm3315, %v4286, %v4287
        %v4289 = vrot.slane %v4267, 7
        %v4290 = vrot.slane %v4289, 2
        %v4291 = vrot.slane %v4268, 7
        %v4292 = vsel %vm3315, %v4290, %v4291
        %v4293 = vrot.slane %v4275, 7
        %v4294 = vrot.slane %v4293, 2
        %v4295 = vrot.slane %v4276, 7
        %v4296 = vsel %vm3315, %v4294, %v4295
        %v4297 = vrot.slane %v4283, 7
        %v4298 = vrot.slane %v4297, 2
        %v4299 = vrot.slane %v4284, 7
        %v4300 = vsel %vm3315, %v4298, %v4299
        %4301 = vrot.lane.b32.xlu0 %v4288, 64
        %v4302 = vpop.permute.xlu0 %4301
        %4303 = vrot.lane.b32.xlu0 %v4292, 64
        %v4304 = vpop.permute.xlu0 %4303
        %4305 = vrot.lane.b32.xlu0 %v4296, 64
        %v4306 = vpop.permute.xlu0 %4305
        %4307 = vrot.lane.b32.xlu0 %v4300, 64
        %v4308 = vpop.permute.xlu0 %4307
        %vm4313 = vcmask 583168
        %4314 = vst.msk [vmem:[#allocation5 + $0x2] sm:$0x3] %vm4313, %v4302
        %4315 = vst.msk [vmem:[#allocation5 + $0x6] sm:$0x3] %vm4313, %v4304
        %4316 = vst.msk [vmem:[#allocation5 + $0xa] sm:$0x3] %vm4313, %v4306
        %4317 = vst.msk [vmem:[#allocation5 + $0xe] sm:$0x3] %vm4313, %v4308
        %v4318 = vld [vmem:[#allocation5] sm:$0xf]
        %v4319 = vld [vmem:[#allocation5 + $0x4] sm:$0xf]
        %v4320 = vld [vmem:[#allocation5 + $0x8] sm:$0xf]
        %v4321 = vld [vmem:[#allocation5 + $0xc] sm:$0xf]
        %v4323 = vlaneseq
        %v4324 = vshrl.u32 %v4323, 7
        %v4325 = vsub.s32 0, %v4324
        %v4326 = vrot.slane %v3080, %v4325
        %v4332 = vcombine.low %v4318, %v4319
        %v4333 = vcombine.low %v4320, %v4321
        %v4335 = vunpack.c.l.s4 1983009808
        %v4336 = vunpack.c.0.s8 %v4335
        %v4337 = vlaneseq
        %v4338 = vshrl.u32 %v4337, 7
        %v4339 = vsub.s32 %v4336, %v4338
        %v4340 = vrot.slane %v4332, %v4339
        %v4342 = vunpack.c.l.s4 1983009808
        %v4343 = vunpack.c.0.s8 %v4342
        %v4344 = vlaneseq
        %v4345 = vshrl.u32 %v4344, 7
        %v4346 = vsub.s32 %v4343, %v4345
        %v4347 = vrot.slane %v4333, %v4346
        %v4348 = vcombine.low %v4340, %v4347
        %v4349 = vcombine.high %v4340, %v4347
        %v4376 = vunpack.c.l.b16 %v3055
        %v4377 = vunpack.c.l.b16 %v3056
        %v4378 = vunpack.c.l.b16 %v3057
        %v4379 = vunpack.c.l.b16 %v3058
        %v4380 = vunpack.c.l.b16 %v3059
        %v4381 = vunpack.c.l.b16 %v3060
        %v4382 = vunpack.c.l.b16 %v3061
        %v4383 = vunpack.c.l.b16 %v3062
        %v4384 = vunpack.c.l.b16 %v3063
        %v4385 = vunpack.c.l.b16 %v3064
        %v4386 = vunpack.c.l.b16 %v3065
        %v4387 = vunpack.c.l.b16 %v3066
        %v4388 = vunpack.c.l.b16 %v3067
        %v4389 = vunpack.c.l.b16 %v3068
        %v4390 = vunpack.c.l.b16 %v3069
        %v4391 = vunpack.c.l.b16 %v3070
        %v4392 = vunpack.c.l.b16 %v3071
        %v4393 = vunpack.c.l.b16 %v3072
        %v4394 = vunpack.c.l.b16 %v3073
        %v4395 = vunpack.c.l.b16 %v3074
        %v4396 = vunpack.c.l.b16 %v3075
        %v4397 = vunpack.c.l.b16 %v3076
        %v4398 = vunpack.c.l.b16 %v3077
        %v4399 = vunpack.c.l.b16 %v3078
        %v4400 = vunpack.c.l.b16 %v3079
        %v4401 = vpack.c.b16 %v4377, %v4376
        %v4402 = vpack.c.b16 %v4379, %v4378
        %v4403 = vpack.c.b16 %v4381, %v4380
        %v4404 = vpack.c.b16 %v4383, %v4382
        %v4405 = vpack.c.b16 %v4385, %v4384
        %v4406 = vpack.c.b16 %v4387, %v4386
        %v4407 = vpack.c.b16 %v4389, %v4388
        %v4408 = vpack.c.b16 %v4391, %v4390
        %v4409 = vpack.c.b16 %v4393, %v4392
        %v4410 = vpack.c.b16 %v4395, %v4394
        %v4411 = vpack.c.b16 %v4397, %v4396
        %v4412 = vpack.c.b16 %v4399, %v4398
        %v4413 = vpack.c.b16 %v4400, %v4400
        %vm4426 = vcmask 588800
        %v4428 = vsel %vm4426, %v4349, 0
        %vm4430 = vcmask 1043456
        %v4432 = vsel %vm4430, %v4413, 0
        %4434 = vmatprep.subr.bf16.mxu0 0
        %4435 = vmatpush1.bf16.msra.mxu0 %v4408
        %4436 = vmatprep.subr.bf16.mxu0 0
        %4437 = vmatpush1.bf16.msra.mxu0 %v4407
        %4438 = vmatprep.subr.bf16.mxu0 0
        %4439 = vmatpush1.bf16.msra.mxu0 %v4406
        %4440 = vmatprep.subr.bf16.mxu0 0
        %4441 = vmatpush1.bf16.msra.mxu0 %v4405
        %4442 = vmatprep.subr.bf16.mxu0 0
        %4443 = vmatpush1.bf16.msra.mxu0 %v4404
        %4444 = vmatprep.subr.bf16.mxu0 0
        %4445 = vmatpush1.bf16.msra.mxu0 %v4403
        %4446 = vmatprep.subr.bf16.mxu0 0
        %4447 = vmatpush1.bf16.msra.mxu0 %v4402
        %4448 = vmatprep.subr.bf16.mxu0 0
        %4449 = vmatpush1.bf16.msra.mxu0 %v4401
        %4450 = vmatprep.subr.bf16.mxu0 0
        %4451 = vmatpush2.bf16.msra.mxu0 0
        %4452 = vmatprep.subr.bf16.mxu0 0
        %4453 = vmatpush2.bf16.msra.mxu0 0
        %4454 = vmatprep.subr.bf16.mxu0 0
        %4455 = vmatpush2.bf16.msra.mxu0 0
        %4456 = vmatprep.subr.bf16.mxu0 0
        %4457 = vmatpush2.bf16.msra.mxu0 %v4432
        %4458 = vmatprep.subr.bf16.mxu0 0
        %4459 = vmatpush2.bf16.msra.mxu0 %v4412
        %4460 = vmatprep.subr.bf16.mxu0 0
        %4461 = vmatpush2.bf16.msra.mxu0 %v4411
        %4462 = vmatprep.subr.bf16.mxu0 0
        %4463 = vmatpush2.bf16.msra.mxu0 %v4410
        %4464 = vmatprep.subr.bf16.mxu0 0
        %4465 = vmatpush2.bf16.msra.mxu0 %v4409
        %4466 = vmatprep.mubr.bf16.mxu0 %v4428
        %4467 = vmatmul.mubr.bf16.gmra.mxu0 %v4348
        %v4468 = vpop.f32.mrf.mxu0
        %v4469 = vadd.f32 %v4326, %v4468
        %v4470 = vpop.f32.mrf.mxu0
        %v4471 = vpop.f32.mrf.mxu0
        %v4472 = vadd.f32 %v4326, %v4471
        %v4473 = vpop.f32.mrf.mxu0
        %4474 = vdwg.mxu0
        %vm4475 = vcmp.ge.f32.partialorder %v4469, 0.0
        %vm4476 = vcmp.ge.f32.partialorder %v4472, 0.0
        %v4477 = vmul.f32 %v4469, 0.2
        %v4478 = vmul.f32 %v4472, 0.2
        %v4479 = vsel %vm4475, %v4469, %v4477
        %v4480 = vsel %vm4476, %v4472, %v4478
        %v4481 = vpack.c.bf16 %v4480, %v4479
        %v4483 = vcombine.high %v4481, %v4481
        %v4485 = vunpack.c.l.s4 1983009808
        %v4486 = vunpack.c.0.s8 %v4485
        %v4487 = vlaneseq
        %v4488 = vshrl.u32 %v4487, 7
        %v4489 = vsub.s32 %v4486, %v4488
        %v4490 = vrot.slane %v4481, %v4489
        %v4492 = vunpack.c.l.s4 1983009808
        %v4493 = vunpack.c.0.s8 %v4492
        %v4494 = vlaneseq
        %v4495 = vshrl.u32 %v4494, 7
        %v4496 = vsub.s32 %v4493, %v4495
        %v4497 = vrot.slane %v4483, %v4496
        %v4498 = vcombine.high %v4490, %v4490
        %v4499 = vcombine.high %v4497, %v4497
        %v4501 = vunpack.c.l.s4 1966171168
        %v4502 = vunpack.c.0.s8 %v4501
        %v4503 = vlaneseq
        %v4504 = vshrl.u32 %v4503, 7
        %v4505 = vsub.s32 %v4502, %v4504
        %v4506 = vrot.slane %v4490, %v4505
        %v4507 = vcombine.high %v4506, %v4506
        %v4509 = vunpack.c.l.s4 1966171168
        %v4510 = vunpack.c.0.s8 %v4509
        %v4511 = vlaneseq
        %v4512 = vshrl.u32 %v4511, 7
        %v4513 = vsub.s32 %v4510, %v4512
        %v4514 = vrot.slane %v4497, %v4513
        %v4515 = vcombine.high %v4514, %v4514
        %v4517 = vunpack.c.l.s4 1935823168
        %v4518 = vunpack.c.0.s8 %v4517
        %v4519 = vlaneseq
        %v4520 = vshrl.u32 %v4519, 7
        %v4521 = vsub.s32 %v4518, %v4520
        %v4522 = vrot.slane %v4506, %v4521
        %v4524 = vunpack.c.l.s4 1935823168
        %v4525 = vunpack.c.0.s8 %v4524
        %v4526 = vlaneseq
        %v4527 = vshrl.u32 %v4526, 7
        %v4528 = vsub.s32 %v4525, %v4527
        %v4529 = vrot.slane %v4507, %v4528
        %v4531 = vunpack.c.l.s4 1935823168
        %v4532 = vunpack.c.0.s8 %v4531
        %v4533 = vlaneseq
        %v4534 = vshrl.u32 %v4533, 7
        %v4535 = vsub.s32 %v4532, %v4534
        %v4536 = vrot.slane %v4514, %v4535
        %v4538 = vunpack.c.l.s4 1935823168
        %v4539 = vunpack.c.0.s8 %v4538
        %v4540 = vlaneseq
        %v4541 = vshrl.u32 %v4540, 7
        %v4542 = vsub.s32 %v4539, %v4541
        %v4543 = vrot.slane %v4515, %v4542
        %v4545 = vunpack.c.l.s4 1983009808
        %v4546 = vunpack.c.0.s8 %v4545
        %v4547 = vlaneseq
        %v4548 = vshrl.u32 %v4547, 7
        %v4549 = vsub.s32 %v4546, %v4548
        %v4550 = vrot.slane %v4522, %v4549
        %v4552 = vunpack.c.l.s4 1983009808
        %v4553 = vunpack.c.0.s8 %v4552
        %v4554 = vlaneseq
        %v4555 = vshrl.u32 %v4554, 7
        %v4556 = vsub.s32 %v4553, %v4555
        %v4557 = vrot.slane %v4529, %v4556
        %v4559 = vunpack.c.l.s4 1983009808
        %v4560 = vunpack.c.0.s8 %v4559
        %v4561 = vlaneseq
        %v4562 = vshrl.u32 %v4561, 7
        %v4563 = vsub.s32 %v4560, %v4562
        %v4564 = vrot.slane %v4536, %v4563
        %v4566 = vunpack.c.l.s4 1983009808
        %v4567 = vunpack.c.0.s8 %v4566
        %v4568 = vlaneseq
        %v4569 = vshrl.u32 %v4568, 7
        %v4570 = vsub.s32 %v4567, %v4569
        %v4571 = vrot.slane %v4543, %v4570
        %v4572 = vunpack.c.l.b16 %v4550
        %v4573 = vunpack.c.l.b16 %v4557
        %v4574 = vunpack.c.l.b16 %v4564
        %v4575 = vunpack.c.l.b16 %v4571
        %v4576 = vrot.slane %v4572, 7
        %v4577 = vrot.slane %v4573, 6
        %v4578 = vsel %vm2511, %v4577, %v4576
        %v4579 = vrot.slane %v4574, 7
        %v4580 = vrot.slane %v4575, 6
        %v4581 = vsel %vm2511, %v4580, %v4579
        %v4582 = vpack.c.b16 %v4578, %v4578
        %v4583 = vpack.c.b16 %v4581, %v4581
        %v4585 = vunpack.c.l.s4 1983009808
        %v4586 = vunpack.c.0.s8 %v4585
        %v4587 = vlaneseq
        %v4588 = vshrl.u32 %v4587, 7
        %v4589 = vsub.s32 %v4586, %v4588
        %v4590 = vrot.slane %v4582, %v4589
        %v4592 = vunpack.c.l.s4 1983009808
        %v4593 = vunpack.c.0.s8 %v4592
        %v4594 = vlaneseq
        %v4595 = vshrl.u32 %v4594, 7
        %v4596 = vsub.s32 %v4593, %v4595
        %v4597 = vrot.slane %v4583, %v4596
        %s4600 = scalar_lea.vmem [#allocation3], 2
        %vm4601 = vcmask 123904
        %vm4602 = vsmask.f32 1282
        %vm4603 = vmand %vm4601, %vm4602
        %v4604 = vld [vmem:[%s4600] sm:$0x3]
        %v4605 = vsel %vm4603, %v4590, %v4604
        %4606 = vst [vmem:[%s4600] sm:$0x3] %v4605
        %v4607 = vld [vmem:[%s4600 + $0x2] sm:$0x3]
        %v4608 = vsel %vm4603, %v4597, %v4607
        %4609 = vst [vmem:[%s4600 + $0x2] sm:$0x3] %v4608
        %v4610 = vrot.slane %v4573, 7
        %v4611 = vsel %vm2511, %v4610, %v4572
        %v4612 = vrot.slane %v4575, 7
        %v4613 = vsel %vm2511, %v4612, %v4574
        %v4614 = vpack.c.b16 %v4611, %v4611
        %v4615 = vpack.c.b16 %v4613, %v4613
        %v4617 = vunpack.c.l.s4 1983009808
        %v4618 = vunpack.c.0.s8 %v4617
        %v4619 = vlaneseq
        %v4620 = vshrl.u32 %v4619, 7
        %v4621 = vsub.s32 %v4618, %v4620
        %v4622 = vrot.slane %v4614, %v4621
        %v4624 = vunpack.c.l.s4 1983009808
        %v4625 = vunpack.c.0.s8 %v4624
        %v4626 = vlaneseq
        %v4627 = vshrl.u32 %v4626, 7
        %v4628 = vsub.s32 %v4625, %v4627
        %v4629 = vrot.slane %v4615, %v4628
        %4630 = vrot.lane.b32.xlu0 %v4622, 16
        %v4631 = vpop.permute.xlu0 %4630
        %4632 = vrot.lane.b32.xlu0 %v4629, 16
        %v4633 = vpop.permute.xlu0 %4632
        %vm4636 = vcmask 255104
        %vm4637 = vmand %vm4636, %vm4602
        %v4638 = vld [vmem:[%s4600] sm:$0x3]
        %v4639 = vsel %vm4637, %v4631, %v4638
        %4640 = vst [vmem:[%s4600] sm:$0x3] %v4639
        %v4641 = vld [vmem:[%s4600 + $0x2] sm:$0x3]
        %v4642 = vsel %vm4637, %v4633, %v4641
        %4643 = vst [vmem:[%s4600 + $0x2] sm:$0x3] %v4642
        %v4645 = vunpack.c.l.s4 1966171168
        %v4646 = vunpack.c.0.s8 %v4645
        %v4647 = vlaneseq
        %v4648 = vshrl.u32 %v4647, 7
        %v4649 = vsub.s32 %v4646, %v4648
        %v4650 = vrot.slane %v4498, %v4649
        %v4651 = vcombine.high %v4650, %v4650
        %v4653 = vunpack.c.l.s4 1966171168
        %v4654 = vunpack.c.0.s8 %v4653
        %v4655 = vlaneseq
        %v4656 = vshrl.u32 %v4655, 7
        %v4657 = vsub.s32 %v4654, %v4656
        %v4658 = vrot.slane %v4499, %v4657
        %v4659 = vcombine.high %v4658, %v4658
        %v4661 = vunpack.c.l.s4 1935823168
        %v4662 = vunpack.c.0.s8 %v4661
        %v4663 = vlaneseq
        %v4664 = vshrl.u32 %v4663, 7
        %v4665 = vsub.s32 %v4662, %v4664
        %v4666 = vrot.slane %v4650, %v4665
        %v4668 = vunpack.c.l.s4 1935823168
        %v4669 = vunpack.c.0.s8 %v4668
        %v4670 = vlaneseq
        %v4671 = vshrl.u32 %v4670, 7
        %v4672 = vsub.s32 %v4669, %v4671
        %v4673 = vrot.slane %v4651, %v4672
        %v4675 = vunpack.c.l.s4 1935823168
        %v4676 = vunpack.c.0.s8 %v4675
        %v4677 = vlaneseq
        %v4678 = vshrl.u32 %v4677, 7
        %v4679 = vsub.s32 %v4676, %v4678
        %v4680 = vrot.slane %v4658, %v4679
        %v4682 = vunpack.c.l.s4 1935823168
        %v4683 = vunpack.c.0.s8 %v4682
        %v4684 = vlaneseq
        %v4685 = vshrl.u32 %v4684, 7
        %v4686 = vsub.s32 %v4683, %v4685
        %v4687 = vrot.slane %v4659, %v4686
        %v4689 = vunpack.c.l.s4 1983009808
        %v4690 = vunpack.c.0.s8 %v4689
        %v4691 = vlaneseq
        %v4692 = vshrl.u32 %v4691, 7
        %v4693 = vsub.s32 %v4690, %v4692
        %v4694 = vrot.slane %v4666, %v4693
        %v4696 = vunpack.c.l.s4 1983009808
        %v4697 = vunpack.c.0.s8 %v4696
        %v4698 = vlaneseq
        %v4699 = vshrl.u32 %v4698, 7
        %v4700 = vsub.s32 %v4697, %v4699
        %v4701 = vrot.slane %v4673, %v4700
        %v4703 = vunpack.c.l.s4 1983009808
        %v4704 = vunpack.c.0.s8 %v4703
        %v4705 = vlaneseq
        %v4706 = vshrl.u32 %v4705, 7
        %v4707 = vsub.s32 %v4704, %v4706
        %v4708 = vrot.slane %v4680, %v4707
        %v4710 = vunpack.c.l.s4 1983009808
        %v4711 = vunpack.c.0.s8 %v4710
        %v4712 = vlaneseq
        %v4713 = vshrl.u32 %v4712, 7
        %v4714 = vsub.s32 %v4711, %v4713
        %v4715 = vrot.slane %v4687, %v4714
        %v4716 = vunpack.c.l.b16 %v4694
        %v4717 = vunpack.c.l.b16 %v4701
        %v4718 = vunpack.c.l.b16 %v4708
        %v4719 = vunpack.c.l.b16 %v4715
        %v4720 = vrot.slane %v4716, 7
        %v4721 = vrot.slane %v4717, 6
        %v4722 = vsel %vm2511, %v4721, %v4720
        %v4723 = vrot.slane %v4718, 7
        %v4724 = vrot.slane %v4719, 6
        %v4725 = vsel %vm2511, %v4724, %v4723
        %v4726 = vpack.c.b16 %v4722, %v4722
        %v4727 = vpack.c.b16 %v4725, %v4725
        %v4729 = vunpack.c.l.s4 1983009808
        %v4730 = vunpack.c.0.s8 %v4729
        %v4731 = vlaneseq
        %v4732 = vshrl.u32 %v4731, 7
        %v4733 = vsub.s32 %v4730, %v4732
        %v4734 = vrot.slane %v4726, %v4733
        %v4736 = vunpack.c.l.s4 1983009808
        %v4737 = vunpack.c.0.s8 %v4736
        %v4738 = vlaneseq
        %v4739 = vshrl.u32 %v4738, 7
        %v4740 = vsub.s32 %v4737, %v4739
        %v4741 = vrot.slane %v4727, %v4740
        %s4744 = scalar_lea.vmem [#allocation3], 10
        %v4745 = vld [vmem:[%s4744] sm:$0x3]
        %v4746 = vsel %vm4603, %v4734, %v4745
        %4747 = vst [vmem:[%s4744] sm:$0x3] %v4746
        %v4748 = vld [vmem:[%s4744 + $0x2] sm:$0x3]
        %v4749 = vsel %vm4603, %v4741, %v4748
        %4750 = vst [vmem:[%s4744 + $0x2] sm:$0x3] %v4749
        %v4751 = vrot.slane %v4717, 7
        %v4752 = vsel %vm2511, %v4751, %v4716
        %v4753 = vrot.slane %v4719, 7
        %v4754 = vsel %vm2511, %v4753, %v4718
        %v4755 = vpack.c.b16 %v4752, %v4752
        %v4756 = vpack.c.b16 %v4754, %v4754
        %v4758 = vunpack.c.l.s4 1983009808
        %v4759 = vunpack.c.0.s8 %v4758
        %v4760 = vlaneseq
        %v4761 = vshrl.u32 %v4760, 7
        %v4762 = vsub.s32 %v4759, %v4761
        %v4763 = vrot.slane %v4755, %v4762
        %v4765 = vunpack.c.l.s4 1983009808
        %v4766 = vunpack.c.0.s8 %v4765
        %v4767 = vlaneseq
        %v4768 = vshrl.u32 %v4767, 7
        %v4769 = vsub.s32 %v4766, %v4768
        %v4770 = vrot.slane %v4756, %v4769
        %4771 = vrot.lane.b32.xlu0 %v4763, 16
        %v4772 = vpop.permute.xlu0 %4771
        %4773 = vrot.lane.b32.xlu0 %v4770, 16
        %v4774 = vpop.permute.xlu0 %4773
        %v4777 = vld [vmem:[%s4744] sm:$0x3]
        %v4778 = vsel %vm4637, %v4772, %v4777
        %4779 = vst [vmem:[%s4744] sm:$0x3] %v4778
        %v4780 = vld [vmem:[%s4744 + $0x2] sm:$0x3]
        %v4781 = vsel %vm4637, %v4774, %v4780
        %4782 = vst [vmem:[%s4744 + $0x2] sm:$0x3] %v4781
        %v4783 = vld [vmem:[%s5] sm:$0xf]
        %v4784 = vld [vmem:[%s5 + $0x4] sm:$0xf]
        %v4785 = vld [vmem:[%s5 + $0x8] sm:$0xf]
        %v4786 = vld [vmem:[%s5 + $0xc] sm:$0xf]
        %v4787 = vld [vmem:[%s5 + $0x10] sm:$0xf]
        %v4788 = vld [vmem:[%s5 + $0x14] sm:$0xf]
        %v4789 = vld [vmem:[%s5 + $0x18] sm:$0xf]
        %v4790 = vld [vmem:[%s5 + $0x1c] sm:$0xf]
        %v4791 = vld [vmem:[%s5 + $0x20] sm:$0xf]
        %v4792 = vld [vmem:[%s5 + $0x24] sm:$0xf]
        %v4793 = vld [vmem:[%s5 + $0x28] sm:$0xf]
        %v4794 = vld [vmem:[%s5 + $0x2c] sm:$0xf]
        %v4795 = vld [vmem:[%s5 + $0x30] sm:$0xf]
        %v4796 = vld [vmem:[%s5 + $0x34] sm:$0xf]
        %v4797 = vld [vmem:[%s5 + $0x38] sm:$0xf]
        %v4798 = vld [vmem:[%s5 + $0x3c] sm:$0xf]
        %v4799 = vld [vmem:[%s5 + $0x40] sm:$0xf]
        %v4800 = vld [vmem:[%s5 + $0x44] sm:$0xf]
        %v4801 = vld [vmem:[%s5 + $0x48] sm:$0xf]
        %v4802 = vld [vmem:[%s5 + $0x4c] sm:$0xf]
        %v4803 = vld [vmem:[%s5 + $0x50] sm:$0xf]
        %v4804 = vld [vmem:[%s5 + $0x54] sm:$0xf]
        %v4805 = vld [vmem:[%s5 + $0x58] sm:$0xf]
        %v4806 = vld [vmem:[%s5 + $0x5c] sm:$0xf]
        %v4807 = vld [vmem:[%s5 + $0x60] sm:$0xf]
        %v4808 = vld [vmem:[%s5 + $0x64] sm:$0xf]
        %v4809 = vld [vmem:[%s5 + $0x68] sm:$0xf]
        %v4810 = vld [vmem:[%s5 + $0x6c] sm:$0xf]
        %v4811 = vld [vmem:[%s5 + $0x70] sm:$0xf]
        %v4812 = vld [vmem:[%s5 + $0x74] sm:$0xf]
        %v4813 = vld [vmem:[%s5 + $0x78] sm:$0xf]
        %v4814 = vld [vmem:[%s5 + $0x7c] sm:$0xf]
        %v4815 = vld [vmem:[%s5 + $0x80] sm:$0xf]
        %v4816 = vld [vmem:[%s5 + $0x84] sm:$0xf]
        %v4817 = vld [vmem:[%s5 + $0x88] sm:$0xf]
        %v4818 = vld [vmem:[%s5 + $0x8c] sm:$0xf]
        %v4819 = vld [vmem:[%s5 + $0x90] sm:$0xf]
        %v4820 = vld [vmem:[%s5 + $0x94] sm:$0xf]
        %v4821 = vld [vmem:[%s5 + $0x98] sm:$0xf]
        %v4822 = vld [vmem:[%s5 + $0x9c] sm:$0xf]
        %v4823 = vld [vmem:[%s5 + $0xa0] sm:$0xf]
        %v4824 = vld [vmem:[%s5 + $0xa4] sm:$0xf]
        %v4825 = vld [vmem:[%s5 + $0xa8] sm:$0xf]
        %v4826 = vld [vmem:[%s5 + $0xac] sm:$0xf]
        %v4827 = vld [vmem:[%s5 + $0xb0] sm:$0xf]
        %v4828 = vld [vmem:[%s5 + $0xb4] sm:$0xf]
        %v4829 = vld [vmem:[%s5 + $0xb8] sm:$0xf]
        %v4830 = vld [vmem:[%s5 + $0xbc] sm:$0xf]
        %v4831 = vld [vmem:[%s5 + $0xc0] sm:$0xf]
        %v4832 = vld [vmem:[%s5 + $0xc4] sm:$0xf]
        %v4833 = vld [vmem:[%s6] sm:$0x1]
        %vm4834 = vcmask 517120
        %vm4835 = vmand %vm4834, %vm3189
        %v4836 = vld [vmem:[#allocation2] sm:$0x3]
        %v4837 = vsel %vm4835, 0, %v4836
        %4838 = vst [vmem:[#allocation2] sm:$0x3] %v4837
        %v4839 = vld [vmem:[#allocation2 + $0x18] sm:$0x3]
        %v4840 = vsel %vm4835, 0, %v4839
        %4841 = vst [vmem:[#allocation2 + $0x18] sm:$0x3] %v4840
        %v4842 = vld [vmem:[%s4078] sm:$0x3]
        %v4843 = vsel %vm4835, 0, %v4842
        %4844 = vst [vmem:[%s4078] sm:$0x3] %v4843
        %v4845 = vld [vmem:[%s4078 + $0x18] sm:$0x3]
        %v4846 = vsel %vm4835, 0, %v4845
        %4847 = vst [vmem:[%s4078 + $0x18] sm:$0x3] %v4846
        %vm4848 = vcmask 516096
        %vm4849 = vmand %vm4848, %vm382
        %v4850 = vld [vmem:[#allocation2] sm:$0x1]
        %v4851 = vsel %vm4849, 0, %v4850
        %4852 = vst [vmem:[#allocation2] sm:$0x1] %v4851
        %v4853 = vld [vmem:[#allocation2 + $0x4] sm:$0x1]
        %v4854 = vsel %vm4849, 0, %v4853
        %4855 = vst [vmem:[#allocation2 + $0x4] sm:$0x1] %v4854
        %v4856 = vld [vmem:[#allocation2 + $0x8] sm:$0x1]
        %v4857 = vsel %vm4849, 0, %v4856
        %4858 = vst [vmem:[#allocation2 + $0x8] sm:$0x1] %v4857
        %v4859 = vld [vmem:[#allocation2 + $0x18] sm:$0x1]
        %v4860 = vsel %vm4849, 0, %v4859
        %4861 = vst [vmem:[#allocation2 + $0x18] sm:$0x1] %v4860
        %v4862 = vld [vmem:[#allocation2 + $0x1c] sm:$0x1]
        %v4863 = vsel %vm4849, 0, %v4862
        %4864 = vst [vmem:[#allocation2 + $0x1c] sm:$0x1] %v4863
        %v4865 = vld [vmem:[#allocation2 + $0x20] sm:$0x1]
        %v4866 = vsel %vm4849, 0, %v4865
        %4867 = vst [vmem:[#allocation2 + $0x20] sm:$0x1] %v4866
        %vm4868 = vcmask 517121
        %vm4869 = vmand %vm4868, %vm3189
        %v4870 = vld [vmem:[#allocation2] sm:$0x2]
        %v4871 = vsel %vm4869, 0, %v4870
        %4872 = vst [vmem:[#allocation2] sm:$0x2] %v4871
        %v4873 = vld [vmem:[#allocation2 + $0x4] sm:$0x2]
        %v4874 = vsel %vm4869, 0, %v4873
        %4875 = vst [vmem:[#allocation2 + $0x4] sm:$0x2] %v4874
        %v4876 = vld [vmem:[#allocation2 + $0x8] sm:$0x2]
        %v4877 = vsel %vm4869, 0, %v4876
        %4878 = vst [vmem:[#allocation2 + $0x8] sm:$0x2] %v4877
        %v4879 = vld [vmem:[#allocation2 + $0x18] sm:$0x2]
        %v4880 = vsel %vm4869, 0, %v4879
        %4881 = vst [vmem:[#allocation2 + $0x18] sm:$0x2] %v4880
        %v4882 = vld [vmem:[#allocation2 + $0x1c] sm:$0x2]
        %v4883 = vsel %vm4869, 0, %v4882
        %4884 = vst [vmem:[#allocation2 + $0x1c] sm:$0x2] %v4883
        %v4885 = vld [vmem:[#allocation2 + $0x20] sm:$0x2]
        %v4886 = vsel %vm4869, 0, %v4885
        %4887 = vst [vmem:[#allocation2 + $0x20] sm:$0x2] %v4886
        %v4888 = vld [vmem:[#allocation3] sm:$0x1]
        %v4889 = vld [vmem:[#allocation3 + $0x2] sm:$0x1]
        %vm4890 = vcmask 253952
        %4891 = vst.msk [vmem:[#allocation6] sm:$0x1] %vm4890, %v4888
        %4892 = vst.msk [vmem:[#allocation6 + $0x4] sm:$0x1] %vm4890, %v4889
        %v4893 = vld [vmem:[#allocation3] sm:$0x3]
        %v4894 = vld [vmem:[#allocation3 + $0x2] sm:$0x3]
        %v4898 = vunpack.c.l.s4 1966171168
        %v4899 = vunpack.c.0.s8 %v4898
        %v4900 = vlaneseq
        %v4901 = vshrl.u32 %v4900, 7
        %v4902 = vsub.s32 %v4899, %v4901
        %v4903 = vrot.slane %v4893, %v4902
        %v4904 = vcombine.high %v4903, %v4903
        %v4906 = vunpack.c.l.s4 1966171168
        %v4907 = vunpack.c.0.s8 %v4906
        %v4908 = vlaneseq
        %v4909 = vshrl.u32 %v4908, 7
        %v4910 = vsub.s32 %v4907, %v4909
        %v4911 = vrot.slane %v4894, %v4910
        %v4912 = vcombine.high %v4911, %v4911
        %vm4913 = vsmask.f32 1284
        %vm4914 = vmor %vm382, %vm4913
        %vm4915 = vsmask.f32 2312
        %vm4916 = vmor %vm4914, %vm4915
        %vm4917 = vsmask.f32 3340
        %vm4918 = vmor %vm4916, %vm4917
        %vm4919 = vsmask.f32 4368
        %vm4920 = vmor %vm4918, %vm4919
        %vm4921 = vsmask.f32 5396
        %vm4922 = vmor %vm4920, %vm4921
        %vm4923 = vsmask.f32 6424
        %vm4924 = vmor %vm4922, %vm4923
        %vm4925 = vsmask.f32 7452
        %vm4926 = vmor %vm4924, %vm4925
        %v4928 = vshrl.u32 %v4903, 16
        %v4930 = vrot.slane %v4928, 7
        %v4931 = vrot.slane %v4930, 1
        %v4933 = vshll.u32 %v4904, 16
        %v4935 = vsel %vm4926, %v4931, %v4933
        %v4937 = vshrl.u32 %v4911, 16
        %v4939 = vrot.slane %v4937, 7
        %v4940 = vrot.slane %v4939, 1
        %v4942 = vshll.u32 %v4912, 16
        %v4944 = vsel %vm4926, %v4940, %v4942
        %4945 = vrot.lane.b32.xlu0 %v4935, 32
        %v4946 = vpop.permute.xlu0 %4945
        %4947 = vrot.lane.b32.xlu0 %v4944, 32
        %v4948 = vpop.permute.xlu0 %4947
        %vm4951 = vcmask 516352
        %4952 = vst.msk [vmem:[#allocation6] sm:$0x1] %vm4951, %v4946
        %4953 = vst.msk [vmem:[#allocation6 + $0x4] sm:$0x1] %vm4951, %v4948
        %v4954 = vld [vmem:[#allocation3] sm:$0x2]
        %v4955 = vld [vmem:[#allocation3 + $0x2] sm:$0x2]
        %v4959 = vunpack.c.l.s4 1966171168
        %v4960 = vunpack.c.0.s8 %v4959
        %v4961 = vlaneseq
        %v4962 = vshrl.u32 %v4961, 7
        %v4963 = vsub.s32 %v4960, %v4962
        %v4964 = vrot.slane %v4954, %v4963
        %v4965 = vcombine.high %v4964, %v4964
        %v4967 = vunpack.c.l.s4 1966171168
        %v4968 = vunpack.c.0.s8 %v4967
        %v4969 = vlaneseq
        %v4970 = vshrl.u32 %v4969, 7
        %v4971 = vsub.s32 %v4968, %v4970
        %v4972 = vrot.slane %v4955, %v4971
        %v4973 = vcombine.high %v4972, %v4972
        %4974 = vrot.lane.b32.xlu0 %v4965, 64
        %v4975 = vpop.permute.xlu0 %4974
        %4976 = vrot.lane.b32.xlu0 %v4973, 64
        %v4977 = vpop.permute.xlu0 %4976
        %vm4980 = vcmask 647680
        %4981 = vst.msk [vmem:[#allocation6] sm:$0x1] %vm4980, %v4975
        %4982 = vst.msk [vmem:[#allocation6 + $0x4] sm:$0x1] %vm4980, %v4977
        %s4983 = scalar_lea.vmem [#allocation3], 8
        %v4984 = vld [vmem:[%s4983] sm:$0x1]
        %v4985 = vld [vmem:[%s4983 + $0x2] sm:$0x1]
        %v4989 = vunpack.c.l.s4 1966171168
        %v4990 = vunpack.c.0.s8 %v4989
        %v4991 = vlaneseq
        %v4992 = vshrl.u32 %v4991, 7
        %v4993 = vsub.s32 %v4990, %v4992
        %v4994 = vrot.slane %v4984, %v4993
        %v4996 = vunpack.c.l.s4 1966171168
        %v4997 = vunpack.c.0.s8 %v4996
        %v4998 = vlaneseq
        %v4999 = vshrl.u32 %v4998, 7
        %v5000 = vsub.s32 %v4997, %v4999
        %v5001 = vrot.slane %v4985, %v5000
        %5002 = vrot.lane.b32.xlu0 %v4994, 80
        %v5003 = vpop.permute.xlu0 %5002
        %5004 = vrot.lane.b32.xlu0 %v5001, 80
        %v5005 = vpop.permute.xlu0 %5004
        %vm5008 = vcmask 909952
        %5009 = vst.msk [vmem:[#allocation6] sm:$0x1] %vm5008, %v5003
        %5010 = vst.msk [vmem:[#allocation6 + $0x4] sm:$0x1] %vm5008, %v5005
        %v5011 = vld [vmem:[%s4983] sm:$0x3]
        %v5012 = vld [vmem:[%s4983 + $0x2] sm:$0x3]
        %v5016 = vunpack.c.l.s4 1966171168
        %v5017 = vunpack.c.0.s8 %v5016
        %v5018 = vlaneseq
        %v5019 = vshrl.u32 %v5018, 7
        %v5020 = vsub.s32 %v5017, %v5019
        %v5021 = vrot.slane %v5011, %v5020
        %v5022 = vcombine.high %v5021, %v5021
        %v5024 = vunpack.c.l.s4 1966171168
        %v5025 = vunpack.c.0.s8 %v5024
        %v5026 = vlaneseq
        %v5027 = vshrl.u32 %v5026, 7
        %v5028 = vsub.s32 %v5025, %v5027
        %v5029 = vrot.slane %v5012, %v5028
        %v5030 = vcombine.high %v5029, %v5029
        %v5032 = vshrl.u32 %v5021, 16
        %v5034 = vrot.slane %v5032, 7
        %v5035 = vrot.slane %v5034, 1
        %v5037 = vshll.u32 %v5022, 16
        %v5039 = vsel %vm4926, %v5035, %v5037
        %v5041 = vshrl.u32 %v5029, 16
        %v5043 = vrot.slane %v5041, 7
        %v5044 = vrot.slane %v5043, 1
        %v5046 = vshll.u32 %v5030, 16
        %v5048 = vsel %vm4926, %v5044, %v5046
        %5049 = vrot.lane.b32.xlu0 %v5039, 112
        %v5050 = vpop.permute.xlu0 %5049
        %5051 = vrot.lane.b32.xlu0 %v5048, 112
        %v5052 = vpop.permute.xlu0 %5051
        %v5053 = vrot.slane %v5050, 7
        %v5054 = vrot.slane %v5052, 7
        %vm5055 = vcmask 916480
        %v5056 = vsel %vm5055, %v5053, %v5050
        %v5057 = vsel %vm5055, %v5054, %v5052
        %vm5060 = vcmask 1041280
        %vm5061 = vcmask 123905
        %vm5062 = vmor %vm5061, %vm5060
        %5063 = vst.msk [vmem:[#allocation6] sm:$0x3] %vm5062, %v5056
        %5064 = vst.msk [vmem:[#allocation6 + $0x4] sm:$0x3] %vm5062, %v5057
        %v5065 = vld [vmem:[%s4983] sm:$0x2]
        %v5066 = vld [vmem:[%s4983 + $0x2] sm:$0x2]
        %v5070 = vunpack.c.l.s4 1966171168
        %v5071 = vunpack.c.0.s8 %v5070
        %v5072 = vlaneseq
        %v5073 = vshrl.u32 %v5072, 7
        %v5074 = vsub.s32 %v5071, %v5073
        %v5075 = vrot.slane %v5065, %v5074
        %v5076 = vcombine.high %v5075, %v5075
        %v5078 = vunpack.c.l.s4 1966171168
        %v5079 = vunpack.c.0.s8 %v5078
        %v5080 = vlaneseq
        %v5081 = vshrl.u32 %v5080, 7
        %v5082 = vsub.s32 %v5079, %v5081
        %v5083 = vrot.slane %v5066, %v5082
        %v5084 = vcombine.high %v5083, %v5083
        %5085 = vrot.lane.b32.xlu0 %v5076, 16
        %v5086 = vpop.permute.xlu0 %5085
        %5087 = vrot.lane.b32.xlu0 %v5084, 16
        %v5088 = vpop.permute.xlu0 %5087
        %vm5091 = vcmask 254080
        %5092 = vst.msk [vmem:[#allocation6 + $0x1] sm:$0x1] %vm5091, %v5086
        %5093 = vst.msk [vmem:[#allocation6 + $0x5] sm:$0x1] %vm5091, %v5088
        %v5094 = vld [vmem:[%s4600] sm:$0x1]
        %v5095 = vld [vmem:[%s4600 + $0x2] sm:$0x1]
        %v5099 = vunpack.c.l.s4 1966171168
        %v5100 = vunpack.c.0.s8 %v5099
        %v5101 = vlaneseq
        %v5102 = vshrl.u32 %v5101, 7
        %v5103 = vsub.s32 %v5100, %v5102
        %v5104 = vrot.slane %v5094, %v5103
        %v5106 = vunpack.c.l.s4 1966171168
        %v5107 = vunpack.c.0.s8 %v5106
        %v5108 = vlaneseq
        %v5109 = vshrl.u32 %v5108, 7
        %v5110 = vsub.s32 %v5107, %v5109
        %v5111 = vrot.slane %v5095, %v5110
        %5112 = vrot.lane.b32.xlu0 %v5104, 32
        %v5113 = vpop.permute.xlu0 %5112
        %5114 = vrot.lane.b32.xlu0 %v5111, 32
        %v5115 = vpop.permute.xlu0 %5114
        %5118 = vst.msk [vmem:[#allocation6 + $0x1] sm:$0x1] %vm4951, %v5113
        %5119 = vst.msk [vmem:[#allocation6 + $0x5] sm:$0x1] %vm4951, %v5115
        %v5120 = vld [vmem:[%s4600] sm:$0x3]
        %v5121 = vld [vmem:[%s4600 + $0x2] sm:$0x3]
        %v5125 = vunpack.c.l.s4 1966171168
        %v5126 = vunpack.c.0.s8 %v5125
        %v5127 = vlaneseq
        %v5128 = vshrl.u32 %v5127, 7
        %v5129 = vsub.s32 %v5126, %v5128
        %v5130 = vrot.slane %v5120, %v5129
        %v5131 = vcombine.high %v5130, %v5130
        %v5133 = vunpack.c.l.s4 1966171168
        %v5134 = vunpack.c.0.s8 %v5133
        %v5135 = vlaneseq
        %v5136 = vshrl.u32 %v5135, 7
        %v5137 = vsub.s32 %v5134, %v5136
        %v5138 = vrot.slane %v5121, %v5137
        %v5139 = vcombine.high %v5138, %v5138
        %v5141 = vshrl.u32 %v5130, 16
        %v5143 = vrot.slane %v5141, 7
        %v5144 = vrot.slane %v5143, 1
        %v5146 = vshll.u32 %v5131, 16
        %v5148 = vsel %vm4926, %v5144, %v5146
        %v5150 = vshrl.u32 %v5138, 16
        %v5152 = vrot.slane %v5150, 7
        %v5153 = vrot.slane %v5152, 1
        %v5155 = vshll.u32 %v5139, 16
        %v5157 = vsel %vm4926, %v5153, %v5155
        %5158 = vrot.lane.b32.xlu0 %v5148, 64
        %v5159 = vpop.permute.xlu0 %5158
        %5160 = vrot.lane.b32.xlu0 %v5157, 64
        %v5161 = vpop.permute.xlu0 %5160
        %vm5164 = vcmask 778752
        %5165 = vst.msk [vmem:[#allocation6 + $0x1] sm:$0x1] %vm5164, %v5159
        %5166 = vst.msk [vmem:[#allocation6 + $0x5] sm:$0x1] %vm5164, %v5161
        %v5167 = vld [vmem:[%s4600] sm:$0x2]
        %v5168 = vld [vmem:[%s4600 + $0x2] sm:$0x2]
        %v5172 = vunpack.c.l.s4 1966171168
        %v5173 = vunpack.c.0.s8 %v5172
        %v5174 = vlaneseq
        %v5175 = vshrl.u32 %v5174, 7
        %v5176 = vsub.s32 %v5173, %v5175
        %v5177 = vrot.slane %v5167, %v5176
        %v5178 = vcombine.high %v5177, %v5177
        %v5180 = vunpack.c.l.s4 1966171168
        %v5181 = vunpack.c.0.s8 %v5180
        %v5182 = vlaneseq
        %v5183 = vshrl.u32 %v5182, 7
        %v5184 = vsub.s32 %v5181, %v5183
        %v5185 = vrot.slane %v5168, %v5184
        %v5186 = vcombine.high %v5185, %v5185
        %5187 = vrot.lane.b32.xlu0 %v5178, 96
        %v5188 = vpop.permute.xlu0 %5187
        %5189 = vrot.lane.b32.xlu0 %v5186, 96
        %v5190 = vpop.permute.xlu0 %5189
        %vm5193 = vcmask 910080
        %5194 = vst.msk [vmem:[#allocation6 + $0x1] sm:$0x1] %vm5193, %v5188
        %5195 = vst.msk [vmem:[#allocation6 + $0x5] sm:$0x1] %vm5193, %v5190
        %v5196 = vld [vmem:[%s4744] sm:$0x1]
        %v5197 = vld [vmem:[%s4744 + $0x2] sm:$0x1]
        %v5201 = vunpack.c.l.s4 1966171168
        %v5202 = vunpack.c.0.s8 %v5201
        %v5203 = vlaneseq
        %v5204 = vshrl.u32 %v5203, 7
        %v5205 = vsub.s32 %v5202, %v5204
        %v5206 = vrot.slane %v5196, %v5205
        %v5208 = vunpack.c.l.s4 1966171168
        %v5209 = vunpack.c.0.s8 %v5208
        %v5210 = vlaneseq
        %v5211 = vshrl.u32 %v5210, 7
        %v5212 = vsub.s32 %v5209, %v5211
        %v5213 = vrot.slane %v5197, %v5212
        %5214 = vrot.lane.b32.xlu0 %v5206, 112
        %v5215 = vpop.permute.xlu0 %5214
        %5216 = vrot.lane.b32.xlu0 %v5213, 112
        %v5217 = vpop.permute.xlu0 %5216
        %v5218 = vrot.slane %v5215, 7
        %v5219 = vrot.slane %v5217, 7
        %v5220 = vsel %vm5055, %v5218, %v5215
        %v5221 = vsel %vm5055, %v5219, %v5217
        %5224 = vst.msk [vmem:[#allocation6 + $0x1] sm:$0x3] %vm5062, %v5220
        %5225 = vst.msk [vmem:[#allocation6 + $0x5] sm:$0x3] %vm5062, %v5221
        %v5226 = vld [vmem:[%s4744] sm:$0x3]
        %v5227 = vld [vmem:[%s4744 + $0x2] sm:$0x3]
        %v5231 = vunpack.c.l.s4 1966171168
        %v5232 = vunpack.c.0.s8 %v5231
        %v5233 = vlaneseq
        %v5234 = vshrl.u32 %v5233, 7
        %v5235 = vsub.s32 %v5232, %v5234
        %v5236 = vrot.slane %v5226, %v5235
        %v5237 = vcombine.high %v5236, %v5236
        %v5239 = vunpack.c.l.s4 1966171168
        %v5240 = vunpack.c.0.s8 %v5239
        %v5241 = vlaneseq
        %v5242 = vshrl.u32 %v5241, 7
        %v5243 = vsub.s32 %v5240, %v5242
        %v5244 = vrot.slane %v5227, %v5243
        %v5245 = vcombine.high %v5244, %v5244
        %v5247 = vshrl.u32 %v5236, 16
        %v5249 = vrot.slane %v5247, 7
        %v5250 = vrot.slane %v5249, 1
        %v5252 = vshll.u32 %v5237, 16
        %v5254 = vsel %vm4926, %v5250, %v5252
        %v5256 = vshrl.u32 %v5244, 16
        %v5258 = vrot.slane %v5256, 7
        %v5259 = vrot.slane %v5258, 1
        %v5261 = vshll.u32 %v5245, 16
        %v5263 = vsel %vm4926, %v5259, %v5261
        %5264 = vrot.lane.b32.xlu0 %v5254, 16
        %v5265 = vpop.permute.xlu0 %5264
        %5266 = vrot.lane.b32.xlu0 %v5263, 16
        %v5267 = vpop.permute.xlu0 %5266
        %vm5270 = vcmask 385152
        %5271 = vst.msk [vmem:[#allocation6 + $0x2] sm:$0x1] %vm5270, %v5265
        %5272 = vst.msk [vmem:[#allocation6 + $0x6] sm:$0x1] %vm5270, %v5267
        %v5273 = vld [vmem:[%s4744] sm:$0x2]
        %v5274 = vld [vmem:[%s4744 + $0x2] sm:$0x2]
        %v5278 = vunpack.c.l.s4 1966171168
        %v5279 = vunpack.c.0.s8 %v5278
        %v5280 = vlaneseq
        %v5281 = vshrl.u32 %v5280, 7
        %v5282 = vsub.s32 %v5279, %v5281
        %v5283 = vrot.slane %v5273, %v5282
        %v5284 = vcombine.high %v5283, %v5283
        %v5286 = vunpack.c.l.s4 1966171168
        %v5287 = vunpack.c.0.s8 %v5286
        %v5288 = vlaneseq
        %v5289 = vshrl.u32 %v5288, 7
        %v5290 = vsub.s32 %v5287, %v5289
        %v5291 = vrot.slane %v5274, %v5290
        %v5292 = vcombine.high %v5291, %v5291
        %5293 = vrot.lane.b32.xlu0 %v5284, 48
        %v5294 = vpop.permute.xlu0 %5293
        %5295 = vrot.lane.b32.xlu0 %v5292, 48
        %v5296 = vpop.permute.xlu0 %5295
        %vm5299 = vcmask 516480
        %5300 = vst.msk [vmem:[#allocation6 + $0x2] sm:$0x1] %vm5299, %v5294
        %5301 = vst.msk [vmem:[#allocation6 + $0x6] sm:$0x1] %vm5299, %v5296
        %s5302 = scalar_lea.vmem [#allocation3], 4
        %v5303 = vld [vmem:[%s5302] sm:$0x1]
        %v5304 = vld [vmem:[%s5302 + $0x2] sm:$0x1]
        %v5308 = vunpack.c.l.s4 1966171168
        %v5309 = vunpack.c.0.s8 %v5308
        %v5310 = vlaneseq
        %v5311 = vshrl.u32 %v5310, 7
        %v5312 = vsub.s32 %v5309, %v5311
        %v5313 = vrot.slane %v5303, %v5312
        %v5315 = vunpack.c.l.s4 1966171168
        %v5316 = vunpack.c.0.s8 %v5315
        %v5317 = vlaneseq
        %v5318 = vshrl.u32 %v5317, 7
        %v5319 = vsub.s32 %v5316, %v5318
        %v5320 = vrot.slane %v5304, %v5319
        %5321 = vrot.lane.b32.xlu0 %v5313, 64
        %v5322 = vpop.permute.xlu0 %5321
        %5323 = vrot.lane.b32.xlu0 %v5320, 64
        %v5324 = vpop.permute.xlu0 %5323
        %5327 = vst.msk [vmem:[#allocation6 + $0x2] sm:$0x1] %vm5164, %v5322
        %5328 = vst.msk [vmem:[#allocation6 + $0x6] sm:$0x1] %vm5164, %v5324
        %v5329 = vld [vmem:[%s5302] sm:$0x3]
        %v5330 = vld [vmem:[%s5302 + $0x2] sm:$0x3]
        %v5334 = vunpack.c.l.s4 1966171168
        %v5335 = vunpack.c.0.s8 %v5334
        %v5336 = vlaneseq
        %v5337 = vshrl.u32 %v5336, 7
        %v5338 = vsub.s32 %v5335, %v5337
        %v5339 = vrot.slane %v5329, %v5338
        %v5340 = vcombine.high %v5339, %v5339
        %v5342 = vunpack.c.l.s4 1966171168
        %v5343 = vunpack.c.0.s8 %v5342
        %v5344 = vlaneseq
        %v5345 = vshrl.u32 %v5344, 7
        %v5346 = vsub.s32 %v5343, %v5345
        %v5347 = vrot.slane %v5330, %v5346
        %v5348 = vcombine.high %v5347, %v5347
        %v5350 = vshrl.u32 %v5339, 16
        %v5352 = vrot.slane %v5350, 7
        %v5353 = vrot.slane %v5352, 1
        %v5355 = vshll.u32 %v5340, 16
        %v5357 = vsel %vm4926, %v5353, %v5355
        %v5359 = vshrl.u32 %v5347, 16
        %v5361 = vrot.slane %v5359, 7
        %v5362 = vrot.slane %v5361, 1
        %v5364 = vshll.u32 %v5348, 16
        %v5366 = vsel %vm4926, %v5362, %v5364
        %5367 = vrot.lane.b32.xlu0 %v5357, 96
        %v5368 = vpop.permute.xlu0 %5367
        %5369 = vrot.lane.b32.xlu0 %v5366, 96
        %v5370 = vpop.permute.xlu0 %5369
        %vm5373 = vcmask 1041152
        %5374 = vst.msk [vmem:[#allocation6 + $0x2] sm:$0x1] %vm5373, %v5368
        %5375 = vst.msk [vmem:[#allocation6 + $0x6] sm:$0x1] %vm5373, %v5370
        %v5376 = vld [vmem:[%s5302] sm:$0x2]
        %v5377 = vld [vmem:[%s5302 + $0x2] sm:$0x2]
        %v5381 = vunpack.c.l.s4 1966171168
        %v5382 = vunpack.c.0.s8 %v5381
        %v5383 = vlaneseq
        %v5384 = vshrl.u32 %v5383, 7
        %v5385 = vsub.s32 %v5382, %v5384
        %v5386 = vrot.slane %v5376, %v5385
        %v5387 = vcombine.high %v5386, %v5386
        %v5389 = vunpack.c.l.s4 1966171168
        %v5390 = vunpack.c.0.s8 %v5389
        %v5391 = vlaneseq
        %v5392 = vshrl.u32 %v5391, 7
        %v5393 = vsub.s32 %v5390, %v5392
        %v5394 = vrot.slane %v5377, %v5393
        %v5395 = vcombine.high %v5394, %v5394
        %vm5398 = vcmask 122880
        %5399 = vst.msk [vmem:[#allocation6 + $0x3] sm:$0x1] %vm5398, %v5387
        %5400 = vst.msk [vmem:[#allocation6 + $0x7] sm:$0x1] %vm5398, %v5395
        %v5401 = vld [vmem:[#allocation6] sm:$0xf]
        %v5402 = vld [vmem:[#allocation6 + $0x4] sm:$0xf]
        %v5404 = vlaneseq
        %v5405 = vshrl.u32 %v5404, 7
        %v5406 = vsub.s32 0, %v5405
        %v5407 = vrot.slane %v4833, %v5406
        %v5411 = vcombine.low %v5401, %v5402
        %v5413 = vunpack.c.l.s4 1966171168
        %v5414 = vunpack.c.0.s8 %v5413
        %v5415 = vlaneseq
        %v5416 = vshrl.u32 %v5415, 7
        %v5417 = vsub.s32 %v5414, %v5416
        %v5418 = vrot.slane %v5411, %v5417
        %v5419 = vcombine.high %v5418, %v5418
        %v5421 = vunpack.c.l.s4 1966171168
        %v5422 = vunpack.c.0.s8 %v5421
        %v5423 = vlaneseq
        %v5424 = vshrl.u32 %v5423, 7
        %v5425 = vsub.s32 %v5422, %v5424
        %v5426 = vrot.slane %v5418, %v5425
        %v5428 = vunpack.c.l.s4 1966171168
        %v5429 = vunpack.c.0.s8 %v5428
        %v5430 = vlaneseq
        %v5431 = vshrl.u32 %v5430, 7
        %v5432 = vsub.s32 %v5429, %v5431
        %v5433 = vrot.slane %v5419, %v5432
        %v5434 = vcombine.high %v5426, %v5426
        %v5435 = vcombine.high %v5433, %v5433
        %v5489 = vunpack.c.l.b16 %v4783
        %v5490 = vunpack.c.l.b16 %v4784
        %v5491 = vunpack.c.l.b16 %v4785
        %v5492 = vunpack.c.l.b16 %v4786
        %v5493 = vunpack.c.l.b16 %v4787
        %v5494 = vunpack.c.l.b16 %v4788
        %v5495 = vunpack.c.l.b16 %v4789
        %v5496 = vunpack.c.l.b16 %v4790
        %v5497 = vunpack.c.l.b16 %v4791
        %v5498 = vunpack.c.l.b16 %v4792
        %v5499 = vunpack.c.l.b16 %v4793
        %v5500 = vunpack.c.l.b16 %v4794
        %v5501 = vunpack.c.l.b16 %v4795
        %v5502 = vunpack.c.l.b16 %v4796
        %v5503 = vunpack.c.l.b16 %v4797
        %v5504 = vunpack.c.l.b16 %v4798
        %v5505 = vunpack.c.l.b16 %v4799
        %v5506 = vunpack.c.l.b16 %v4800
        %v5507 = vunpack.c.l.b16 %v4801
        %v5508 = vunpack.c.l.b16 %v4802
        %v5509 = vunpack.c.l.b16 %v4803
        %v5510 = vunpack.c.l.b16 %v4804
        %v5511 = vunpack.c.l.b16 %v4805
        %v5512 = vunpack.c.l.b16 %v4806
        %v5513 = vunpack.c.l.b16 %v4807
        %v5514 = vunpack.c.l.b16 %v4808
        %v5515 = vunpack.c.l.b16 %v4809
        %v5516 = vunpack.c.l.b16 %v4810
        %v5517 = vunpack.c.l.b16 %v4811
        %v5518 = vunpack.c.l.b16 %v4812
        %v5519 = vunpack.c.l.b16 %v4813
        %v5520 = vunpack.c.l.b16 %v4814
        %v5521 = vunpack.c.l.b16 %v4815
        %v5522 = vunpack.c.l.b16 %v4816
        %v5523 = vunpack.c.l.b16 %v4817
        %v5524 = vunpack.c.l.b16 %v4818
        %v5525 = vunpack.c.l.b16 %v4819
        %v5526 = vunpack.c.l.b16 %v4820
        %v5527 = vunpack.c.l.b16 %v4821
        %v5528 = vunpack.c.l.b16 %v4822
        %v5529 = vunpack.c.l.b16 %v4823
        %v5530 = vunpack.c.l.b16 %v4824
        %v5531 = vunpack.c.l.b16 %v4825
        %v5532 = vunpack.c.l.b16 %v4826
        %v5533 = vunpack.c.l.b16 %v4827
        %v5534 = vunpack.c.l.b16 %v4828
        %v5535 = vunpack.c.l.b16 %v4829
        %v5536 = vunpack.c.l.b16 %v4830
        %v5537 = vunpack.c.l.b16 %v4831
        %v5538 = vunpack.c.l.b16 %v4832
        %v5539 = vpack.c.b16 %v5490, %v5489
        %v5540 = vpack.c.b16 %v5492, %v5491
        %v5541 = vpack.c.b16 %v5494, %v5493
        %v5542 = vpack.c.b16 %v5496, %v5495
        %v5543 = vpack.c.b16 %v5498, %v5497
        %v5544 = vpack.c.b16 %v5500, %v5499
        %v5545 = vpack.c.b16 %v5502, %v5501
        %v5546 = vpack.c.b16 %v5504, %v5503
        %v5547 = vpack.c.b16 %v5506, %v5505
        %v5548 = vpack.c.b16 %v5508, %v5507
        %v5549 = vpack.c.b16 %v5510, %v5509
        %v5550 = vpack.c.b16 %v5512, %v5511
        %v5551 = vpack.c.b16 %v5514, %v5513
        %v5552 = vpack.c.b16 %v5516, %v5515
        %v5553 = vpack.c.b16 %v5518, %v5517
        %v5554 = vpack.c.b16 %v5520, %v5519
        %v5555 = vpack.c.b16 %v5522, %v5521
        %v5556 = vpack.c.b16 %v5524, %v5523
        %v5557 = vpack.c.b16 %v5526, %v5525
        %v5558 = vpack.c.b16 %v5528, %v5527
        %v5559 = vpack.c.b16 %v5530, %v5529
        %v5560 = vpack.c.b16 %v5532, %v5531
        %v5561 = vpack.c.b16 %v5534, %v5533
        %v5562 = vpack.c.b16 %v5536, %v5535
        %v5563 = vpack.c.b16 %v5538, %v5537
        %vm5589 = vcmask 130048
        %v5591 = vsel %vm5589, %v5435, 0
        %5593 = vmatprep.subr.bf16.mxu0 0
        %5594 = vmatpush1.bf16.msra.mxu0 %v5546
        %5595 = vmatprep.subr.bf16.mxu0 0
        %5596 = vmatpush1.bf16.msra.mxu0 %v5545
        %5597 = vmatprep.subr.bf16.mxu0 0
        %5598 = vmatpush1.bf16.msra.mxu0 %v5544
        %5599 = vmatprep.subr.bf16.mxu0 0
        %5600 = vmatpush1.bf16.msra.mxu0 %v5543
        %5601 = vmatprep.subr.bf16.mxu0 0
        %5602 = vmatpush1.bf16.msra.mxu0 %v5542
        %5603 = vmatprep.subr.bf16.mxu0 0
        %5604 = vmatpush1.bf16.msra.mxu0 %v5541
        %5605 = vmatprep.subr.bf16.mxu0 0
        %5606 = vmatpush1.bf16.msra.mxu0 %v5540
        %5607 = vmatprep.subr.bf16.mxu0 0
        %5608 = vmatpush1.bf16.msra.mxu0 %v5539
        %5609 = vmatprep.subr.bf16.mxu0 0
        %5610 = vmatpush2.bf16.msra.mxu0 %v5554
        %5611 = vmatprep.subr.bf16.mxu0 0
        %5612 = vmatpush2.bf16.msra.mxu0 %v5553
        %5613 = vmatprep.subr.bf16.mxu0 0
        %5614 = vmatpush2.bf16.msra.mxu0 %v5552
        %5615 = vmatprep.subr.bf16.mxu0 0
        %5616 = vmatpush2.bf16.msra.mxu0 %v5551
        %5617 = vmatprep.subr.bf16.mxu0 0
        %5618 = vmatpush2.bf16.msra.mxu0 %v5550
        %5619 = vmatprep.subr.bf16.mxu0 0
        %5620 = vmatpush2.bf16.msra.mxu0 %v5549
        %5621 = vmatprep.subr.bf16.mxu0 0
        %5622 = vmatpush2.bf16.msra.mxu0 %v5548
        %5623 = vmatprep.subr.bf16.mxu0 0
        %5624 = vmatpush2.bf16.msra.mxu0 %v5547
        %5625 = vmatprep.mubr.bf16.mxu0 %v5433
        %5626 = vmatmul.mubr.bf16.gmra.mxu0 %v5426
        %v5627 = vpop.f32.mrf.mxu0
        %v5628 = vadd.f32 %v5407, %v5627
        %v5629 = vpop.f32.mrf.mxu0
        %v5630 = vpop.f32.mrf.mxu0
        %v5631 = vpop.f32.mrf.mxu0
        %5632 = vdwg.mxu0
        %5633 = vmatprep.subr.bf16.mxu0 0
        %5634 = vmatpush1.bf16.msra.mxu0 %v5562
        %5635 = vmatprep.subr.bf16.mxu0 0
        %5636 = vmatpush1.bf16.msra.mxu0 %v5561
        %5637 = vmatprep.subr.bf16.mxu0 0
        %5638 = vmatpush1.bf16.msra.mxu0 %v5560
        %5639 = vmatprep.subr.bf16.mxu0 0
        %5640 = vmatpush1.bf16.msra.mxu0 %v5559
        %5641 = vmatprep.subr.bf16.mxu0 0
        %5642 = vmatpush1.bf16.msra.mxu0 %v5558
        %5643 = vmatprep.subr.bf16.mxu0 0
        %5644 = vmatpush1.bf16.msra.mxu0 %v5557
        %5645 = vmatprep.subr.bf16.mxu0 0
        %5646 = vmatpush1.bf16.msra.mxu0 %v5556
        %5647 = vmatprep.subr.bf16.mxu0 0
        %5648 = vmatpush1.bf16.msra.mxu0 %v5555
        %5649 = vmatprep.subr.bf16.mxu0 0
        %5650 = vmatpush2.bf16.msra.mxu0 0
        %5651 = vmatprep.subr.bf16.mxu0 0
        %5652 = vmatpush2.bf16.msra.mxu0 0
        %5653 = vmatprep.subr.bf16.mxu0 0
        %5654 = vmatpush2.bf16.msra.mxu0 0
        %5655 = vmatprep.subr.bf16.mxu0 0
        %5656 = vmatpush2.bf16.msra.mxu0 0
        %5657 = vmatprep.subr.bf16.mxu0 0
        %5658 = vmatpush2.bf16.msra.mxu0 0
        %5659 = vmatprep.subr.bf16.mxu0 0
        %5660 = vmatpush2.bf16.msra.mxu0 0
        %5661 = vmatprep.subr.bf16.mxu0 0
        %5662 = vmatpush2.bf16.msra.mxu0 0
        %5663 = vmatprep.subr.bf16.mxu0 0
        %5664 = vmatpush2.bf16.msra.mxu0 %v5563
        %5665 = vmatprep.mubr.bf16.mxu0 %v5591
        %5666 = vmatmul.mubr.bf16.gmra.mxu0 %v5434
        %v5667 = vpop.f32.mrf.mxu0
        %v5668 = vadd.f32 %v5628, %v5667
        %v5669 = vpop.f32.mrf.mxu0
        %v5670 = vpop.f32.mrf.mxu0
        %v5671 = vpop.f32.mrf.mxu0
        %5672 = vdwg.mxu0
        %vm5673 = vcmp.ge.f32.partialorder %v5668, 0.0
        %v5674 = vmul.f32 %v5668, 0.2
        %v5675 = vsel %vm5673, %v5668, %v5674
        %v5676 = vpack.c.bf16 %v5675, %v5675
        %v5678 = vunpack.c.l.b16 %v5676
        %v5679 = vpack.c.b16 %v5678, %v5678
        %v5681 = vshll.u32 %v5679, 16
        %vm5684 = vsmask.f32 7938
        %vm5685 = vmand %vm3087, %vm5684
        %v5686 = vld [vmem:[%s2548] sm:$0x1]
        %v5687 = vsel %vm5685, %v5681, %v5686
        %5688 = vst [vmem:[%s2548] sm:$0x1] %v5687
        %5689 = vrot.lane.b32.xlu0 %v5679, 32
        %v5690 = vpop.permute.xlu0 %5689
        %vm5692 = vcmask 516352
        %vm5693 = vmand %vm5692, %vm5684
        %v5694 = vld [vmem:[%s2548] sm:$0x1]
        %v5695 = vsel %vm5693, %v5690, %v5694
        %5696 = vst [vmem:[%s2548] sm:$0x1] %v5695
        %v5697 = vrot.slane %v5681, 5
        %v5698 = vrot.slane %v5697, 4
        %v5700 = vld [vmem:[%s2990] sm:$0x1]
        %v5701 = vsel %vm5685, %v5698, %v5700
        %5702 = vst [vmem:[%s2990] sm:$0x1] %v5701
        %v5703 = vrot.slane %v5679, 5
        %v5704 = vrot.slane %v5703, 4
        %5705 = vrot.lane.b32.xlu0 %v5704, 32
        %v5706 = vpop.permute.xlu0 %5705
        %v5708 = vld [vmem:[%s2990] sm:$0x1]
        %v5709 = vsel %vm5693, %v5706, %v5708
        %5710 = vst [vmem:[%s2990] sm:$0x1] %v5709
        %v5711 = vld [vmem:[#allocation11] sm:$0xf]
        %v5712 = vld [vmem:[#allocation11 + $0x4] sm:$0xf]
        %v5713 = vld [vmem:[#allocation11 + $0x8] sm:$0xf]
        %v5714 = vld [vmem:[#allocation11 + $0xc] sm:$0xf]
        %v5715 = vld [vmem:[#allocation11 + $0x10] sm:$0xf]
        %v5716 = vld [vmem:[#allocation11 + $0x14] sm:$0xf]
        %v5717 = vld [vmem:[#allocation11 + $0x18] sm:$0xf]
        %v5718 = vld [vmem:[#allocation11 + $0x1c] sm:$0xf]
        %v5719 = vld [vmem:[#allocation11 + $0x20] sm:$0xf]
        %v5720 = vld [vmem:[#allocation11 + $0x24] sm:$0xf]
        %v5721 = vld [vmem:[#allocation11 + $0x28] sm:$0xf]
        %v5722 = vld [vmem:[#allocation11 + $0x2c] sm:$0xf]
        %v5723 = vld [vmem:[#allocation11 + $0x30] sm:$0xf]
        %v5724 = vld [vmem:[#allocation11 + $0x34] sm:$0xf]
        %v5725 = vld [vmem:[#allocation11 + $0x38] sm:$0xf]
        %v5726 = vld [vmem:[#allocation11 + $0x3c] sm:$0xf]
        %v5727 = vld [vmem:[#allocation11 + $0x40] sm:$0xf]
        %v5728 = vld [vmem:[#allocation11 + $0x44] sm:$0xf]
        %v5729 = vld [vmem:[#allocation11 + $0x48] sm:$0xf]
        %v5730 = vld [vmem:[#allocation11 + $0x4c] sm:$0xf]
        %v5731 = vld [vmem:[#allocation11 + $0x50] sm:$0xf]
        %v5732 = vld [vmem:[#allocation11 + $0x54] sm:$0xf]
        %v5733 = vld [vmem:[#allocation11 + $0x58] sm:$0xf]
        %v5734 = vld [vmem:[#allocation11 + $0x5c] sm:$0xf]
        %v5735 = vld [vmem:[#allocation11 + $0x60] sm:$0xf]
        %v5736 = vld [vmem:[#allocation11 + $0x64] sm:$0xf]
        %v5737 = vld [vmem:[#allocation11 + $0x68] sm:$0xf]
        %v5738 = vld [vmem:[#allocation11 + $0x6c] sm:$0xf]
        %v5739 = vld [vmem:[#allocation11 + $0x70] sm:$0xf]
        %v5740 = vld [vmem:[#allocation11 + $0x74] sm:$0xf]
        %v5741 = vld [vmem:[#allocation11 + $0x78] sm:$0xf]
        %v5742 = vld [vmem:[#allocation11 + $0x7c] sm:$0xf]
        %v5743 = vld [vmem:[#allocation11 + $0x80] sm:$0xf]
        %v5744 = vld [vmem:[#allocation11 + $0x84] sm:$0xf]
        %v5745 = vld [vmem:[#allocation11 + $0x88] sm:$0xf]
        %v5746 = vld [vmem:[#allocation11 + $0x8c] sm:$0xf]
        %v5747 = vld [vmem:[#allocation11 + $0x90] sm:$0xf]
        %v5748 = vld [vmem:[#allocation11 + $0x94] sm:$0xf]
        %v5749 = vld [vmem:[#allocation11 + $0x98] sm:$0xf]
        %v5750 = vld [vmem:[#allocation11 + $0x9c] sm:$0xf]
        %v5751 = vld [vmem:[#allocation11 + $0xa0] sm:$0xf]
        %v5752 = vld [vmem:[#allocation11 + $0xa4] sm:$0xf]
        %v5753 = vld [vmem:[#allocation11 + $0xa8] sm:$0xf]
        %v5754 = vld [vmem:[#allocation11 + $0xac] sm:$0xf]
        %v5755 = vld [vmem:[#allocation11 + $0xb0] sm:$0xf]
        %v5756 = vld [vmem:[#allocation11 + $0xb4] sm:$0xf]
        %v5757 = vld [vmem:[#allocation11 + $0xb8] sm:$0xf]
        %v5758 = vld [vmem:[#allocation11 + $0xbc] sm:$0xf]
        %v5759 = vld [vmem:[#allocation11 + $0xc0] sm:$0xf]
        %v5760 = vld [vmem:[#allocation11 + $0xc4] sm:$0xf]
        %v5761 = vld [vmem:[#allocation11 + $0xc8] sm:$0xf]
        %v5762 = vld [vmem:[#allocation11 + $0xcc] sm:$0xf]
        %v5763 = vld [vmem:[#allocation11 + $0xd0] sm:$0xf]
        %v5764 = vld [vmem:[#allocation11 + $0xd4] sm:$0xf]
        %v5765 = vld [vmem:[#allocation11 + $0xd8] sm:$0xf]
        %v5766 = vld [vmem:[#allocation11 + $0xdc] sm:$0xf]
        %v5767 = vld [vmem:[#allocation11 + $0xe0] sm:$0xf]
        %v5768 = vld [vmem:[#allocation11 + $0xe4] sm:$0xf]
        %v5769 = vld [vmem:[#allocation11 + $0xe8] sm:$0xf]
        %v5770 = vld [vmem:[#allocation11 + $0xec] sm:$0xf]
        %v5771 = vld [vmem:[#allocation11 + $0xf0] sm:$0xf]
        %v5772 = vld [vmem:[#allocation11 + $0xf4] sm:$0xf]
        %v5773 = vld [vmem:[#allocation11 + $0xf8] sm:$0xf]
        %v5774 = vld [vmem:[#allocation11 + $0xfc] sm:$0xf]
        %v5775 = vld [vmem:[#allocation11 + $0x100] sm:$0xf]
        %v5776 = vld [vmem:[#allocation11 + $0x104] sm:$0xf]
        %v5777 = vld [vmem:[#allocation11 + $0x108] sm:$0xf]
        %v5778 = vld [vmem:[#allocation11 + $0x10c] sm:$0xf]
        %v5779 = vld [vmem:[#allocation11 + $0x110] sm:$0xf]
        %v5780 = vld [vmem:[#allocation11 + $0x114] sm:$0xf]
        %v5781 = vld [vmem:[#allocation11 + $0x118] sm:$0xf]
        %v5782 = vld [vmem:[#allocation11 + $0x11c] sm:$0xf]
        %v5783 = vld [vmem:[#allocation11 + $0x120] sm:$0xf]
        %v5784 = vld [vmem:[#allocation11 + $0x124] sm:$0xf]
        %v5785 = vld [vmem:[#allocation11 + $0x128] sm:$0xf]
        %v5786 = vld [vmem:[#allocation11 + $0x12c] sm:$0xf]
        %v5787 = vld [vmem:[#allocation11 + $0x130] sm:$0xf]
        %v5788 = vld [vmem:[#allocation11 + $0x134] sm:$0xf]
        %v5789 = vld [vmem:[#allocation11 + $0x138] sm:$0xf]
        %v5790 = vld [vmem:[#allocation11 + $0x13c] sm:$0xf]
        %v5791 = vld [vmem:[#allocation11 + $0x140] sm:$0xf]
        %v5792 = vld [vmem:[#allocation11 + $0x144] sm:$0xf]
        %v5793 = vld [vmem:[#allocation11 + $0x148] sm:$0xf]
        %v5794 = vld [vmem:[#allocation11 + $0x14c] sm:$0xf]
        %v5795 = vld [vmem:[#allocation11 + $0x150] sm:$0xf]
        %v5796 = vld [vmem:[#allocation11 + $0x154] sm:$0xf]
        %v5797 = vld [vmem:[#allocation11 + $0x158] sm:$0xf]
        %v5798 = vld [vmem:[#allocation11 + $0x15c] sm:$0xf]
        %v5799 = vld [vmem:[#allocation11 + $0x160] sm:$0xf]
        %v5800 = vld [vmem:[#allocation11 + $0x164] sm:$0xf]
        %v5801 = vld [vmem:[#allocation11 + $0x168] sm:$0xf]
        %v5802 = vld [vmem:[#allocation11 + $0x16c] sm:$0xf]
        %v5803 = vld [vmem:[#allocation11 + $0x170] sm:$0xf]
        %v5804 = vld [vmem:[#allocation11 + $0x174] sm:$0xf]
        %v5805 = vld [vmem:[#allocation11 + $0x178] sm:$0xf]
        %v5806 = vld [vmem:[#allocation11 + $0x17c] sm:$0xf]
        %v5807 = vld [vmem:[#allocation11 + $0x180] sm:$0xf]
        %v5808 = vld [vmem:[#allocation11 + $0x184] sm:$0xf]
        %v5809 = vld [vmem:[#allocation11 + $0x188] sm:$0xf]
        %v5810 = vld [vmem:[#allocation11 + $0x18c] sm:$0xf]
        %v5811 = vld [vmem:[%s8] sm:$0x1]
        %v5812 = vld [vmem:[#allocation2] sm:$0x1]
        %v5813 = vld [vmem:[#allocation7] sm:$0x1]
        %v5814 = vsel %vm4849, %v5812, %v5813
        %5815 = vst [vmem:[#allocation7] sm:$0x1] %v5814
        %v5816 = vld [vmem:[#allocation2] sm:$0x1]
        %v5819 = vunpack.c.l.s4 1966171168
        %v5820 = vunpack.c.0.s8 %v5819
        %v5821 = vlaneseq
        %v5822 = vshrl.u32 %v5821, 7
        %v5823 = vsub.s32 %v5820, %v5822
        %v5824 = vrot.slane %v5816, %v5823
        %v5826 = vunpack.c.l.s4 1966171168
        %v5827 = vunpack.c.0.s8 %v5826
        %v5828 = vlaneseq
        %v5829 = vshrl.u32 %v5828, 7
        %v5830 = vsub.s32 %v5827, %v5829
        %v5831 = vrot.slane %v5824, %v5830
        %v5833 = vshrl.u32 %v5831, 16
        %v5835 = vrot.slane %v5833, 7
        %v5836 = vrot.slane %v5835, 1
        %5837 = vrot.lane.b32.xlu0 %v5836, 64
        %v5838 = vpop.permute.xlu0 %5837
        %vm5840 = vcmask 1040896
        %vm5841 = vmand %vm5840, %vm382
        %v5842 = vld [vmem:[#allocation7] sm:$0x1]
        %v5843 = vsel %vm5841, %v5838, %v5842
        %5844 = vst [vmem:[#allocation7] sm:$0x1] %v5843
        %v5845 = vld [vmem:[#allocation2] sm:$0x2]
        %v5848 = vunpack.c.l.s4 1966171168
        %v5849 = vunpack.c.0.s8 %v5848
        %v5850 = vlaneseq
        %v5851 = vshrl.u32 %v5850, 7
        %v5852 = vsub.s32 %v5849, %v5851
        %v5853 = vrot.slane %v5845, %v5852
        %v5854 = vcombine.high %v5853, %v5853
        %v5856 = vunpack.c.l.s4 1966171168
        %v5857 = vunpack.c.0.s8 %v5856
        %v5858 = vlaneseq
        %v5859 = vshrl.u32 %v5858, 7
        %v5860 = vsub.s32 %v5857, %v5859
        %v5861 = vrot.slane %v5854, %v5860
        %v5863 = vld [vmem:[#allocation7 + $0x1] sm:$0x1]
        %v5864 = vsel %vm3088, %v5861, %v5863
        %5865 = vst [vmem:[#allocation7 + $0x1] sm:$0x1] %v5864
        %v5866 = vld [vmem:[%s3349] sm:$0x1]
        %v5869 = vunpack.c.l.s4 1966171168
        %v5870 = vunpack.c.0.s8 %v5869
        %v5871 = vlaneseq
        %v5872 = vshrl.u32 %v5871, 7
        %v5873 = vsub.s32 %v5870, %v5872
        %v5874 = vrot.slane %v5866, %v5873
        %v5876 = vunpack.c.l.s4 1966171168
        %v5877 = vunpack.c.0.s8 %v5876
        %v5878 = vlaneseq
        %v5879 = vshrl.u32 %v5878, 7
        %v5880 = vsub.s32 %v5877, %v5879
        %v5881 = vrot.slane %v5874, %v5880
        %5882 = vrot.lane.b32.xlu0 %v5881, 32
        %v5883 = vpop.permute.xlu0 %5882
        %vm5885 = vcmask 778496
        %vm5886 = vmand %vm5885, %vm382
        %v5887 = vld [vmem:[#allocation7 + $0x1] sm:$0x1]
        %v5888 = vsel %vm5886, %v5883, %v5887
        %5889 = vst [vmem:[#allocation7 + $0x1] sm:$0x1] %v5888
        %v5890 = vld [vmem:[%s3349] sm:$0x1]
        %v5893 = vunpack.c.l.s4 1966171168
        %v5894 = vunpack.c.0.s8 %v5893
        %v5895 = vlaneseq
        %v5896 = vshrl.u32 %v5895, 7
        %v5897 = vsub.s32 %v5894, %v5896
        %v5898 = vrot.slane %v5890, %v5897
        %v5900 = vunpack.c.l.s4 1966171168
        %v5901 = vunpack.c.0.s8 %v5900
        %v5902 = vlaneseq
        %v5903 = vshrl.u32 %v5902, 7
        %v5904 = vsub.s32 %v5901, %v5903
        %v5905 = vrot.slane %v5898, %v5904
        %v5907 = vshrl.u32 %v5905, 16
        %v5909 = vrot.slane %v5907, 7
        %v5910 = vrot.slane %v5909, 1
        %5911 = vrot.lane.b32.xlu0 %v5910, 96
        %v5912 = vpop.permute.xlu0 %5911
        %v5913 = vrot.slane %v5912, 7
        %vm5914 = vcmask 785408
        %v5915 = vsel %vm5914, %v5913, %v5912
        %vm5917 = vcmask 1041152
        %vm5918 = vmand %vm5917, %vm382
        %vm5919 = vmand %vm3113, %vm3189
        %vm5920 = vmor %vm5919, %vm5918
        %v5921 = vld [vmem:[#allocation7 + $0x1] sm:$0x3]
        %v5922 = vsel %vm5920, %v5915, %v5921
        %5923 = vst [vmem:[#allocation7 + $0x1] sm:$0x3] %v5922
        %v5924 = vld [vmem:[%s3349] sm:$0x2]
        %v5927 = vunpack.c.l.s4 1966171168
        %v5928 = vunpack.c.0.s8 %v5927
        %v5929 = vlaneseq
        %v5930 = vshrl.u32 %v5929, 7
        %v5931 = vsub.s32 %v5928, %v5930
        %v5932 = vrot.slane %v5924, %v5931
        %v5933 = vcombine.high %v5932, %v5932
        %v5935 = vunpack.c.l.s4 1966171168
        %v5936 = vunpack.c.0.s8 %v5935
        %v5937 = vlaneseq
        %v5938 = vshrl.u32 %v5937, 7
        %v5939 = vsub.s32 %v5936, %v5938
        %v5940 = vrot.slane %v5933, %v5939
        %5941 = vrot.lane.b32.xlu0 %v5940, 32
        %v5942 = vpop.permute.xlu0 %5941
        %vm5944 = vmand %vm5692, %vm382
        %v5945 = vld [vmem:[#allocation7 + $0x2] sm:$0x1]
        %v5946 = vsel %vm5944, %v5942, %v5945
        %5947 = vst [vmem:[#allocation7 + $0x2] sm:$0x1] %v5946
        %v5948 = vld [vmem:[%s2548] sm:$0x1]
        %v5951 = vunpack.c.l.s4 1966171168
        %v5952 = vunpack.c.0.s8 %v5951
        %v5953 = vlaneseq
        %v5954 = vshrl.u32 %v5953, 7
        %v5955 = vsub.s32 %v5952, %v5954
        %v5956 = vrot.slane %v5948, %v5955
        %v5958 = vunpack.c.l.s4 1966171168
        %v5959 = vunpack.c.0.s8 %v5958
        %v5960 = vlaneseq
        %v5961 = vshrl.u32 %v5960, 7
        %v5962 = vsub.s32 %v5959, %v5961
        %v5963 = vrot.slane %v5956, %v5962
        %5964 = vrot.lane.b32.xlu0 %v5963, 64
        %v5965 = vpop.permute.xlu0 %5964
        %v5967 = vld [vmem:[#allocation7 + $0x2] sm:$0x1]
        %v5968 = vsel %vm5841, %v5965, %v5967
        %5969 = vst [vmem:[#allocation7 + $0x2] sm:$0x1] %v5968
        %v5970 = vld [vmem:[%s2548] sm:$0x1]
        %v5973 = vunpack.c.l.s4 1966171168
        %v5974 = vunpack.c.0.s8 %v5973
        %v5975 = vlaneseq
        %v5976 = vshrl.u32 %v5975, 7
        %v5977 = vsub.s32 %v5974, %v5976
        %v5978 = vrot.slane %v5970, %v5977
        %v5980 = vunpack.c.l.s4 1966171168
        %v5981 = vunpack.c.0.s8 %v5980
        %v5982 = vlaneseq
        %v5983 = vshrl.u32 %v5982, 7
        %v5984 = vsub.s32 %v5981, %v5983
        %v5985 = vrot.slane %v5978, %v5984
        %v5987 = vshrl.u32 %v5985, 16
        %v5989 = vrot.slane %v5987, 7
        %v5990 = vrot.slane %v5989, 1
        %v5992 = vld [vmem:[#allocation7 + $0x3] sm:$0x1]
        %v5993 = vsel %vm4849, %v5990, %v5992
        %5994 = vst [vmem:[#allocation7 + $0x3] sm:$0x1] %v5993
        %v5995 = vld [vmem:[%s2548] sm:$0x2]
        %v5998 = vunpack.c.l.s4 1966171168
        %v5999 = vunpack.c.0.s8 %v5998
        %v6000 = vlaneseq
        %v6001 = vshrl.u32 %v6000, 7
        %v6002 = vsub.s32 %v5999, %v6001
        %v6003 = vrot.slane %v5995, %v6002
        %v6004 = vcombine.high %v6003, %v6003
        %v6006 = vunpack.c.l.s4 1966171168
        %v6007 = vunpack.c.0.s8 %v6006
        %v6008 = vlaneseq
        %v6009 = vshrl.u32 %v6008, 7
        %v6010 = vsub.s32 %v6007, %v6009
        %v6011 = vrot.slane %v6004, %v6010
        %6012 = vrot.lane.b32.xlu0 %v6011, 64
        %v6013 = vpop.permute.xlu0 %6012
        %vm6015 = vcmask 778752
        %vm6016 = vmand %vm6015, %vm382
        %v6017 = vld [vmem:[#allocation7 + $0x3] sm:$0x1]
        %v6018 = vsel %vm6016, %v6013, %v6017
        %6019 = vst [vmem:[#allocation7 + $0x3] sm:$0x1] %v6018
        %v6020 = vld [vmem:[%s2990] sm:$0x1]
        %v6023 = vunpack.c.l.s4 1966171168
        %v6024 = vunpack.c.0.s8 %v6023
        %v6025 = vlaneseq
        %v6026 = vshrl.u32 %v6025, 7
        %v6027 = vsub.s32 %v6024, %v6026
        %v6028 = vrot.slane %v6020, %v6027
        %v6030 = vunpack.c.l.s4 1966171168
        %v6031 = vunpack.c.0.s8 %v6030
        %v6032 = vlaneseq
        %v6033 = vshrl.u32 %v6032, 7
        %v6034 = vsub.s32 %v6031, %v6033
        %v6035 = vrot.slane %v6028, %v6034
        %6036 = vrot.lane.b32.xlu0 %v6035, 96
        %v6037 = vpop.permute.xlu0 %6036
        %v6038 = vrot.slane %v6037, 7
        %v6039 = vsel %vm5914, %v6038, %v6037
        %v6041 = vld [vmem:[#allocation7 + $0x3] sm:$0x3]
        %v6042 = vsel %vm5920, %v6039, %v6041
        %6043 = vst [vmem:[#allocation7 + $0x3] sm:$0x3] %v6042
        %v6044 = vld [vmem:[%s2990] sm:$0x1]
        %v6047 = vunpack.c.l.s4 1966171168
        %v6048 = vunpack.c.0.s8 %v6047
        %v6049 = vlaneseq
        %v6050 = vshrl.u32 %v6049, 7
        %v6051 = vsub.s32 %v6048, %v6050
        %v6052 = vrot.slane %v6044, %v6051
        %v6054 = vunpack.c.l.s4 1966171168
        %v6055 = vunpack.c.0.s8 %v6054
        %v6056 = vlaneseq
        %v6057 = vshrl.u32 %v6056, 7
        %v6058 = vsub.s32 %v6055, %v6057
        %v6059 = vrot.slane %v6052, %v6058
        %v6061 = vshrl.u32 %v6059, 16
        %v6063 = vrot.slane %v6061, 7
        %v6064 = vrot.slane %v6063, 1
        %6065 = vrot.lane.b32.xlu0 %v6064, 32
        %v6066 = vpop.permute.xlu0 %6065
        %v6068 = vld [vmem:[#allocation7 + $0x4] sm:$0x1]
        %v6069 = vsel %vm5886, %v6066, %v6068
        %6070 = vst [vmem:[#allocation7 + $0x4] sm:$0x1] %v6069
        %v6071 = vld [vmem:[%s2990] sm:$0x2]
        %v6074 = vunpack.c.l.s4 1966171168
        %v6075 = vunpack.c.0.s8 %v6074
        %v6076 = vlaneseq
        %v6077 = vshrl.u32 %v6076, 7
        %v6078 = vsub.s32 %v6075, %v6077
        %v6079 = vrot.slane %v6071, %v6078
        %v6080 = vcombine.high %v6079, %v6079
        %v6082 = vunpack.c.l.s4 1966171168
        %v6083 = vunpack.c.0.s8 %v6082
        %v6084 = vlaneseq
        %v6085 = vshrl.u32 %v6084, 7
        %v6086 = vsub.s32 %v6083, %v6085
        %v6087 = vrot.slane %v6080, %v6086
        %6088 = vrot.lane.b32.xlu0 %v6087, 96
        %v6089 = vpop.permute.xlu0 %6088
        %v6091 = vld [vmem:[#allocation7 + $0x4] sm:$0x1]
        %v6092 = vsel %vm5918, %v6089, %v6091
        %6093 = vst [vmem:[#allocation7 + $0x4] sm:$0x1] %v6092
        %v6094 = vld [vmem:[%s4078] sm:$0x1]
        %v6095 = vld [vmem:[#allocation7 + $0x5] sm:$0x1]
        %v6096 = vsel %vm4849, %v6094, %v6095
        %6097 = vst [vmem:[#allocation7 + $0x5] sm:$0x1] %v6096
        %v6098 = vld [vmem:[%s4078] sm:$0x1]
        %v6101 = vunpack.c.l.s4 1966171168
        %v6102 = vunpack.c.0.s8 %v6101
        %v6103 = vlaneseq
        %v6104 = vshrl.u32 %v6103, 7
        %v6105 = vsub.s32 %v6102, %v6104
        %v6106 = vrot.slane %v6098, %v6105
        %v6108 = vunpack.c.l.s4 1966171168
        %v6109 = vunpack.c.0.s8 %v6108
        %v6110 = vlaneseq
        %v6111 = vshrl.u32 %v6110, 7
        %v6112 = vsub.s32 %v6109, %v6111
        %v6113 = vrot.slane %v6106, %v6112
        %v6115 = vshrl.u32 %v6113, 16
        %v6117 = vrot.slane %v6115, 7
        %v6118 = vrot.slane %v6117, 1
        %6119 = vrot.lane.b32.xlu0 %v6118, 64
        %v6120 = vpop.permute.xlu0 %6119
        %v6122 = vld [vmem:[#allocation7 + $0x5] sm:$0x1]
        %v6123 = vsel %vm5841, %v6120, %v6122
        %6124 = vst [vmem:[#allocation7 + $0x5] sm:$0x1] %v6123
        %v6125 = vld [vmem:[%s4078] sm:$0x2]
        %v6128 = vunpack.c.l.s4 1966171168
        %v6129 = vunpack.c.0.s8 %v6128
        %v6130 = vlaneseq
        %v6131 = vshrl.u32 %v6130, 7
        %v6132 = vsub.s32 %v6129, %v6131
        %v6133 = vrot.slane %v6125, %v6132
        %v6134 = vcombine.high %v6133, %v6133
        %v6136 = vunpack.c.l.s4 1966171168
        %v6137 = vunpack.c.0.s8 %v6136
        %v6138 = vlaneseq
        %v6139 = vshrl.u32 %v6138, 7
        %v6140 = vsub.s32 %v6137, %v6139
        %v6141 = vrot.slane %v6134, %v6140
        %v6143 = vld [vmem:[#allocation7 + $0x6] sm:$0x1]
        %v6144 = vsel %vm3088, %v6141, %v6143
        %6145 = vst [vmem:[#allocation7 + $0x6] sm:$0x1] %v6144
        %v6146 = vld [vmem:[#allocation7] sm:$0x7f]
        %v6148 = vcombine.high %v6146, %v6146
        %v6150 = vunpack.c.l.s4 1966171168
        %v6151 = vunpack.c.0.s8 %v6150
        %v6152 = vlaneseq
        %v6153 = vshrl.u32 %v6152, 7
        %v6154 = vsub.s32 %v6151, %v6153
        %v6155 = vrot.slane %v6146, %v6154
        %v6157 = vunpack.c.l.s4 1966171168
        %v6158 = vunpack.c.0.s8 %v6157
        %v6159 = vlaneseq
        %v6160 = vshrl.u32 %v6159, 7
        %v6161 = vsub.s32 %v6158, %v6160
        %v6162 = vrot.slane %v6148, %v6161
        %v6163 = vcombine.high %v6155, %v6155
        %v6164 = vcombine.high %v6162, %v6162
        %v6166 = vunpack.c.l.s4 1966171168
        %v6167 = vunpack.c.0.s8 %v6166
        %v6168 = vlaneseq
        %v6169 = vshrl.u32 %v6168, 7
        %v6170 = vsub.s32 %v6167, %v6169
        %v6171 = vrot.slane %v6155, %v6170
        %v6173 = vunpack.c.l.s4 1966171168
        %v6174 = vunpack.c.0.s8 %v6173
        %v6175 = vlaneseq
        %v6176 = vshrl.u32 %v6175, 7
        %v6177 = vsub.s32 %v6174, %v6176
        %v6178 = vrot.slane %v6162, %v6177
        %v6180 = vunpack.c.l.s4 1966171168
        %v6181 = vunpack.c.0.s8 %v6180
        %v6182 = vlaneseq
        %v6183 = vshrl.u32 %v6182, 7
        %v6184 = vsub.s32 %v6181, %v6183
        %v6185 = vrot.slane %v6163, %v6184
        %v6187 = vunpack.c.l.s4 1966171168
        %v6188 = vunpack.c.0.s8 %v6187
        %v6189 = vlaneseq
        %v6190 = vshrl.u32 %v6189, 7
        %v6191 = vsub.s32 %v6188, %v6190
        %v6192 = vrot.slane %v6164, %v6191
        %v6193 = vcombine.high %v6171, %v6171
        %v6194 = vcombine.high %v6178, %v6178
        %v6195 = vcombine.high %v6185, %v6185
        %v6302 = vunpack.c.l.b16 %v5711
        %v6303 = vunpack.c.l.b16 %v5712
        %v6304 = vunpack.c.l.b16 %v5713
        %v6305 = vunpack.c.l.b16 %v5714
        %v6306 = vunpack.c.l.b16 %v5715
        %v6307 = vunpack.c.l.b16 %v5716
        %v6308 = vunpack.c.l.b16 %v5717
        %v6309 = vunpack.c.l.b16 %v5718
        %v6310 = vunpack.c.l.b16 %v5719
        %v6311 = vunpack.c.l.b16 %v5720
        %v6312 = vunpack.c.l.b16 %v5721
        %v6313 = vunpack.c.l.b16 %v5722
        %v6314 = vunpack.c.l.b16 %v5723
        %v6315 = vunpack.c.l.b16 %v5724
        %v6316 = vunpack.c.l.b16 %v5725
        %v6317 = vunpack.c.l.b16 %v5726
        %v6318 = vunpack.c.l.b16 %v5727
        %v6319 = vunpack.c.l.b16 %v5728
        %v6320 = vunpack.c.l.b16 %v5729
        %v6321 = vunpack.c.l.b16 %v5730
        %v6322 = vunpack.c.l.b16 %v5731
        %v6323 = vunpack.c.l.b16 %v5732
        %v6324 = vunpack.c.l.b16 %v5733
        %v6325 = vunpack.c.l.b16 %v5734
        %v6326 = vunpack.c.l.b16 %v5735
        %v6327 = vunpack.c.l.b16 %v5736
        %v6328 = vunpack.c.l.b16 %v5737
        %v6329 = vunpack.c.l.b16 %v5738
        %v6330 = vunpack.c.l.b16 %v5739
        %v6331 = vunpack.c.l.b16 %v5740
        %v6332 = vunpack.c.l.b16 %v5741
        %v6333 = vunpack.c.l.b16 %v5742
        %v6334 = vunpack.c.l.b16 %v5743
        %v6335 = vunpack.c.l.b16 %v5744
        %v6336 = vunpack.c.l.b16 %v5745
        %v6337 = vunpack.c.l.b16 %v5746
        %v6338 = vunpack.c.l.b16 %v5747
        %v6339 = vunpack.c.l.b16 %v5748
        %v6340 = vunpack.c.l.b16 %v5749
        %v6341 = vunpack.c.l.b16 %v5750
        %v6342 = vunpack.c.l.b16 %v5751
        %v6343 = vunpack.c.l.b16 %v5752
        %v6344 = vunpack.c.l.b16 %v5753
        %v6345 = vunpack.c.l.b16 %v5754
        %v6346 = vunpack.c.l.b16 %v5755
        %v6347 = vunpack.c.l.b16 %v5756
        %v6348 = vunpack.c.l.b16 %v5757
        %v6349 = vunpack.c.l.b16 %v5758
        %v6350 = vunpack.c.l.b16 %v5759
        %v6351 = vunpack.c.l.b16 %v5760
        %v6352 = vunpack.c.l.b16 %v5761
        %v6353 = vunpack.c.l.b16 %v5762
        %v6354 = vunpack.c.l.b16 %v5763
        %v6355 = vunpack.c.l.b16 %v5764
        %v6356 = vunpack.c.l.b16 %v5765
        %v6357 = vunpack.c.l.b16 %v5766
        %v6358 = vunpack.c.l.b16 %v5767
        %v6359 = vunpack.c.l.b16 %v5768
        %v6360 = vunpack.c.l.b16 %v5769
        %v6361 = vunpack.c.l.b16 %v5770
        %v6362 = vunpack.c.l.b16 %v5771
        %v6363 = vunpack.c.l.b16 %v5772
        %v6364 = vunpack.c.l.b16 %v5773
        %v6365 = vunpack.c.l.b16 %v5774
        %v6366 = vunpack.c.l.b16 %v5775
        %v6367 = vunpack.c.l.b16 %v5776
        %v6368 = vunpack.c.l.b16 %v5777
        %v6369 = vunpack.c.l.b16 %v5778
        %v6370 = vunpack.c.l.b16 %v5779
        %v6371 = vunpack.c.l.b16 %v5780
        %v6372 = vunpack.c.l.b16 %v5781
        %v6373 = vunpack.c.l.b16 %v5782
        %v6374 = vunpack.c.l.b16 %v5783
        %v6375 = vunpack.c.l.b16 %v5784
        %v6376 = vunpack.c.l.b16 %v5785
        %v6377 = vunpack.c.l.b16 %v5786
        %v6378 = vunpack.c.l.b16 %v5787
        %v6379 = vunpack.c.l.b16 %v5788
        %v6380 = vunpack.c.l.b16 %v5789
        %v6381 = vunpack.c.l.b16 %v5790
        %v6382 = vunpack.c.l.b16 %v5791
        %v6383 = vunpack.c.l.b16 %v5792
        %v6384 = vunpack.c.l.b16 %v5793
        %v6385 = vunpack.c.l.b16 %v5794
        %v6386 = vunpack.c.l.b16 %v5795
        %v6387 = vunpack.c.l.b16 %v5796
        %v6388 = vunpack.c.l.b16 %v5797
        %v6389 = vunpack.c.l.b16 %v5798
        %v6390 = vunpack.c.l.b16 %v5799
        %v6391 = vunpack.c.l.b16 %v5800
        %v6392 = vunpack.c.l.b16 %v5801
        %v6393 = vunpack.c.l.b16 %v5802
        %v6394 = vunpack.c.l.b16 %v5803
        %v6395 = vunpack.c.l.b16 %v5804
        %v6396 = vunpack.c.l.b16 %v5805
        %v6397 = vunpack.c.l.b16 %v5806
        %v6398 = vunpack.c.l.b16 %v5807
        %v6399 = vunpack.c.l.b16 %v5808
        %v6400 = vunpack.c.l.b16 %v5809
        %v6401 = vunpack.c.l.b16 %v5810
        %v6402 = vpack.c.b16 %v6303, %v6302
        %v6403 = vpack.c.b16 %v6305, %v6304
        %v6404 = vpack.c.b16 %v6307, %v6306
        %v6405 = vpack.c.b16 %v6309, %v6308
        %v6406 = vpack.c.b16 %v6311, %v6310
        %v6407 = vpack.c.b16 %v6313, %v6312
        %v6408 = vpack.c.b16 %v6315, %v6314
        %v6409 = vpack.c.b16 %v6317, %v6316
        %v6410 = vpack.c.b16 %v6319, %v6318
        %v6411 = vpack.c.b16 %v6321, %v6320
        %v6412 = vpack.c.b16 %v6323, %v6322
        %v6413 = vpack.c.b16 %v6325, %v6324
        %v6414 = vpack.c.b16 %v6327, %v6326
        %v6415 = vpack.c.b16 %v6329, %v6328
        %v6416 = vpack.c.b16 %v6331, %v6330
        %v6417 = vpack.c.b16 %v6333, %v6332
        %v6418 = vpack.c.b16 %v6335, %v6334
        %v6419 = vpack.c.b16 %v6337, %v6336
        %v6420 = vpack.c.b16 %v6339, %v6338
        %v6421 = vpack.c.b16 %v6341, %v6340
        %v6422 = vpack.c.b16 %v6343, %v6342
        %v6423 = vpack.c.b16 %v6345, %v6344
        %v6424 = vpack.c.b16 %v6347, %v6346
        %v6425 = vpack.c.b16 %v6349, %v6348
        %v6426 = vpack.c.b16 %v6351, %v6350
        %v6427 = vpack.c.b16 %v6353, %v6352
        %v6428 = vpack.c.b16 %v6355, %v6354
        %v6429 = vpack.c.b16 %v6357, %v6356
        %v6430 = vpack.c.b16 %v6359, %v6358
        %v6431 = vpack.c.b16 %v6361, %v6360
        %v6432 = vpack.c.b16 %v6363, %v6362
        %v6433 = vpack.c.b16 %v6365, %v6364
        %v6434 = vpack.c.b16 %v6367, %v6366
        %v6435 = vpack.c.b16 %v6369, %v6368
        %v6436 = vpack.c.b16 %v6371, %v6370
        %v6437 = vpack.c.b16 %v6373, %v6372
        %v6438 = vpack.c.b16 %v6375, %v6374
        %v6439 = vpack.c.b16 %v6377, %v6376
        %v6440 = vpack.c.b16 %v6379, %v6378
        %v6441 = vpack.c.b16 %v6381, %v6380
        %v6442 = vpack.c.b16 %v6383, %v6382
        %v6443 = vpack.c.b16 %v6385, %v6384
        %v6444 = vpack.c.b16 %v6387, %v6386
        %v6445 = vpack.c.b16 %v6389, %v6388
        %v6446 = vpack.c.b16 %v6391, %v6390
        %v6447 = vpack.c.b16 %v6393, %v6392
        %v6448 = vpack.c.b16 %v6395, %v6394
        %v6449 = vpack.c.b16 %v6397, %v6396
        %v6450 = vpack.c.b16 %v6399, %v6398
        %v6451 = vpack.c.b16 %v6401, %v6400
        %vm6502 = vcmask 261120
        %v6504 = vsel %vm6502, %v6194, 0
        %6506 = vmatprep.subr.bf16.mxu0 0
        %6507 = vmatpush1.bf16.msra.mxu0 %v6409
        %6508 = vmatprep.subr.bf16.mxu0 0
        %6509 = vmatpush1.bf16.msra.mxu0 %v6408
        %6510 = vmatprep.subr.bf16.mxu0 0
        %6511 = vmatpush1.bf16.msra.mxu0 %v6407
        %6512 = vmatprep.subr.bf16.mxu0 0
        %6513 = vmatpush1.bf16.msra.mxu0 %v6406
        %6514 = vmatprep.subr.bf16.mxu0 0
        %6515 = vmatpush1.bf16.msra.mxu0 %v6405
        %6516 = vmatprep.subr.bf16.mxu0 0
        %6517 = vmatpush1.bf16.msra.mxu0 %v6404
        %6518 = vmatprep.subr.bf16.mxu0 0
        %6519 = vmatpush1.bf16.msra.mxu0 %v6403
        %6520 = vmatprep.subr.bf16.mxu0 0
        %6521 = vmatpush1.bf16.msra.mxu0 %v6402
        %6522 = vmatprep.subr.bf16.mxu0 0
        %6523 = vmatpush2.bf16.msra.mxu0 %v6417
        %6524 = vmatprep.subr.bf16.mxu0 0
        %6525 = vmatpush2.bf16.msra.mxu0 %v6416
        %6526 = vmatprep.subr.bf16.mxu0 0
        %6527 = vmatpush2.bf16.msra.mxu0 %v6415
        %6528 = vmatprep.subr.bf16.mxu0 0
        %6529 = vmatpush2.bf16.msra.mxu0 %v6414
        %6530 = vmatprep.subr.bf16.mxu0 0
        %6531 = vmatpush2.bf16.msra.mxu0 %v6413
        %6532 = vmatprep.subr.bf16.mxu0 0
        %6533 = vmatpush2.bf16.msra.mxu0 %v6412
        %6534 = vmatprep.subr.bf16.mxu0 0
        %6535 = vmatpush2.bf16.msra.mxu0 %v6411
        %6536 = vmatprep.subr.bf16.mxu0 0
        %6537 = vmatpush2.bf16.msra.mxu0 %v6410
        %6538 = vmatprep.mubr.bf16.mxu0 %v6185
        %6539 = vmatmul.mubr.bf16.gmra.mxu0 %v6171
        %v6540 = vpop.f32.mrf.mxu0
        %v6541 = vadd.f32 %v5811, %v6540
        %v6542 = vpop.f32.mrf.mxu0
        %v6543 = vpop.f32.mrf.mxu0
        %v6544 = vpop.f32.mrf.mxu0
        %6545 = vdwg.mxu0
        %6546 = vmatprep.subr.bf16.mxu0 0
        %6547 = vmatpush1.bf16.msra.mxu0 %v6425
        %6548 = vmatprep.subr.bf16.mxu0 0
        %6549 = vmatpush1.bf16.msra.mxu0 %v6424
        %6550 = vmatprep.subr.bf16.mxu0 0
        %6551 = vmatpush1.bf16.msra.mxu0 %v6423
        %6552 = vmatprep.subr.bf16.mxu0 0
        %6553 = vmatpush1.bf16.msra.mxu0 %v6422
        %6554 = vmatprep.subr.bf16.mxu0 0
        %6555 = vmatpush1.bf16.msra.mxu0 %v6421
        %6556 = vmatprep.subr.bf16.mxu0 0
        %6557 = vmatpush1.bf16.msra.mxu0 %v6420
        %6558 = vmatprep.subr.bf16.mxu0 0
        %6559 = vmatpush1.bf16.msra.mxu0 %v6419
        %6560 = vmatprep.subr.bf16.mxu0 0
        %6561 = vmatpush1.bf16.msra.mxu0 %v6418
        %6562 = vmatprep.subr.bf16.mxu0 0
        %6563 = vmatpush2.bf16.msra.mxu0 %v6433
        %6564 = vmatprep.subr.bf16.mxu0 0
        %6565 = vmatpush2.bf16.msra.mxu0 %v6432
        %6566 = vmatprep.subr.bf16.mxu0 0
        %6567 = vmatpush2.bf16.msra.mxu0 %v6431
        %6568 = vmatprep.subr.bf16.mxu0 0
        %6569 = vmatpush2.bf16.msra.mxu0 %v6430
        %6570 = vmatprep.subr.bf16.mxu0 0
        %6571 = vmatpush2.bf16.msra.mxu0 %v6429
        %6572 = vmatprep.subr.bf16.mxu0 0
        %6573 = vmatpush2.bf16.msra.mxu0 %v6428
        %6574 = vmatprep.subr.bf16.mxu0 0
        %6575 = vmatpush2.bf16.msra.mxu0 %v6427
        %6576 = vmatprep.subr.bf16.mxu0 0
        %6577 = vmatpush2.bf16.msra.mxu0 %v6426
        %6578 = vmatprep.mubr.bf16.mxu0 %v6195
        %6579 = vmatmul.mubr.bf16.gmra.mxu0 %v6193
        %v6580 = vpop.f32.mrf.mxu0
        %v6581 = vadd.f32 %v6541, %v6580
        %v6582 = vpop.f32.mrf.mxu0
        %v6583 = vpop.f32.mrf.mxu0
        %v6584 = vpop.f32.mrf.mxu0
        %6585 = vdwg.mxu0
        %6586 = vmatprep.subr.bf16.mxu0 0
        %6587 = vmatpush1.bf16.msra.mxu0 %v6441
        %6588 = vmatprep.subr.bf16.mxu0 0
        %6589 = vmatpush1.bf16.msra.mxu0 %v6440
        %6590 = vmatprep.subr.bf16.mxu0 0
        %6591 = vmatpush1.bf16.msra.mxu0 %v6439
        %6592 = vmatprep.subr.bf16.mxu0 0
        %6593 = vmatpush1.bf16.msra.mxu0 %v6438
        %6594 = vmatprep.subr.bf16.mxu0 0
        %6595 = vmatpush1.bf16.msra.mxu0 %v6437
        %6596 = vmatprep.subr.bf16.mxu0 0
        %6597 = vmatpush1.bf16.msra.mxu0 %v6436
        %6598 = vmatprep.subr.bf16.mxu0 0
        %6599 = vmatpush1.bf16.msra.mxu0 %v6435
        %6600 = vmatprep.subr.bf16.mxu0 0
        %6601 = vmatpush1.bf16.msra.mxu0 %v6434
        %6602 = vmatprep.subr.bf16.mxu0 0
        %6603 = vmatpush2.bf16.msra.mxu0 %v6449
        %6604 = vmatprep.subr.bf16.mxu0 0
        %6605 = vmatpush2.bf16.msra.mxu0 %v6448
        %6606 = vmatprep.subr.bf16.mxu0 0
        %6607 = vmatpush2.bf16.msra.mxu0 %v6447
        %6608 = vmatprep.subr.bf16.mxu0 0
        %6609 = vmatpush2.bf16.msra.mxu0 %v6446
        %6610 = vmatprep.subr.bf16.mxu0 0
        %6611 = vmatpush2.bf16.msra.mxu0 %v6445
        %6612 = vmatprep.subr.bf16.mxu0 0
        %6613 = vmatpush2.bf16.msra.mxu0 %v6444
        %6614 = vmatprep.subr.bf16.mxu0 0
        %6615 = vmatpush2.bf16.msra.mxu0 %v6443
        %6616 = vmatprep.subr.bf16.mxu0 0
        %6617 = vmatpush2.bf16.msra.mxu0 %v6442
        %6618 = vmatprep.mubr.bf16.mxu0 %v6192
        %6619 = vmatmul.mubr.bf16.gmra.mxu0 %v6178
        %v6620 = vpop.f32.mrf.mxu0
        %v6621 = vadd.f32 %v6581, %v6620
        %v6622 = vpop.f32.mrf.mxu0
        %v6623 = vpop.f32.mrf.mxu0
        %v6624 = vpop.f32.mrf.mxu0
        %6625 = vdwg.mxu0
        %6626 = vmatprep.subr.bf16.mxu0 0
        %6627 = vmatpush1.bf16.msra.mxu0 0
        %6628 = vmatprep.subr.bf16.mxu0 0
        %6629 = vmatpush1.bf16.msra.mxu0 0
        %6630 = vmatprep.subr.bf16.mxu0 0
        %6631 = vmatpush1.bf16.msra.mxu0 0
        %6632 = vmatprep.subr.bf16.mxu0 0
        %6633 = vmatpush1.bf16.msra.mxu0 0
        %6634 = vmatprep.subr.bf16.mxu0 0
        %6635 = vmatpush1.bf16.msra.mxu0 0
        %6636 = vmatprep.subr.bf16.mxu0 0
        %6637 = vmatpush1.bf16.msra.mxu0 0
        %6638 = vmatprep.subr.bf16.mxu0 0
        %6639 = vmatpush1.bf16.msra.mxu0 %v6451
        %6640 = vmatprep.subr.bf16.mxu0 0
        %6641 = vmatpush1.bf16.msra.mxu0 %v6450
        %6642 = vmatprep.subr.bf16.mxu0 0
        %6643 = vmatpush2.bf16.msra.mxu0 0
        %6644 = vmatprep.subr.bf16.mxu0 0
        %6645 = vmatpush2.bf16.msra.mxu0 0
        %6646 = vmatprep.subr.bf16.mxu0 0
        %6647 = vmatpush2.bf16.msra.mxu0 0
        %6648 = vmatprep.subr.bf16.mxu0 0
        %6649 = vmatpush2.bf16.msra.mxu0 0
        %6650 = vmatprep.subr.bf16.mxu0 0
        %6651 = vmatpush2.bf16.msra.mxu0 0
        %6652 = vmatprep.subr.bf16.mxu0 0
        %6653 = vmatpush2.bf16.msra.mxu0 0
        %6654 = vmatprep.subr.bf16.mxu0 0
        %6655 = vmatpush2.bf16.msra.mxu0 0
        %6656 = vmatprep.subr.bf16.mxu0 0
        %6657 = vmatpush2.bf16.msra.mxu0 0
        %6658 = vmatprep.mubr.bf16.mxu0 0
        %6659 = vmatmul.mubr.bf16.gmra.mxu0 %v6504
        %v6660 = vpop.f32.mrf.mxu0
        %v6661 = vadd.f32 %v6621, %v6660
        %v6662 = vpop.f32.mrf.mxu0
        %v6663 = vpop.f32.mrf.mxu0
        %v6664 = vpop.f32.mrf.mxu0
        %6665 = vdwg.mxu0
        %vm6666 = vcmp.ge.f32.partialorder %v6661, 0.0
        %v6667 = vmul.f32 %v6661, 0.2
        %v6668 = vsel %vm6666, %v6661, %v6667
        %6669 = vst [vmem:[%s354] sm:$0x1] %v6668
        %s6670 = sand.u32 %s227, 1
        %s6671 = scalar_lea.sflag [#allocation10], %s6670
        %s6672 = sand.u32 %s227, 1
        %s6673 = scalar_lea.vmem [#allocation13], %s6672
        // Predicated region
        $region65: #{tpu_custom_call.1} parent=55 // pred_check
          %p6674 = pneg %p237
        $region66: #{tpu_custom_call.1} parent=55 // pred_check_branch
          %6676 = sbr.rel (%p6674) target = $region68
        $region67: #{tpu_custom_call.1} parent=55 // pred_region
          %s6678 = ssub.s32 16, 16
          %6679 = vsyncadd %s6671, %s6678
          %s6680 = smul.addr %s25, 16
          %s6681 = scalar_lea.hbm %s9, %s6680
          %s6683 = sshll.u32 %s6673, 4
          %s6684 = int_to_ptr.vmem [resolvable:$true] %s6683
          %6686 = dma.vmem_to_hbm [thread:$0]  %s6684, 16, %s6681, %s6671
        $region68: #{tpu_custom_call.1} parent=55 // pred_fallthru
          _
      $region56: #{tpu_custom_call.1} parent=5 // pred_fallthru
        _
      %p6687 = scmp.le.s32.totalorder 2, %s20
      // Predicated region
      $region69: #{tpu_custom_call.1} parent=5 // pred_check
        %p6688 = pneg %p6687
      $region70: #{tpu_custom_call.1} parent=5 // pred_check_branch
        %6690 = sbr.rel (%p6688) target = $region72
      $region71: #{tpu_custom_call.1} parent=5 // pred_region
        %s6691 = ssub.s32 %s20, 2
        // Predicated region
        $region73: #{tpu_custom_call.1} parent=71 // pred_check
          %p6692 = pneg %p243
        $region74: #{tpu_custom_call.1} parent=71 // pred_check_branch
          %6694 = sbr.rel (%p6692) target = $region76
        $region75: #{tpu_custom_call.1} parent=71 // pred_region
          %s6695 = sand.u32 %s228, 1
          %s6696 = scalar_lea.sflag [#allocation10], %s6695
          %s6697 = sand.u32 %s228, 1
          %s6698 = scalar_lea.vmem [#allocation13], %s6697
          %6699 = dma.done %s6696, 16
        $region76: #{tpu_custom_call.1} parent=71 // pred_fallthru
          _
      $region72: #{tpu_custom_call.1} parent=5 // pred_fallthru
        _
    $region6: #{tpu_custom_call.1} parent=1 // loop_footer
      %s24 = sadd.s32 1, %s20
    $region7: #{tpu_custom_call.1} parent=1 // loop_footer_branch
      %19 = sbr.rel target = $region3
    $region8: #{tpu_custom_call.1} parent=1 // loop_exit
      _
    %6700 = vsyncpa [#allocation9], 1
    %s6701 = scalar_lea.sflag [#allocation9], 1
    %6702 = vsyncpa %s6701, 1
    %6703 = vsyncpa [#allocation12], 1
    %6704 = vsyncpa [#allocation10], 1
    %s6705 = scalar_lea.sflag [#allocation10], 1
    %6706 = vsyncpa %s6705, 1

</llo_original>
